<compile_context>
chip_gen: v5e
topology: v5e:2x2
jax: 0.10.0
libtpu: 0.0.40
codegen_flags: <defaults>
</compile_context>

<pallas_src>
import functools

import jax
import jax.numpy as jnp
import numpy as np
from jax.experimental import pallas as pl
from jax.experimental.pallas import tpu as pltpu

VOCAB = 28          # _char_vocab_size
EMB = 50            # emb_size
HID = 500           # lstm_size
HP = 512            # padded hidden (lane aligned)
VP = 128            # padded vocab  (lane aligned)
G4 = 4 * HP         # fused gate width (i, f, g, o)


# --------------------------- Pallas kernels ---------------------------------

def _linear_kernel(x_ref, w_ref, b_ref, o_ref):
    o_ref[...] = (jnp.dot(x_ref[...], w_ref[...],
                          preferred_element_type=jnp.float32) + b_ref[...])


def linear_pallas(x, w_t, b_row):
    """y = x @ w_t + b_row.  x: (N, In), w_t: (In, Out), b_row: (1, Out)."""
    N, In = x.shape
    Out = w_t.shape[1]
    return pl.pallas_call(
        _linear_kernel,
        out_shape=jax.ShapeDtypeStruct((N, Out), jnp.float32),
        grid=(1,),
        in_specs=[pl.BlockSpec((N, In), lambda i: (0, 0)),
                  pl.BlockSpec((In, Out), lambda i: (0, 0)),
                  pl.BlockSpec((1, Out), lambda i: (0, 0))],
        out_specs=pl.BlockSpec((N, Out), lambda i: (0, 0)),
    )(x, w_t, b_row)


def _gates_to_hc(gates, c_prev):
    """Fused gate slab (B, 4HP) -> (h_new, c_new).  PyTorch order i,f,g,o."""
    i_g = jax.nn.sigmoid(gates[:, 0 * HP:1 * HP])
    f_g = jax.nn.sigmoid(gates[:, 1 * HP:2 * HP])
    g_g = jnp.tanh(gates[:, 2 * HP:3 * HP])
    o_g = jax.nn.sigmoid(gates[:, 3 * HP:4 * HP])
    c_new = f_g * c_prev + i_g * g_g
    h_new = o_g * jnp.tanh(c_new)
    return h_new, c_new


def _lstm_enc_kernel(xp_ref, whh_ref, clast_ref, h_scr, c_scr):
    """Encoder recurrence.  x-projection precomputed; only c_last emitted."""
    t = pl.program_id(0)

    @pl.when(t == 0)
    def _():
        h_scr[...] = jnp.zeros_like(h_scr)
        c_scr[...] = jnp.zeros_like(c_scr)

    gates = xp_ref[0] + jnp.dot(h_scr[...], whh_ref[...],
                                preferred_element_type=jnp.float32)
    h_new, c_new = _gates_to_hc(gates, c_scr[...])
    h_scr[...] = h_new
    c_scr[...] = c_new

    @pl.when(t == pl.num_programs(0) - 1)
    def _():
        clast_ref[...] = c_new


def lstm_encoder(xproj, w_hh_t):
    """xproj: (T, B, 4HP) pre-activations.  Returns c_last (B, HP)."""
    T, B, _ = xproj.shape
    return pl.pallas_call(
        _lstm_enc_kernel,
        out_shape=jax.ShapeDtypeStruct((B, HP), jnp.float32),
        grid=(T,),
        in_specs=[pl.BlockSpec((1, B, G4), lambda t: (t, 0, 0)),
                  pl.BlockSpec((HP, G4), lambda t: (0, 0))],
        out_specs=pl.BlockSpec((B, HP), lambda t: (0, 0)),
        scratch_shapes=[pltpu.VMEM((B, HP), jnp.float32),
                        pltpu.VMEM((B, HP), jnp.float32)],
        compiler_params=pltpu.CompilerParams(
            dimension_semantics=("arbitrary",)),   # sequential recurrence
    )(xproj, w_hh_t)


def _lstm_dec_train_kernel(xp_ref, whh_ref, c0_ref, outw_ref, outb_ref,
                           logits_ref, h_scr, c_scr):
    """Teacher-forced decoder step + fused output_fc epilogue (lane-dense)."""
    t = pl.program_id(0)

    @pl.when(t == 0)
    def _():
        h_scr[...] = jnp.zeros_like(h_scr)
        c_scr[...] = c0_ref[...]

    gates = xp_ref[0] + jnp.dot(h_scr[...], whh_ref[...],
                                preferred_element_type=jnp.float32)
    h_new, c_new = _gates_to_hc(gates, c_scr[...])
    h_scr[...] = h_new
    c_scr[...] = c_new
    logits_ref[0] = (jnp.dot(h_new, outw_ref[...],
                             preferred_element_type=jnp.float32)
                     + outb_ref[...])


def lstm_decoder_train(xproj, w_hh_t, c0, out_w_t, out_b):
    T, B, _ = xproj.shape
    return pl.pallas_call(
        _lstm_dec_train_kernel,
        out_shape=jax.ShapeDtypeStruct((T, B, VP), jnp.float32),
        grid=(T,),
        in_specs=[pl.BlockSpec((1, B, G4), lambda t: (t, 0, 0)),
                  pl.BlockSpec((HP, G4), lambda t: (0, 0)),
                  pl.BlockSpec((B, HP), lambda t: (0, 0)),
                  pl.BlockSpec((HP, VP), lambda t: (0, 0)),
                  pl.BlockSpec((1, VP), lambda t: (0, 0))],
        out_specs=pl.BlockSpec((1, B, VP), lambda t: (t, 0, 0)),
        scratch_shapes=[pltpu.VMEM((B, HP), jnp.float32),
                        pltpu.VMEM((B, HP), jnp.float32)],
        compiler_params=pltpu.CompilerParams(
            dimension_semantics=("arbitrary",)),
    )(xproj, w_hh_t, c0, out_w_t, out_b)


def _lstm_dec_eval_kernel(wihe_ref, whh_ref, mb_ref, c0_ref, e0_ref,
                          outw_ref, outb_ref, emb_ref,
                          logits_ref, h_scr, c_scr, e_scr):
    """One greedy-decode step; weights stay VMEM-resident across grid=(50,)."""
    t = pl.program_id(0)

    @pl.when(t == 0)
    def _():
        h_scr[...] = jnp.zeros_like(h_scr)
        c_scr[...] = c0_ref[...]
        e_scr[...] = e0_ref[...]

    # gates = emb @ W_ih[:EMB] + h_prev @ W_hh + (msg @ W_ih[EMB:] + b)
    gates = (jnp.dot(e_scr[...], wihe_ref[...],
                     preferred_element_type=jnp.float32)
             + jnp.dot(h_scr[...], whh_ref[...],
                       preferred_element_type=jnp.float32)
             + mb_ref[...])
    h_new, c_new = _gates_to_hc(gates, c_scr[...])
    h_scr[...] = h_new
    c_scr[...] = c_new

    logits = (jnp.dot(h_new, outw_ref[...],
                      preferred_element_type=jnp.float32)
              + outb_ref[...])                    # (B, VP); padded lanes = -1e9
    logits_ref[0] = logits

    # greedy argmax (first-max semantics) -> one-hot -> next-step embedding
    B = logits.shape[0]
    ids = jax.lax.broadcasted_iota(jnp.int32, (B, VP), 1)
    mx = jnp.max(logits, axis=-1, keepdims=True)
    first = jnp.min(jnp.where(logits == mx, ids, VP), axis=-1, keepdims=True)
    onehot = (ids == first).astype(jnp.float32)
    e_scr[...] = jnp.dot(onehot, emb_ref[...],
                         preferred_element_type=jnp.float32)


def lstm_decoder_greedy(wih_emb_t, w_hh_t, msg_bias, c0, e0,
                        out_w_t, out_b, emb_pad, num_steps):
    B = c0.shape[0]
    return pl.pallas_call(
        _lstm_dec_eval_kernel,
        out_shape=jax.ShapeDtypeStruct((num_steps, B, VP), jnp.float32),
        grid=(num_steps,),
        in_specs=[pl.BlockSpec((EMB, G4), lambda t: (0, 0)),
                  pl.BlockSpec((HP, G4), lambda t: (0, 0)),
                  pl.BlockSpec((B, G4), lambda t: (0, 0)),
                  pl.BlockSpec((B, HP), lambda t: (0, 0)),
                  pl.BlockSpec((B, EMB), lambda t: (0, 0)),
                  pl.BlockSpec((HP, VP), lambda t: (0, 0)),
                  pl.BlockSpec((1, VP), lambda t: (0, 0)),
                  pl.BlockSpec((VP, EMB), lambda t: (0, 0))],
        out_specs=pl.BlockSpec((1, B, VP), lambda t: (t, 0, 0)),
        scratch_shapes=[pltpu.VMEM((B, HP), jnp.float32),
                        pltpu.VMEM((B, HP), jnp.float32),
                        pltpu.VMEM((B, EMB), jnp.float32)],
        compiler_params=pltpu.CompilerParams(
            dimension_semantics=("arbitrary",)),
    )(wih_emb_t, w_hh_t, msg_bias, c0, e0, out_w_t, out_b, emb_pad)


# --------------------------- parameters --------------------------------------

def init_params(key, message_size):
    """Raw parameters in PyTorch conventions (unpadded)."""
    ks = jax.random.split(key, 13)
    s = 0.1
    return {
        "emb":      jax.random.normal(ks[0], (VOCAB, EMB)) * s,
        "enc_w_ih": jax.random.normal(ks[1], (4 * HID, EMB)) * s,
        "enc_w_hh": jax.random.normal(ks[2], (4 * HID, HID)) * s,
        "enc_b_ih": jax.random.normal(ks[3], (4 * HID,)) * s,
        "enc_b_hh": jax.random.normal(ks[4], (4 * HID,)) * s,
        "fc_w":     jax.random.normal(ks[5], (HID, message_size + HID)) * s,
        "fc_b":     jax.random.normal(ks[6], (HID,)) * s,
        "dec_w_ih": jax.random.normal(ks[7], (4 * HID, message_size + EMB)) * s,
        "dec_w_hh": jax.random.normal(ks[8], (4 * HID, HID)) * s,
        "dec_b_ih": jax.random.normal(ks[9], (4 * HID,)) * s,
        "dec_b_hh": jax.random.normal(ks[10], (4 * HID,)) * s,
        "out_w":    jax.random.normal(ks[11], (VOCAB, HID)) * s,
        "out_b":    jax.random.normal(ks[12], (VOCAB,)) * s,
    }


def prep_params(p):
    """One-time (hoisted) transpose + pad of params into kernel operands."""
    def gate_pad_t(w):                       # (4H, In) -> (In, 4HP)
        in_dim = w.shape[1]
        w4 = jnp.transpose(w.reshape(4, HID, in_dim), (2, 0, 1))  # (In, 4, H)
        w4 = jnp.pad(w4, ((0, 0), (0, 0), (0, HP - HID)))
        return w4.reshape(in_dim, G4)

    def gate_pad_b(b_ih, b_hh):              # -> (1, 4HP)
        b = (b_ih + b_hh).reshape(4, HID)
        b = jnp.pad(b, ((0, 0), (0, HP - HID)))
        return b.reshape(1, G4)

    def hh_pad(w_hh):                        # (4H, H) -> (HP, 4HP)
        return jnp.pad(gate_pad_t(w_hh), ((0, HP - HID), (0, 0)))

    # enc_dec_fc: input order is [from_c | message]; accept padded from_c.
    fc_t = p["fc_w"].T                                               # (H+M, H)
    fc_c = jnp.pad(fc_t[:HID], ((0, HP - HID), (0, HP - HID)))       # (HP, HP)
    fc_m = jnp.pad(fc_t[HID:], ((0, 0), (0, HP - HID)))              # (M, HP)
    fc_w_t = jnp.concatenate([fc_c, fc_m], axis=0)                   # (HP+M, HP)
    fc_b = jnp.pad(p["fc_b"], (0, HP - HID)).reshape(1, HP)

    # output_fc: pad to (HP, VP); bias pads at -1e9 so in-kernel argmax never
    # picks a padded class (padded logits are sliced off outside anyway).
    out_w_t = jnp.pad(p["out_w"].T, ((0, HP - HID), (0, VP - VOCAB)))
    out_b = jnp.concatenate(
        [p["out_b"], jnp.full((VP - VOCAB,), -1e9, jnp.float32)]).reshape(1, VP)

    dec_wih_t = gate_pad_t(p["dec_w_ih"])                            # (E+M, 4HP)

    return {
        "emb": p["emb"],
        "emb_pad": jnp.pad(p["emb"], ((0, VP - VOCAB), (0, 0))),     # (VP, EMB)
        "enc_wih_t": gate_pad_t(p["enc_w_ih"]),                      # (EMB, 4HP)
        "enc_whh_t": hh_pad(p["enc_w_hh"]),                          # (HP, 4HP)
        "enc_b": gate_pad_b(p["enc_b_ih"], p["enc_b_hh"]),
        "fc_w_t": fc_w_t, "fc_b": fc_b,
        "dec_wih_t": dec_wih_t,
        "dec_wih_emb_t": dec_wih_t[:EMB],                            # (EMB, 4HP)
        "dec_wih_msg_t": dec_wih_t[EMB:],                            # (MSG, 4HP)
        "dec_whh_t": hh_pad(p["dec_w_hh"]),                          # (HP, 4HP)
        "dec_b": gate_pad_b(p["dec_b_ih"], p["dec_b_hh"]),
        "out_w_t": out_w_t, "out_b": out_b,
    }


# --------------------------- Decoder module ---------------------------------

def _encode(pp, from_ids, message):
    """Encoder LSTM + enc_dec_fc -> decoder initial c (padded to HP)."""
    B, S = from_ids.shape
    from_emb = jnp.take(pp["emb"], from_ids.T, axis=0)               # (S, B, E)
    xproj = linear_pallas(from_emb.reshape(S * B, EMB),
                          pp["enc_wih_t"], pp["enc_b"]).reshape(S, B, G4)
    from_c = lstm_encoder(xproj, pp["enc_whh_t"])                    # (B, HP)
    fc_in = jnp.concatenate([from_c, message], axis=1)               # (B, HP+M)
    dec_c0 = linear_pallas(fc_in, pp["fc_w_t"], pp["fc_b"])          # (B, HP)
    return dec_c0


@jax.jit
def decoder_forward_train(pp, from_ids, message, to_ids):
    """Training branch (teacher forcing).  Returns (S_to-1, B, VOCAB)."""
    B = from_ids.shape[0]
    dec_c0 = _encode(pp, from_ids, message)
    Td = to_ids.shape[1] - 1
    to_emb = jnp.take(pp["emb"], to_ids[:, :-1].T, axis=0)           # (Td, B, E)
    msg = jnp.broadcast_to(message[None], (Td, B, message.shape[1]))
    dec_in = jnp.concatenate([to_emb, msg], axis=2)                  # (Td, B, E+M)
    xproj = linear_pallas(dec_in.reshape(Td * B, -1),
                          pp["dec_wih_t"], pp["dec_b"]).reshape(Td, B, G4)
    logits = lstm_decoder_train(xproj, pp["dec_whh_t"], dec_c0,
                                pp["out_w_t"], pp["out_b"])          # (Td,B,VP)
    return logits[:, :, :VOCAB]


@functools.partial(jax.jit, static_argnames=("num_steps",))
def decoder_forward_eval(pp, from_ids, message, num_steps=50):
    """Eval branch: greedy autoregressive decode in ONE fused kernel."""
    B = from_ids.shape[0]
    dec_c0 = _encode(pp, from_ids, message)
    # Message's gate contribution + bias is constant across steps: hoist it.
    msg_bias = linear_pallas(message, pp["dec_wih_msg_t"], pp["dec_b"])
    start_emb = jnp.broadcast_to(pp["emb"][26][None, :], (B, EMB))
    logits = lstm_decoder_greedy(pp["dec_wih_emb_t"], pp["dec_whh_t"],
                                 msg_bias, dec_c0, start_emb,
                                 pp["out_w_t"], pp["out_b"], pp["emb_pad"],
                                 num_steps)                          # (T,B,VP)
    return logits[:, :, :VOCAB]


# --------------------------- pure-JAX reference ------------------------------

def _lstm_ref(x_seq, w_ih, w_hh, b_ih, b_hh, h0, c0):
    def step(carry, x_t):
        h, c = carry
        gates = x_t @ w_ih.T + b_ih + h @ w_hh.T + b_hh
        i, f, g, o = jnp.split(gates, 4, axis=-1)
        c = jax.nn.sigmoid(f) * c + jax.nn.sigmoid(i) * jnp.tanh(g)
        h = jax.nn.sigmoid(o) * jnp.tanh(c)
        return (h, c), h
    (h, c), hs = jax.lax.scan(step, (h0, c0), x_seq)
    return hs, h, c


def ref_forward_train(p, from_ids, message, to_ids):
    B = from_ids.shape[0]
    z = jnp.zeros((B, HID), jnp.float32)
    from_emb = p["emb"][from_ids.T]
    _, _, from_c = _lstm_ref(from_emb, p["enc_w_ih"], p["enc_w_hh"],
                             p["enc_b_ih"], p["enc_b_hh"], z, z)
    dec_c0 = jnp.concatenate([from_c, message], 1) @ p["fc_w"].T + p["fc_b"]
    Td = to_ids.shape[1] - 1
    to_emb = p["emb"][to_ids[:, :-1].T]
    msg = jnp.broadcast_to(message[None], (Td, B, message.shape[1]))
    dec_in = jnp.concatenate([to_emb, msg], 2)
    hs, _, _ = _lstm_ref(dec_in, p["dec_w_ih"], p["dec_w_hh"],
                         p["dec_b_ih"], p["dec_b_hh"], z, dec_c0)
    return hs @ p["out_w"].T + p["out_b"]


# --------------------------------- main --------------------------------------

if __name__ == "__main__":
    B, S_FROM, S_TO, MSG = 2, 8, 8, 32   # batch, from-seq, to-seq, message_size

    key = jax.random.PRNGKey(0)
    k_p, k_f, k_t, k_m = jax.random.split(key, 4)
    params = init_params(k_p, MSG)
    pp = prep_params(params)             # one-time weight transpose / pad
    from_ids = jax.random.randint(k_f, (B, S_FROM), 0, VOCAB, dtype=jnp.int32)
    to_ids = jax.random.randint(k_t, (B, S_TO), 0, VOCAB, dtype=jnp.int32)
    message = jax.random.normal(k_m, (B, MSG), dtype=jnp.float32)

    # Training-mode forward (teacher forcing).
    logits_train = jax.block_until_ready(
        decoder_forward_train(pp, from_ids, message, to_ids))
    assert logits_train.shape == (S_TO - 1, B, VOCAB)

    ref = ref_forward_train(params, from_ids, message, to_ids)
    np.testing.assert_allclose(np.asarray(logits_train), np.asarray(ref),
                               rtol=3e-2, atol=3e-3)

    # Eval-mode forward (50-step greedy decode fused into one kernel).
    logits_eval = jax.block_until_ready(
        decoder_forward_eval(pp, from_ids, message, num_steps=50))
    assert logits_eval.shape == (50, B, VOCAB)
    assert bool(jnp.all(jnp.isfinite(logits_eval)))

    print("KERNEL_OK")
</pallas_src>

<mosaic_0001>
module attributes {stable_mosaic.version = 11 : i64} {
  func.func @_linear_kernel(%arg0: i32, %arg1: memref<16x50xf32, #tpu.memory_space<vmem>>, %arg2: memref<50x2048xf32, #tpu.memory_space<vmem>>, %arg3: memref<1x2048xf32, #tpu.memory_space<vmem>>, %arg4: memref<16x2048xf32, #tpu.memory_space<vmem>>) attributes {dimension_semantics = [#tpu.dimension_semantics<arbitrary>], iteration_bounds = array<i64: 1>, scalar_prefetch = 0 : i64, scratch_operands = 0 : i64, tpu.core_type = #tpu.core_type<tc>, window_params = [{pipeline_mode = #tpu.pipeline_mode<synchronous>, transform_indices = @transform_0, window_bounds = array<i64: 16, 50>}, {pipeline_mode = #tpu.pipeline_mode<synchronous>, transform_indices = @transform_1, window_bounds = array<i64: 50, 2048>}, {pipeline_mode = #tpu.pipeline_mode<synchronous>, transform_indices = @transform_2, window_bounds = array<i64: 1, 2048>}, {pipeline_mode = #tpu.pipeline_mode<synchronous>, transform_indices = @transform_3, window_bounds = array<i64: 16, 2048>}]} {
    %c0 = arith.constant 0 : index
    %c0_0 = arith.constant 0 : index
    %0 = vector.load %arg1[%c0, %c0_0] : memref<16x50xf32, #tpu.memory_space<vmem>>, vector<16x50xf32>
    %c0_1 = arith.constant 0 : index
    %c0_2 = arith.constant 0 : index
    %1 = vector.load %arg2[%c0_1, %c0_2] : memref<50x2048xf32, #tpu.memory_space<vmem>>, vector<50x2048xf32>
    %cst = arith.constant dense<0.000000e+00> : vector<16x2048xf32>
    %2 = tpu.matmul %0, %1, %cst {dimension_numbers = #tpu.dot_dimension_numbers<[1], [0], [0], [1], [0, 0, 1, 1], [], []>} : vector<16x50xf32>, vector<50x2048xf32>, vector<16x2048xf32> -> vector<16x2048xf32>
    %c0_3 = arith.constant 0 : index
    %c0_4 = arith.constant 0 : index
    %3 = vector.load %arg3[%c0_3, %c0_4] : memref<1x2048xf32, #tpu.memory_space<vmem>>, vector<1x2048xf32>
    %4 = vector.broadcast %3 : vector<1x2048xf32> to vector<16x2048xf32>
    %5 = arith.addf %2, %4 : vector<16x2048xf32>
    %c0_5 = arith.constant 0 : index
    %c0_6 = arith.constant 0 : index
    %6 = vector.load %arg4[%c0_5, %c0_6] : memref<16x2048xf32, #tpu.memory_space<vmem>>, vector<16x2048xf32>
    tpu.vector_store %arg4[%c0_5, %c0_6], %5 {strides = array<i32>} : memref<16x2048xf32, #tpu.memory_space<vmem>>, vector<16x2048xf32>,
    return
  }
  func.func @transform_0(%arg0: i32) -> (i32, i32) {
    %c0_i32 = arith.constant 0 : i32
    %c0_i32_0 = arith.constant 0 : i32
    %c0_i32_1 = arith.constant 0 : i32
    return %c0_i32, %c0_i32_0 : i32, i32
  }
  func.func @transform_1(%arg0: i32) -> (i32, i32) {
    %c0_i32 = arith.constant 0 : i32
    %c0_i32_0 = arith.constant 0 : i32
    %c0_i32_1 = arith.constant 0 : i32
    return %c0_i32, %c0_i32_0 : i32, i32
  }
  func.func @transform_2(%arg0: i32) -> (i32, i32) {
    %c0_i32 = arith.constant 0 : i32
    %c0_i32_0 = arith.constant 0 : i32
    %c0_i32_1 = arith.constant 0 : i32
    return %c0_i32, %c0_i32_0 : i32, i32
  }
  func.func @transform_3(%arg0: i32) -> (i32, i32) {
    %c0_i32 = arith.constant 0 : i32
    %c0_i32_0 = arith.constant 0 : i32
    %c0_i32_1 = arith.constant 0 : i32
    return %c0_i32, %c0_i32_0 : i32, i32
  }
}

module attributes {stable_mosaic.version = 11 : i64} {
  func.func @_lstm_enc_kernel(%arg0: i32, %arg1: memref<1x2x2048xf32, #tpu.memory_space<vmem>>, %arg2: memref<512x2048xf32, #tpu.memory_space<vmem>>, %arg3: memref<2x512xf32, #tpu.memory_space<vmem>>, %arg4: memref<2x512xf32, #tpu.memory_space<vmem>>, %arg5: memref<2x512xf32, #tpu.memory_space<vmem>>) attributes {dimension_semantics = [#tpu.dimension_semantics<arbitrary>], iteration_bounds = array<i64: 8>, scalar_prefetch = 0 : i64, scratch_operands = 2 : i64, tpu.core_type = #tpu.core_type<tc>, window_params = [{transform_indices = @transform_0, window_bounds = array<i64: 1, 2, 2048>}, {pipeline_mode = #tpu.pipeline_mode<synchronous>, transform_indices = @transform_1, window_bounds = array<i64: 512, 2048>}, {pipeline_mode = #tpu.pipeline_mode<synchronous>, transform_indices = @transform_2, window_bounds = array<i64: 2, 512>}]} {
    %c0_i32 = arith.constant 0 : i32
    %0 = arith.cmpi eq, %arg0, %c0_i32 : i32
    %1 = arith.extui %0 : i1 to i32
    %c0_i32_0 = arith.constant 0 : i32
    %2 = arith.cmpi ne, %1, %c0_i32_0 : i32
    scf.if %2 {
      %cst_17 = arith.constant 0.000000e+00 : f32
      %40 = vector.broadcast %cst_17 : f32 to vector<2x512xf32>
      %c0_18 = arith.constant 0 : index
      %c0_19 = arith.constant 0 : index
      %41 = vector.load %arg4[%c0_18, %c0_19] : memref<2x512xf32, #tpu.memory_space<vmem>>, vector<2x512xf32>
      tpu.vector_store %arg4[%c0_18, %c0_19], %40 {strides = array<i32>} : memref<2x512xf32, #tpu.memory_space<vmem>>, vector<2x512xf32>,
      %cst_20 = arith.constant 0.000000e+00 : f32
      %42 = vector.broadcast %cst_20 : f32 to vector<2x512xf32>
      %c0_21 = arith.constant 0 : index
      %c0_22 = arith.constant 0 : index
      %43 = vector.load %arg5[%c0_21, %c0_22] : memref<2x512xf32, #tpu.memory_space<vmem>>, vector<2x512xf32>
      tpu.vector_store %arg5[%c0_21, %c0_22], %42 {strides = array<i32>} : memref<2x512xf32, #tpu.memory_space<vmem>>, vector<2x512xf32>,
    } else {
    }
    %c0 = arith.constant 0 : index
    %c0_1 = arith.constant 0 : index
    %c0_2 = arith.constant 0 : index
    %3 = vector.load %arg1[%c0, %c0_1, %c0_2] : memref<1x2x2048xf32, #tpu.memory_space<vmem>>, vector<1x2x2048xf32>
    %4 = vector.shape_cast %3 : vector<1x2x2048xf32> to vector<2x2048xf32>
    %c0_3 = arith.constant 0 : index
    %c0_4 = arith.constant 0 : index
    %5 = vector.load %arg4[%c0_3, %c0_4] : memref<2x512xf32, #tpu.memory_space<vmem>>, vector<2x512xf32>
    %c0_5 = arith.constant 0 : index
    %c0_6 = arith.constant 0 : index
    %6 = vector.load %arg2[%c0_5, %c0_6] : memref<512x2048xf32, #tpu.memory_space<vmem>>, vector<512x2048xf32>
    %cst = arith.constant dense<0.000000e+00> : vector<2x2048xf32>
    %7 = tpu.matmul %5, %6, %cst {dimension_numbers = #tpu.dot_dimension_numbers<[1], [0], [0], [1], [0, 0, 1, 1], [], []>} : vector<2x512xf32>, vector<512x2048xf32>, vector<2x2048xf32> -> vector<2x2048xf32>
    %8 = arith.addf %4, %7 : vector<2x2048xf32>
    %c0_7 = arith.constant 0 : index
    %c0_8 = arith.constant 0 : index
    %9 = vector.load %arg5[%c0_7, %c0_8] : memref<2x512xf32, #tpu.memory_space<vmem>>, vector<2x512xf32>
    %10 = vector.extract_strided_slice %8 {offsets = [0, 0], sizes = [2, 512], strides = [1, 1]} : vector<2x2048xf32> to vector<2x512xf32>
    %11 = arith.negf %10 : vector<2x512xf32>
    %12 = math.exp %11 : vector<2x512xf32>
    %cst_9 = arith.constant 1.000000e+00 : f32
    %13 = vector.broadcast %cst_9 : f32 to vector<2x512xf32>
    %14 = arith.addf %13, %12 : vector<2x512xf32>
    %15 = arith.divf %13, %14 : vector<2x512xf32>
    %16 = vector.extract_strided_slice %8 {offsets = [0, 512], sizes = [2, 512], strides = [1, 1]} : vector<2x2048xf32> to vector<2x512xf32>
    %17 = arith.negf %16 : vector<2x512xf32>
    %18 = math.exp %17 : vector<2x512xf32>
    %cst_10 = arith.constant 1.000000e+00 : f32
    %19 = vector.broadcast %cst_10 : f32 to vector<2x512xf32>
    %20 = arith.addf %19, %18 : vector<2x512xf32>
    %21 = arith.divf %19, %20 : vector<2x512xf32>
    %22 = vector.extract_strided_slice %8 {offsets = [0, 1024], sizes = [2, 512], strides = [1, 1]} : vector<2x2048xf32> to vector<2x512xf32>
    %23 = math.tanh %22 : vector<2x512xf32>
    %24 = vector.extract_strided_slice %8 {offsets = [0, 1536], sizes = [2, 512], strides = [1, 1]} : vector<2x2048xf32> to vector<2x512xf32>
    %25 = arith.negf %24 : vector<2x512xf32>
    %26 = math.exp %25 : vector<2x512xf32>
    %cst_11 = arith.constant 1.000000e+00 : f32
    %27 = vector.broadcast %cst_11 : f32 to vector<2x512xf32>
    %28 = arith.addf %27, %26 : vector<2x512xf32>
    %29 = arith.divf %27, %28 : vector<2x512xf32>
    %30 = arith.mulf %21, %9 : vector<2x512xf32>
    %31 = arith.mulf %15, %23 : vector<2x512xf32>
    %32 = arith.addf %30, %31 : vector<2x512xf32>
    %33 = math.tanh %32 : vector<2x512xf32>
    %34 = arith.mulf %29, %33 : vector<2x512xf32>
    %c0_12 = arith.constant 0 : index
    %c0_13 = arith.constant 0 : index
    %35 = vector.load %arg4[%c0_12, %c0_13] : memref<2x512xf32, #tpu.memory_space<vmem>>, vector<2x512xf32>
    tpu.vector_store %arg4[%c0_12, %c0_13], %34 {strides = array<i32>} : memref<2x512xf32, #tpu.memory_space<vmem>>, vector<2x512xf32>,
    %c0_14 = arith.constant 0 : index
    %c0_15 = arith.constant 0 : index
    %36 = vector.load %arg5[%c0_14, %c0_15] : memref<2x512xf32, #tpu.memory_space<vmem>>, vector<2x512xf32>
    tpu.vector_store %arg5[%c0_14, %c0_15], %32 {strides = array<i32>} : memref<2x512xf32, #tpu.memory_space<vmem>>, vector<2x512xf32>,
    %c7_i32 = arith.constant 7 : i32
    %37 = arith.cmpi eq, %arg0, %c7_i32 : i32
    %38 = arith.extui %37 : i1 to i32
    %c0_i32_16 = arith.constant 0 : i32
    %39 = arith.cmpi ne, %38, %c0_i32_16 : i32
    scf.if %39 {
      %c0_17 = arith.constant 0 : index
      %c0_18 = arith.constant 0 : index
      %40 = vector.load %arg3[%c0_17, %c0_18] : memref<2x512xf32, #tpu.memory_space<vmem>>, vector<2x512xf32>
      tpu.vector_store %arg3[%c0_17, %c0_18], %32 {strides = array<i32>} : memref<2x512xf32, #tpu.memory_space<vmem>>, vector<2x512xf32>,
    } else {
    }
    return
  }
  func.func @transform_0(%arg0: i32) -> (i32, i32, i32) {
    %c0_i32 = arith.constant 0 : i32
    %c0_i32_0 = arith.constant 0 : i32
    %c0_i32_1 = arith.constant 0 : i32
    return %arg0, %c0_i32, %c0_i32_0 : i32, i32, i32
  }
  func.func @transform_1(%arg0: i32) -> (i32, i32) {
    %c0_i32 = arith.constant 0 : i32
    %c0_i32_0 = arith.constant 0 : i32
    %c0_i32_1 = arith.constant 0 : i32
    return %c0_i32, %c0_i32_0 : i32, i32
  }
  func.func @transform_2(%arg0: i32) -> (i32, i32) {
    %c0_i32 = arith.constant 0 : i32
    %c0_i32_0 = arith.constant 0 : i32
    %c0_i32_1 = arith.constant 0 : i32
    return %c0_i32, %c0_i32_0 : i32, i32
  }
}

module attributes {stable_mosaic.version = 11 : i64} {
  func.func @_linear_kernel(%arg0: i32, %arg1: memref<2x544xf32, #tpu.memory_space<vmem>>, %arg2: memref<544x512xf32, #tpu.memory_space<vmem>>, %arg3: memref<1x512xf32, #tpu.memory_space<vmem>>, %arg4: memref<2x512xf32, #tpu.memory_space<vmem>>) attributes {dimension_semantics = [#tpu.dimension_semantics<arbitrary>], iteration_bounds = array<i64: 1>, scalar_prefetch = 0 : i64, scratch_operands = 0 : i64, tpu.core_type = #tpu.core_type<tc>, window_params = [{pipeline_mode = #tpu.pipeline_mode<synchronous>, transform_indices = @transform_0, window_bounds = array<i64: 2, 544>}, {pipeline_mode = #tpu.pipeline_mode<synchronous>, transform_indices = @transform_1, window_bounds = array<i64: 544, 512>}, {pipeline_mode = #tpu.pipeline_mode<synchronous>, transform_indices = @transform_2, window_bounds = array<i64: 1, 512>}, {pipeline_mode = #tpu.pipeline_mode<synchronous>, transform_indices = @transform_3, window_bounds = array<i64: 2, 512>}]} {
    %c0 = arith.constant 0 : index
    %c0_0 = arith.constant 0 : index
    %0 = vector.load %arg1[%c0, %c0_0] : memref<2x544xf32, #tpu.memory_space<vmem>>, vector<2x544xf32>
    %c0_1 = arith.constant 0 : index
    %c0_2 = arith.constant 0 : index
    %1 = vector.load %arg2[%c0_1, %c0_2] : memref<544x512xf32, #tpu.memory_space<vmem>>, vector<544x512xf32>
    %cst = arith.constant dense<0.000000e+00> : vector<2x512xf32>
    %2 = tpu.matmul %0, %1, %cst {dimension_numbers = #tpu.dot_dimension_numbers<[1], [0], [0], [1], [0, 0, 1, 1], [], []>} : vector<2x544xf32>, vector<544x512xf32>, vector<2x512xf32> -> vector<2x512xf32>
    %c0_3 = arith.constant 0 : index
    %c0_4 = arith.constant 0 : index
    %3 = vector.load %arg3[%c0_3, %c0_4] : memref<1x512xf32, #tpu.memory_space<vmem>>, vector<1x512xf32>
    %4 = vector.broadcast %3 : vector<1x512xf32> to vector<2x512xf32>
    %5 = arith.addf %2, %4 : vector<2x512xf32>
    %c0_5 = arith.constant 0 : index
    %c0_6 = arith.constant 0 : index
    %6 = vector.load %arg4[%c0_5, %c0_6] : memref<2x512xf32, #tpu.memory_space<vmem>>, vector<2x512xf32>
    tpu.vector_store %arg4[%c0_5, %c0_6], %5 {strides = array<i32>} : memref<2x512xf32, #tpu.memory_space<vmem>>, vector<2x512xf32>,
    return
  }
  func.func @transform_0(%arg0: i32) -> (i32, i32) {
    %c0_i32 = arith.constant 0 : i32
    %c0_i32_0 = arith.constant 0 : i32
    %c0_i32_1 = arith.constant 0 : i32
    return %c0_i32, %c0_i32_0 : i32, i32
  }
  func.func @transform_1(%arg0: i32) -> (i32, i32) {
    %c0_i32 = arith.constant 0 : i32
    %c0_i32_0 = arith.constant 0 : i32
    %c0_i32_1 = arith.constant 0 : i32
    return %c0_i32, %c0_i32_0 : i32, i32
  }
  func.func @transform_2(%arg0: i32) -> (i32, i32) {
    %c0_i32 = arith.constant 0 : i32
    %c0_i32_0 = arith.constant 0 : i32
    %c0_i32_1 = arith.constant 0 : i32
    return %c0_i32, %c0_i32_0 : i32, i32
  }
  func.func @transform_3(%arg0: i32) -> (i32, i32) {
    %c0_i32 = arith.constant 0 : i32
    %c0_i32_0 = arith.constant 0 : i32
    %c0_i32_1 = arith.constant 0 : i32
    return %c0_i32, %c0_i32_0 : i32, i32
  }
}

module attributes {stable_mosaic.version = 11 : i64} {
  func.func @_linear_kernel(%arg0: i32, %arg1: memref<14x82xf32, #tpu.memory_space<vmem>>, %arg2: memref<82x2048xf32, #tpu.memory_space<vmem>>, %arg3: memref<1x2048xf32, #tpu.memory_space<vmem>>, %arg4: memref<14x2048xf32, #tpu.memory_space<vmem>>) attributes {dimension_semantics = [#tpu.dimension_semantics<arbitrary>], iteration_bounds = array<i64: 1>, scalar_prefetch = 0 : i64, scratch_operands = 0 : i64, tpu.core_type = #tpu.core_type<tc>, window_params = [{pipeline_mode = #tpu.pipeline_mode<synchronous>, transform_indices = @transform_0, window_bounds = array<i64: 14, 82>}, {pipeline_mode = #tpu.pipeline_mode<synchronous>, transform_indices = @transform_1, window_bounds = array<i64: 82, 2048>}, {pipeline_mode = #tpu.pipeline_mode<synchronous>, transform_indices = @transform_2, window_bounds = array<i64: 1, 2048>}, {pipeline_mode = #tpu.pipeline_mode<synchronous>, transform_indices = @transform_3, window_bounds = array<i64: 14, 2048>}]} {
    %c0 = arith.constant 0 : index
    %c0_0 = arith.constant 0 : index
    %0 = vector.load %arg1[%c0, %c0_0] : memref<14x82xf32, #tpu.memory_space<vmem>>, vector<14x82xf32>
    %c0_1 = arith.constant 0 : index
    %c0_2 = arith.constant 0 : index
    %1 = vector.load %arg2[%c0_1, %c0_2] : memref<82x2048xf32, #tpu.memory_space<vmem>>, vector<82x2048xf32>
    %cst = arith.constant dense<0.000000e+00> : vector<14x2048xf32>
    %2 = tpu.matmul %0, %1, %cst {dimension_numbers = #tpu.dot_dimension_numbers<[1], [0], [0], [1], [0, 0, 1, 1], [], []>} : vector<14x82xf32>, vector<82x2048xf32>, vector<14x2048xf32> -> vector<14x2048xf32>
    %c0_3 = arith.constant 0 : index
    %c0_4 = arith.constant 0 : index
    %3 = vector.load %arg3[%c0_3, %c0_4] : memref<1x2048xf32, #tpu.memory_space<vmem>>, vector<1x2048xf32>
    %4 = vector.broadcast %3 : vector<1x2048xf32> to vector<14x2048xf32>
    %5 = arith.addf %2, %4 : vector<14x2048xf32>
    %c0_5 = arith.constant 0 : index
    %c0_6 = arith.constant 0 : index
    %6 = vector.load %arg4[%c0_5, %c0_6] : memref<14x2048xf32, #tpu.memory_space<vmem>>, vector<14x2048xf32>
    tpu.vector_store %arg4[%c0_5, %c0_6], %5 {strides = array<i32>} : memref<14x2048xf32, #tpu.memory_space<vmem>>, vector<14x2048xf32>,
    return
  }
  func.func @transform_0(%arg0: i32) -> (i32, i32) {
    %c0_i32 = arith.constant 0 : i32
    %c0_i32_0 = arith.constant 0 : i32
    %c0_i32_1 = arith.constant 0 : i32
    return %c0_i32, %c0_i32_0 : i32, i32
  }
  func.func @transform_1(%arg0: i32) -> (i32, i32) {
    %c0_i32 = arith.constant 0 : i32
    %c0_i32_0 = arith.constant 0 : i32
    %c0_i32_1 = arith.constant 0 : i32
    return %c0_i32, %c0_i32_0 : i32, i32
  }
  func.func @transform_2(%arg0: i32) -> (i32, i32) {
    %c0_i32 = arith.constant 0 : i32
    %c0_i32_0 = arith.constant 0 : i32
    %c0_i32_1 = arith.constant 0 : i32
    return %c0_i32, %c0_i32_0 : i32, i32
  }
  func.func @transform_3(%arg0: i32) -> (i32, i32) {
    %c0_i32 = arith.constant 0 : i32
    %c0_i32_0 = arith.constant 0 : i32
    %c0_i32_1 = arith.constant 0 : i32
    return %c0_i32, %c0_i32_0 : i32, i32
  }
}

module attributes {stable_mosaic.version = 11 : i64} {
  func.func @_lstm_dec_train_kernel(%arg0: i32, %arg1: memref<1x2x2048xf32, #tpu.memory_space<vmem>>, %arg2: memref<512x2048xf32, #tpu.memory_space<vmem>>, %arg3: memref<2x512xf32, #tpu.memory_space<vmem>>, %arg4: memref<512x128xf32, #tpu.memory_space<vmem>>, %arg5: memref<1x128xf32, #tpu.memory_space<vmem>>, %arg6: memref<1x2x128xf32, #tpu.memory_space<vmem>>, %arg7: memref<2x512xf32, #tpu.memory_space<vmem>>, %arg8: memref<2x512xf32, #tpu.memory_space<vmem>>) attributes {dimension_semantics = [#tpu.dimension_semantics<arbitrary>], iteration_bounds = array<i64: 7>, scalar_prefetch = 0 : i64, scratch_operands = 2 : i64, tpu.core_type = #tpu.core_type<tc>, window_params = [{transform_indices = @transform_0, window_bounds = array<i64: 1, 2, 2048>}, {pipeline_mode = #tpu.pipeline_mode<synchronous>, transform_indices = @transform_1, window_bounds = array<i64: 512, 2048>}, {pipeline_mode = #tpu.pipeline_mode<synchronous>, transform_indices = @transform_2, window_bounds = array<i64: 2, 512>}, {pipeline_mode = #tpu.pipeline_mode<synchronous>, transform_indices = @transform_3, window_bounds = array<i64: 512, 128>}, {pipeline_mode = #tpu.pipeline_mode<synchronous>, transform_indices = @transform_4, window_bounds = array<i64: 1, 128>}, {transform_indices = @transform_5, window_bounds = array<i64: 1, 2, 128>}]} {
    %c0_i32 = arith.constant 0 : i32
    %0 = arith.cmpi eq, %arg0, %c0_i32 : i32
    %1 = arith.extui %0 : i1 to i32
    %c0_i32_0 = arith.constant 0 : i32
    %2 = arith.cmpi ne, %1, %c0_i32_0 : i32
    scf.if %2 {
      %cst_24 = arith.constant 0.000000e+00 : f32
      %45 = vector.broadcast %cst_24 : f32 to vector<2x512xf32>
      %c0_25 = arith.constant 0 : index
      %c0_26 = arith.constant 0 : index
      %46 = vector.load %arg7[%c0_25, %c0_26] : memref<2x512xf32, #tpu.memory_space<vmem>>, vector<2x512xf32>
      tpu.vector_store %arg7[%c0_25, %c0_26], %45 {strides = array<i32>} : memref<2x512xf32, #tpu.memory_space<vmem>>, vector<2x512xf32>,
      %c0_27 = arith.constant 0 : index
      %c0_28 = arith.constant 0 : index
      %47 = vector.load %arg3[%c0_27, %c0_28] : memref<2x512xf32, #tpu.memory_space<vmem>>, vector<2x512xf32>
      %c0_29 = arith.constant 0 : index
      %c0_30 = arith.constant 0 : index
      %48 = vector.load %arg8[%c0_29, %c0_30] : memref<2x512xf32, #tpu.memory_space<vmem>>, vector<2x512xf32>
      tpu.vector_store %arg8[%c0_29, %c0_30], %47 {strides = array<i32>} : memref<2x512xf32, #tpu.memory_space<vmem>>, vector<2x512xf32>,
    } else {
    }
    %c0 = arith.constant 0 : index
    %c0_1 = arith.constant 0 : index
    %c0_2 = arith.constant 0 : index
    %3 = vector.load %arg1[%c0, %c0_1, %c0_2] : memref<1x2x2048xf32, #tpu.memory_space<vmem>>, vector<1x2x2048xf32>
    %4 = vector.shape_cast %3 : vector<1x2x2048xf32> to vector<2x2048xf32>
    %c0_3 = arith.constant 0 : index
    %c0_4 = arith.constant 0 : index
    %5 = vector.load %arg7[%c0_3, %c0_4] : memref<2x512xf32, #tpu.memory_space<vmem>>, vector<2x512xf32>
    %c0_5 = arith.constant 0 : index
    %c0_6 = arith.constant 0 : index
    %6 = vector.load %arg2[%c0_5, %c0_6] : memref<512x2048xf32, #tpu.memory_space<vmem>>, vector<512x2048xf32>
    %cst = arith.constant dense<0.000000e+00> : vector<2x2048xf32>
    %7 = tpu.matmul %5, %6, %cst {dimension_numbers = #tpu.dot_dimension_numbers<[1], [0], [0], [1], [0, 0, 1, 1], [], []>} : vector<2x512xf32>, vector<512x2048xf32>, vector<2x2048xf32> -> vector<2x2048xf32>
    %8 = arith.addf %4, %7 : vector<2x2048xf32>
    %c0_7 = arith.constant 0 : index
    %c0_8 = arith.constant 0 : index
    %9 = vector.load %arg8[%c0_7, %c0_8] : memref<2x512xf32, #tpu.memory_space<vmem>>, vector<2x512xf32>
    %10 = vector.extract_strided_slice %8 {offsets = [0, 0], sizes = [2, 512], strides = [1, 1]} : vector<2x2048xf32> to vector<2x512xf32>
    %11 = arith.negf %10 : vector<2x512xf32>
    %12 = math.exp %11 : vector<2x512xf32>
    %cst_9 = arith.constant 1.000000e+00 : f32
    %13 = vector.broadcast %cst_9 : f32 to vector<2x512xf32>
    %14 = arith.addf %13, %12 : vector<2x512xf32>
    %15 = arith.divf %13, %14 : vector<2x512xf32>
    %16 = vector.extract_strided_slice %8 {offsets = [0, 512], sizes = [2, 512], strides = [1, 1]} : vector<2x2048xf32> to vector<2x512xf32>
    %17 = arith.negf %16 : vector<2x512xf32>
    %18 = math.exp %17 : vector<2x512xf32>
    %cst_10 = arith.constant 1.000000e+00 : f32
    %19 = vector.broadcast %cst_10 : f32 to vector<2x512xf32>
    %20 = arith.addf %19, %18 : vector<2x512xf32>
    %21 = arith.divf %19, %20 : vector<2x512xf32>
    %22 = vector.extract_strided_slice %8 {offsets = [0, 1024], sizes = [2, 512], strides = [1, 1]} : vector<2x2048xf32> to vector<2x512xf32>
    %23 = math.tanh %22 : vector<2x512xf32>
    %24 = vector.extract_strided_slice %8 {offsets = [0, 1536], sizes = [2, 512], strides = [1, 1]} : vector<2x2048xf32> to vector<2x512xf32>
    %25 = arith.negf %24 : vector<2x512xf32>
    %26 = math.exp %25 : vector<2x512xf32>
    %cst_11 = arith.constant 1.000000e+00 : f32
    %27 = vector.broadcast %cst_11 : f32 to vector<2x512xf32>
    %28 = arith.addf %27, %26 : vector<2x512xf32>
    %29 = arith.divf %27, %28 : vector<2x512xf32>
    %30 = arith.mulf %21, %9 : vector<2x512xf32>
    %31 = arith.mulf %15, %23 : vector<2x512xf32>
    %32 = arith.addf %30, %31 : vector<2x512xf32>
    %33 = math.tanh %32 : vector<2x512xf32>
    %34 = arith.mulf %29, %33 : vector<2x512xf32>
    %c0_12 = arith.constant 0 : index
    %c0_13 = arith.constant 0 : index
    %35 = vector.load %arg7[%c0_12, %c0_13] : memref<2x512xf32, #tpu.memory_space<vmem>>, vector<2x512xf32>
    tpu.vector_store %arg7[%c0_12, %c0_13], %34 {strides = array<i32>} : memref<2x512xf32, #tpu.memory_space<vmem>>, vector<2x512xf32>,
    %c0_14 = arith.constant 0 : index
    %c0_15 = arith.constant 0 : index
    %36 = vector.load %arg8[%c0_14, %c0_15] : memref<2x512xf32, #tpu.memory_space<vmem>>, vector<2x512xf32>
    tpu.vector_store %arg8[%c0_14, %c0_15], %32 {strides = array<i32>} : memref<2x512xf32, #tpu.memory_space<vmem>>, vector<2x512xf32>,
    %c0_16 = arith.constant 0 : index
    %c0_17 = arith.constant 0 : index
    %37 = vector.load %arg4[%c0_16, %c0_17] : memref<512x128xf32, #tpu.memory_space<vmem>>, vector<512x128xf32>
    %cst_18 = arith.constant dense<0.000000e+00> : vector<2x128xf32>
    %38 = tpu.matmul %34, %37, %cst_18 {dimension_numbers = #tpu.dot_dimension_numbers<[1], [0], [0], [1], [0, 0, 1, 1], [], []>} : vector<2x512xf32>, vector<512x128xf32>, vector<2x128xf32> -> vector<2x128xf32>
    %c0_19 = arith.constant 0 : index
    %c0_20 = arith.constant 0 : index
    %39 = vector.load %arg5[%c0_19, %c0_20] : memref<1x128xf32, #tpu.memory_space<vmem>>, vector<1x128xf32>
    %40 = vector.broadcast %39 : vector<1x128xf32> to vector<2x128xf32>
    %41 = arith.addf %38, %40 : vector<2x128xf32>
    %c0_21 = arith.constant 0 : index
    %c0_22 = arith.constant 0 : index
    %c0_23 = arith.constant 0 : index
    %42 = vector.load %arg6[%c0_21, %c0_22, %c0_23] : memref<1x2x128xf32, #tpu.memory_space<vmem>>, vector<1x2x128xf32>
    %43 = vector.shape_cast %42 : vector<1x2x128xf32> to vector<2x128xf32>
    %44 = vector.shape_cast %41 : vector<2x128xf32> to vector<1x2x128xf32>
    tpu.vector_store %arg6[%c0_21, %c0_22, %c0_23], %44 {strides = array<i32>} : memref<1x2x128xf32, #tpu.memory_space<vmem>>, vector<1x2x128xf32>,
    return
  }
  func.func @transform_0(%arg0: i32) -> (i32, i32, i32) {
    %c0_i32 = arith.constant 0 : i32
    %c0_i32_0 = arith.constant 0 : i32
    %c0_i32_1 = arith.constant 0 : i32
    return %arg0, %c0_i32, %c0_i32_0 : i32, i32, i32
  }
  func.func @transform_1(%arg0: i32) -> (i32, i32) {
    %c0_i32 = arith.constant 0 : i32
    %c0_i32_0 = arith.constant 0 : i32
    %c0_i32_1 = arith.constant 0 : i32
    return %c0_i32, %c0_i32_0 : i32, i32
  }
  func.func @transform_2(%arg0: i32) -> (i32, i32) {
    %c0_i32 = arith.constant 0 : i32
    %c0_i32_0 = arith.constant 0 : i32
    %c0_i32_1 = arith.constant 0 : i32
    return %c0_i32, %c0_i32_0 : i32, i32
  }
  func.func @transform_3(%arg0: i32) -> (i32, i32) {
    %c0_i32 = arith.constant 0 : i32
    %c0_i32_0 = arith.constant 0 : i32
    %c0_i32_1 = arith.constant 0 : i32
    return %c0_i32, %c0_i32_0 : i32, i32
  }
  func.func @transform_4(%arg0: i32) -> (i32, i32) {
    %c0_i32 = arith.constant 0 : i32
    %c0_i32_0 = arith.constant 0 : i32
    %c0_i32_1 = arith.constant 0 : i32
    return %c0_i32, %c0_i32_0 : i32, i32
  }
  func.func @transform_5(%arg0: i32) -> (i32, i32, i32) {
    %c0_i32 = arith.constant 0 : i32
    %c0_i32_0 = arith.constant 0 : i32
    %c0_i32_1 = arith.constant 0 : i32
    return %arg0, %c0_i32, %c0_i32_0 : i32, i32, i32
  }
}

</mosaic_0001>

<llo_original>
// kernel: decoder_forward_train.5
$region0: #{decoder_forward_train.5}
  #allocation0 [shape = 'u32[]', space=smem, size = 0x4, offset = 0x4, fixed_abs, tag = 'smem constant byte address 0x4 - core index']
  #allocation1 [shape = 'u32[72,128]{1,0:T(1,128)}', space=vmem, size = 0x9000, scoped, tag = 'internal scratch']
  %s0 = inlined_call_operand.vmem [shape: f32[16,50], index: 0, kind: input, shape index: {}]
  %s1 = inlined_call_operand.hbm [shape: f32[50,2048], index: 1, kind: input, shape index: {}]
  %s2 = inlined_call_operand.hbm [shape: f32[1,2048], index: 2, kind: input, shape index: {}]
  %s3 = inlined_call_operand.vmem [shape: f32[16,2048], index: 3, kind: output, shape index: {}]
  %s4 = sld [smem:[#allocation0]]
  $region30: #{decoder_forward_train.5} parent=0
    _
  %s6 = ssub.s32 1, %s4
  %s7 = scalar_select 0, %s6, %s4
  $region1: #{decoder_forward_train.5} parent=0
    #allocation2 [shape = 'u8[458752]{0}', space=vmem, size = 0x70000, scoped, tag = 'input window, operand 1, single buffered']
    #allocation3 [shape = 's32[1]{0}', space=sflag, size = 0x4, scoped, tag = 'scoped memory for decoder_forward_train.5']
    #allocation4 [shape = 'u8[8192]{0}', space=vmem, size = 0x2000, scoped, tag = 'input window, operand 2, single buffered']
    #allocation5 [shape = 's32[1]{0}', space=sflag, size = 0x4, scoped, tag = 'scoped memory for decoder_forward_train.5']
    %8 = vsyncpa [#allocation3], 0
    %9 = vsyncpa [#allocation5], 0
    // Predicated region
    $region2: #{decoder_forward_train.5} parent=1 // pred_check
      _
    $region3: #{decoder_forward_train.5} parent=1 // pred_check_branch
      %11 = sbr.rel (0) target = $region5
    $region4: #{decoder_forward_train.5} parent=1 // pred_region
      _
    $region5: #{decoder_forward_train.5} parent=1 // pred_fallthru
      _
    // Predicated region
    $region6: #{decoder_forward_train.5} parent=1 // pred_check
      _
    $region7: #{decoder_forward_train.5} parent=1 // pred_check_branch
      %13 = sbr.rel (0) target = $region9
    $region8: #{decoder_forward_train.5} parent=1 // pred_region
      %15 = vsyncadd [#allocation3], 0
      %s16 = sshll.u32 %s1, 4
      %s17 = int_to_ptr.hbm [resolvable:$true] %s16
      %s18 = sshll.u32 [#allocation2], 4
      %s19 = int_to_ptr.vmem [resolvable:$true] %s18
      %24 = dma.hbm_to_vmem [thread:$0]  %s17, 14336, %s19, [#allocation3], 2048, 2048, 128
    $region9: #{decoder_forward_train.5} parent=1 // pred_fallthru
      _
    // Predicated region
    $region10: #{decoder_forward_train.5} parent=1 // pred_check
      _
    $region11: #{decoder_forward_train.5} parent=1 // pred_check_branch
      %26 = sbr.rel (0) target = $region13
    $region12: #{decoder_forward_train.5} parent=1 // pred_region
      %28 = vsyncadd [#allocation5], 0
      %s30 = sshll.u32 %s2, 4
      %s31 = int_to_ptr.hbm [resolvable:$true] %s30
      %s32 = sshll.u32 [#allocation4], 4
      %s33 = int_to_ptr.vmem [resolvable:$true] %s32
      %35 = dma.hbm_to_vmem [thread:$0]  %s31, 256, %s33, [#allocation5]
    $region13: #{decoder_forward_train.5} parent=1 // pred_fallthru
      _
    // Predicated region
    $region14: #{decoder_forward_train.5} parent=1 // pred_check
      _
    $region15: #{decoder_forward_train.5} parent=1 // pred_check_branch
      %37 = sbr.rel (0) target = $region17
    $region16: #{decoder_forward_train.5} parent=1 // pred_region
      %39 = dma.done [#allocation3], 14336
    $region17: #{decoder_forward_train.5} parent=1 // pred_fallthru
      _
    // Predicated region
    $region18: #{decoder_forward_train.5} parent=1 // pred_check
      _
    $region19: #{decoder_forward_train.5} parent=1 // pred_check_branch
      %41 = sbr.rel (0) target = $region21
    $region20: #{decoder_forward_train.5} parent=1 // pred_region
      %43 = dma.done [#allocation5], 256
    $region21: #{decoder_forward_train.5} parent=1 // pred_fallthru
      _
    %v44 = vld [vmem:[%s0] sm:$0xff]
    %v45 = vld [vmem:[%s0 + $0x8] sm:$0xff]
    %v46 = vld [vmem:[#allocation2] sm:$0xff]
    %v47 = vld [vmem:[#allocation2 + $0x8] sm:$0xff]
    %v48 = vld [vmem:[#allocation2 + $0x10] sm:$0xff]
    %v49 = vld [vmem:[#allocation2 + $0x18] sm:$0xff]
    %v50 = vld [vmem:[#allocation2 + $0x20] sm:$0xff]
    %v51 = vld [vmem:[#allocation2 + $0x28] sm:$0xff]
    %v52 = vld [vmem:[#allocation2 + $0x30] sm:$0xff]
    %v53 = vld [vmem:[#allocation2 + $0x38] sm:$0xff]
    %v54 = vld [vmem:[#allocation2 + $0x40] sm:$0xff]
    %v55 = vld [vmem:[#allocation2 + $0x48] sm:$0xff]
    %v56 = vld [vmem:[#allocation2 + $0x50] sm:$0xff]
    %v57 = vld [vmem:[#allocation2 + $0x58] sm:$0xff]
    %v58 = vld [vmem:[#allocation2 + $0x60] sm:$0xff]
    %v59 = vld [vmem:[#allocation2 + $0x68] sm:$0xff]
    %v60 = vld [vmem:[#allocation2 + $0x70] sm:$0xff]
    %v61 = vld [vmem:[#allocation2 + $0x78] sm:$0xff]
    %v62 = vld [vmem:[#allocation2 + $0x80] sm:$0xff]
    %v63 = vld [vmem:[#allocation2 + $0x88] sm:$0xff]
    %v64 = vld [vmem:[#allocation2 + $0x90] sm:$0xff]
    %v65 = vld [vmem:[#allocation2 + $0x98] sm:$0xff]
    %v66 = vld [vmem:[#allocation2 + $0xa0] sm:$0xff]
    %v67 = vld [vmem:[#allocation2 + $0xa8] sm:$0xff]
    %v68 = vld [vmem:[#allocation2 + $0xb0] sm:$0xff]
    %v69 = vld [vmem:[#allocation2 + $0xb8] sm:$0xff]
    %v70 = vld [vmem:[#allocation2 + $0xc0] sm:$0xff]
    %v71 = vld [vmem:[#allocation2 + $0xc8] sm:$0xff]
    %v72 = vld [vmem:[#allocation2 + $0xd0] sm:$0xff]
    %v73 = vld [vmem:[#allocation2 + $0xd8] sm:$0xff]
    %v74 = vld [vmem:[#allocation2 + $0xe0] sm:$0xff]
    %v75 = vld [vmem:[#allocation2 + $0xe8] sm:$0xff]
    %v76 = vld [vmem:[#allocation2 + $0xf0] sm:$0xff]
    %v77 = vld [vmem:[#allocation2 + $0xf8] sm:$0xff]
    %v78 = vld [vmem:[#allocation2 + $0x100] sm:$0xff]
    %v79 = vld [vmem:[#allocation2 + $0x108] sm:$0xff]
    %v80 = vld [vmem:[#allocation2 + $0x110] sm:$0xff]
    %v81 = vld [vmem:[#allocation2 + $0x118] sm:$0xff]
    %v82 = vld [vmem:[#allocation2 + $0x120] sm:$0xff]
    %v83 = vld [vmem:[#allocation2 + $0x128] sm:$0xff]
    %v84 = vld [vmem:[#allocation2 + $0x130] sm:$0xff]
    %v85 = vld [vmem:[#allocation2 + $0x138] sm:$0xff]
    %v86 = vld [vmem:[#allocation2 + $0x140] sm:$0xff]
    %v87 = vld [vmem:[#allocation2 + $0x148] sm:$0xff]
    %v88 = vld [vmem:[#allocation2 + $0x150] sm:$0xff]
    %v89 = vld [vmem:[#allocation2 + $0x158] sm:$0xff]
    %v90 = vld [vmem:[#allocation2 + $0x160] sm:$0xff]
    %v91 = vld [vmem:[#allocation2 + $0x168] sm:$0xff]
    %v92 = vld [vmem:[#allocation2 + $0x170] sm:$0xff]
    %v93 = vld [vmem:[#allocation2 + $0x178] sm:$0xff]
    %v94 = vld [vmem:[#allocation2 + $0x180] sm:$0xff]
    %v95 = vld [vmem:[#allocation2 + $0x188] sm:$0xff]
    %v96 = vld [vmem:[#allocation2 + $0x190] sm:$0xff]
    %v97 = vld [vmem:[#allocation2 + $0x198] sm:$0xff]
    %v98 = vld [vmem:[#allocation2 + $0x1a0] sm:$0xff]
    %v99 = vld [vmem:[#allocation2 + $0x1a8] sm:$0xff]
    %v100 = vld [vmem:[#allocation2 + $0x1b0] sm:$0xff]
    %v101 = vld [vmem:[#allocation2 + $0x1b8] sm:$0xff]
    %v102 = vld [vmem:[#allocation2 + $0x1c0] sm:$0xff]
    %v103 = vld [vmem:[#allocation2 + $0x1c8] sm:$0xff]
    %v104 = vld [vmem:[#allocation2 + $0x1d0] sm:$0xff]
    %v105 = vld [vmem:[#allocation2 + $0x1d8] sm:$0xff]
    %v106 = vld [vmem:[#allocation2 + $0x1e0] sm:$0xff]
    %v107 = vld [vmem:[#allocation2 + $0x1e8] sm:$0xff]
    %v108 = vld [vmem:[#allocation2 + $0x1f0] sm:$0xff]
    %v109 = vld [vmem:[#allocation2 + $0x1f8] sm:$0xff]
    %v110 = vld [vmem:[#allocation2 + $0x200] sm:$0xff]
    %v111 = vld [vmem:[#allocation2 + $0x208] sm:$0xff]
    %v112 = vld [vmem:[#allocation2 + $0x210] sm:$0xff]
    %v113 = vld [vmem:[#allocation2 + $0x218] sm:$0xff]
    %v114 = vld [vmem:[#allocation2 + $0x220] sm:$0xff]
    %v115 = vld [vmem:[#allocation2 + $0x228] sm:$0xff]
    %v116 = vld [vmem:[#allocation2 + $0x230] sm:$0xff]
    %v117 = vld [vmem:[#allocation2 + $0x238] sm:$0xff]
    %v118 = vld [vmem:[#allocation2 + $0x240] sm:$0xff]
    %v119 = vld [vmem:[#allocation2 + $0x248] sm:$0xff]
    %v120 = vld [vmem:[#allocation2 + $0x250] sm:$0xff]
    %v121 = vld [vmem:[#allocation2 + $0x258] sm:$0xff]
    %v122 = vld [vmem:[#allocation2 + $0x260] sm:$0xff]
    %v123 = vld [vmem:[#allocation2 + $0x268] sm:$0xff]
    %v124 = vld [vmem:[#allocation2 + $0x270] sm:$0xff]
    %v125 = vld [vmem:[#allocation2 + $0x278] sm:$0xff]
    %v126 = vld [vmem:[#allocation2 + $0x280] sm:$0xff]
    %v127 = vld [vmem:[#allocation2 + $0x288] sm:$0xff]
    %v128 = vld [vmem:[#allocation2 + $0x290] sm:$0xff]
    %v129 = vld [vmem:[#allocation2 + $0x298] sm:$0xff]
    %v130 = vld [vmem:[#allocation2 + $0x2a0] sm:$0xff]
    %v131 = vld [vmem:[#allocation2 + $0x2a8] sm:$0xff]
    %v132 = vld [vmem:[#allocation2 + $0x2b0] sm:$0xff]
    %v133 = vld [vmem:[#allocation2 + $0x2b8] sm:$0xff]
    %v134 = vld [vmem:[#allocation2 + $0x2c0] sm:$0xff]
    %v135 = vld [vmem:[#allocation2 + $0x2c8] sm:$0xff]
    %v136 = vld [vmem:[#allocation2 + $0x2d0] sm:$0xff]
    %v137 = vld [vmem:[#allocation2 + $0x2d8] sm:$0xff]
    %v138 = vld [vmem:[#allocation2 + $0x2e0] sm:$0xff]
    %v139 = vld [vmem:[#allocation2 + $0x2e8] sm:$0xff]
    %v140 = vld [vmem:[#allocation2 + $0x2f0] sm:$0xff]
    %v141 = vld [vmem:[#allocation2 + $0x2f8] sm:$0xff]
    %v142 = vld [vmem:[#allocation2 + $0x300] sm:$0x3]
    %v143 = vld [vmem:[#allocation2 + $0x308] sm:$0x3]
    %v144 = vld [vmem:[#allocation2 + $0x310] sm:$0x3]
    %v145 = vld [vmem:[#allocation2 + $0x318] sm:$0x3]
    %v146 = vld [vmem:[#allocation2 + $0x320] sm:$0x3]
    %v147 = vld [vmem:[#allocation2 + $0x328] sm:$0x3]
    %v148 = vld [vmem:[#allocation2 + $0x330] sm:$0x3]
    %v149 = vld [vmem:[#allocation2 + $0x338] sm:$0x3]
    %v150 = vld [vmem:[#allocation2 + $0x340] sm:$0x3]
    %v151 = vld [vmem:[#allocation2 + $0x348] sm:$0x3]
    %v152 = vld [vmem:[#allocation2 + $0x350] sm:$0x3]
    %v153 = vld [vmem:[#allocation2 + $0x358] sm:$0x3]
    %v154 = vld [vmem:[#allocation2 + $0x360] sm:$0x3]
    %v155 = vld [vmem:[#allocation2 + $0x368] sm:$0x3]
    %v156 = vld [vmem:[#allocation2 + $0x370] sm:$0x3]
    %v157 = vld [vmem:[#allocation2 + $0x378] sm:$0x3]
    %v158 = vld [vmem:[#allocation4] sm:$0xff]
    %v159 = vld [vmem:[#allocation4 + $0x8] sm:$0xff]
    %v162 = vperm.slane %v158, 0
    %v163 = vperm.slane %v158, 1
    %v164 = vperm.slane %v158, 2
    %v165 = vperm.slane %v158, 3
    %v166 = vperm.slane %v158, 4
    %v167 = vperm.slane %v158, 5
    %v168 = vperm.slane %v158, 6
    %v169 = vperm.slane %v158, 7
    %v170 = vperm.slane %v159, 0
    %v171 = vperm.slane %v159, 1
    %v172 = vperm.slane %v159, 2
    %v173 = vperm.slane %v159, 3
    %v174 = vperm.slane %v159, 4
    %v175 = vperm.slane %v159, 5
    %v176 = vperm.slane %v159, 6
    %v177 = vperm.slane %v159, 7
    %vm194 = vcmask 408576
    %v196 = vsel %vm194, %v44, 0
    %v199 = vsel %vm194, %v45, 0
    %vm201 = vcmask 1041408
    %v203 = vsel %vm201, %v142, 0
    %v206 = vsel %vm201, %v143, 0
    %v209 = vsel %vm201, %v144, 0
    %v212 = vsel %vm201, %v145, 0
    %v215 = vsel %vm201, %v146, 0
    %v218 = vsel %vm201, %v147, 0
    %v221 = vsel %vm201, %v148, 0
    %v224 = vsel %vm201, %v149, 0
    %v227 = vsel %vm201, %v150, 0
    %v230 = vsel %vm201, %v151, 0
    %v233 = vsel %vm201, %v152, 0
    %v236 = vsel %vm201, %v153, 0
    %v239 = vsel %vm201, %v154, 0
    %v242 = vsel %vm201, %v155, 0
    %v245 = vsel %vm201, %v156, 0
    %v248 = vsel %vm201, %v157, 0
    %250 = vmatpush.msra.mxu0 0.0
    %251 = vmatpush.msra.mxu0 0.0
    %252 = vmatpush.msra.mxu0 0.0
    %253 = vmatpush.msra.mxu0 0.0
    %254 = vmatpush.msra.mxu0 0.0
    %255 = vmatpush.msra.mxu0 0.0
    %256 = vmatpush.msra.mxu0 0.0
    %257 = vmatpush.msra.mxu0 0.0
    %258 = vmatpush.msra.mxu0 0.0
    %259 = vmatpush.msra.mxu0 %v203
    %260 = vmatpush.msra.mxu0 %v126
    %261 = vmatpush.msra.mxu0 %v110
    %262 = vmatpush.msra.mxu0 %v94
    %263 = vmatpush.msra.mxu0 %v78
    %264 = vmatpush.msra.mxu0 %v62
    %265 = vmatpush.msra.mxu0 %v46
    %266 = vmatmul.f32.gmra.mxu0 %v196
    %v267 = vpop.f32.mrf.mxu0
    %v268 = vadd.f32 %v162, %v267
    %269 = vmatmul.f32.gmra.mxu0 %v199
    %v270 = vpop.f32.mrf.mxu0
    %v271 = vadd.f32 %v162, %v270
    %272 = vdwg.mxu0
    %273 = vmatpush.msra.mxu0 0.0
    %274 = vmatpush.msra.mxu0 0.0
    %275 = vmatpush.msra.mxu0 0.0
    %276 = vmatpush.msra.mxu0 0.0
    %277 = vmatpush.msra.mxu0 0.0
    %278 = vmatpush.msra.mxu0 0.0
    %279 = vmatpush.msra.mxu0 0.0
    %280 = vmatpush.msra.mxu0 0.0
    %281 = vmatpush.msra.mxu0 0.0
    %282 = vmatpush.msra.mxu0 %v206
    %283 = vmatpush.msra.mxu0 %v127
    %284 = vmatpush.msra.mxu0 %v111
    %285 = vmatpush.msra.mxu0 %v95
    %286 = vmatpush.msra.mxu0 %v79
    %287 = vmatpush.msra.mxu0 %v63
    %288 = vmatpush.msra.mxu0 %v47
    %289 = vmatmul.f32.gmra.mxu0 %v196
    %v290 = vpop.f32.mrf.mxu0
    %v291 = vadd.f32 %v163, %v290
    %292 = vmatmul.f32.gmra.mxu0 %v199
    %v293 = vpop.f32.mrf.mxu0
    %v294 = vadd.f32 %v163, %v293
    %295 = vdwg.mxu0
    %296 = vmatpush.msra.mxu0 0.0
    %297 = vmatpush.msra.mxu0 0.0
    %298 = vmatpush.msra.mxu0 0.0
    %299 = vmatpush.msra.mxu0 0.0
    %300 = vmatpush.msra.mxu0 0.0
    %301 = vmatpush.msra.mxu0 0.0
    %302 = vmatpush.msra.mxu0 0.0
    %303 = vmatpush.msra.mxu0 0.0
    %304 = vmatpush.msra.mxu0 0.0
    %305 = vmatpush.msra.mxu0 %v209
    %306 = vmatpush.msra.mxu0 %v128
    %307 = vmatpush.msra.mxu0 %v112
    %308 = vmatpush.msra.mxu0 %v96
    %309 = vmatpush.msra.mxu0 %v80
    %310 = vmatpush.msra.mxu0 %v64
    %311 = vmatpush.msra.mxu0 %v48
    %312 = vmatmul.f32.gmra.mxu0 %v196
    %v313 = vpop.f32.mrf.mxu0
    %v314 = vadd.f32 %v164, %v313
    %315 = vmatmul.f32.gmra.mxu0 %v199
    %v316 = vpop.f32.mrf.mxu0
    %v317 = vadd.f32 %v164, %v316
    %318 = vdwg.mxu0
    %319 = vmatpush.msra.mxu0 0.0
    %320 = vmatpush.msra.mxu0 0.0
    %321 = vmatpush.msra.mxu0 0.0
    %322 = vmatpush.msra.mxu0 0.0
    %323 = vmatpush.msra.mxu0 0.0
    %324 = vmatpush.msra.mxu0 0.0
    %325 = vmatpush.msra.mxu0 0.0
    %326 = vmatpush.msra.mxu0 0.0
    %327 = vmatpush.msra.mxu0 0.0
    %328 = vmatpush.msra.mxu0 %v212
    %329 = vmatpush.msra.mxu0 %v129
    %330 = vmatpush.msra.mxu0 %v113
    %331 = vmatpush.msra.mxu0 %v97
    %332 = vmatpush.msra.mxu0 %v81
    %333 = vmatpush.msra.mxu0 %v65
    %334 = vmatpush.msra.mxu0 %v49
    %335 = vmatmul.f32.gmra.mxu0 %v196
    %v336 = vpop.f32.mrf.mxu0
    %v337 = vadd.f32 %v165, %v336
    %338 = vmatmul.f32.gmra.mxu0 %v199
    %v339 = vpop.f32.mrf.mxu0
    %v340 = vadd.f32 %v165, %v339
    %341 = vdwg.mxu0
    %342 = vmatpush.msra.mxu0 0.0
    %343 = vmatpush.msra.mxu0 0.0
    %344 = vmatpush.msra.mxu0 0.0
    %345 = vmatpush.msra.mxu0 0.0
    %346 = vmatpush.msra.mxu0 0.0
    %347 = vmatpush.msra.mxu0 0.0
    %348 = vmatpush.msra.mxu0 0.0
    %349 = vmatpush.msra.mxu0 0.0
    %350 = vmatpush.msra.mxu0 0.0
    %351 = vmatpush.msra.mxu0 %v215
    %352 = vmatpush.msra.mxu0 %v130
    %353 = vmatpush.msra.mxu0 %v114
    %354 = vmatpush.msra.mxu0 %v98
    %355 = vmatpush.msra.mxu0 %v82
    %356 = vmatpush.msra.mxu0 %v66
    %357 = vmatpush.msra.mxu0 %v50
    %358 = vmatmul.f32.gmra.mxu0 %v196
    %v359 = vpop.f32.mrf.mxu0
    %v360 = vadd.f32 %v166, %v359
    %361 = vmatmul.f32.gmra.mxu0 %v199
    %v362 = vpop.f32.mrf.mxu0
    %v363 = vadd.f32 %v166, %v362
    %364 = vdwg.mxu0
    %365 = vmatpush.msra.mxu0 0.0
    %366 = vmatpush.msra.mxu0 0.0
    %367 = vmatpush.msra.mxu0 0.0
    %368 = vmatpush.msra.mxu0 0.0
    %369 = vmatpush.msra.mxu0 0.0
    %370 = vmatpush.msra.mxu0 0.0
    %371 = vmatpush.msra.mxu0 0.0
    %372 = vmatpush.msra.mxu0 0.0
    %373 = vmatpush.msra.mxu0 0.0
    %374 = vmatpush.msra.mxu0 %v218
    %375 = vmatpush.msra.mxu0 %v131
    %376 = vmatpush.msra.mxu0 %v115
    %377 = vmatpush.msra.mxu0 %v99
    %378 = vmatpush.msra.mxu0 %v83
    %379 = vmatpush.msra.mxu0 %v67
    %380 = vmatpush.msra.mxu0 %v51
    %381 = vmatmul.f32.gmra.mxu0 %v196
    %v382 = vpop.f32.mrf.mxu0
    %v383 = vadd.f32 %v167, %v382
    %384 = vmatmul.f32.gmra.mxu0 %v199
    %v385 = vpop.f32.mrf.mxu0
    %v386 = vadd.f32 %v167, %v385
    %387 = vdwg.mxu0
    %388 = vmatpush.msra.mxu0 0.0
    %389 = vmatpush.msra.mxu0 0.0
    %390 = vmatpush.msra.mxu0 0.0
    %391 = vmatpush.msra.mxu0 0.0
    %392 = vmatpush.msra.mxu0 0.0
    %393 = vmatpush.msra.mxu0 0.0
    %394 = vmatpush.msra.mxu0 0.0
    %395 = vmatpush.msra.mxu0 0.0
    %396 = vmatpush.msra.mxu0 0.0
    %397 = vmatpush.msra.mxu0 %v221
    %398 = vmatpush.msra.mxu0 %v132
    %399 = vmatpush.msra.mxu0 %v116
    %400 = vmatpush.msra.mxu0 %v100
    %401 = vmatpush.msra.mxu0 %v84
    %402 = vmatpush.msra.mxu0 %v68
    %403 = vmatpush.msra.mxu0 %v52
    %404 = vmatmul.f32.gmra.mxu0 %v196
    %v405 = vpop.f32.mrf.mxu0
    %v406 = vadd.f32 %v168, %v405
    %407 = vmatmul.f32.gmra.mxu0 %v199
    %v408 = vpop.f32.mrf.mxu0
    %v409 = vadd.f32 %v168, %v408
    %410 = vdwg.mxu0
    %411 = vmatpush.msra.mxu0 0.0
    %412 = vmatpush.msra.mxu0 0.0
    %413 = vmatpush.msra.mxu0 0.0
    %414 = vmatpush.msra.mxu0 0.0
    %415 = vmatpush.msra.mxu0 0.0
    %416 = vmatpush.msra.mxu0 0.0
    %417 = vmatpush.msra.mxu0 0.0
    %418 = vmatpush.msra.mxu0 0.0
    %419 = vmatpush.msra.mxu0 0.0
    %420 = vmatpush.msra.mxu0 %v224
    %421 = vmatpush.msra.mxu0 %v133
    %422 = vmatpush.msra.mxu0 %v117
    %423 = vmatpush.msra.mxu0 %v101
    %424 = vmatpush.msra.mxu0 %v85
    %425 = vmatpush.msra.mxu0 %v69
    %426 = vmatpush.msra.mxu0 %v53
    %427 = vmatmul.f32.gmra.mxu0 %v196
    %v428 = vpop.f32.mrf.mxu0
    %v429 = vadd.f32 %v169, %v428
    %430 = vmatmul.f32.gmra.mxu0 %v199
    %v431 = vpop.f32.mrf.mxu0
    %v432 = vadd.f32 %v169, %v431
    %433 = vdwg.mxu0
    %434 = vmatpush.msra.mxu0 0.0
    %435 = vmatpush.msra.mxu0 0.0
    %436 = vmatpush.msra.mxu0 0.0
    %437 = vmatpush.msra.mxu0 0.0
    %438 = vmatpush.msra.mxu0 0.0
    %439 = vmatpush.msra.mxu0 0.0
    %440 = vmatpush.msra.mxu0 0.0
    %441 = vmatpush.msra.mxu0 0.0
    %442 = vmatpush.msra.mxu0 0.0
    %443 = vmatpush.msra.mxu0 %v227
    %444 = vmatpush.msra.mxu0 %v134
    %445 = vmatpush.msra.mxu0 %v118
    %446 = vmatpush.msra.mxu0 %v102
    %447 = vmatpush.msra.mxu0 %v86
    %448 = vmatpush.msra.mxu0 %v70
    %449 = vmatpush.msra.mxu0 %v54
    %450 = vmatmul.f32.gmra.mxu0 %v196
    %v451 = vpop.f32.mrf.mxu0
    %v452 = vadd.f32 %v170, %v451
    %453 = vmatmul.f32.gmra.mxu0 %v199
    %v454 = vpop.f32.mrf.mxu0
    %v455 = vadd.f32 %v170, %v454
    %456 = vdwg.mxu0
    %457 = vmatpush.msra.mxu0 0.0
    %458 = vmatpush.msra.mxu0 0.0
    %459 = vmatpush.msra.mxu0 0.0
    %460 = vmatpush.msra.mxu0 0.0
    %461 = vmatpush.msra.mxu0 0.0
    %462 = vmatpush.msra.mxu0 0.0
    %463 = vmatpush.msra.mxu0 0.0
    %464 = vmatpush.msra.mxu0 0.0
    %465 = vmatpush.msra.mxu0 0.0
    %466 = vmatpush.msra.mxu0 %v230
    %467 = vmatpush.msra.mxu0 %v135
    %468 = vmatpush.msra.mxu0 %v119
    %469 = vmatpush.msra.mxu0 %v103
    %470 = vmatpush.msra.mxu0 %v87
    %471 = vmatpush.msra.mxu0 %v71
    %472 = vmatpush.msra.mxu0 %v55
    %473 = vmatmul.f32.gmra.mxu0 %v196
    %v474 = vpop.f32.mrf.mxu0
    %v475 = vadd.f32 %v171, %v474
    %476 = vmatmul.f32.gmra.mxu0 %v199
    %v477 = vpop.f32.mrf.mxu0
    %v478 = vadd.f32 %v171, %v477
    %479 = vdwg.mxu0
    %480 = vmatpush.msra.mxu0 0.0
    %481 = vmatpush.msra.mxu0 0.0
    %482 = vmatpush.msra.mxu0 0.0
    %483 = vmatpush.msra.mxu0 0.0
    %484 = vmatpush.msra.mxu0 0.0
    %485 = vmatpush.msra.mxu0 0.0
    %486 = vmatpush.msra.mxu0 0.0
    %487 = vmatpush.msra.mxu0 0.0
    %488 = vmatpush.msra.mxu0 0.0
    %489 = vmatpush.msra.mxu0 %v233
    %490 = vmatpush.msra.mxu0 %v136
    %491 = vmatpush.msra.mxu0 %v120
    %492 = vmatpush.msra.mxu0 %v104
    %493 = vmatpush.msra.mxu0 %v88
    %494 = vmatpush.msra.mxu0 %v72
    %495 = vmatpush.msra.mxu0 %v56
    %496 = vmatmul.f32.gmra.mxu0 %v196
    %v497 = vpop.f32.mrf.mxu0
    %v498 = vadd.f32 %v172, %v497
    %499 = vmatmul.f32.gmra.mxu0 %v199
    %v500 = vpop.f32.mrf.mxu0
    %v501 = vadd.f32 %v172, %v500
    %502 = vdwg.mxu0
    %503 = vmatpush.msra.mxu0 0.0
    %504 = vmatpush.msra.mxu0 0.0
    %505 = vmatpush.msra.mxu0 0.0
    %506 = vmatpush.msra.mxu0 0.0
    %507 = vmatpush.msra.mxu0 0.0
    %508 = vmatpush.msra.mxu0 0.0
    %509 = vmatpush.msra.mxu0 0.0
    %510 = vmatpush.msra.mxu0 0.0
    %511 = vmatpush.msra.mxu0 0.0
    %512 = vmatpush.msra.mxu0 %v236
    %513 = vmatpush.msra.mxu0 %v137
    %514 = vmatpush.msra.mxu0 %v121
    %515 = vmatpush.msra.mxu0 %v105
    %516 = vmatpush.msra.mxu0 %v89
    %517 = vmatpush.msra.mxu0 %v73
    %518 = vmatpush.msra.mxu0 %v57
    %519 = vmatmul.f32.gmra.mxu0 %v196
    %v520 = vpop.f32.mrf.mxu0
    %v521 = vadd.f32 %v173, %v520
    %522 = vmatmul.f32.gmra.mxu0 %v199
    %v523 = vpop.f32.mrf.mxu0
    %v524 = vadd.f32 %v173, %v523
    %525 = vdwg.mxu0
    %526 = vmatpush.msra.mxu0 0.0
    %527 = vmatpush.msra.mxu0 0.0
    %528 = vmatpush.msra.mxu0 0.0
    %529 = vmatpush.msra.mxu0 0.0
    %530 = vmatpush.msra.mxu0 0.0
    %531 = vmatpush.msra.mxu0 0.0
    %532 = vmatpush.msra.mxu0 0.0
    %533 = vmatpush.msra.mxu0 0.0
    %534 = vmatpush.msra.mxu0 0.0
    %535 = vmatpush.msra.mxu0 %v239
    %536 = vmatpush.msra.mxu0 %v138
    %537 = vmatpush.msra.mxu0 %v122
    %538 = vmatpush.msra.mxu0 %v106
    %539 = vmatpush.msra.mxu0 %v90
    %540 = vmatpush.msra.mxu0 %v74
    %541 = vmatpush.msra.mxu0 %v58
    %542 = vmatmul.f32.gmra.mxu0 %v196
    %v543 = vpop.f32.mrf.mxu0
    %v544 = vadd.f32 %v174, %v543
    %545 = vmatmul.f32.gmra.mxu0 %v199
    %v546 = vpop.f32.mrf.mxu0
    %v547 = vadd.f32 %v174, %v546
    %548 = vdwg.mxu0
    %549 = vmatpush.msra.mxu0 0.0
    %550 = vmatpush.msra.mxu0 0.0
    %551 = vmatpush.msra.mxu0 0.0
    %552 = vmatpush.msra.mxu0 0.0
    %553 = vmatpush.msra.mxu0 0.0
    %554 = vmatpush.msra.mxu0 0.0
    %555 = vmatpush.msra.mxu0 0.0
    %556 = vmatpush.msra.mxu0 0.0
    %557 = vmatpush.msra.mxu0 0.0
    %558 = vmatpush.msra.mxu0 %v242
    %559 = vmatpush.msra.mxu0 %v139
    %560 = vmatpush.msra.mxu0 %v123
    %561 = vmatpush.msra.mxu0 %v107
    %562 = vmatpush.msra.mxu0 %v91
    %563 = vmatpush.msra.mxu0 %v75
    %564 = vmatpush.msra.mxu0 %v59
    %565 = vmatmul.f32.gmra.mxu0 %v196
    %v566 = vpop.f32.mrf.mxu0
    %v567 = vadd.f32 %v175, %v566
    %568 = vmatmul.f32.gmra.mxu0 %v199
    %v569 = vpop.f32.mrf.mxu0
    %v570 = vadd.f32 %v175, %v569
    %571 = vdwg.mxu0
    %572 = vmatpush.msra.mxu0 0.0
    %573 = vmatpush.msra.mxu0 0.0
    %574 = vmatpush.msra.mxu0 0.0
    %575 = vmatpush.msra.mxu0 0.0
    %576 = vmatpush.msra.mxu0 0.0
    %577 = vmatpush.msra.mxu0 0.0
    %578 = vmatpush.msra.mxu0 0.0
    %579 = vmatpush.msra.mxu0 0.0
    %580 = vmatpush.msra.mxu0 0.0
    %581 = vmatpush.msra.mxu0 %v245
    %582 = vmatpush.msra.mxu0 %v140
    %583 = vmatpush.msra.mxu0 %v124
    %584 = vmatpush.msra.mxu0 %v108
    %585 = vmatpush.msra.mxu0 %v92
    %586 = vmatpush.msra.mxu0 %v76
    %587 = vmatpush.msra.mxu0 %v60
    %588 = vmatmul.f32.gmra.mxu0 %v196
    %v589 = vpop.f32.mrf.mxu0
    %v590 = vadd.f32 %v176, %v589
    %591 = vmatmul.f32.gmra.mxu0 %v199
    %v592 = vpop.f32.mrf.mxu0
    %v593 = vadd.f32 %v176, %v592
    %594 = vdwg.mxu0
    %595 = vmatpush.msra.mxu0 0.0
    %596 = vmatpush.msra.mxu0 0.0
    %597 = vmatpush.msra.mxu0 0.0
    %598 = vmatpush.msra.mxu0 0.0
    %599 = vmatpush.msra.mxu0 0.0
    %600 = vmatpush.msra.mxu0 0.0
    %601 = vmatpush.msra.mxu0 0.0
    %602 = vmatpush.msra.mxu0 0.0
    %603 = vmatpush.msra.mxu0 0.0
    %604 = vmatpush.msra.mxu0 %v248
    %605 = vmatpush.msra.mxu0 %v141
    %606 = vmatpush.msra.mxu0 %v125
    %607 = vmatpush.msra.mxu0 %v109
    %608 = vmatpush.msra.mxu0 %v93
    %609 = vmatpush.msra.mxu0 %v77
    %610 = vmatpush.msra.mxu0 %v61
    %611 = vmatmul.f32.gmra.mxu0 %v196
    %v612 = vpop.f32.mrf.mxu0
    %v613 = vadd.f32 %v177, %v612
    %614 = vmatmul.f32.gmra.mxu0 %v199
    %v615 = vpop.f32.mrf.mxu0
    %v616 = vadd.f32 %v177, %v615
    %617 = vdwg.mxu0
    %618 = vst [vmem:[%s3] sm:$0xff] %v268
    %619 = vst [vmem:[%s3 + $0x8] sm:$0xff] %v291
    %620 = vst [vmem:[%s3 + $0x10] sm:$0xff] %v314
    %621 = vst [vmem:[%s3 + $0x18] sm:$0xff] %v337
    %622 = vst [vmem:[%s3 + $0x20] sm:$0xff] %v360
    %623 = vst [vmem:[%s3 + $0x28] sm:$0xff] %v383
    %624 = vst [vmem:[%s3 + $0x30] sm:$0xff] %v406
    %625 = vst [vmem:[%s3 + $0x38] sm:$0xff] %v429
    %626 = vst [vmem:[%s3 + $0x40] sm:$0xff] %v452
    %627 = vst [vmem:[%s3 + $0x48] sm:$0xff] %v475
    %628 = vst [vmem:[%s3 + $0x50] sm:$0xff] %v498
    %629 = vst [vmem:[%s3 + $0x58] sm:$0xff] %v521
    %630 = vst [vmem:[%s3 + $0x60] sm:$0xff] %v544
    %631 = vst [vmem:[%s3 + $0x68] sm:$0xff] %v567
    %632 = vst [vmem:[%s3 + $0x70] sm:$0xff] %v590
    %633 = vst [vmem:[%s3 + $0x78] sm:$0xff] %v613
    %634 = vst [vmem:[%s3 + $0x80] sm:$0xff] %v271
    %635 = vst [vmem:[%s3 + $0x88] sm:$0xff] %v294
    %636 = vst [vmem:[%s3 + $0x90] sm:$0xff] %v317
    %637 = vst [vmem:[%s3 + $0x98] sm:$0xff] %v340
    %638 = vst [vmem:[%s3 + $0xa0] sm:$0xff] %v363
    %639 = vst [vmem:[%s3 + $0xa8] sm:$0xff] %v386
    %640 = vst [vmem:[%s3 + $0xb0] sm:$0xff] %v409
    %641 = vst [vmem:[%s3 + $0xb8] sm:$0xff] %v432
    %642 = vst [vmem:[%s3 + $0xc0] sm:$0xff] %v455
    %643 = vst [vmem:[%s3 + $0xc8] sm:$0xff] %v478
    %644 = vst [vmem:[%s3 + $0xd0] sm:$0xff] %v501
    %645 = vst [vmem:[%s3 + $0xd8] sm:$0xff] %v524
    %646 = vst [vmem:[%s3 + $0xe0] sm:$0xff] %v547
    %647 = vst [vmem:[%s3 + $0xe8] sm:$0xff] %v570
    %648 = vst [vmem:[%s3 + $0xf0] sm:$0xff] %v593
    %649 = vst [vmem:[%s3 + $0xf8] sm:$0xff] %v616
    // Predicated region
    $region22: #{decoder_forward_train.5} parent=1 // pred_check
      _
    $region23: #{decoder_forward_train.5} parent=1 // pred_check_branch
      %651 = sbr.rel (0) target = $region25
    $region24: #{decoder_forward_train.5} parent=1 // pred_region
      _
    $region25: #{decoder_forward_train.5} parent=1 // pred_fallthru
      _
    // Predicated region
    $region26: #{decoder_forward_train.5} parent=1 // pred_check
      _
    $region27: #{decoder_forward_train.5} parent=1 // pred_check_branch
      %653 = sbr.rel (0) target = $region29
    $region28: #{decoder_forward_train.5} parent=1 // pred_region
      _
    $region29: #{decoder_forward_train.5} parent=1 // pred_fallthru
      _
    %654 = vsyncpa [#allocation3], 1
    %655 = vsyncpa [#allocation5], 1

// kernel: decoder_forward_train.7
$region0: #{decoder_forward_train.7}
  #allocation0 [shape = 'u32[]', space=smem, size = 0x4, offset = 0x4, fixed_abs, tag = 'smem constant byte address 0x4 - core index']
  #allocation1 [shape = 'u32[72,128]{1,0:T(1,128)}', space=vmem, size = 0x9000, scoped, tag = 'internal scratch']
  %s0 = inlined_call_operand.vmem [shape: f32[2,544], index: 0, kind: input, shape index: {}]
  %s1 = inlined_call_operand.hbm [shape: f32[544,512], index: 1, kind: input, shape index: {}]
  %s2 = inlined_call_operand.hbm [shape: f32[1,512], index: 2, kind: input, shape index: {}]
  %s3 = inlined_call_operand.vmem [shape: f32[2,512], index: 3, kind: output, shape index: {}]
  %s4 = sld [smem:[#allocation0]]
  $region30: #{decoder_forward_train.7} parent=0
    _
  %s6 = ssub.s32 1, %s4
  %s7 = scalar_select 0, %s6, %s4
  $region1: #{decoder_forward_train.7} parent=0
    #allocation2 [shape = 'u8[1114112]{0}', space=vmem, size = 0x110000, scoped, tag = 'input window, operand 1, single buffered']
    #allocation3 [shape = 's32[1]{0}', space=sflag, size = 0x4, scoped, tag = 'scoped memory for decoder_forward_train.7']
    #allocation4 [shape = 'u8[2048]{0}', space=vmem, size = 0x800, scoped, tag = 'input window, operand 2, single buffered']
    #allocation5 [shape = 's32[1]{0}', space=sflag, size = 0x4, scoped, tag = 'scoped memory for decoder_forward_train.7']
    %8 = vsyncpa [#allocation3], 0
    %9 = vsyncpa [#allocation5], 0
    // Predicated region
    $region2: #{decoder_forward_train.7} parent=1 // pred_check
      _
    $region3: #{decoder_forward_train.7} parent=1 // pred_check_branch
      %11 = sbr.rel (0) target = $region5
    $region4: #{decoder_forward_train.7} parent=1 // pred_region
      _
    $region5: #{decoder_forward_train.7} parent=1 // pred_fallthru
      _
    // Predicated region
    $region6: #{decoder_forward_train.7} parent=1 // pred_check
      _
    $region7: #{decoder_forward_train.7} parent=1 // pred_check_branch
      %13 = sbr.rel (0) target = $region9
    $region8: #{decoder_forward_train.7} parent=1 // pred_region
      %15 = vsyncadd [#allocation3], 0
      %s16 = sshll.u32 %s1, 4
      %s17 = int_to_ptr.hbm [resolvable:$true] %s16
      %s18 = sshll.u32 [#allocation2], 4
      %s19 = int_to_ptr.vmem [resolvable:$true] %s18
      %24 = dma.hbm_to_vmem [thread:$0]  %s17, 34816, %s19, [#allocation3], 512, 512, 32
    $region9: #{decoder_forward_train.7} parent=1 // pred_fallthru
      _
    // Predicated region
    $region10: #{decoder_forward_train.7} parent=1 // pred_check
      _
    $region11: #{decoder_forward_train.7} parent=1 // pred_check_branch
      %26 = sbr.rel (0) target = $region13
    $region12: #{decoder_forward_train.7} parent=1 // pred_region
      %28 = vsyncadd [#allocation5], 0
      %s30 = sshll.u32 %s2, 4
      %s31 = int_to_ptr.hbm [resolvable:$true] %s30
      %s32 = sshll.u32 [#allocation4], 4
      %s33 = int_to_ptr.vmem [resolvable:$true] %s32
      %35 = dma.hbm_to_vmem [thread:$0]  %s31, 64, %s33, [#allocation5]
    $region13: #{decoder_forward_train.7} parent=1 // pred_fallthru
      _
    // Predicated region
    $region14: #{decoder_forward_train.7} parent=1 // pred_check
      _
    $region15: #{decoder_forward_train.7} parent=1 // pred_check_branch
      %37 = sbr.rel (0) target = $region17
    $region16: #{decoder_forward_train.7} parent=1 // pred_region
      %39 = dma.done [#allocation3], 34816
    $region17: #{decoder_forward_train.7} parent=1 // pred_fallthru
      _
    // Predicated region
    $region18: #{decoder_forward_train.7} parent=1 // pred_check
      _
    $region19: #{decoder_forward_train.7} parent=1 // pred_check_branch
      %41 = sbr.rel (0) target = $region21
    $region20: #{decoder_forward_train.7} parent=1 // pred_region
      %43 = dma.done [#allocation5], 64
    $region21: #{decoder_forward_train.7} parent=1 // pred_fallthru
      _
    %v44 = vld [vmem:[%s0] sm:$0xff]
    %v45 = vld [vmem:[%s0 + $0x8] sm:$0x3]
    %v46 = vld [vmem:[#allocation2] sm:$0xff]
    %v47 = vld [vmem:[#allocation2 + $0x8] sm:$0xff]
    %v48 = vld [vmem:[#allocation2 + $0x10] sm:$0xff]
    %v49 = vld [vmem:[#allocation2 + $0x18] sm:$0xff]
    %v50 = vld [vmem:[#allocation2 + $0x20] sm:$0xff]
    %v51 = vld [vmem:[#allocation2 + $0x28] sm:$0xff]
    %v52 = vld [vmem:[#allocation2 + $0x30] sm:$0xff]
    %v53 = vld [vmem:[#allocation2 + $0x38] sm:$0xff]
    %v54 = vld [vmem:[#allocation2 + $0x40] sm:$0xff]
    %v55 = vld [vmem:[#allocation2 + $0x48] sm:$0xff]
    %v56 = vld [vmem:[#allocation2 + $0x50] sm:$0xff]
    %v57 = vld [vmem:[#allocation2 + $0x58] sm:$0xff]
    %v58 = vld [vmem:[#allocation2 + $0x60] sm:$0xff]
    %v59 = vld [vmem:[#allocation2 + $0x68] sm:$0xff]
    %v60 = vld [vmem:[#allocation2 + $0x70] sm:$0xff]
    %v61 = vld [vmem:[#allocation2 + $0x78] sm:$0xff]
    %v62 = vld [vmem:[#allocation2 + $0x80] sm:$0xff]
    %v63 = vld [vmem:[#allocation2 + $0x88] sm:$0xff]
    %v64 = vld [vmem:[#allocation2 + $0x90] sm:$0xff]
    %v65 = vld [vmem:[#allocation2 + $0x98] sm:$0xff]
    %v66 = vld [vmem:[#allocation2 + $0xa0] sm:$0xff]
    %v67 = vld [vmem:[#allocation2 + $0xa8] sm:$0xff]
    %v68 = vld [vmem:[#allocation2 + $0xb0] sm:$0xff]
    %v69 = vld [vmem:[#allocation2 + $0xb8] sm:$0xff]
    %v70 = vld [vmem:[#allocation2 + $0xc0] sm:$0xff]
    %v71 = vld [vmem:[#allocation2 + $0xc8] sm:$0xff]
    %v72 = vld [vmem:[#allocation2 + $0xd0] sm:$0xff]
    %v73 = vld [vmem:[#allocation2 + $0xd8] sm:$0xff]
    %v74 = vld [vmem:[#allocation2 + $0xe0] sm:$0xff]
    %v75 = vld [vmem:[#allocation2 + $0xe8] sm:$0xff]
    %v76 = vld [vmem:[#allocation2 + $0xf0] sm:$0xff]
    %v77 = vld [vmem:[#allocation2 + $0xf8] sm:$0xff]
    %v78 = vld [vmem:[#allocation2 + $0x100] sm:$0xff]
    %v79 = vld [vmem:[#allocation2 + $0x108] sm:$0xff]
    %v80 = vld [vmem:[#allocation2 + $0x110] sm:$0xff]
    %v81 = vld [vmem:[#allocation2 + $0x118] sm:$0xff]
    %v82 = vld [vmem:[#allocation2 + $0x120] sm:$0xff]
    %v83 = vld [vmem:[#allocation2 + $0x128] sm:$0xff]
    %v84 = vld [vmem:[#allocation2 + $0x130] sm:$0xff]
    %v85 = vld [vmem:[#allocation2 + $0x138] sm:$0xff]
    %v86 = vld [vmem:[#allocation2 + $0x140] sm:$0xff]
    %v87 = vld [vmem:[#allocation2 + $0x148] sm:$0xff]
    %v88 = vld [vmem:[#allocation2 + $0x150] sm:$0xff]
    %v89 = vld [vmem:[#allocation2 + $0x158] sm:$0xff]
    %v90 = vld [vmem:[#allocation2 + $0x160] sm:$0xff]
    %v91 = vld [vmem:[#allocation2 + $0x168] sm:$0xff]
    %v92 = vld [vmem:[#allocation2 + $0x170] sm:$0xff]
    %v93 = vld [vmem:[#allocation2 + $0x178] sm:$0xff]
    %v94 = vld [vmem:[#allocation2 + $0x180] sm:$0xff]
    %v95 = vld [vmem:[#allocation2 + $0x188] sm:$0xff]
    %v96 = vld [vmem:[#allocation2 + $0x190] sm:$0xff]
    %v97 = vld [vmem:[#allocation2 + $0x198] sm:$0xff]
    %v98 = vld [vmem:[#allocation2 + $0x1a0] sm:$0xff]
    %v99 = vld [vmem:[#allocation2 + $0x1a8] sm:$0xff]
    %v100 = vld [vmem:[#allocation2 + $0x1b0] sm:$0xff]
    %v101 = vld [vmem:[#allocation2 + $0x1b8] sm:$0xff]
    %v102 = vld [vmem:[#allocation2 + $0x1c0] sm:$0xff]
    %v103 = vld [vmem:[#allocation2 + $0x1c8] sm:$0xff]
    %v104 = vld [vmem:[#allocation2 + $0x1d0] sm:$0xff]
    %v105 = vld [vmem:[#allocation2 + $0x1d8] sm:$0xff]
    %v106 = vld [vmem:[#allocation2 + $0x1e0] sm:$0xff]
    %v107 = vld [vmem:[#allocation2 + $0x1e8] sm:$0xff]
    %v108 = vld [vmem:[#allocation2 + $0x1f0] sm:$0xff]
    %v109 = vld [vmem:[#allocation2 + $0x1f8] sm:$0xff]
    %v110 = vld [vmem:[#allocation2 + $0x200] sm:$0xff]
    %v111 = vld [vmem:[#allocation2 + $0x208] sm:$0xff]
    %v112 = vld [vmem:[#allocation2 + $0x210] sm:$0xff]
    %v113 = vld [vmem:[#allocation2 + $0x218] sm:$0xff]
    %v114 = vld [vmem:[#allocation2 + $0x220] sm:$0xff]
    %v115 = vld [vmem:[#allocation2 + $0x228] sm:$0xff]
    %v116 = vld [vmem:[#allocation2 + $0x230] sm:$0xff]
    %v117 = vld [vmem:[#allocation2 + $0x238] sm:$0xff]
    %v118 = vld [vmem:[#allocation2 + $0x240] sm:$0xff]
    %v119 = vld [vmem:[#allocation2 + $0x248] sm:$0xff]
    %v120 = vld [vmem:[#allocation2 + $0x250] sm:$0xff]
    %v121 = vld [vmem:[#allocation2 + $0x258] sm:$0xff]
    %v122 = vld [vmem:[#allocation2 + $0x260] sm:$0xff]
    %v123 = vld [vmem:[#allocation2 + $0x268] sm:$0xff]
    %v124 = vld [vmem:[#allocation2 + $0x270] sm:$0xff]
    %v125 = vld [vmem:[#allocation2 + $0x278] sm:$0xff]
    %v126 = vld [vmem:[#allocation2 + $0x280] sm:$0xff]
    %v127 = vld [vmem:[#allocation2 + $0x288] sm:$0xff]
    %v128 = vld [vmem:[#allocation2 + $0x290] sm:$0xff]
    %v129 = vld [vmem:[#allocation2 + $0x298] sm:$0xff]
    %v130 = vld [vmem:[#allocation2 + $0x2a0] sm:$0xff]
    %v131 = vld [vmem:[#allocation2 + $0x2a8] sm:$0xff]
    %v132 = vld [vmem:[#allocation2 + $0x2b0] sm:$0xff]
    %v133 = vld [vmem:[#allocation2 + $0x2b8] sm:$0xff]
    %v134 = vld [vmem:[#allocation2 + $0x2c0] sm:$0xff]
    %v135 = vld [vmem:[#allocation2 + $0x2c8] sm:$0xff]
    %v136 = vld [vmem:[#allocation2 + $0x2d0] sm:$0xff]
    %v137 = vld [vmem:[#allocation2 + $0x2d8] sm:$0xff]
    %v138 = vld [vmem:[#allocation2 + $0x2e0] sm:$0xff]
    %v139 = vld [vmem:[#allocation2 + $0x2e8] sm:$0xff]
    %v140 = vld [vmem:[#allocation2 + $0x2f0] sm:$0xff]
    %v141 = vld [vmem:[#allocation2 + $0x2f8] sm:$0xff]
    %v142 = vld [vmem:[#allocation2 + $0x300] sm:$0xff]
    %v143 = vld [vmem:[#allocation2 + $0x308] sm:$0xff]
    %v144 = vld [vmem:[#allocation2 + $0x310] sm:$0xff]
    %v145 = vld [vmem:[#allocation2 + $0x318] sm:$0xff]
    %v146 = vld [vmem:[#allocation2 + $0x320] sm:$0xff]
    %v147 = vld [vmem:[#allocation2 + $0x328] sm:$0xff]
    %v148 = vld [vmem:[#allocation2 + $0x330] sm:$0xff]
    %v149 = vld [vmem:[#allocation2 + $0x338] sm:$0xff]
    %v150 = vld [vmem:[#allocation2 + $0x340] sm:$0xff]
    %v151 = vld [vmem:[#allocation2 + $0x348] sm:$0xff]
    %v152 = vld [vmem:[#allocation2 + $0x350] sm:$0xff]
    %v153 = vld [vmem:[#allocation2 + $0x358] sm:$0xff]
    %v154 = vld [vmem:[#allocation2 + $0x360] sm:$0xff]
    %v155 = vld [vmem:[#allocation2 + $0x368] sm:$0xff]
    %v156 = vld [vmem:[#allocation2 + $0x370] sm:$0xff]
    %v157 = vld [vmem:[#allocation2 + $0x378] sm:$0xff]
    %v158 = vld [vmem:[#allocation2 + $0x380] sm:$0xff]
    %v159 = vld [vmem:[#allocation2 + $0x388] sm:$0xff]
    %v160 = vld [vmem:[#allocation2 + $0x390] sm:$0xff]
    %v161 = vld [vmem:[#allocation2 + $0x398] sm:$0xff]
    %v162 = vld [vmem:[#allocation2 + $0x3a0] sm:$0xff]
    %v163 = vld [vmem:[#allocation2 + $0x3a8] sm:$0xff]
    %v164 = vld [vmem:[#allocation2 + $0x3b0] sm:$0xff]
    %v165 = vld [vmem:[#allocation2 + $0x3b8] sm:$0xff]
    %v166 = vld [vmem:[#allocation2 + $0x3c0] sm:$0xff]
    %v167 = vld [vmem:[#allocation2 + $0x3c8] sm:$0xff]
    %v168 = vld [vmem:[#allocation2 + $0x3d0] sm:$0xff]
    %v169 = vld [vmem:[#allocation2 + $0x3d8] sm:$0xff]
    %v170 = vld [vmem:[#allocation2 + $0x3e0] sm:$0xff]
    %v171 = vld [vmem:[#allocation2 + $0x3e8] sm:$0xff]
    %v172 = vld [vmem:[#allocation2 + $0x3f0] sm:$0xff]
    %v173 = vld [vmem:[#allocation2 + $0x3f8] sm:$0xff]
    %v174 = vld [vmem:[#allocation2 + $0x400] sm:$0xff]
    %v175 = vld [vmem:[#allocation2 + $0x408] sm:$0xff]
    %v176 = vld [vmem:[#allocation2 + $0x410] sm:$0xff]
    %v177 = vld [vmem:[#allocation2 + $0x418] sm:$0xff]
    %v178 = vld [vmem:[#allocation2 + $0x420] sm:$0xff]
    %v179 = vld [vmem:[#allocation2 + $0x428] sm:$0xff]
    %v180 = vld [vmem:[#allocation2 + $0x430] sm:$0xff]
    %v181 = vld [vmem:[#allocation2 + $0x438] sm:$0xff]
    %v182 = vld [vmem:[#allocation2 + $0x440] sm:$0xff]
    %v183 = vld [vmem:[#allocation2 + $0x448] sm:$0xff]
    %v184 = vld [vmem:[#allocation2 + $0x450] sm:$0xff]
    %v185 = vld [vmem:[#allocation2 + $0x458] sm:$0xff]
    %v186 = vld [vmem:[#allocation2 + $0x460] sm:$0xff]
    %v187 = vld [vmem:[#allocation2 + $0x468] sm:$0xff]
    %v188 = vld [vmem:[#allocation2 + $0x470] sm:$0xff]
    %v189 = vld [vmem:[#allocation2 + $0x478] sm:$0xff]
    %v190 = vld [vmem:[#allocation2 + $0x480] sm:$0xff]
    %v191 = vld [vmem:[#allocation2 + $0x488] sm:$0xff]
    %v192 = vld [vmem:[#allocation2 + $0x490] sm:$0xff]
    %v193 = vld [vmem:[#allocation2 + $0x498] sm:$0xff]
    %v194 = vld [vmem:[#allocation2 + $0x4a0] sm:$0xff]
    %v195 = vld [vmem:[#allocation2 + $0x4a8] sm:$0xff]
    %v196 = vld [vmem:[#allocation2 + $0x4b0] sm:$0xff]
    %v197 = vld [vmem:[#allocation2 + $0x4b8] sm:$0xff]
    %v198 = vld [vmem:[#allocation2 + $0x4c0] sm:$0xff]
    %v199 = vld [vmem:[#allocation2 + $0x4c8] sm:$0xff]
    %v200 = vld [vmem:[#allocation2 + $0x4d0] sm:$0xff]
    %v201 = vld [vmem:[#allocation2 + $0x4d8] sm:$0xff]
    %v202 = vld [vmem:[#allocation2 + $0x4e0] sm:$0xff]
    %v203 = vld [vmem:[#allocation2 + $0x4e8] sm:$0xff]
    %v204 = vld [vmem:[#allocation2 + $0x4f0] sm:$0xff]
    %v205 = vld [vmem:[#allocation2 + $0x4f8] sm:$0xff]
    %v206 = vld [vmem:[#allocation2 + $0x500] sm:$0xff]
    %v207 = vld [vmem:[#allocation2 + $0x508] sm:$0xff]
    %v208 = vld [vmem:[#allocation2 + $0x510] sm:$0xff]
    %v209 = vld [vmem:[#allocation2 + $0x518] sm:$0xff]
    %v210 = vld [vmem:[#allocation2 + $0x520] sm:$0xff]
    %v211 = vld [vmem:[#allocation2 + $0x528] sm:$0xff]
    %v212 = vld [vmem:[#allocation2 + $0x530] sm:$0xff]
    %v213 = vld [vmem:[#allocation2 + $0x538] sm:$0xff]
    %v214 = vld [vmem:[#allocation2 + $0x540] sm:$0xff]
    %v215 = vld [vmem:[#allocation2 + $0x548] sm:$0xff]
    %v216 = vld [vmem:[#allocation2 + $0x550] sm:$0xff]
    %v217 = vld [vmem:[#allocation2 + $0x558] sm:$0xff]
    %v218 = vld [vmem:[#allocation2 + $0x560] sm:$0xff]
    %v219 = vld [vmem:[#allocation2 + $0x568] sm:$0xff]
    %v220 = vld [vmem:[#allocation2 + $0x570] sm:$0xff]
    %v221 = vld [vmem:[#allocation2 + $0x578] sm:$0xff]
    %v222 = vld [vmem:[#allocation2 + $0x580] sm:$0xff]
    %v223 = vld [vmem:[#allocation2 + $0x588] sm:$0xff]
    %v224 = vld [vmem:[#allocation2 + $0x590] sm:$0xff]
    %v225 = vld [vmem:[#allocation2 + $0x598] sm:$0xff]
    %v226 = vld [vmem:[#allocation2 + $0x5a0] sm:$0xff]
    %v227 = vld [vmem:[#allocation2 + $0x5a8] sm:$0xff]
    %v228 = vld [vmem:[#allocation2 + $0x5b0] sm:$0xff]
    %v229 = vld [vmem:[#allocation2 + $0x5b8] sm:$0xff]
    %v230 = vld [vmem:[#allocation2 + $0x5c0] sm:$0xff]
    %v231 = vld [vmem:[#allocation2 + $0x5c8] sm:$0xff]
    %v232 = vld [vmem:[#allocation2 + $0x5d0] sm:$0xff]
    %v233 = vld [vmem:[#allocation2 + $0x5d8] sm:$0xff]
    %v234 = vld [vmem:[#allocation2 + $0x5e0] sm:$0xff]
    %v235 = vld [vmem:[#allocation2 + $0x5e8] sm:$0xff]
    %v236 = vld [vmem:[#allocation2 + $0x5f0] sm:$0xff]
    %v237 = vld [vmem:[#allocation2 + $0x5f8] sm:$0xff]
    %v238 = vld [vmem:[#allocation2 + $0x600] sm:$0xff]
    %v239 = vld [vmem:[#allocation2 + $0x608] sm:$0xff]
    %v240 = vld [vmem:[#allocation2 + $0x610] sm:$0xff]
    %v241 = vld [vmem:[#allocation2 + $0x618] sm:$0xff]
    %v242 = vld [vmem:[#allocation2 + $0x620] sm:$0xff]
    %v243 = vld [vmem:[#allocation2 + $0x628] sm:$0xff]
    %v244 = vld [vmem:[#allocation2 + $0x630] sm:$0xff]
    %v245 = vld [vmem:[#allocation2 + $0x638] sm:$0xff]
    %v246 = vld [vmem:[#allocation2 + $0x640] sm:$0xff]
    %v247 = vld [vmem:[#allocation2 + $0x648] sm:$0xff]
    %v248 = vld [vmem:[#allocation2 + $0x650] sm:$0xff]
    %v249 = vld [vmem:[#allocation2 + $0x658] sm:$0xff]
    %v250 = vld [vmem:[#allocation2 + $0x660] sm:$0xff]
    %v251 = vld [vmem:[#allocation2 + $0x668] sm:$0xff]
    %v252 = vld [vmem:[#allocation2 + $0x670] sm:$0xff]
    %v253 = vld [vmem:[#allocation2 + $0x678] sm:$0xff]
    %v254 = vld [vmem:[#allocation2 + $0x680] sm:$0xff]
    %v255 = vld [vmem:[#allocation2 + $0x688] sm:$0xff]
    %v256 = vld [vmem:[#allocation2 + $0x690] sm:$0xff]
    %v257 = vld [vmem:[#allocation2 + $0x698] sm:$0xff]
    %v258 = vld [vmem:[#allocation2 + $0x6a0] sm:$0xff]
    %v259 = vld [vmem:[#allocation2 + $0x6a8] sm:$0xff]
    %v260 = vld [vmem:[#allocation2 + $0x6b0] sm:$0xff]
    %v261 = vld [vmem:[#allocation2 + $0x6b8] sm:$0xff]
    %v262 = vld [vmem:[#allocation2 + $0x6c0] sm:$0xff]
    %v263 = vld [vmem:[#allocation2 + $0x6c8] sm:$0xff]
    %v264 = vld [vmem:[#allocation2 + $0x6d0] sm:$0xff]
    %v265 = vld [vmem:[#allocation2 + $0x6d8] sm:$0xff]
    %v266 = vld [vmem:[#allocation2 + $0x6e0] sm:$0xff]
    %v267 = vld [vmem:[#allocation2 + $0x6e8] sm:$0xff]
    %v268 = vld [vmem:[#allocation2 + $0x6f0] sm:$0xff]
    %v269 = vld [vmem:[#allocation2 + $0x6f8] sm:$0xff]
    %v270 = vld [vmem:[#allocation2 + $0x700] sm:$0xff]
    %v271 = vld [vmem:[#allocation2 + $0x708] sm:$0xff]
    %v272 = vld [vmem:[#allocation2 + $0x710] sm:$0xff]
    %v273 = vld [vmem:[#allocation2 + $0x718] sm:$0xff]
    %v274 = vld [vmem:[#allocation2 + $0x720] sm:$0xff]
    %v275 = vld [vmem:[#allocation2 + $0x728] sm:$0xff]
    %v276 = vld [vmem:[#allocation2 + $0x730] sm:$0xff]
    %v277 = vld [vmem:[#allocation2 + $0x738] sm:$0xff]
    %v278 = vld [vmem:[#allocation2 + $0x740] sm:$0xff]
    %v279 = vld [vmem:[#allocation2 + $0x748] sm:$0xff]
    %v280 = vld [vmem:[#allocation2 + $0x750] sm:$0xff]
    %v281 = vld [vmem:[#allocation2 + $0x758] sm:$0xff]
    %v282 = vld [vmem:[#allocation2 + $0x760] sm:$0xff]
    %v283 = vld [vmem:[#allocation2 + $0x768] sm:$0xff]
    %v284 = vld [vmem:[#allocation2 + $0x770] sm:$0xff]
    %v285 = vld [vmem:[#allocation2 + $0x778] sm:$0xff]
    %v286 = vld [vmem:[#allocation2 + $0x780] sm:$0xff]
    %v287 = vld [vmem:[#allocation2 + $0x788] sm:$0xff]
    %v288 = vld [vmem:[#allocation2 + $0x790] sm:$0xff]
    %v289 = vld [vmem:[#allocation2 + $0x798] sm:$0xff]
    %v290 = vld [vmem:[#allocation2 + $0x7a0] sm:$0xff]
    %v291 = vld [vmem:[#allocation2 + $0x7a8] sm:$0xff]
    %v292 = vld [vmem:[#allocation2 + $0x7b0] sm:$0xff]
    %v293 = vld [vmem:[#allocation2 + $0x7b8] sm:$0xff]
    %v294 = vld [vmem:[#allocation2 + $0x7c0] sm:$0xff]
    %v295 = vld [vmem:[#allocation2 + $0x7c8] sm:$0xff]
    %v296 = vld [vmem:[#allocation2 + $0x7d0] sm:$0xff]
    %v297 = vld [vmem:[#allocation2 + $0x7d8] sm:$0xff]
    %v298 = vld [vmem:[#allocation2 + $0x7e0] sm:$0xff]
    %v299 = vld [vmem:[#allocation2 + $0x7e8] sm:$0xff]
    %v300 = vld [vmem:[#allocation2 + $0x7f0] sm:$0xff]
    %v301 = vld [vmem:[#allocation2 + $0x7f8] sm:$0xff]
    %v302 = vld [vmem:[#allocation2 + $0x800] sm:$0xff]
    %v303 = vld [vmem:[#allocation2 + $0x808] sm:$0xff]
    %v304 = vld [vmem:[#allocation2 + $0x810] sm:$0xff]
    %v305 = vld [vmem:[#allocation2 + $0x818] sm:$0xff]
    %v306 = vld [vmem:[#allocation2 + $0x820] sm:$0xff]
    %v307 = vld [vmem:[#allocation2 + $0x828] sm:$0xff]
    %v308 = vld [vmem:[#allocation2 + $0x830] sm:$0xff]
    %v309 = vld [vmem:[#allocation2 + $0x838] sm:$0xff]
    %v310 = vld [vmem:[#allocation2 + $0x840] sm:$0xff]
    %v311 = vld [vmem:[#allocation2 + $0x848] sm:$0xff]
    %v312 = vld [vmem:[#allocation2 + $0x850] sm:$0xff]
    %v313 = vld [vmem:[#allocation2 + $0x858] sm:$0xff]
    %v314 = vld [vmem:[#allocation2 + $0x860] sm:$0xff]
    %v315 = vld [vmem:[#allocation2 + $0x868] sm:$0xff]
    %v316 = vld [vmem:[#allocation2 + $0x870] sm:$0xff]
    %v317 = vld [vmem:[#allocation2 + $0x878] sm:$0xff]
    %v318 = vld [vmem:[#allocation4] sm:$0xf]
    %v320 = vperm.slane %v318, 0
    %v321 = vperm.slane %v318, 1
    %v322 = vperm.slane %v318, 2
    %v323 = vperm.slane %v318, 3
    %330 = vst [vmem:[#allocation1] ss:$4 sm:$0xff] %v44
    %s331 = scalar_lea.vmem [#allocation1], 32
    %332 = vst [vmem:[%s331] ss:$4 sm:$0xff] %v45
    %v333 = vld.sshfl [vmem:[#allocation1] sm:$0xff pattern:$0x73625140]
    %v334 = vld.sshfl [vmem:[#allocation1 + $0x8] sm:$0xff pattern:$0x73625140]
    %v335 = vld.sshfl [vmem:[#allocation1 + $0x10] sm:$0xff pattern:$0x73625140]
    %v336 = vld.sshfl [vmem:[#allocation1 + $0x18] sm:$0xff pattern:$0x73625140]
    %v337 = vld.sshfl [vmem:[#allocation1 + $0x20] sm:$0xff pattern:$0x73625140]
    %vm342 = vcmask 261120
    %v343 = vsel %vm342, %v337, 0
    %345 = vmatpush.msra.mxu0 %v106
    %346 = vmatpush.msra.mxu0 %v102
    %347 = vmatpush.msra.mxu0 %v98
    %348 = vmatpush.msra.mxu0 %v94
    %349 = vmatpush.msra.mxu0 %v90
    %350 = vmatpush.msra.mxu0 %v86
    %351 = vmatpush.msra.mxu0 %v82
    %352 = vmatpush.msra.mxu0 %v78
    %353 = vmatpush.msra.mxu0 %v74
    %354 = vmatpush.msra.mxu0 %v70
    %355 = vmatpush.msra.mxu0 %v66
    %356 = vmatpush.msra.mxu0 %v62
    %357 = vmatpush.msra.mxu0 %v58
    %358 = vmatpush.msra.mxu0 %v54
    %359 = vmatpush.msra.mxu0 %v50
    %360 = vmatpush.msra.mxu0 %v46
    %361 = vmatmul.f32.gmra.mxu0 %v333
    %v362 = vpop.f32.mrf.mxu0
    %v363 = vadd.f32 %v320, %v362
    %364 = vdwg.mxu0
    %365 = vmatpush.msra.mxu0 %v170
    %366 = vmatpush.msra.mxu0 %v166
    %367 = vmatpush.msra.mxu0 %v162
    %368 = vmatpush.msra.mxu0 %v158
    %369 = vmatpush.msra.mxu0 %v154
    %370 = vmatpush.msra.mxu0 %v150
    %371 = vmatpush.msra.mxu0 %v146
    %372 = vmatpush.msra.mxu0 %v142
    %373 = vmatpush.msra.mxu0 %v138
    %374 = vmatpush.msra.mxu0 %v134
    %375 = vmatpush.msra.mxu0 %v130
    %376 = vmatpush.msra.mxu0 %v126
    %377 = vmatpush.msra.mxu0 %v122
    %378 = vmatpush.msra.mxu0 %v118
    %379 = vmatpush.msra.mxu0 %v114
    %380 = vmatpush.msra.mxu0 %v110
    %381 = vmatmul.f32.gmra.mxu0 %v334
    %v382 = vpop.f32.mrf.mxu0
    %v383 = vadd.f32 %v363, %v382
    %384 = vdwg.mxu0
    %385 = vmatpush.msra.mxu0 %v234
    %386 = vmatpush.msra.mxu0 %v230
    %387 = vmatpush.msra.mxu0 %v226
    %388 = vmatpush.msra.mxu0 %v222
    %389 = vmatpush.msra.mxu0 %v218
    %390 = vmatpush.msra.mxu0 %v214
    %391 = vmatpush.msra.mxu0 %v210
    %392 = vmatpush.msra.mxu0 %v206
    %393 = vmatpush.msra.mxu0 %v202
    %394 = vmatpush.msra.mxu0 %v198
    %395 = vmatpush.msra.mxu0 %v194
    %396 = vmatpush.msra.mxu0 %v190
    %397 = vmatpush.msra.mxu0 %v186
    %398 = vmatpush.msra.mxu0 %v182
    %399 = vmatpush.msra.mxu0 %v178
    %400 = vmatpush.msra.mxu0 %v174
    %401 = vmatmul.f32.gmra.mxu0 %v335
    %v402 = vpop.f32.mrf.mxu0
    %v403 = vadd.f32 %v383, %v402
    %404 = vdwg.mxu0
    %405 = vmatpush.msra.mxu0 %v298
    %406 = vmatpush.msra.mxu0 %v294
    %407 = vmatpush.msra.mxu0 %v290
    %408 = vmatpush.msra.mxu0 %v286
    %409 = vmatpush.msra.mxu0 %v282
    %410 = vmatpush.msra.mxu0 %v278
    %411 = vmatpush.msra.mxu0 %v274
    %412 = vmatpush.msra.mxu0 %v270
    %413 = vmatpush.msra.mxu0 %v266
    %414 = vmatpush.msra.mxu0 %v262
    %415 = vmatpush.msra.mxu0 %v258
    %416 = vmatpush.msra.mxu0 %v254
    %417 = vmatpush.msra.mxu0 %v250
    %418 = vmatpush.msra.mxu0 %v246
    %419 = vmatpush.msra.mxu0 %v242
    %420 = vmatpush.msra.mxu0 %v238
    %421 = vmatmul.f32.gmra.mxu0 %v336
    %v422 = vpop.f32.mrf.mxu0
    %v423 = vadd.f32 %v403, %v422
    %424 = vdwg.mxu0
    %425 = vmatpush.msra.mxu0 0.0
    %426 = vmatpush.msra.mxu0 0.0
    %427 = vmatpush.msra.mxu0 0.0
    %428 = vmatpush.msra.mxu0 0.0
    %429 = vmatpush.msra.mxu0 0.0
    %430 = vmatpush.msra.mxu0 0.0
    %431 = vmatpush.msra.mxu0 0.0
    %432 = vmatpush.msra.mxu0 0.0
    %433 = vmatpush.msra.mxu0 0.0
    %434 = vmatpush.msra.mxu0 0.0
    %435 = vmatpush.msra.mxu0 0.0
    %436 = vmatpush.msra.mxu0 0.0
    %437 = vmatpush.msra.mxu0 %v314
    %438 = vmatpush.msra.mxu0 %v310
    %439 = vmatpush.msra.mxu0 %v306
    %440 = vmatpush.msra.mxu0 %v302
    %441 = vmatmul.f32.gmra.mxu0 %v343
    %v442 = vpop.f32.mrf.mxu0
    %v443 = vadd.f32 %v423, %v442
    %444 = vdwg.mxu0
    %445 = vmatpush.msra.mxu0 %v107
    %446 = vmatpush.msra.mxu0 %v103
    %447 = vmatpush.msra.mxu0 %v99
    %448 = vmatpush.msra.mxu0 %v95
    %449 = vmatpush.msra.mxu0 %v91
    %450 = vmatpush.msra.mxu0 %v87
    %451 = vmatpush.msra.mxu0 %v83
    %452 = vmatpush.msra.mxu0 %v79
    %453 = vmatpush.msra.mxu0 %v75
    %454 = vmatpush.msra.mxu0 %v71
    %455 = vmatpush.msra.mxu0 %v67
    %456 = vmatpush.msra.mxu0 %v63
    %457 = vmatpush.msra.mxu0 %v59
    %458 = vmatpush.msra.mxu0 %v55
    %459 = vmatpush.msra.mxu0 %v51
    %460 = vmatpush.msra.mxu0 %v47
    %461 = vmatmul.f32.gmra.mxu0 %v333
    %v462 = vpop.f32.mrf.mxu0
    %v463 = vadd.f32 %v321, %v462
    %464 = vdwg.mxu0
    %465 = vmatpush.msra.mxu0 %v171
    %466 = vmatpush.msra.mxu0 %v167
    %467 = vmatpush.msra.mxu0 %v163
    %468 = vmatpush.msra.mxu0 %v159
    %469 = vmatpush.msra.mxu0 %v155
    %470 = vmatpush.msra.mxu0 %v151
    %471 = vmatpush.msra.mxu0 %v147
    %472 = vmatpush.msra.mxu0 %v143
    %473 = vmatpush.msra.mxu0 %v139
    %474 = vmatpush.msra.mxu0 %v135
    %475 = vmatpush.msra.mxu0 %v131
    %476 = vmatpush.msra.mxu0 %v127
    %477 = vmatpush.msra.mxu0 %v123
    %478 = vmatpush.msra.mxu0 %v119
    %479 = vmatpush.msra.mxu0 %v115
    %480 = vmatpush.msra.mxu0 %v111
    %481 = vmatmul.f32.gmra.mxu0 %v334
    %v482 = vpop.f32.mrf.mxu0
    %v483 = vadd.f32 %v463, %v482
    %484 = vdwg.mxu0
    %485 = vmatpush.msra.mxu0 %v235
    %486 = vmatpush.msra.mxu0 %v231
    %487 = vmatpush.msra.mxu0 %v227
    %488 = vmatpush.msra.mxu0 %v223
    %489 = vmatpush.msra.mxu0 %v219
    %490 = vmatpush.msra.mxu0 %v215
    %491 = vmatpush.msra.mxu0 %v211
    %492 = vmatpush.msra.mxu0 %v207
    %493 = vmatpush.msra.mxu0 %v203
    %494 = vmatpush.msra.mxu0 %v199
    %495 = vmatpush.msra.mxu0 %v195
    %496 = vmatpush.msra.mxu0 %v191
    %497 = vmatpush.msra.mxu0 %v187
    %498 = vmatpush.msra.mxu0 %v183
    %499 = vmatpush.msra.mxu0 %v179
    %500 = vmatpush.msra.mxu0 %v175
    %501 = vmatmul.f32.gmra.mxu0 %v335
    %v502 = vpop.f32.mrf.mxu0
    %v503 = vadd.f32 %v483, %v502
    %504 = vdwg.mxu0
    %505 = vmatpush.msra.mxu0 %v299
    %506 = vmatpush.msra.mxu0 %v295
    %507 = vmatpush.msra.mxu0 %v291
    %508 = vmatpush.msra.mxu0 %v287
    %509 = vmatpush.msra.mxu0 %v283
    %510 = vmatpush.msra.mxu0 %v279
    %511 = vmatpush.msra.mxu0 %v275
    %512 = vmatpush.msra.mxu0 %v271
    %513 = vmatpush.msra.mxu0 %v267
    %514 = vmatpush.msra.mxu0 %v263
    %515 = vmatpush.msra.mxu0 %v259
    %516 = vmatpush.msra.mxu0 %v255
    %517 = vmatpush.msra.mxu0 %v251
    %518 = vmatpush.msra.mxu0 %v247
    %519 = vmatpush.msra.mxu0 %v243
    %520 = vmatpush.msra.mxu0 %v239
    %521 = vmatmul.f32.gmra.mxu0 %v336
    %v522 = vpop.f32.mrf.mxu0
    %v523 = vadd.f32 %v503, %v522
    %524 = vdwg.mxu0
    %525 = vmatpush.msra.mxu0 0.0
    %526 = vmatpush.msra.mxu0 0.0
    %527 = vmatpush.msra.mxu0 0.0
    %528 = vmatpush.msra.mxu0 0.0
    %529 = vmatpush.msra.mxu0 0.0
    %530 = vmatpush.msra.mxu0 0.0
    %531 = vmatpush.msra.mxu0 0.0
    %532 = vmatpush.msra.mxu0 0.0
    %533 = vmatpush.msra.mxu0 0.0
    %534 = vmatpush.msra.mxu0 0.0
    %535 = vmatpush.msra.mxu0 0.0
    %536 = vmatpush.msra.mxu0 0.0
    %537 = vmatpush.msra.mxu0 %v315
    %538 = vmatpush.msra.mxu0 %v311
    %539 = vmatpush.msra.mxu0 %v307
    %540 = vmatpush.msra.mxu0 %v303
    %541 = vmatmul.f32.gmra.mxu0 %v343
    %v542 = vpop.f32.mrf.mxu0
    %v543 = vadd.f32 %v523, %v542
    %544 = vdwg.mxu0
    %545 = vmatpush.msra.mxu0 %v108
    %546 = vmatpush.msra.mxu0 %v104
    %547 = vmatpush.msra.mxu0 %v100
    %548 = vmatpush.msra.mxu0 %v96
    %549 = vmatpush.msra.mxu0 %v92
    %550 = vmatpush.msra.mxu0 %v88
    %551 = vmatpush.msra.mxu0 %v84
    %552 = vmatpush.msra.mxu0 %v80
    %553 = vmatpush.msra.mxu0 %v76
    %554 = vmatpush.msra.mxu0 %v72
    %555 = vmatpush.msra.mxu0 %v68
    %556 = vmatpush.msra.mxu0 %v64
    %557 = vmatpush.msra.mxu0 %v60
    %558 = vmatpush.msra.mxu0 %v56
    %559 = vmatpush.msra.mxu0 %v52
    %560 = vmatpush.msra.mxu0 %v48
    %561 = vmatmul.f32.gmra.mxu0 %v333
    %v562 = vpop.f32.mrf.mxu0
    %v563 = vadd.f32 %v322, %v562
    %564 = vdwg.mxu0
    %565 = vmatpush.msra.mxu0 %v172
    %566 = vmatpush.msra.mxu0 %v168
    %567 = vmatpush.msra.mxu0 %v164
    %568 = vmatpush.msra.mxu0 %v160
    %569 = vmatpush.msra.mxu0 %v156
    %570 = vmatpush.msra.mxu0 %v152
    %571 = vmatpush.msra.mxu0 %v148
    %572 = vmatpush.msra.mxu0 %v144
    %573 = vmatpush.msra.mxu0 %v140
    %574 = vmatpush.msra.mxu0 %v136
    %575 = vmatpush.msra.mxu0 %v132
    %576 = vmatpush.msra.mxu0 %v128
    %577 = vmatpush.msra.mxu0 %v124
    %578 = vmatpush.msra.mxu0 %v120
    %579 = vmatpush.msra.mxu0 %v116
    %580 = vmatpush.msra.mxu0 %v112
    %581 = vmatmul.f32.gmra.mxu0 %v334
    %v582 = vpop.f32.mrf.mxu0
    %v583 = vadd.f32 %v563, %v582
    %584 = vdwg.mxu0
    %585 = vmatpush.msra.mxu0 %v236
    %586 = vmatpush.msra.mxu0 %v232
    %587 = vmatpush.msra.mxu0 %v228
    %588 = vmatpush.msra.mxu0 %v224
    %589 = vmatpush.msra.mxu0 %v220
    %590 = vmatpush.msra.mxu0 %v216
    %591 = vmatpush.msra.mxu0 %v212
    %592 = vmatpush.msra.mxu0 %v208
    %593 = vmatpush.msra.mxu0 %v204
    %594 = vmatpush.msra.mxu0 %v200
    %595 = vmatpush.msra.mxu0 %v196
    %596 = vmatpush.msra.mxu0 %v192
    %597 = vmatpush.msra.mxu0 %v188
    %598 = vmatpush.msra.mxu0 %v184
    %599 = vmatpush.msra.mxu0 %v180
    %600 = vmatpush.msra.mxu0 %v176
    %601 = vmatmul.f32.gmra.mxu0 %v335
    %v602 = vpop.f32.mrf.mxu0
    %v603 = vadd.f32 %v583, %v602
    %604 = vdwg.mxu0
    %605 = vmatpush.msra.mxu0 %v300
    %606 = vmatpush.msra.mxu0 %v296
    %607 = vmatpush.msra.mxu0 %v292
    %608 = vmatpush.msra.mxu0 %v288
    %609 = vmatpush.msra.mxu0 %v284
    %610 = vmatpush.msra.mxu0 %v280
    %611 = vmatpush.msra.mxu0 %v276
    %612 = vmatpush.msra.mxu0 %v272
    %613 = vmatpush.msra.mxu0 %v268
    %614 = vmatpush.msra.mxu0 %v264
    %615 = vmatpush.msra.mxu0 %v260
    %616 = vmatpush.msra.mxu0 %v256
    %617 = vmatpush.msra.mxu0 %v252
    %618 = vmatpush.msra.mxu0 %v248
    %619 = vmatpush.msra.mxu0 %v244
    %620 = vmatpush.msra.mxu0 %v240
    %621 = vmatmul.f32.gmra.mxu0 %v336
    %v622 = vpop.f32.mrf.mxu0
    %v623 = vadd.f32 %v603, %v622
    %624 = vdwg.mxu0
    %625 = vmatpush.msra.mxu0 0.0
    %626 = vmatpush.msra.mxu0 0.0
    %627 = vmatpush.msra.mxu0 0.0
    %628 = vmatpush.msra.mxu0 0.0
    %629 = vmatpush.msra.mxu0 0.0
    %630 = vmatpush.msra.mxu0 0.0
    %631 = vmatpush.msra.mxu0 0.0
    %632 = vmatpush.msra.mxu0 0.0
    %633 = vmatpush.msra.mxu0 0.0
    %634 = vmatpush.msra.mxu0 0.0
    %635 = vmatpush.msra.mxu0 0.0
    %636 = vmatpush.msra.mxu0 0.0
    %637 = vmatpush.msra.mxu0 %v316
    %638 = vmatpush.msra.mxu0 %v312
    %639 = vmatpush.msra.mxu0 %v308
    %640 = vmatpush.msra.mxu0 %v304
    %641 = vmatmul.f32.gmra.mxu0 %v343
    %v642 = vpop.f32.mrf.mxu0
    %v643 = vadd.f32 %v623, %v642
    %644 = vdwg.mxu0
    %645 = vmatpush.msra.mxu0 %v109
    %646 = vmatpush.msra.mxu0 %v105
    %647 = vmatpush.msra.mxu0 %v101
    %648 = vmatpush.msra.mxu0 %v97
    %649 = vmatpush.msra.mxu0 %v93
    %650 = vmatpush.msra.mxu0 %v89
    %651 = vmatpush.msra.mxu0 %v85
    %652 = vmatpush.msra.mxu0 %v81
    %653 = vmatpush.msra.mxu0 %v77
    %654 = vmatpush.msra.mxu0 %v73
    %655 = vmatpush.msra.mxu0 %v69
    %656 = vmatpush.msra.mxu0 %v65
    %657 = vmatpush.msra.mxu0 %v61
    %658 = vmatpush.msra.mxu0 %v57
    %659 = vmatpush.msra.mxu0 %v53
    %660 = vmatpush.msra.mxu0 %v49
    %661 = vmatmul.f32.gmra.mxu0 %v333
    %v662 = vpop.f32.mrf.mxu0
    %v663 = vadd.f32 %v323, %v662
    %664 = vdwg.mxu0
    %665 = vmatpush.msra.mxu0 %v173
    %666 = vmatpush.msra.mxu0 %v169
    %667 = vmatpush.msra.mxu0 %v165
    %668 = vmatpush.msra.mxu0 %v161
    %669 = vmatpush.msra.mxu0 %v157
    %670 = vmatpush.msra.mxu0 %v153
    %671 = vmatpush.msra.mxu0 %v149
    %672 = vmatpush.msra.mxu0 %v145
    %673 = vmatpush.msra.mxu0 %v141
    %674 = vmatpush.msra.mxu0 %v137
    %675 = vmatpush.msra.mxu0 %v133
    %676 = vmatpush.msra.mxu0 %v129
    %677 = vmatpush.msra.mxu0 %v125
    %678 = vmatpush.msra.mxu0 %v121
    %679 = vmatpush.msra.mxu0 %v117
    %680 = vmatpush.msra.mxu0 %v113
    %681 = vmatmul.f32.gmra.mxu0 %v334
    %v682 = vpop.f32.mrf.mxu0
    %v683 = vadd.f32 %v663, %v682
    %684 = vdwg.mxu0
    %685 = vmatpush.msra.mxu0 %v237
    %686 = vmatpush.msra.mxu0 %v233
    %687 = vmatpush.msra.mxu0 %v229
    %688 = vmatpush.msra.mxu0 %v225
    %689 = vmatpush.msra.mxu0 %v221
    %690 = vmatpush.msra.mxu0 %v217
    %691 = vmatpush.msra.mxu0 %v213
    %692 = vmatpush.msra.mxu0 %v209
    %693 = vmatpush.msra.mxu0 %v205
    %694 = vmatpush.msra.mxu0 %v201
    %695 = vmatpush.msra.mxu0 %v197
    %696 = vmatpush.msra.mxu0 %v193
    %697 = vmatpush.msra.mxu0 %v189
    %698 = vmatpush.msra.mxu0 %v185
    %699 = vmatpush.msra.mxu0 %v181
    %700 = vmatpush.msra.mxu0 %v177
    %701 = vmatmul.f32.gmra.mxu0 %v335
    %v702 = vpop.f32.mrf.mxu0
    %v703 = vadd.f32 %v683, %v702
    %704 = vdwg.mxu0
    %705 = vmatpush.msra.mxu0 %v301
    %706 = vmatpush.msra.mxu0 %v297
    %707 = vmatpush.msra.mxu0 %v293
    %708 = vmatpush.msra.mxu0 %v289
    %709 = vmatpush.msra.mxu0 %v285
    %710 = vmatpush.msra.mxu0 %v281
    %711 = vmatpush.msra.mxu0 %v277
    %712 = vmatpush.msra.mxu0 %v273
    %713 = vmatpush.msra.mxu0 %v269
    %714 = vmatpush.msra.mxu0 %v265
    %715 = vmatpush.msra.mxu0 %v261
    %716 = vmatpush.msra.mxu0 %v257
    %717 = vmatpush.msra.mxu0 %v253
    %718 = vmatpush.msra.mxu0 %v249
    %719 = vmatpush.msra.mxu0 %v245
    %720 = vmatpush.msra.mxu0 %v241
    %721 = vmatmul.f32.gmra.mxu0 %v336
    %v722 = vpop.f32.mrf.mxu0
    %v723 = vadd.f32 %v703, %v722
    %724 = vdwg.mxu0
    %725 = vmatpush.msra.mxu0 0.0
    %726 = vmatpush.msra.mxu0 0.0
    %727 = vmatpush.msra.mxu0 0.0
    %728 = vmatpush.msra.mxu0 0.0
    %729 = vmatpush.msra.mxu0 0.0
    %730 = vmatpush.msra.mxu0 0.0
    %731 = vmatpush.msra.mxu0 0.0
    %732 = vmatpush.msra.mxu0 0.0
    %733 = vmatpush.msra.mxu0 0.0
    %734 = vmatpush.msra.mxu0 0.0
    %735 = vmatpush.msra.mxu0 0.0
    %736 = vmatpush.msra.mxu0 0.0
    %737 = vmatpush.msra.mxu0 %v317
    %738 = vmatpush.msra.mxu0 %v313
    %739 = vmatpush.msra.mxu0 %v309
    %740 = vmatpush.msra.mxu0 %v305
    %741 = vmatmul.f32.gmra.mxu0 %v343
    %v742 = vpop.f32.mrf.mxu0
    %v743 = vadd.f32 %v723, %v742
    %744 = vdwg.mxu0
    %v749 = vrot.slane %v543, 6
    %v750 = vrot.slane %v643, 4
    %v751 = vrot.slane %v743, 2
    %vm752 = vcmask 1041408
    %v753 = vsel %vm752, %v443, %v749
    %vm754 = vcmask 1045508
    %v755 = vsel %vm754, %v750, %v751
    %vm756 = vcmask 1043456
    %v757 = vsel %vm756, %v753, %v755
    %759 = vst [vmem:[%s3] sm:$0xff] %v757
    // Predicated region
    $region22: #{decoder_forward_train.7} parent=1 // pred_check
      _
    $region23: #{decoder_forward_train.7} parent=1 // pred_check_branch
      %761 = sbr.rel (0) target = $region25
    $region24: #{decoder_forward_train.7} parent=1 // pred_region
      _
    $region25: #{decoder_forward_train.7} parent=1 // pred_fallthru
      _
    // Predicated region
    $region26: #{decoder_forward_train.7} parent=1 // pred_check
      _
    $region27: #{decoder_forward_train.7} parent=1 // pred_check_branch
      %763 = sbr.rel (0) target = $region29
    $region28: #{decoder_forward_train.7} parent=1 // pred_region
      _
    $region29: #{decoder_forward_train.7} parent=1 // pred_fallthru
      _
    %764 = vsyncpa [#allocation3], 1
    %765 = vsyncpa [#allocation5], 1

// kernel: decoder_forward_train.8
$region0: #{decoder_forward_train.8}
  #allocation0 [shape = 'u32[]', space=smem, size = 0x4, offset = 0x4, fixed_abs, tag = 'smem constant byte address 0x4 - core index']
  #allocation1 [shape = 'u32[72,128]{1,0:T(1,128)}', space=vmem, size = 0x9000, scoped, tag = 'internal scratch']
  %s0 = inlined_call_operand.vmem [shape: f32[14,82], index: 0, kind: input, shape index: {}]
  %s1 = inlined_call_operand.hbm [shape: f32[82,2048], index: 1, kind: input, shape index: {}]
  %s2 = inlined_call_operand.hbm [shape: f32[1,2048], index: 2, kind: input, shape index: {}]
  %s3 = inlined_call_operand.vmem [shape: f32[14,2048], index: 3, kind: output, shape index: {}]
  %s4 = sld [smem:[#allocation0]]
  $region30: #{decoder_forward_train.8} parent=0
    _
  %s6 = ssub.s32 1, %s4
  %s7 = scalar_select 0, %s6, %s4
  $region1: #{decoder_forward_train.8} parent=0
    #allocation2 [shape = 'u8[720896]{0}', space=vmem, size = 0xb0000, scoped, tag = 'input window, operand 1, single buffered']
    #allocation3 [shape = 's32[1]{0}', space=sflag, size = 0x4, scoped, tag = 'scoped memory for decoder_forward_train.8']
    #allocation4 [shape = 'u8[8192]{0}', space=vmem, size = 0x2000, scoped, tag = 'input window, operand 2, single buffered']
    #allocation5 [shape = 's32[1]{0}', space=sflag, size = 0x4, scoped, tag = 'scoped memory for decoder_forward_train.8']
    %8 = vsyncpa [#allocation3], 0
    %9 = vsyncpa [#allocation5], 0
    // Predicated region
    $region2: #{decoder_forward_train.8} parent=1 // pred_check
      _
    $region3: #{decoder_forward_train.8} parent=1 // pred_check_branch
      %11 = sbr.rel (0) target = $region5
    $region4: #{decoder_forward_train.8} parent=1 // pred_region
      _
    $region5: #{decoder_forward_train.8} parent=1 // pred_fallthru
      _
    // Predicated region
    $region6: #{decoder_forward_train.8} parent=1 // pred_check
      _
    $region7: #{decoder_forward_train.8} parent=1 // pred_check_branch
      %13 = sbr.rel (0) target = $region9
    $region8: #{decoder_forward_train.8} parent=1 // pred_region
      %15 = vsyncadd [#allocation3], 0
      %s16 = sshll.u32 %s1, 4
      %s17 = int_to_ptr.hbm [resolvable:$true] %s16
      %s18 = sshll.u32 [#allocation2], 4
      %s19 = int_to_ptr.vmem [resolvable:$true] %s18
      %24 = dma.hbm_to_vmem [thread:$0]  %s17, 22528, %s19, [#allocation3], 2048, 2048, 128
    $region9: #{decoder_forward_train.8} parent=1 // pred_fallthru
      _
    // Predicated region
    $region10: #{decoder_forward_train.8} parent=1 // pred_check
      _
    $region11: #{decoder_forward_train.8} parent=1 // pred_check_branch
      %26 = sbr.rel (0) target = $region13
    $region12: #{decoder_forward_train.8} parent=1 // pred_region
      %28 = vsyncadd [#allocation5], 0
      %s30 = sshll.u32 %s2, 4
      %s31 = int_to_ptr.hbm [resolvable:$true] %s30
      %s32 = sshll.u32 [#allocation4], 4
      %s33 = int_to_ptr.vmem [resolvable:$true] %s32
      %35 = dma.hbm_to_vmem [thread:$0]  %s31, 256, %s33, [#allocation5]
    $region13: #{decoder_forward_train.8} parent=1 // pred_fallthru
      _
    // Predicated region
    $region14: #{decoder_forward_train.8} parent=1 // pred_check
      _
    $region15: #{decoder_forward_train.8} parent=1 // pred_check_branch
      %37 = sbr.rel (0) target = $region17
    $region16: #{decoder_forward_train.8} parent=1 // pred_region
      %39 = dma.done [#allocation3], 22528
    $region17: #{decoder_forward_train.8} parent=1 // pred_fallthru
      _
    // Predicated region
    $region18: #{decoder_forward_train.8} parent=1 // pred_check
      _
    $region19: #{decoder_forward_train.8} parent=1 // pred_check_branch
      %41 = sbr.rel (0) target = $region21
    $region20: #{decoder_forward_train.8} parent=1 // pred_region
      %43 = dma.done [#allocation5], 256
    $region21: #{decoder_forward_train.8} parent=1 // pred_fallthru
      _
    %v44 = vld [vmem:[%s0] sm:$0xff]
    %v45 = vld [vmem:[%s0 + $0x8] sm:$0x3f]
    %v46 = vld [vmem:[#allocation2] sm:$0xff]
    %v47 = vld [vmem:[#allocation2 + $0x8] sm:$0xff]
    %v48 = vld [vmem:[#allocation2 + $0x10] sm:$0xff]
    %v49 = vld [vmem:[#allocation2 + $0x18] sm:$0xff]
    %v50 = vld [vmem:[#allocation2 + $0x20] sm:$0xff]
    %v51 = vld [vmem:[#allocation2 + $0x28] sm:$0xff]
    %v52 = vld [vmem:[#allocation2 + $0x30] sm:$0xff]
    %v53 = vld [vmem:[#allocation2 + $0x38] sm:$0xff]
    %v54 = vld [vmem:[#allocation2 + $0x40] sm:$0xff]
    %v55 = vld [vmem:[#allocation2 + $0x48] sm:$0xff]
    %v56 = vld [vmem:[#allocation2 + $0x50] sm:$0xff]
    %v57 = vld [vmem:[#allocation2 + $0x58] sm:$0xff]
    %v58 = vld [vmem:[#allocation2 + $0x60] sm:$0xff]
    %v59 = vld [vmem:[#allocation2 + $0x68] sm:$0xff]
    %v60 = vld [vmem:[#allocation2 + $0x70] sm:$0xff]
    %v61 = vld [vmem:[#allocation2 + $0x78] sm:$0xff]
    %v62 = vld [vmem:[#allocation2 + $0x80] sm:$0xff]
    %v63 = vld [vmem:[#allocation2 + $0x88] sm:$0xff]
    %v64 = vld [vmem:[#allocation2 + $0x90] sm:$0xff]
    %v65 = vld [vmem:[#allocation2 + $0x98] sm:$0xff]
    %v66 = vld [vmem:[#allocation2 + $0xa0] sm:$0xff]
    %v67 = vld [vmem:[#allocation2 + $0xa8] sm:$0xff]
    %v68 = vld [vmem:[#allocation2 + $0xb0] sm:$0xff]
    %v69 = vld [vmem:[#allocation2 + $0xb8] sm:$0xff]
    %v70 = vld [vmem:[#allocation2 + $0xc0] sm:$0xff]
    %v71 = vld [vmem:[#allocation2 + $0xc8] sm:$0xff]
    %v72 = vld [vmem:[#allocation2 + $0xd0] sm:$0xff]
    %v73 = vld [vmem:[#allocation2 + $0xd8] sm:$0xff]
    %v74 = vld [vmem:[#allocation2 + $0xe0] sm:$0xff]
    %v75 = vld [vmem:[#allocation2 + $0xe8] sm:$0xff]
    %v76 = vld [vmem:[#allocation2 + $0xf0] sm:$0xff]
    %v77 = vld [vmem:[#allocation2 + $0xf8] sm:$0xff]
    %v78 = vld [vmem:[#allocation2 + $0x100] sm:$0xff]
    %v79 = vld [vmem:[#allocation2 + $0x108] sm:$0xff]
    %v80 = vld [vmem:[#allocation2 + $0x110] sm:$0xff]
    %v81 = vld [vmem:[#allocation2 + $0x118] sm:$0xff]
    %v82 = vld [vmem:[#allocation2 + $0x120] sm:$0xff]
    %v83 = vld [vmem:[#allocation2 + $0x128] sm:$0xff]
    %v84 = vld [vmem:[#allocation2 + $0x130] sm:$0xff]
    %v85 = vld [vmem:[#allocation2 + $0x138] sm:$0xff]
    %v86 = vld [vmem:[#allocation2 + $0x140] sm:$0xff]
    %v87 = vld [vmem:[#allocation2 + $0x148] sm:$0xff]
    %v88 = vld [vmem:[#allocation2 + $0x150] sm:$0xff]
    %v89 = vld [vmem:[#allocation2 + $0x158] sm:$0xff]
    %v90 = vld [vmem:[#allocation2 + $0x160] sm:$0xff]
    %v91 = vld [vmem:[#allocation2 + $0x168] sm:$0xff]
    %v92 = vld [vmem:[#allocation2 + $0x170] sm:$0xff]
    %v93 = vld [vmem:[#allocation2 + $0x178] sm:$0xff]
    %v94 = vld [vmem:[#allocation2 + $0x180] sm:$0xff]
    %v95 = vld [vmem:[#allocation2 + $0x188] sm:$0xff]
    %v96 = vld [vmem:[#allocation2 + $0x190] sm:$0xff]
    %v97 = vld [vmem:[#allocation2 + $0x198] sm:$0xff]
    %v98 = vld [vmem:[#allocation2 + $0x1a0] sm:$0xff]
    %v99 = vld [vmem:[#allocation2 + $0x1a8] sm:$0xff]
    %v100 = vld [vmem:[#allocation2 + $0x1b0] sm:$0xff]
    %v101 = vld [vmem:[#allocation2 + $0x1b8] sm:$0xff]
    %v102 = vld [vmem:[#allocation2 + $0x1c0] sm:$0xff]
    %v103 = vld [vmem:[#allocation2 + $0x1c8] sm:$0xff]
    %v104 = vld [vmem:[#allocation2 + $0x1d0] sm:$0xff]
    %v105 = vld [vmem:[#allocation2 + $0x1d8] sm:$0xff]
    %v106 = vld [vmem:[#allocation2 + $0x1e0] sm:$0xff]
    %v107 = vld [vmem:[#allocation2 + $0x1e8] sm:$0xff]
    %v108 = vld [vmem:[#allocation2 + $0x1f0] sm:$0xff]
    %v109 = vld [vmem:[#allocation2 + $0x1f8] sm:$0xff]
    %v110 = vld [vmem:[#allocation2 + $0x200] sm:$0xff]
    %v111 = vld [vmem:[#allocation2 + $0x208] sm:$0xff]
    %v112 = vld [vmem:[#allocation2 + $0x210] sm:$0xff]
    %v113 = vld [vmem:[#allocation2 + $0x218] sm:$0xff]
    %v114 = vld [vmem:[#allocation2 + $0x220] sm:$0xff]
    %v115 = vld [vmem:[#allocation2 + $0x228] sm:$0xff]
    %v116 = vld [vmem:[#allocation2 + $0x230] sm:$0xff]
    %v117 = vld [vmem:[#allocation2 + $0x238] sm:$0xff]
    %v118 = vld [vmem:[#allocation2 + $0x240] sm:$0xff]
    %v119 = vld [vmem:[#allocation2 + $0x248] sm:$0xff]
    %v120 = vld [vmem:[#allocation2 + $0x250] sm:$0xff]
    %v121 = vld [vmem:[#allocation2 + $0x258] sm:$0xff]
    %v122 = vld [vmem:[#allocation2 + $0x260] sm:$0xff]
    %v123 = vld [vmem:[#allocation2 + $0x268] sm:$0xff]
    %v124 = vld [vmem:[#allocation2 + $0x270] sm:$0xff]
    %v125 = vld [vmem:[#allocation2 + $0x278] sm:$0xff]
    %v126 = vld [vmem:[#allocation2 + $0x280] sm:$0xff]
    %v127 = vld [vmem:[#allocation2 + $0x288] sm:$0xff]
    %v128 = vld [vmem:[#allocation2 + $0x290] sm:$0xff]
    %v129 = vld [vmem:[#allocation2 + $0x298] sm:$0xff]
    %v130 = vld [vmem:[#allocation2 + $0x2a0] sm:$0xff]
    %v131 = vld [vmem:[#allocation2 + $0x2a8] sm:$0xff]
    %v132 = vld [vmem:[#allocation2 + $0x2b0] sm:$0xff]
    %v133 = vld [vmem:[#allocation2 + $0x2b8] sm:$0xff]
    %v134 = vld [vmem:[#allocation2 + $0x2c0] sm:$0xff]
    %v135 = vld [vmem:[#allocation2 + $0x2c8] sm:$0xff]
    %v136 = vld [vmem:[#allocation2 + $0x2d0] sm:$0xff]
    %v137 = vld [vmem:[#allocation2 + $0x2d8] sm:$0xff]
    %v138 = vld [vmem:[#allocation2 + $0x2e0] sm:$0xff]
    %v139 = vld [vmem:[#allocation2 + $0x2e8] sm:$0xff]
    %v140 = vld [vmem:[#allocation2 + $0x2f0] sm:$0xff]
    %v141 = vld [vmem:[#allocation2 + $0x2f8] sm:$0xff]
    %v142 = vld [vmem:[#allocation2 + $0x300] sm:$0xff]
    %v143 = vld [vmem:[#allocation2 + $0x308] sm:$0xff]
    %v144 = vld [vmem:[#allocation2 + $0x310] sm:$0xff]
    %v145 = vld [vmem:[#allocation2 + $0x318] sm:$0xff]
    %v146 = vld [vmem:[#allocation2 + $0x320] sm:$0xff]
    %v147 = vld [vmem:[#allocation2 + $0x328] sm:$0xff]
    %v148 = vld [vmem:[#allocation2 + $0x330] sm:$0xff]
    %v149 = vld [vmem:[#allocation2 + $0x338] sm:$0xff]
    %v150 = vld [vmem:[#allocation2 + $0x340] sm:$0xff]
    %v151 = vld [vmem:[#allocation2 + $0x348] sm:$0xff]
    %v152 = vld [vmem:[#allocation2 + $0x350] sm:$0xff]
    %v153 = vld [vmem:[#allocation2 + $0x358] sm:$0xff]
    %v154 = vld [vmem:[#allocation2 + $0x360] sm:$0xff]
    %v155 = vld [vmem:[#allocation2 + $0x368] sm:$0xff]
    %v156 = vld [vmem:[#allocation2 + $0x370] sm:$0xff]
    %v157 = vld [vmem:[#allocation2 + $0x378] sm:$0xff]
    %v158 = vld [vmem:[#allocation2 + $0x380] sm:$0xff]
    %v159 = vld [vmem:[#allocation2 + $0x388] sm:$0xff]
    %v160 = vld [vmem:[#allocation2 + $0x390] sm:$0xff]
    %v161 = vld [vmem:[#allocation2 + $0x398] sm:$0xff]
    %v162 = vld [vmem:[#allocation2 + $0x3a0] sm:$0xff]
    %v163 = vld [vmem:[#allocation2 + $0x3a8] sm:$0xff]
    %v164 = vld [vmem:[#allocation2 + $0x3b0] sm:$0xff]
    %v165 = vld [vmem:[#allocation2 + $0x3b8] sm:$0xff]
    %v166 = vld [vmem:[#allocation2 + $0x3c0] sm:$0xff]
    %v167 = vld [vmem:[#allocation2 + $0x3c8] sm:$0xff]
    %v168 = vld [vmem:[#allocation2 + $0x3d0] sm:$0xff]
    %v169 = vld [vmem:[#allocation2 + $0x3d8] sm:$0xff]
    %v170 = vld [vmem:[#allocation2 + $0x3e0] sm:$0xff]
    %v171 = vld [vmem:[#allocation2 + $0x3e8] sm:$0xff]
    %v172 = vld [vmem:[#allocation2 + $0x3f0] sm:$0xff]
    %v173 = vld [vmem:[#allocation2 + $0x3f8] sm:$0xff]
    %v174 = vld [vmem:[#allocation2 + $0x400] sm:$0xff]
    %v175 = vld [vmem:[#allocation2 + $0x408] sm:$0xff]
    %v176 = vld [vmem:[#allocation2 + $0x410] sm:$0xff]
    %v177 = vld [vmem:[#allocation2 + $0x418] sm:$0xff]
    %v178 = vld [vmem:[#allocation2 + $0x420] sm:$0xff]
    %v179 = vld [vmem:[#allocation2 + $0x428] sm:$0xff]
    %v180 = vld [vmem:[#allocation2 + $0x430] sm:$0xff]
    %v181 = vld [vmem:[#allocation2 + $0x438] sm:$0xff]
    %v182 = vld [vmem:[#allocation2 + $0x440] sm:$0xff]
    %v183 = vld [vmem:[#allocation2 + $0x448] sm:$0xff]
    %v184 = vld [vmem:[#allocation2 + $0x450] sm:$0xff]
    %v185 = vld [vmem:[#allocation2 + $0x458] sm:$0xff]
    %v186 = vld [vmem:[#allocation2 + $0x460] sm:$0xff]
    %v187 = vld [vmem:[#allocation2 + $0x468] sm:$0xff]
    %v188 = vld [vmem:[#allocation2 + $0x470] sm:$0xff]
    %v189 = vld [vmem:[#allocation2 + $0x478] sm:$0xff]
    %v190 = vld [vmem:[#allocation2 + $0x480] sm:$0xff]
    %v191 = vld [vmem:[#allocation2 + $0x488] sm:$0xff]
    %v192 = vld [vmem:[#allocation2 + $0x490] sm:$0xff]
    %v193 = vld [vmem:[#allocation2 + $0x498] sm:$0xff]
    %v194 = vld [vmem:[#allocation2 + $0x4a0] sm:$0xff]
    %v195 = vld [vmem:[#allocation2 + $0x4a8] sm:$0xff]
    %v196 = vld [vmem:[#allocation2 + $0x4b0] sm:$0xff]
    %v197 = vld [vmem:[#allocation2 + $0x4b8] sm:$0xff]
    %v198 = vld [vmem:[#allocation2 + $0x4c0] sm:$0xff]
    %v199 = vld [vmem:[#allocation2 + $0x4c8] sm:$0xff]
    %v200 = vld [vmem:[#allocation2 + $0x4d0] sm:$0xff]
    %v201 = vld [vmem:[#allocation2 + $0x4d8] sm:$0xff]
    %v202 = vld [vmem:[#allocation2 + $0x4e0] sm:$0xff]
    %v203 = vld [vmem:[#allocation2 + $0x4e8] sm:$0xff]
    %v204 = vld [vmem:[#allocation2 + $0x4f0] sm:$0xff]
    %v205 = vld [vmem:[#allocation2 + $0x4f8] sm:$0xff]
    %v206 = vld [vmem:[#allocation2 + $0x500] sm:$0x3]
    %v207 = vld [vmem:[#allocation2 + $0x508] sm:$0x3]
    %v208 = vld [vmem:[#allocation2 + $0x510] sm:$0x3]
    %v209 = vld [vmem:[#allocation2 + $0x518] sm:$0x3]
    %v210 = vld [vmem:[#allocation2 + $0x520] sm:$0x3]
    %v211 = vld [vmem:[#allocation2 + $0x528] sm:$0x3]
    %v212 = vld [vmem:[#allocation2 + $0x530] sm:$0x3]
    %v213 = vld [vmem:[#allocation2 + $0x538] sm:$0x3]
    %v214 = vld [vmem:[#allocation2 + $0x540] sm:$0x3]
    %v215 = vld [vmem:[#allocation2 + $0x548] sm:$0x3]
    %v216 = vld [vmem:[#allocation2 + $0x550] sm:$0x3]
    %v217 = vld [vmem:[#allocation2 + $0x558] sm:$0x3]
    %v218 = vld [vmem:[#allocation2 + $0x560] sm:$0x3]
    %v219 = vld [vmem:[#allocation2 + $0x568] sm:$0x3]
    %v220 = vld [vmem:[#allocation2 + $0x570] sm:$0x3]
    %v221 = vld [vmem:[#allocation2 + $0x578] sm:$0x3]
    %v222 = vld [vmem:[#allocation4] sm:$0xff]
    %v223 = vld [vmem:[#allocation4 + $0x8] sm:$0xff]
    %v226 = vperm.slane %v222, 0
    %v227 = vperm.slane %v222, 1
    %v228 = vperm.slane %v222, 2
    %v229 = vperm.slane %v222, 3
    %v230 = vperm.slane %v222, 4
    %v231 = vperm.slane %v222, 5
    %v232 = vperm.slane %v222, 6
    %v233 = vperm.slane %v222, 7
    %v234 = vperm.slane %v223, 0
    %v235 = vperm.slane %v223, 1
    %v236 = vperm.slane %v223, 2
    %v237 = vperm.slane %v223, 3
    %v238 = vperm.slane %v223, 4
    %v239 = vperm.slane %v223, 5
    %v240 = vperm.slane %v223, 6
    %v241 = vperm.slane %v223, 7
    %vm258 = vcmask 670720
    %v260 = vsel %vm258, %v44, 0
    %v263 = vsel %vm258, %v45, 0
    %vm265 = vcmask 1041408
    %v267 = vsel %vm265, %v206, 0
    %v270 = vsel %vm265, %v207, 0
    %v273 = vsel %vm265, %v208, 0
    %v276 = vsel %vm265, %v209, 0
    %v279 = vsel %vm265, %v210, 0
    %v282 = vsel %vm265, %v211, 0
    %v285 = vsel %vm265, %v212, 0
    %v288 = vsel %vm265, %v213, 0
    %v291 = vsel %vm265, %v214, 0
    %v294 = vsel %vm265, %v215, 0
    %v297 = vsel %vm265, %v216, 0
    %v300 = vsel %vm265, %v217, 0
    %v303 = vsel %vm265, %v218, 0
    %v306 = vsel %vm265, %v219, 0
    %v309 = vsel %vm265, %v220, 0
    %v312 = vsel %vm265, %v221, 0
    %314 = vmatpush.msra.mxu0 0.0
    %315 = vmatpush.msra.mxu0 0.0
    %316 = vmatpush.msra.mxu0 0.0
    %317 = vmatpush.msra.mxu0 0.0
    %318 = vmatpush.msra.mxu0 0.0
    %319 = vmatpush.msra.mxu0 %v267
    %320 = vmatpush.msra.mxu0 %v190
    %321 = vmatpush.msra.mxu0 %v174
    %322 = vmatpush.msra.mxu0 %v158
    %323 = vmatpush.msra.mxu0 %v142
    %324 = vmatpush.msra.mxu0 %v126
    %325 = vmatpush.msra.mxu0 %v110
    %326 = vmatpush.msra.mxu0 %v94
    %327 = vmatpush.msra.mxu0 %v78
    %328 = vmatpush.msra.mxu0 %v62
    %329 = vmatpush.msra.mxu0 %v46
    %330 = vmatmul.f32.gmra.mxu0 %v260
    %v331 = vpop.f32.mrf.mxu0
    %v332 = vadd.f32 %v226, %v331
    %333 = vmatmul.f32.gmra.mxu0 %v263
    %v334 = vpop.f32.mrf.mxu0
    %v335 = vadd.f32 %v226, %v334
    %336 = vdwg.mxu0
    %337 = vmatpush.msra.mxu0 0.0
    %338 = vmatpush.msra.mxu0 0.0
    %339 = vmatpush.msra.mxu0 0.0
    %340 = vmatpush.msra.mxu0 0.0
    %341 = vmatpush.msra.mxu0 0.0
    %342 = vmatpush.msra.mxu0 %v270
    %343 = vmatpush.msra.mxu0 %v191
    %344 = vmatpush.msra.mxu0 %v175
    %345 = vmatpush.msra.mxu0 %v159
    %346 = vmatpush.msra.mxu0 %v143
    %347 = vmatpush.msra.mxu0 %v127
    %348 = vmatpush.msra.mxu0 %v111
    %349 = vmatpush.msra.mxu0 %v95
    %350 = vmatpush.msra.mxu0 %v79
    %351 = vmatpush.msra.mxu0 %v63
    %352 = vmatpush.msra.mxu0 %v47
    %353 = vmatmul.f32.gmra.mxu0 %v260
    %v354 = vpop.f32.mrf.mxu0
    %v355 = vadd.f32 %v227, %v354
    %356 = vmatmul.f32.gmra.mxu0 %v263
    %v357 = vpop.f32.mrf.mxu0
    %v358 = vadd.f32 %v227, %v357
    %359 = vdwg.mxu0
    %360 = vmatpush.msra.mxu0 0.0
    %361 = vmatpush.msra.mxu0 0.0
    %362 = vmatpush.msra.mxu0 0.0
    %363 = vmatpush.msra.mxu0 0.0
    %364 = vmatpush.msra.mxu0 0.0
    %365 = vmatpush.msra.mxu0 %v273
    %366 = vmatpush.msra.mxu0 %v192
    %367 = vmatpush.msra.mxu0 %v176
    %368 = vmatpush.msra.mxu0 %v160
    %369 = vmatpush.msra.mxu0 %v144
    %370 = vmatpush.msra.mxu0 %v128
    %371 = vmatpush.msra.mxu0 %v112
    %372 = vmatpush.msra.mxu0 %v96
    %373 = vmatpush.msra.mxu0 %v80
    %374 = vmatpush.msra.mxu0 %v64
    %375 = vmatpush.msra.mxu0 %v48
    %376 = vmatmul.f32.gmra.mxu0 %v260
    %v377 = vpop.f32.mrf.mxu0
    %v378 = vadd.f32 %v228, %v377
    %379 = vmatmul.f32.gmra.mxu0 %v263
    %v380 = vpop.f32.mrf.mxu0
    %v381 = vadd.f32 %v228, %v380
    %382 = vdwg.mxu0
    %383 = vmatpush.msra.mxu0 0.0
    %384 = vmatpush.msra.mxu0 0.0
    %385 = vmatpush.msra.mxu0 0.0
    %386 = vmatpush.msra.mxu0 0.0
    %387 = vmatpush.msra.mxu0 0.0
    %388 = vmatpush.msra.mxu0 %v276
    %389 = vmatpush.msra.mxu0 %v193
    %390 = vmatpush.msra.mxu0 %v177
    %391 = vmatpush.msra.mxu0 %v161
    %392 = vmatpush.msra.mxu0 %v145
    %393 = vmatpush.msra.mxu0 %v129
    %394 = vmatpush.msra.mxu0 %v113
    %395 = vmatpush.msra.mxu0 %v97
    %396 = vmatpush.msra.mxu0 %v81
    %397 = vmatpush.msra.mxu0 %v65
    %398 = vmatpush.msra.mxu0 %v49
    %399 = vmatmul.f32.gmra.mxu0 %v260
    %v400 = vpop.f32.mrf.mxu0
    %v401 = vadd.f32 %v229, %v400
    %402 = vmatmul.f32.gmra.mxu0 %v263
    %v403 = vpop.f32.mrf.mxu0
    %v404 = vadd.f32 %v229, %v403
    %405 = vdwg.mxu0
    %406 = vmatpush.msra.mxu0 0.0
    %407 = vmatpush.msra.mxu0 0.0
    %408 = vmatpush.msra.mxu0 0.0
    %409 = vmatpush.msra.mxu0 0.0
    %410 = vmatpush.msra.mxu0 0.0
    %411 = vmatpush.msra.mxu0 %v279
    %412 = vmatpush.msra.mxu0 %v194
    %413 = vmatpush.msra.mxu0 %v178
    %414 = vmatpush.msra.mxu0 %v162
    %415 = vmatpush.msra.mxu0 %v146
    %416 = vmatpush.msra.mxu0 %v130
    %417 = vmatpush.msra.mxu0 %v114
    %418 = vmatpush.msra.mxu0 %v98
    %419 = vmatpush.msra.mxu0 %v82
    %420 = vmatpush.msra.mxu0 %v66
    %421 = vmatpush.msra.mxu0 %v50
    %422 = vmatmul.f32.gmra.mxu0 %v260
    %v423 = vpop.f32.mrf.mxu0
    %v424 = vadd.f32 %v230, %v423
    %425 = vmatmul.f32.gmra.mxu0 %v263
    %v426 = vpop.f32.mrf.mxu0
    %v427 = vadd.f32 %v230, %v426
    %428 = vdwg.mxu0
    %429 = vmatpush.msra.mxu0 0.0
    %430 = vmatpush.msra.mxu0 0.0
    %431 = vmatpush.msra.mxu0 0.0
    %432 = vmatpush.msra.mxu0 0.0
    %433 = vmatpush.msra.mxu0 0.0
    %434 = vmatpush.msra.mxu0 %v282
    %435 = vmatpush.msra.mxu0 %v195
    %436 = vmatpush.msra.mxu0 %v179
    %437 = vmatpush.msra.mxu0 %v163
    %438 = vmatpush.msra.mxu0 %v147
    %439 = vmatpush.msra.mxu0 %v131
    %440 = vmatpush.msra.mxu0 %v115
    %441 = vmatpush.msra.mxu0 %v99
    %442 = vmatpush.msra.mxu0 %v83
    %443 = vmatpush.msra.mxu0 %v67
    %444 = vmatpush.msra.mxu0 %v51
    %445 = vmatmul.f32.gmra.mxu0 %v260
    %v446 = vpop.f32.mrf.mxu0
    %v447 = vadd.f32 %v231, %v446
    %448 = vmatmul.f32.gmra.mxu0 %v263
    %v449 = vpop.f32.mrf.mxu0
    %v450 = vadd.f32 %v231, %v449
    %451 = vdwg.mxu0
    %452 = vmatpush.msra.mxu0 0.0
    %453 = vmatpush.msra.mxu0 0.0
    %454 = vmatpush.msra.mxu0 0.0
    %455 = vmatpush.msra.mxu0 0.0
    %456 = vmatpush.msra.mxu0 0.0
    %457 = vmatpush.msra.mxu0 %v285
    %458 = vmatpush.msra.mxu0 %v196
    %459 = vmatpush.msra.mxu0 %v180
    %460 = vmatpush.msra.mxu0 %v164
    %461 = vmatpush.msra.mxu0 %v148
    %462 = vmatpush.msra.mxu0 %v132
    %463 = vmatpush.msra.mxu0 %v116
    %464 = vmatpush.msra.mxu0 %v100
    %465 = vmatpush.msra.mxu0 %v84
    %466 = vmatpush.msra.mxu0 %v68
    %467 = vmatpush.msra.mxu0 %v52
    %468 = vmatmul.f32.gmra.mxu0 %v260
    %v469 = vpop.f32.mrf.mxu0
    %v470 = vadd.f32 %v232, %v469
    %471 = vmatmul.f32.gmra.mxu0 %v263
    %v472 = vpop.f32.mrf.mxu0
    %v473 = vadd.f32 %v232, %v472
    %474 = vdwg.mxu0
    %475 = vmatpush.msra.mxu0 0.0
    %476 = vmatpush.msra.mxu0 0.0
    %477 = vmatpush.msra.mxu0 0.0
    %478 = vmatpush.msra.mxu0 0.0
    %479 = vmatpush.msra.mxu0 0.0
    %480 = vmatpush.msra.mxu0 %v288
    %481 = vmatpush.msra.mxu0 %v197
    %482 = vmatpush.msra.mxu0 %v181
    %483 = vmatpush.msra.mxu0 %v165
    %484 = vmatpush.msra.mxu0 %v149
    %485 = vmatpush.msra.mxu0 %v133
    %486 = vmatpush.msra.mxu0 %v117
    %487 = vmatpush.msra.mxu0 %v101
    %488 = vmatpush.msra.mxu0 %v85
    %489 = vmatpush.msra.mxu0 %v69
    %490 = vmatpush.msra.mxu0 %v53
    %491 = vmatmul.f32.gmra.mxu0 %v260
    %v492 = vpop.f32.mrf.mxu0
    %v493 = vadd.f32 %v233, %v492
    %494 = vmatmul.f32.gmra.mxu0 %v263
    %v495 = vpop.f32.mrf.mxu0
    %v496 = vadd.f32 %v233, %v495
    %497 = vdwg.mxu0
    %498 = vmatpush.msra.mxu0 0.0
    %499 = vmatpush.msra.mxu0 0.0
    %500 = vmatpush.msra.mxu0 0.0
    %501 = vmatpush.msra.mxu0 0.0
    %502 = vmatpush.msra.mxu0 0.0
    %503 = vmatpush.msra.mxu0 %v291
    %504 = vmatpush.msra.mxu0 %v198
    %505 = vmatpush.msra.mxu0 %v182
    %506 = vmatpush.msra.mxu0 %v166
    %507 = vmatpush.msra.mxu0 %v150
    %508 = vmatpush.msra.mxu0 %v134
    %509 = vmatpush.msra.mxu0 %v118
    %510 = vmatpush.msra.mxu0 %v102
    %511 = vmatpush.msra.mxu0 %v86
    %512 = vmatpush.msra.mxu0 %v70
    %513 = vmatpush.msra.mxu0 %v54
    %514 = vmatmul.f32.gmra.mxu0 %v260
    %v515 = vpop.f32.mrf.mxu0
    %v516 = vadd.f32 %v234, %v515
    %517 = vmatmul.f32.gmra.mxu0 %v263
    %v518 = vpop.f32.mrf.mxu0
    %v519 = vadd.f32 %v234, %v518
    %520 = vdwg.mxu0
    %521 = vmatpush.msra.mxu0 0.0
    %522 = vmatpush.msra.mxu0 0.0
    %523 = vmatpush.msra.mxu0 0.0
    %524 = vmatpush.msra.mxu0 0.0
    %525 = vmatpush.msra.mxu0 0.0
    %526 = vmatpush.msra.mxu0 %v294
    %527 = vmatpush.msra.mxu0 %v199
    %528 = vmatpush.msra.mxu0 %v183
    %529 = vmatpush.msra.mxu0 %v167
    %530 = vmatpush.msra.mxu0 %v151
    %531 = vmatpush.msra.mxu0 %v135
    %532 = vmatpush.msra.mxu0 %v119
    %533 = vmatpush.msra.mxu0 %v103
    %534 = vmatpush.msra.mxu0 %v87
    %535 = vmatpush.msra.mxu0 %v71
    %536 = vmatpush.msra.mxu0 %v55
    %537 = vmatmul.f32.gmra.mxu0 %v260
    %v538 = vpop.f32.mrf.mxu0
    %v539 = vadd.f32 %v235, %v538
    %540 = vmatmul.f32.gmra.mxu0 %v263
    %v541 = vpop.f32.mrf.mxu0
    %v542 = vadd.f32 %v235, %v541
    %543 = vdwg.mxu0
    %544 = vmatpush.msra.mxu0 0.0
    %545 = vmatpush.msra.mxu0 0.0
    %546 = vmatpush.msra.mxu0 0.0
    %547 = vmatpush.msra.mxu0 0.0
    %548 = vmatpush.msra.mxu0 0.0
    %549 = vmatpush.msra.mxu0 %v297
    %550 = vmatpush.msra.mxu0 %v200
    %551 = vmatpush.msra.mxu0 %v184
    %552 = vmatpush.msra.mxu0 %v168
    %553 = vmatpush.msra.mxu0 %v152
    %554 = vmatpush.msra.mxu0 %v136
    %555 = vmatpush.msra.mxu0 %v120
    %556 = vmatpush.msra.mxu0 %v104
    %557 = vmatpush.msra.mxu0 %v88
    %558 = vmatpush.msra.mxu0 %v72
    %559 = vmatpush.msra.mxu0 %v56
    %560 = vmatmul.f32.gmra.mxu0 %v260
    %v561 = vpop.f32.mrf.mxu0
    %v562 = vadd.f32 %v236, %v561
    %563 = vmatmul.f32.gmra.mxu0 %v263
    %v564 = vpop.f32.mrf.mxu0
    %v565 = vadd.f32 %v236, %v564
    %566 = vdwg.mxu0
    %567 = vmatpush.msra.mxu0 0.0
    %568 = vmatpush.msra.mxu0 0.0
    %569 = vmatpush.msra.mxu0 0.0
    %570 = vmatpush.msra.mxu0 0.0
    %571 = vmatpush.msra.mxu0 0.0
    %572 = vmatpush.msra.mxu0 %v300
    %573 = vmatpush.msra.mxu0 %v201
    %574 = vmatpush.msra.mxu0 %v185
    %575 = vmatpush.msra.mxu0 %v169
    %576 = vmatpush.msra.mxu0 %v153
    %577 = vmatpush.msra.mxu0 %v137
    %578 = vmatpush.msra.mxu0 %v121
    %579 = vmatpush.msra.mxu0 %v105
    %580 = vmatpush.msra.mxu0 %v89
    %581 = vmatpush.msra.mxu0 %v73
    %582 = vmatpush.msra.mxu0 %v57
    %583 = vmatmul.f32.gmra.mxu0 %v260
    %v584 = vpop.f32.mrf.mxu0
    %v585 = vadd.f32 %v237, %v584
    %586 = vmatmul.f32.gmra.mxu0 %v263
    %v587 = vpop.f32.mrf.mxu0
    %v588 = vadd.f32 %v237, %v587
    %589 = vdwg.mxu0
    %590 = vmatpush.msra.mxu0 0.0
    %591 = vmatpush.msra.mxu0 0.0
    %592 = vmatpush.msra.mxu0 0.0
    %593 = vmatpush.msra.mxu0 0.0
    %594 = vmatpush.msra.mxu0 0.0
    %595 = vmatpush.msra.mxu0 %v303
    %596 = vmatpush.msra.mxu0 %v202
    %597 = vmatpush.msra.mxu0 %v186
    %598 = vmatpush.msra.mxu0 %v170
    %599 = vmatpush.msra.mxu0 %v154
    %600 = vmatpush.msra.mxu0 %v138
    %601 = vmatpush.msra.mxu0 %v122
    %602 = vmatpush.msra.mxu0 %v106
    %603 = vmatpush.msra.mxu0 %v90
    %604 = vmatpush.msra.mxu0 %v74
    %605 = vmatpush.msra.mxu0 %v58
    %606 = vmatmul.f32.gmra.mxu0 %v260
    %v607 = vpop.f32.mrf.mxu0
    %v608 = vadd.f32 %v238, %v607
    %609 = vmatmul.f32.gmra.mxu0 %v263
    %v610 = vpop.f32.mrf.mxu0
    %v611 = vadd.f32 %v238, %v610
    %612 = vdwg.mxu0
    %613 = vmatpush.msra.mxu0 0.0
    %614 = vmatpush.msra.mxu0 0.0
    %615 = vmatpush.msra.mxu0 0.0
    %616 = vmatpush.msra.mxu0 0.0
    %617 = vmatpush.msra.mxu0 0.0
    %618 = vmatpush.msra.mxu0 %v306
    %619 = vmatpush.msra.mxu0 %v203
    %620 = vmatpush.msra.mxu0 %v187
    %621 = vmatpush.msra.mxu0 %v171
    %622 = vmatpush.msra.mxu0 %v155
    %623 = vmatpush.msra.mxu0 %v139
    %624 = vmatpush.msra.mxu0 %v123
    %625 = vmatpush.msra.mxu0 %v107
    %626 = vmatpush.msra.mxu0 %v91
    %627 = vmatpush.msra.mxu0 %v75
    %628 = vmatpush.msra.mxu0 %v59
    %629 = vmatmul.f32.gmra.mxu0 %v260
    %v630 = vpop.f32.mrf.mxu0
    %v631 = vadd.f32 %v239, %v630
    %632 = vmatmul.f32.gmra.mxu0 %v263
    %v633 = vpop.f32.mrf.mxu0
    %v634 = vadd.f32 %v239, %v633
    %635 = vdwg.mxu0
    %636 = vmatpush.msra.mxu0 0.0
    %637 = vmatpush.msra.mxu0 0.0
    %638 = vmatpush.msra.mxu0 0.0
    %639 = vmatpush.msra.mxu0 0.0
    %640 = vmatpush.msra.mxu0 0.0
    %641 = vmatpush.msra.mxu0 %v309
    %642 = vmatpush.msra.mxu0 %v204
    %643 = vmatpush.msra.mxu0 %v188
    %644 = vmatpush.msra.mxu0 %v172
    %645 = vmatpush.msra.mxu0 %v156
    %646 = vmatpush.msra.mxu0 %v140
    %647 = vmatpush.msra.mxu0 %v124
    %648 = vmatpush.msra.mxu0 %v108
    %649 = vmatpush.msra.mxu0 %v92
    %650 = vmatpush.msra.mxu0 %v76
    %651 = vmatpush.msra.mxu0 %v60
    %652 = vmatmul.f32.gmra.mxu0 %v260
    %v653 = vpop.f32.mrf.mxu0
    %v654 = vadd.f32 %v240, %v653
    %655 = vmatmul.f32.gmra.mxu0 %v263
    %v656 = vpop.f32.mrf.mxu0
    %v657 = vadd.f32 %v240, %v656
    %658 = vdwg.mxu0
    %659 = vmatpush.msra.mxu0 0.0
    %660 = vmatpush.msra.mxu0 0.0
    %661 = vmatpush.msra.mxu0 0.0
    %662 = vmatpush.msra.mxu0 0.0
    %663 = vmatpush.msra.mxu0 0.0
    %664 = vmatpush.msra.mxu0 %v312
    %665 = vmatpush.msra.mxu0 %v205
    %666 = vmatpush.msra.mxu0 %v189
    %667 = vmatpush.msra.mxu0 %v173
    %668 = vmatpush.msra.mxu0 %v157
    %669 = vmatpush.msra.mxu0 %v141
    %670 = vmatpush.msra.mxu0 %v125
    %671 = vmatpush.msra.mxu0 %v109
    %672 = vmatpush.msra.mxu0 %v93
    %673 = vmatpush.msra.mxu0 %v77
    %674 = vmatpush.msra.mxu0 %v61
    %675 = vmatmul.f32.gmra.mxu0 %v260
    %v676 = vpop.f32.mrf.mxu0
    %v677 = vadd.f32 %v241, %v676
    %678 = vmatmul.f32.gmra.mxu0 %v263
    %v679 = vpop.f32.mrf.mxu0
    %v680 = vadd.f32 %v241, %v679
    %681 = vdwg.mxu0
    %682 = vst [vmem:[%s3] sm:$0xff] %v332
    %683 = vst [vmem:[%s3 + $0x8] sm:$0xff] %v355
    %684 = vst [vmem:[%s3 + $0x10] sm:$0xff] %v378
    %685 = vst [vmem:[%s3 + $0x18] sm:$0xff] %v401
    %686 = vst [vmem:[%s3 + $0x20] sm:$0xff] %v424
    %687 = vst [vmem:[%s3 + $0x28] sm:$0xff] %v447
    %688 = vst [vmem:[%s3 + $0x30] sm:$0xff] %v470
    %689 = vst [vmem:[%s3 + $0x38] sm:$0xff] %v493
    %690 = vst [vmem:[%s3 + $0x40] sm:$0xff] %v516
    %691 = vst [vmem:[%s3 + $0x48] sm:$0xff] %v539
    %692 = vst [vmem:[%s3 + $0x50] sm:$0xff] %v562
    %693 = vst [vmem:[%s3 + $0x58] sm:$0xff] %v585
    %694 = vst [vmem:[%s3 + $0x60] sm:$0xff] %v608
    %695 = vst [vmem:[%s3 + $0x68] sm:$0xff] %v631
    %696 = vst [vmem:[%s3 + $0x70] sm:$0xff] %v654
    %697 = vst [vmem:[%s3 + $0x78] sm:$0xff] %v677
    %698 = vst [vmem:[%s3 + $0x80] sm:$0x3f] %v335
    %699 = vst [vmem:[%s3 + $0x88] sm:$0x3f] %v358
    %700 = vst [vmem:[%s3 + $0x90] sm:$0x3f] %v381
    %701 = vst [vmem:[%s3 + $0x98] sm:$0x3f] %v404
    %702 = vst [vmem:[%s3 + $0xa0] sm:$0x3f] %v427
    %703 = vst [vmem:[%s3 + $0xa8] sm:$0x3f] %v450
    %704 = vst [vmem:[%s3 + $0xb0] sm:$0x3f] %v473
    %705 = vst [vmem:[%s3 + $0xb8] sm:$0x3f] %v496
    %706 = vst [vmem:[%s3 + $0xc0] sm:$0x3f] %v519
    %707 = vst [vmem:[%s3 + $0xc8] sm:$0x3f] %v542
    %708 = vst [vmem:[%s3 + $0xd0] sm:$0x3f] %v565
    %709 = vst [vmem:[%s3 + $0xd8] sm:$0x3f] %v588
    %710 = vst [vmem:[%s3 + $0xe0] sm:$0x3f] %v611
    %711 = vst [vmem:[%s3 + $0xe8] sm:$0x3f] %v634
    %712 = vst [vmem:[%s3 + $0xf0] sm:$0x3f] %v657
    %713 = vst [vmem:[%s3 + $0xf8] sm:$0x3f] %v680
    // Predicated region
    $region22: #{decoder_forward_train.8} parent=1 // pred_check
      _
    $region23: #{decoder_forward_train.8} parent=1 // pred_check_branch
      %715 = sbr.rel (0) target = $region25
    $region24: #{decoder_forward_train.8} parent=1 // pred_region
      _
    $region25: #{decoder_forward_train.8} parent=1 // pred_fallthru
      _
    // Predicated region
    $region26: #{decoder_forward_train.8} parent=1 // pred_check
      _
    $region27: #{decoder_forward_train.8} parent=1 // pred_check_branch
      %717 = sbr.rel (0) target = $region29
    $region28: #{decoder_forward_train.8} parent=1 // pred_region
      _
    $region29: #{decoder_forward_train.8} parent=1 // pred_fallthru
      _
    %718 = vsyncpa [#allocation3], 1
    %719 = vsyncpa [#allocation5], 1

// kernel: decoder_forward_train.6
$region0: #{decoder_forward_train.6}
  #allocation0 [shape = 'u32[]', space=smem, size = 0x4, offset = 0x4, fixed_abs, tag = 'smem constant byte address 0x4 - core index']
  #allocation1 [shape = 'u32[72,128]{1,0:T(1,128)}', space=vmem, size = 0x9000, scoped, tag = 'internal scratch']
  #allocation2 [shape = 'f32[2,512]{1,0:T(2,128)}', space=vmem, size = 0x1000, scoped, tag = 'scratch operand']
  #allocation3 [shape = 'f32[2,512]{1,0:T(2,128)}', space=vmem, size = 0x1000, scoped, tag = 'scratch operand']
  %s0 = inlined_call_operand.vmem [shape: f32[8,2,2048], index: 0, kind: input, shape index: {}]
  %s1 = inlined_call_operand.hbm [shape: f32[512,2048], index: 1, kind: input, shape index: {}]
  %s2 = inlined_call_operand.vmem [shape: f32[2,512], index: 2, kind: output, shape index: {}]
  %s3 = sld [smem:[#allocation0]]
  $region53: #{decoder_forward_train.6} parent=0
    _
  %s5 = ssub.s32 1, %s3
  %s6 = scalar_select 0, %s5, %s3
  $region1: #{decoder_forward_train.6} parent=0
    #allocation4 [shape = 'u8[4194304]{0}', space=vmem, size = 0x400000, scoped, tag = 'input window, operand 1, single buffered']
    #allocation5 [shape = 's32[2]{0}', space=sflag, size = 0x8, scoped, tag = 'scoped memory for decoder_forward_train.6']
    %7 = vsyncpa [#allocation5], 0
    loop: start=0, step=1, limit=10
    $region2: #{decoder_forward_train.6} parent=1 // loop_pre_header
      _
    $region3: #{decoder_forward_train.6} parent=1 // loop_header
      %s9 = sphi 0, %s13
      %p10 = scmp.ge.s32.totalorder %s9, 10
      %s19 = sphi 0, %s21
      %s22 = sphi 0, %s19
      %s23 = sphi 0, %s22
      %s39 = sphi 0, %s23
      %s43 = sphi 0, %s43
      %s45 = sphi 0, %s43
      %s46 = sphi 0, %s45
      %s60 = sphi 0, %s46
      %s64 = sphi 0, %s64
      %s66 = sphi 0, %s64
      %s67 = sphi 0, %s66
      %s81 = sphi 0, %s67
    $region4: #{decoder_forward_train.6} parent=1 // loop_header_branch
      %12 = sbr.rel (%p10) target = $region8
    $region5: #{decoder_forward_train.6} parent=1 // loop_body
      %s14 = ssub.s32 %s9, 1
      %s15 = ssub.s32 %s9, 2
      %s16 = sadd.s32 %s9, 1
      %s17 = ssub.s32 %s9, %s16
      %p18 = scmp.eq.s32.totalorder %s17, 0
      %s20 = sadd.s32 %s19, 1
      %s21 = scalar_select %p18, %s19, %s20
      %p24 = pneg %p18
      %p25 = scmp.eq.s32.totalorder %s9, 7
      %p26 = por %p24, %p25
      %p27 = scmp.ne.s32.totalorder %s19, %s22
      %p28 = scmp.eq.s32.totalorder %s9, 0
      %p29 = por %p27, %p28
      %p30 = scmp.ne.s32.totalorder %s19, %s22
      %p31 = scmp.eq.s32.totalorder %s14, 7
      %p32 = por %p30, %p31
      %p33 = scmp.ne.s32.totalorder %s22, %s23
      %p34 = scmp.eq.s32.totalorder %s14, 0
      %p35 = por %p33, %p34
      %p36 = scmp.ne.s32.totalorder %s22, %s23
      %p37 = scmp.eq.s32.totalorder %s15, 7
      %p38 = por %p36, %p37
      %p40 = scmp.ne.s32.totalorder %s23, %s39
      %p41 = scmp.eq.s32.totalorder %s15, 0
      %p42 = por %p40, %p41
      %s44 = sadd.s32 %s43, 1
      %p47 = scmp.eq.s32.totalorder %s9, 7
      %p48 = scmp.ne.s32.totalorder %s43, %s45
      %p49 = scmp.eq.s32.totalorder %s9, 0
      %p50 = por %p48, %p49
      %p51 = scmp.ne.s32.totalorder %s43, %s45
      %p52 = scmp.eq.s32.totalorder %s14, 7
      %p53 = por %p51, %p52
      %p54 = scmp.ne.s32.totalorder %s45, %s46
      %p55 = scmp.eq.s32.totalorder %s14, 0
      %p56 = por %p54, %p55
      %p57 = scmp.ne.s32.totalorder %s45, %s46
      %p58 = scmp.eq.s32.totalorder %s15, 7
      %p59 = por %p57, %p58
      %p61 = scmp.ne.s32.totalorder %s46, %s60
      %p62 = scmp.eq.s32.totalorder %s15, 0
      %p63 = por %p61, %p62
      %s65 = sadd.s32 %s64, 1
      %p68 = scmp.eq.s32.totalorder %s9, 7
      %p69 = scmp.ne.s32.totalorder %s64, %s66
      %p70 = scmp.eq.s32.totalorder %s9, 0
      %p71 = por %p69, %p70
      %p72 = scmp.ne.s32.totalorder %s64, %s66
      %p73 = scmp.eq.s32.totalorder %s14, 7
      %p74 = por %p72, %p73
      %p75 = scmp.ne.s32.totalorder %s66, %s67
      %p76 = scmp.eq.s32.totalorder %s14, 0
      %p77 = por %p75, %p76
      %p78 = scmp.ne.s32.totalorder %s66, %s67
      %p79 = scmp.eq.s32.totalorder %s15, 7
      %p80 = por %p78, %p79
      %p82 = scmp.ne.s32.totalorder %s67, %s81
      %p83 = scmp.eq.s32.totalorder %s15, 0
      %p84 = por %p82, %p83
      %p85 = scmp.le.s32.totalorder 1, %s9
      %p86 = scmp.lt.s32.totalorder %s9, 9
      %p87 = pnand %p85, %p86
      %p88 = pneg %p87
      // Predicated region
      $region9: #{decoder_forward_train.6} parent=5 // pred_check
        _
      $region10: #{decoder_forward_train.6} parent=5 // pred_check_branch
        %90 = sbr.rel (%p87) target = $region12
      $region11: #{decoder_forward_train.6} parent=5 // pred_region
        %s91 = ssub.s32 %s9, 1
        // Predicated region
        $region13: #{decoder_forward_train.6} parent=11 // pred_check
          %p92 = pneg %p56
        $region14: #{decoder_forward_train.6} parent=11 // pred_check_branch
          %94 = sbr.rel (%p92) target = $region16
        $region15: #{decoder_forward_train.6} parent=11 // pred_region
          %96 = vsyncadd [#allocation5], 0
          %s97 = sshll.u32 %s1, 4
          %s98 = int_to_ptr.hbm [resolvable:$true] %s97
          %s99 = sshll.u32 [#allocation4], 4
          %s100 = int_to_ptr.vmem [resolvable:$true] %s99
          %105 = dma.hbm_to_vmem [thread:$0]  %s98, 131072, %s100, [#allocation5], 2048, 2048, 128
        $region16: #{decoder_forward_train.6} parent=11 // pred_fallthru
          _
      $region12: #{decoder_forward_train.6} parent=5 // pred_fallthru
        _
      %p106 = scmp.lt.s32.totalorder %s9, 8
      // Predicated region
      $region17: #{decoder_forward_train.6} parent=5 // pred_check
        %p107 = pneg %p106
      $region18: #{decoder_forward_train.6} parent=5 // pred_check_branch
        %109 = sbr.rel (%p107) target = $region20
      $region19: #{decoder_forward_train.6} parent=5 // pred_region
        // Predicated region
        $region21: #{decoder_forward_train.6} parent=19 // pred_check
          %p110 = pneg %p29
        $region22: #{decoder_forward_train.6} parent=19 // pred_check_branch
          %112 = sbr.rel (%p110) target = $region24
        $region23: #{decoder_forward_train.6} parent=19 // pred_region
          %p113 = scmp.lt.s32.totalorder %s9, 7
          %s114 = scalar_select %p113, %s9, 7
          %s115 = smul.addr %s114, 16
          %s116 = smul.addr %s115, 2
          %s117 = scalar_lea.vmem %s0, %s116
        $region24: #{decoder_forward_train.6} parent=19 // pred_fallthru
          _
      $region20: #{decoder_forward_train.6} parent=5 // pred_fallthru
        _
      %p118 = scmp.le.s32.totalorder 1, %s9
      %p119 = scmp.lt.s32.totalorder %s9, 9
      %p120 = pnand %p118, %p119
      %p121 = pneg %p120
      // Predicated region
      $region25: #{decoder_forward_train.6} parent=5 // pred_check
        _
      $region26: #{decoder_forward_train.6} parent=5 // pred_check_branch
        %123 = sbr.rel (%p120) target = $region28
      $region27: #{decoder_forward_train.6} parent=5 // pred_region
        %s124 = ssub.s32 %s9, 1
        // Predicated region
        $region29: #{decoder_forward_train.6} parent=27 // pred_check
          %p125 = pneg %p56
        $region30: #{decoder_forward_train.6} parent=27 // pred_check_branch
          %127 = sbr.rel (%p125) target = $region32
        $region31: #{decoder_forward_train.6} parent=27 // pred_region
          %129 = dma.done [#allocation5], 131072
        $region32: #{decoder_forward_train.6} parent=27 // pred_fallthru
          _
        %p130 = scmp.lt.s32.totalorder %s14, 7
        %s131 = scalar_select %p130, %s14, 7
        %s132 = smul.addr %s131, 16
        %s133 = smul.addr %s132, 2
        %s134 = scalar_lea.vmem %s0, %s133
        %p135 = pneg %p35
        %p136 = pneg %p32
        %p137 = pneg %p56
        %p138 = pneg %p53
        %p139 = pneg %p77
        %p140 = pneg %p74
        %p141 = scmp.lt.s32.totalorder %s14, 7
        %s142 = scalar_select %p141, %s14, 7
        %s143 = smul.addr %s142, 16
        %s144 = smul.addr %s143, 2
        %s145 = scalar_lea.vmem %s0, %s144
        %p146 = scmp.eq.s32.totalorder %s14, 0
        // Predicated region
        $region33: #{decoder_forward_train.6} parent=27 // pred_check
          %p147 = pneg %p146
        $region34: #{decoder_forward_train.6} parent=27 // pred_check_branch
          %149 = sbr.rel (%p147) target = $region36
        $region35: #{decoder_forward_train.6} parent=27 // pred_region
          %150 = vst [vmem:[#allocation2] sm:$0xff] 0.0
          %151 = vst [vmem:[#allocation3] sm:$0xff] 0.0
        $region36: #{decoder_forward_train.6} parent=27 // pred_fallthru
          _
        %v152 = vld [vmem:[%s145] sm:$0xff]
        %v153 = vld [vmem:[%s145 + $0x8] sm:$0xff]
        %v154 = vld [vmem:[%s145 + $0x10] sm:$0xff]
        %v155 = vld [vmem:[%s145 + $0x18] sm:$0xff]
        %v156 = vld [vmem:[#allocation2] sm:$0xff]
        %v157 = vld [vmem:[#allocation4] sm:$0xff]
        %v158 = vld [vmem:[#allocation4 + $0x8] sm:$0xff]
        %v159 = vld [vmem:[#allocation4 + $0x10] sm:$0xff]
        %v160 = vld [vmem:[#allocation4 + $0x18] sm:$0xff]
        %v161 = vld [vmem:[#allocation4 + $0x20] sm:$0xff]
        %v162 = vld [vmem:[#allocation4 + $0x28] sm:$0xff]
        %v163 = vld [vmem:[#allocation4 + $0x30] sm:$0xff]
        %v164 = vld [vmem:[#allocation4 + $0x38] sm:$0xff]
        %v165 = vld [vmem:[#allocation4 + $0x40] sm:$0xff]
        %v166 = vld [vmem:[#allocation4 + $0x48] sm:$0xff]
        %v167 = vld [vmem:[#allocation4 + $0x50] sm:$0xff]
        %v168 = vld [vmem:[#allocation4 + $0x58] sm:$0xff]
        %v169 = vld [vmem:[#allocation4 + $0x60] sm:$0xff]
        %v170 = vld [vmem:[#allocation4 + $0x68] sm:$0xff]
        %v171 = vld [vmem:[#allocation4 + $0x70] sm:$0xff]
        %v172 = vld [vmem:[#allocation4 + $0x78] sm:$0xff]
        %v173 = vld [vmem:[#allocation4 + $0x80] sm:$0xff]
        %v174 = vld [vmem:[#allocation4 + $0x88] sm:$0xff]
        %v175 = vld [vmem:[#allocation4 + $0x90] sm:$0xff]
        %v176 = vld [vmem:[#allocation4 + $0x98] sm:$0xff]
        %v177 = vld [vmem:[#allocation4 + $0xa0] sm:$0xff]
        %v178 = vld [vmem:[#allocation4 + $0xa8] sm:$0xff]
        %v179 = vld [vmem:[#allocation4 + $0xb0] sm:$0xff]
        %v180 = vld [vmem:[#allocation4 + $0xb8] sm:$0xff]
        %v181 = vld [vmem:[#allocation4 + $0xc0] sm:$0xff]
        %v182 = vld [vmem:[#allocation4 + $0xc8] sm:$0xff]
        %v183 = vld [vmem:[#allocation4 + $0xd0] sm:$0xff]
        %v184 = vld [vmem:[#allocation4 + $0xd8] sm:$0xff]
        %v185 = vld [vmem:[#allocation4 + $0xe0] sm:$0xff]
        %v186 = vld [vmem:[#allocation4 + $0xe8] sm:$0xff]
        %v187 = vld [vmem:[#allocation4 + $0xf0] sm:$0xff]
        %v188 = vld [vmem:[#allocation4 + $0xf8] sm:$0xff]
        %v189 = vld [vmem:[#allocation4 + $0x100] sm:$0xff]
        %v190 = vld [vmem:[#allocation4 + $0x108] sm:$0xff]
        %v191 = vld [vmem:[#allocation4 + $0x110] sm:$0xff]
        %v192 = vld [vmem:[#allocation4 + $0x118] sm:$0xff]
        %v193 = vld [vmem:[#allocation4 + $0x120] sm:$0xff]
        %v194 = vld [vmem:[#allocation4 + $0x128] sm:$0xff]
        %v195 = vld [vmem:[#allocation4 + $0x130] sm:$0xff]
        %v196 = vld [vmem:[#allocation4 + $0x138] sm:$0xff]
        %v197 = vld [vmem:[#allocation4 + $0x140] sm:$0xff]
        %v198 = vld [vmem:[#allocation4 + $0x148] sm:$0xff]
        %v199 = vld [vmem:[#allocation4 + $0x150] sm:$0xff]
        %v200 = vld [vmem:[#allocation4 + $0x158] sm:$0xff]
        %v201 = vld [vmem:[#allocation4 + $0x160] sm:$0xff]
        %v202 = vld [vmem:[#allocation4 + $0x168] sm:$0xff]
        %v203 = vld [vmem:[#allocation4 + $0x170] sm:$0xff]
        %v204 = vld [vmem:[#allocation4 + $0x178] sm:$0xff]
        %v205 = vld [vmem:[#allocation4 + $0x180] sm:$0xff]
        %v206 = vld [vmem:[#allocation4 + $0x188] sm:$0xff]
        %v207 = vld [vmem:[#allocation4 + $0x190] sm:$0xff]
        %v208 = vld [vmem:[#allocation4 + $0x198] sm:$0xff]
        %v209 = vld [vmem:[#allocation4 + $0x1a0] sm:$0xff]
        %v210 = vld [vmem:[#allocation4 + $0x1a8] sm:$0xff]
        %v211 = vld [vmem:[#allocation4 + $0x1b0] sm:$0xff]
        %v212 = vld [vmem:[#allocation4 + $0x1b8] sm:$0xff]
        %v213 = vld [vmem:[#allocation4 + $0x1c0] sm:$0xff]
        %v214 = vld [vmem:[#allocation4 + $0x1c8] sm:$0xff]
        %v215 = vld [vmem:[#allocation4 + $0x1d0] sm:$0xff]
        %v216 = vld [vmem:[#allocation4 + $0x1d8] sm:$0xff]
        %v217 = vld [vmem:[#allocation4 + $0x1e0] sm:$0xff]
        %v218 = vld [vmem:[#allocation4 + $0x1e8] sm:$0xff]
        %v219 = vld [vmem:[#allocation4 + $0x1f0] sm:$0xff]
        %v220 = vld [vmem:[#allocation4 + $0x1f8] sm:$0xff]
        %v221 = vld [vmem:[#allocation4 + $0x200] sm:$0xff]
        %v222 = vld [vmem:[#allocation4 + $0x208] sm:$0xff]
        %v223 = vld [vmem:[#allocation4 + $0x210] sm:$0xff]
        %v224 = vld [vmem:[#allocation4 + $0x218] sm:$0xff]
        %v225 = vld [vmem:[#allocation4 + $0x220] sm:$0xff]
        %v226 = vld [vmem:[#allocation4 + $0x228] sm:$0xff]
        %v227 = vld [vmem:[#allocation4 + $0x230] sm:$0xff]
        %v228 = vld [vmem:[#allocation4 + $0x238] sm:$0xff]
        %v229 = vld [vmem:[#allocation4 + $0x240] sm:$0xff]
        %v230 = vld [vmem:[#allocation4 + $0x248] sm:$0xff]
        %v231 = vld [vmem:[#allocation4 + $0x250] sm:$0xff]
        %v232 = vld [vmem:[#allocation4 + $0x258] sm:$0xff]
        %v233 = vld [vmem:[#allocation4 + $0x260] sm:$0xff]
        %v234 = vld [vmem:[#allocation4 + $0x268] sm:$0xff]
        %v235 = vld [vmem:[#allocation4 + $0x270] sm:$0xff]
        %v236 = vld [vmem:[#allocation4 + $0x278] sm:$0xff]
        %v237 = vld [vmem:[#allocation4 + $0x280] sm:$0xff]
        %v238 = vld [vmem:[#allocation4 + $0x288] sm:$0xff]
        %v239 = vld [vmem:[#allocation4 + $0x290] sm:$0xff]
        %v240 = vld [vmem:[#allocation4 + $0x298] sm:$0xff]
        %v241 = vld [vmem:[#allocation4 + $0x2a0] sm:$0xff]
        %v242 = vld [vmem:[#allocation4 + $0x2a8] sm:$0xff]
        %v243 = vld [vmem:[#allocation4 + $0x2b0] sm:$0xff]
        %v244 = vld [vmem:[#allocation4 + $0x2b8] sm:$0xff]
        %v245 = vld [vmem:[#allocation4 + $0x2c0] sm:$0xff]
        %v246 = vld [vmem:[#allocation4 + $0x2c8] sm:$0xff]
        %v247 = vld [vmem:[#allocation4 + $0x2d0] sm:$0xff]
        %v248 = vld [vmem:[#allocation4 + $0x2d8] sm:$0xff]
        %v249 = vld [vmem:[#allocation4 + $0x2e0] sm:$0xff]
        %v250 = vld [vmem:[#allocation4 + $0x2e8] sm:$0xff]
        %v251 = vld [vmem:[#allocation4 + $0x2f0] sm:$0xff]
        %v252 = vld [vmem:[#allocation4 + $0x2f8] sm:$0xff]
        %v253 = vld [vmem:[#allocation4 + $0x300] sm:$0xff]
        %v254 = vld [vmem:[#allocation4 + $0x308] sm:$0xff]
        %v255 = vld [vmem:[#allocation4 + $0x310] sm:$0xff]
        %v256 = vld [vmem:[#allocation4 + $0x318] sm:$0xff]
        %v257 = vld [vmem:[#allocation4 + $0x320] sm:$0xff]
        %v258 = vld [vmem:[#allocation4 + $0x328] sm:$0xff]
        %v259 = vld [vmem:[#allocation4 + $0x330] sm:$0xff]
        %v260 = vld [vmem:[#allocation4 + $0x338] sm:$0xff]
        %v261 = vld [vmem:[#allocation4 + $0x340] sm:$0xff]
        %v262 = vld [vmem:[#allocation4 + $0x348] sm:$0xff]
        %v263 = vld [vmem:[#allocation4 + $0x350] sm:$0xff]
        %v264 = vld [vmem:[#allocation4 + $0x358] sm:$0xff]
        %v265 = vld [vmem:[#allocation4 + $0x360] sm:$0xff]
        %v266 = vld [vmem:[#allocation4 + $0x368] sm:$0xff]
        %v267 = vld [vmem:[#allocation4 + $0x370] sm:$0xff]
        %v268 = vld [vmem:[#allocation4 + $0x378] sm:$0xff]
        %v269 = vld [vmem:[#allocation4 + $0x380] sm:$0xff]
        %v270 = vld [vmem:[#allocation4 + $0x388] sm:$0xff]
        %v271 = vld [vmem:[#allocation4 + $0x390] sm:$0xff]
        %v272 = vld [vmem:[#allocation4 + $0x398] sm:$0xff]
        %v273 = vld [vmem:[#allocation4 + $0x3a0] sm:$0xff]
        %v274 = vld [vmem:[#allocation4 + $0x3a8] sm:$0xff]
        %v275 = vld [vmem:[#allocation4 + $0x3b0] sm:$0xff]
        %v276 = vld [vmem:[#allocation4 + $0x3b8] sm:$0xff]
        %v277 = vld [vmem:[#allocation4 + $0x3c0] sm:$0xff]
        %v278 = vld [vmem:[#allocation4 + $0x3c8] sm:$0xff]
        %v279 = vld [vmem:[#allocation4 + $0x3d0] sm:$0xff]
        %v280 = vld [vmem:[#allocation4 + $0x3d8] sm:$0xff]
        %v281 = vld [vmem:[#allocation4 + $0x3e0] sm:$0xff]
        %v282 = vld [vmem:[#allocation4 + $0x3e8] sm:$0xff]
        %v283 = vld [vmem:[#allocation4 + $0x3f0] sm:$0xff]
        %v284 = vld [vmem:[#allocation4 + $0x3f8] sm:$0xff]
        %v285 = vld [vmem:[#allocation4 + $0x400] sm:$0xff]
        %v286 = vld [vmem:[#allocation4 + $0x408] sm:$0xff]
        %v287 = vld [vmem:[#allocation4 + $0x410] sm:$0xff]
        %v288 = vld [vmem:[#allocation4 + $0x418] sm:$0xff]
        %v289 = vld [vmem:[#allocation4 + $0x420] sm:$0xff]
        %v290 = vld [vmem:[#allocation4 + $0x428] sm:$0xff]
        %v291 = vld [vmem:[#allocation4 + $0x430] sm:$0xff]
        %v292 = vld [vmem:[#allocation4 + $0x438] sm:$0xff]
        %v293 = vld [vmem:[#allocation4 + $0x440] sm:$0xff]
        %v294 = vld [vmem:[#allocation4 + $0x448] sm:$0xff]
        %v295 = vld [vmem:[#allocation4 + $0x450] sm:$0xff]
        %v296 = vld [vmem:[#allocation4 + $0x458] sm:$0xff]
        %v297 = vld [vmem:[#allocation4 + $0x460] sm:$0xff]
        %v298 = vld [vmem:[#allocation4 + $0x468] sm:$0xff]
        %v299 = vld [vmem:[#allocation4 + $0x470] sm:$0xff]
        %v300 = vld [vmem:[#allocation4 + $0x478] sm:$0xff]
        %v301 = vld [vmem:[#allocation4 + $0x480] sm:$0xff]
        %v302 = vld [vmem:[#allocation4 + $0x488] sm:$0xff]
        %v303 = vld [vmem:[#allocation4 + $0x490] sm:$0xff]
        %v304 = vld [vmem:[#allocation4 + $0x498] sm:$0xff]
        %v305 = vld [vmem:[#allocation4 + $0x4a0] sm:$0xff]
        %v306 = vld [vmem:[#allocation4 + $0x4a8] sm:$0xff]
        %v307 = vld [vmem:[#allocation4 + $0x4b0] sm:$0xff]
        %v308 = vld [vmem:[#allocation4 + $0x4b8] sm:$0xff]
        %v309 = vld [vmem:[#allocation4 + $0x4c0] sm:$0xff]
        %v310 = vld [vmem:[#allocation4 + $0x4c8] sm:$0xff]
        %v311 = vld [vmem:[#allocation4 + $0x4d0] sm:$0xff]
        %v312 = vld [vmem:[#allocation4 + $0x4d8] sm:$0xff]
        %v313 = vld [vmem:[#allocation4 + $0x4e0] sm:$0xff]
        %v314 = vld [vmem:[#allocation4 + $0x4e8] sm:$0xff]
        %v315 = vld [vmem:[#allocation4 + $0x4f0] sm:$0xff]
        %v316 = vld [vmem:[#allocation4 + $0x4f8] sm:$0xff]
        %v317 = vld [vmem:[#allocation4 + $0x500] sm:$0xff]
        %v318 = vld [vmem:[#allocation4 + $0x508] sm:$0xff]
        %v319 = vld [vmem:[#allocation4 + $0x510] sm:$0xff]
        %v320 = vld [vmem:[#allocation4 + $0x518] sm:$0xff]
        %v321 = vld [vmem:[#allocation4 + $0x520] sm:$0xff]
        %v322 = vld [vmem:[#allocation4 + $0x528] sm:$0xff]
        %v323 = vld [vmem:[#allocation4 + $0x530] sm:$0xff]
        %v324 = vld [vmem:[#allocation4 + $0x538] sm:$0xff]
        %v325 = vld [vmem:[#allocation4 + $0x540] sm:$0xff]
        %v326 = vld [vmem:[#allocation4 + $0x548] sm:$0xff]
        %v327 = vld [vmem:[#allocation4 + $0x550] sm:$0xff]
        %v328 = vld [vmem:[#allocation4 + $0x558] sm:$0xff]
        %v329 = vld [vmem:[#allocation4 + $0x560] sm:$0xff]
        %v330 = vld [vmem:[#allocation4 + $0x568] sm:$0xff]
        %v331 = vld [vmem:[#allocation4 + $0x570] sm:$0xff]
        %v332 = vld [vmem:[#allocation4 + $0x578] sm:$0xff]
        %v333 = vld [vmem:[#allocation4 + $0x580] sm:$0xff]
        %v334 = vld [vmem:[#allocation4 + $0x588] sm:$0xff]
        %v335 = vld [vmem:[#allocation4 + $0x590] sm:$0xff]
        %v336 = vld [vmem:[#allocation4 + $0x598] sm:$0xff]
        %v337 = vld [vmem:[#allocation4 + $0x5a0] sm:$0xff]
        %v338 = vld [vmem:[#allocation4 + $0x5a8] sm:$0xff]
        %v339 = vld [vmem:[#allocation4 + $0x5b0] sm:$0xff]
        %v340 = vld [vmem:[#allocation4 + $0x5b8] sm:$0xff]
        %v341 = vld [vmem:[#allocation4 + $0x5c0] sm:$0xff]
        %v342 = vld [vmem:[#allocation4 + $0x5c8] sm:$0xff]
        %v343 = vld [vmem:[#allocation4 + $0x5d0] sm:$0xff]
        %v344 = vld [vmem:[#allocation4 + $0x5d8] sm:$0xff]
        %v345 = vld [vmem:[#allocation4 + $0x5e0] sm:$0xff]
        %v346 = vld [vmem:[#allocation4 + $0x5e8] sm:$0xff]
        %v347 = vld [vmem:[#allocation4 + $0x5f0] sm:$0xff]
        %v348 = vld [vmem:[#allocation4 + $0x5f8] sm:$0xff]
        %v349 = vld [vmem:[#allocation4 + $0x600] sm:$0xff]
        %v350 = vld [vmem:[#allocation4 + $0x608] sm:$0xff]
        %v351 = vld [vmem:[#allocation4 + $0x610] sm:$0xff]
        %v352 = vld [vmem:[#allocation4 + $0x618] sm:$0xff]
        %v353 = vld [vmem:[#allocation4 + $0x620] sm:$0xff]
        %v354 = vld [vmem:[#allocation4 + $0x628] sm:$0xff]
        %v355 = vld [vmem:[#allocation4 + $0x630] sm:$0xff]
        %v356 = vld [vmem:[#allocation4 + $0x638] sm:$0xff]
        %v357 = vld [vmem:[#allocation4 + $0x640] sm:$0xff]
        %v358 = vld [vmem:[#allocation4 + $0x648] sm:$0xff]
        %v359 = vld [vmem:[#allocation4 + $0x650] sm:$0xff]
        %v360 = vld [vmem:[#allocation4 + $0x658] sm:$0xff]
        %v361 = vld [vmem:[#allocation4 + $0x660] sm:$0xff]
        %v362 = vld [vmem:[#allocation4 + $0x668] sm:$0xff]
        %v363 = vld [vmem:[#allocation4 + $0x670] sm:$0xff]
        %v364 = vld [vmem:[#allocation4 + $0x678] sm:$0xff]
        %v365 = vld [vmem:[#allocation4 + $0x680] sm:$0xff]
        %v366 = vld [vmem:[#allocation4 + $0x688] sm:$0xff]
        %v367 = vld [vmem:[#allocation4 + $0x690] sm:$0xff]
        %v368 = vld [vmem:[#allocation4 + $0x698] sm:$0xff]
        %v369 = vld [vmem:[#allocation4 + $0x6a0] sm:$0xff]
        %v370 = vld [vmem:[#allocation4 + $0x6a8] sm:$0xff]
        %v371 = vld [vmem:[#allocation4 + $0x6b0] sm:$0xff]
        %v372 = vld [vmem:[#allocation4 + $0x6b8] sm:$0xff]
        %v373 = vld [vmem:[#allocation4 + $0x6c0] sm:$0xff]
        %v374 = vld [vmem:[#allocation4 + $0x6c8] sm:$0xff]
        %v375 = vld [vmem:[#allocation4 + $0x6d0] sm:$0xff]
        %v376 = vld [vmem:[#allocation4 + $0x6d8] sm:$0xff]
        %v377 = vld [vmem:[#allocation4 + $0x6e0] sm:$0xff]
        %v378 = vld [vmem:[#allocation4 + $0x6e8] sm:$0xff]
        %v379 = vld [vmem:[#allocation4 + $0x6f0] sm:$0xff]
        %v380 = vld [vmem:[#allocation4 + $0x6f8] sm:$0xff]
        %v381 = vld [vmem:[#allocation4 + $0x700] sm:$0xff]
        %v382 = vld [vmem:[#allocation4 + $0x708] sm:$0xff]
        %v383 = vld [vmem:[#allocation4 + $0x710] sm:$0xff]
        %v384 = vld [vmem:[#allocation4 + $0x718] sm:$0xff]
        %v385 = vld [vmem:[#allocation4 + $0x720] sm:$0xff]
        %v386 = vld [vmem:[#allocation4 + $0x728] sm:$0xff]
        %v387 = vld [vmem:[#allocation4 + $0x730] sm:$0xff]
        %v388 = vld [vmem:[#allocation4 + $0x738] sm:$0xff]
        %v389 = vld [vmem:[#allocation4 + $0x740] sm:$0xff]
        %v390 = vld [vmem:[#allocation4 + $0x748] sm:$0xff]
        %v391 = vld [vmem:[#allocation4 + $0x750] sm:$0xff]
        %v392 = vld [vmem:[#allocation4 + $0x758] sm:$0xff]
        %v393 = vld [vmem:[#allocation4 + $0x760] sm:$0xff]
        %v394 = vld [vmem:[#allocation4 + $0x768] sm:$0xff]
        %v395 = vld [vmem:[#allocation4 + $0x770] sm:$0xff]
        %v396 = vld [vmem:[#allocation4 + $0x778] sm:$0xff]
        %v397 = vld [vmem:[#allocation4 + $0x780] sm:$0xff]
        %v398 = vld [vmem:[#allocation4 + $0x788] sm:$0xff]
        %v399 = vld [vmem:[#allocation4 + $0x790] sm:$0xff]
        %v400 = vld [vmem:[#allocation4 + $0x798] sm:$0xff]
        %v401 = vld [vmem:[#allocation4 + $0x7a0] sm:$0xff]
        %v402 = vld [vmem:[#allocation4 + $0x7a8] sm:$0xff]
        %v403 = vld [vmem:[#allocation4 + $0x7b0] sm:$0xff]
        %v404 = vld [vmem:[#allocation4 + $0x7b8] sm:$0xff]
        %v405 = vld [vmem:[#allocation4 + $0x7c0] sm:$0xff]
        %v406 = vld [vmem:[#allocation4 + $0x7c8] sm:$0xff]
        %v407 = vld [vmem:[#allocation4 + $0x7d0] sm:$0xff]
        %v408 = vld [vmem:[#allocation4 + $0x7d8] sm:$0xff]
        %v409 = vld [vmem:[#allocation4 + $0x7e0] sm:$0xff]
        %v410 = vld [vmem:[#allocation4 + $0x7e8] sm:$0xff]
        %v411 = vld [vmem:[#allocation4 + $0x7f0] sm:$0xff]
        %v412 = vld [vmem:[#allocation4 + $0x7f8] sm:$0xff]
        %v413 = vld [vmem:[#allocation4 + $0x800] sm:$0xff]
        %v414 = vld [vmem:[#allocation4 + $0x808] sm:$0xff]
        %v415 = vld [vmem:[#allocation4 + $0x810] sm:$0xff]
        %v416 = vld [vmem:[#allocation4 + $0x818] sm:$0xff]
        %v417 = vld [vmem:[#allocation4 + $0x820] sm:$0xff]
        %v418 = vld [vmem:[#allocation4 + $0x828] sm:$0xff]
        %v419 = vld [vmem:[#allocation4 + $0x830] sm:$0xff]
        %v420 = vld [vmem:[#allocation4 + $0x838] sm:$0xff]
        %v421 = vld [vmem:[#allocation4 + $0x840] sm:$0xff]
        %v422 = vld [vmem:[#allocation4 + $0x848] sm:$0xff]
        %v423 = vld [vmem:[#allocation4 + $0x850] sm:$0xff]
        %v424 = vld [vmem:[#allocation4 + $0x858] sm:$0xff]
        %v425 = vld [vmem:[#allocation4 + $0x860] sm:$0xff]
        %v426 = vld [vmem:[#allocation4 + $0x868] sm:$0xff]
        %v427 = vld [vmem:[#allocation4 + $0x870] sm:$0xff]
        %v428 = vld [vmem:[#allocation4 + $0x878] sm:$0xff]
        %v429 = vld [vmem:[#allocation4 + $0x880] sm:$0xff]
        %v430 = vld [vmem:[#allocation4 + $0x888] sm:$0xff]
        %v431 = vld [vmem:[#allocation4 + $0x890] sm:$0xff]
        %v432 = vld [vmem:[#allocation4 + $0x898] sm:$0xff]
        %v433 = vld [vmem:[#allocation4 + $0x8a0] sm:$0xff]
        %v434 = vld [vmem:[#allocation4 + $0x8a8] sm:$0xff]
        %v435 = vld [vmem:[#allocation4 + $0x8b0] sm:$0xff]
        %v436 = vld [vmem:[#allocation4 + $0x8b8] sm:$0xff]
        %v437 = vld [vmem:[#allocation4 + $0x8c0] sm:$0xff]
        %v438 = vld [vmem:[#allocation4 + $0x8c8] sm:$0xff]
        %v439 = vld [vmem:[#allocation4 + $0x8d0] sm:$0xff]
        %v440 = vld [vmem:[#allocation4 + $0x8d8] sm:$0xff]
        %v441 = vld [vmem:[#allocation4 + $0x8e0] sm:$0xff]
        %v442 = vld [vmem:[#allocation4 + $0x8e8] sm:$0xff]
        %v443 = vld [vmem:[#allocation4 + $0x8f0] sm:$0xff]
        %v444 = vld [vmem:[#allocation4 + $0x8f8] sm:$0xff]
        %v445 = vld [vmem:[#allocation4 + $0x900] sm:$0xff]
        %v446 = vld [vmem:[#allocation4 + $0x908] sm:$0xff]
        %v447 = vld [vmem:[#allocation4 + $0x910] sm:$0xff]
        %v448 = vld [vmem:[#allocation4 + $0x918] sm:$0xff]
        %v449 = vld [vmem:[#allocation4 + $0x920] sm:$0xff]
        %v450 = vld [vmem:[#allocation4 + $0x928] sm:$0xff]
        %v451 = vld [vmem:[#allocation4 + $0x930] sm:$0xff]
        %v452 = vld [vmem:[#allocation4 + $0x938] sm:$0xff]
        %v453 = vld [vmem:[#allocation4 + $0x940] sm:$0xff]
        %v454 = vld [vmem:[#allocation4 + $0x948] sm:$0xff]
        %v455 = vld [vmem:[#allocation4 + $0x950] sm:$0xff]
        %v456 = vld [vmem:[#allocation4 + $0x958] sm:$0xff]
        %v457 = vld [vmem:[#allocation4 + $0x960] sm:$0xff]
        %v458 = vld [vmem:[#allocation4 + $0x968] sm:$0xff]
        %v459 = vld [vmem:[#allocation4 + $0x970] sm:$0xff]
        %v460 = vld [vmem:[#allocation4 + $0x978] sm:$0xff]
        %v461 = vld [vmem:[#allocation4 + $0x980] sm:$0xff]
        %v462 = vld [vmem:[#allocation4 + $0x988] sm:$0xff]
        %v463 = vld [vmem:[#allocation4 + $0x990] sm:$0xff]
        %v464 = vld [vmem:[#allocation4 + $0x998] sm:$0xff]
        %v465 = vld [vmem:[#allocation4 + $0x9a0] sm:$0xff]
        %v466 = vld [vmem:[#allocation4 + $0x9a8] sm:$0xff]
        %v467 = vld [vmem:[#allocation4 + $0x9b0] sm:$0xff]
        %v468 = vld [vmem:[#allocation4 + $0x9b8] sm:$0xff]
        %v469 = vld [vmem:[#allocation4 + $0x9c0] sm:$0xff]
        %v470 = vld [vmem:[#allocation4 + $0x9c8] sm:$0xff]
        %v471 = vld [vmem:[#allocation4 + $0x9d0] sm:$0xff]
        %v472 = vld [vmem:[#allocation4 + $0x9d8] sm:$0xff]
        %v473 = vld [vmem:[#allocation4 + $0x9e0] sm:$0xff]
        %v474 = vld [vmem:[#allocation4 + $0x9e8] sm:$0xff]
        %v475 = vld [vmem:[#allocation4 + $0x9f0] sm:$0xff]
        %v476 = vld [vmem:[#allocation4 + $0x9f8] sm:$0xff]
        %v477 = vld [vmem:[#allocation4 + $0xa00] sm:$0xff]
        %v478 = vld [vmem:[#allocation4 + $0xa08] sm:$0xff]
        %v479 = vld [vmem:[#allocation4 + $0xa10] sm:$0xff]
        %v480 = vld [vmem:[#allocation4 + $0xa18] sm:$0xff]
        %v481 = vld [vmem:[#allocation4 + $0xa20] sm:$0xff]
        %v482 = vld [vmem:[#allocation4 + $0xa28] sm:$0xff]
        %v483 = vld [vmem:[#allocation4 + $0xa30] sm:$0xff]
        %v484 = vld [vmem:[#allocation4 + $0xa38] sm:$0xff]
        %v485 = vld [vmem:[#allocation4 + $0xa40] sm:$0xff]
        %v486 = vld [vmem:[#allocation4 + $0xa48] sm:$0xff]
        %v487 = vld [vmem:[#allocation4 + $0xa50] sm:$0xff]
        %v488 = vld [vmem:[#allocation4 + $0xa58] sm:$0xff]
        %v489 = vld [vmem:[#allocation4 + $0xa60] sm:$0xff]
        %v490 = vld [vmem:[#allocation4 + $0xa68] sm:$0xff]
        %v491 = vld [vmem:[#allocation4 + $0xa70] sm:$0xff]
        %v492 = vld [vmem:[#allocation4 + $0xa78] sm:$0xff]
        %v493 = vld [vmem:[#allocation4 + $0xa80] sm:$0xff]
        %v494 = vld [vmem:[#allocation4 + $0xa88] sm:$0xff]
        %v495 = vld [vmem:[#allocation4 + $0xa90] sm:$0xff]
        %v496 = vld [vmem:[#allocation4 + $0xa98] sm:$0xff]
        %v497 = vld [vmem:[#allocation4 + $0xaa0] sm:$0xff]
        %v498 = vld [vmem:[#allocation4 + $0xaa8] sm:$0xff]
        %v499 = vld [vmem:[#allocation4 + $0xab0] sm:$0xff]
        %v500 = vld [vmem:[#allocation4 + $0xab8] sm:$0xff]
        %v501 = vld [vmem:[#allocation4 + $0xac0] sm:$0xff]
        %v502 = vld [vmem:[#allocation4 + $0xac8] sm:$0xff]
        %v503 = vld [vmem:[#allocation4 + $0xad0] sm:$0xff]
        %v504 = vld [vmem:[#allocation4 + $0xad8] sm:$0xff]
        %v505 = vld [vmem:[#allocation4 + $0xae0] sm:$0xff]
        %v506 = vld [vmem:[#allocation4 + $0xae8] sm:$0xff]
        %v507 = vld [vmem:[#allocation4 + $0xaf0] sm:$0xff]
        %v508 = vld [vmem:[#allocation4 + $0xaf8] sm:$0xff]
        %v509 = vld [vmem:[#allocation4 + $0xb00] sm:$0xff]
        %v510 = vld [vmem:[#allocation4 + $0xb08] sm:$0xff]
        %v511 = vld [vmem:[#allocation4 + $0xb10] sm:$0xff]
        %v512 = vld [vmem:[#allocation4 + $0xb18] sm:$0xff]
        %v513 = vld [vmem:[#allocation4 + $0xb20] sm:$0xff]
        %v514 = vld [vmem:[#allocation4 + $0xb28] sm:$0xff]
        %v515 = vld [vmem:[#allocation4 + $0xb30] sm:$0xff]
        %v516 = vld [vmem:[#allocation4 + $0xb38] sm:$0xff]
        %v517 = vld [vmem:[#allocation4 + $0xb40] sm:$0xff]
        %v518 = vld [vmem:[#allocation4 + $0xb48] sm:$0xff]
        %v519 = vld [vmem:[#allocation4 + $0xb50] sm:$0xff]
        %v520 = vld [vmem:[#allocation4 + $0xb58] sm:$0xff]
        %v521 = vld [vmem:[#allocation4 + $0xb60] sm:$0xff]
        %v522 = vld [vmem:[#allocation4 + $0xb68] sm:$0xff]
        %v523 = vld [vmem:[#allocation4 + $0xb70] sm:$0xff]
        %v524 = vld [vmem:[#allocation4 + $0xb78] sm:$0xff]
        %v525 = vld [vmem:[#allocation4 + $0xb80] sm:$0xff]
        %v526 = vld [vmem:[#allocation4 + $0xb88] sm:$0xff]
        %v527 = vld [vmem:[#allocation4 + $0xb90] sm:$0xff]
        %v528 = vld [vmem:[#allocation4 + $0xb98] sm:$0xff]
        %v529 = vld [vmem:[#allocation4 + $0xba0] sm:$0xff]
        %v530 = vld [vmem:[#allocation4 + $0xba8] sm:$0xff]
        %v531 = vld [vmem:[#allocation4 + $0xbb0] sm:$0xff]
        %v532 = vld [vmem:[#allocation4 + $0xbb8] sm:$0xff]
        %v533 = vld [vmem:[#allocation4 + $0xbc0] sm:$0xff]
        %v534 = vld [vmem:[#allocation4 + $0xbc8] sm:$0xff]
        %v535 = vld [vmem:[#allocation4 + $0xbd0] sm:$0xff]
        %v536 = vld [vmem:[#allocation4 + $0xbd8] sm:$0xff]
        %v537 = vld [vmem:[#allocation4 + $0xbe0] sm:$0xff]
        %v538 = vld [vmem:[#allocation4 + $0xbe8] sm:$0xff]
        %v539 = vld [vmem:[#allocation4 + $0xbf0] sm:$0xff]
        %v540 = vld [vmem:[#allocation4 + $0xbf8] sm:$0xff]
        %v541 = vld [vmem:[#allocation4 + $0xc00] sm:$0xff]
        %v542 = vld [vmem:[#allocation4 + $0xc08] sm:$0xff]
        %v543 = vld [vmem:[#allocation4 + $0xc10] sm:$0xff]
        %v544 = vld [vmem:[#allocation4 + $0xc18] sm:$0xff]
        %v545 = vld [vmem:[#allocation4 + $0xc20] sm:$0xff]
        %v546 = vld [vmem:[#allocation4 + $0xc28] sm:$0xff]
        %v547 = vld [vmem:[#allocation4 + $0xc30] sm:$0xff]
        %v548 = vld [vmem:[#allocation4 + $0xc38] sm:$0xff]
        %v549 = vld [vmem:[#allocation4 + $0xc40] sm:$0xff]
        %v550 = vld [vmem:[#allocation4 + $0xc48] sm:$0xff]
        %v551 = vld [vmem:[#allocation4 + $0xc50] sm:$0xff]
        %v552 = vld [vmem:[#allocation4 + $0xc58] sm:$0xff]
        %v553 = vld [vmem:[#allocation4 + $0xc60] sm:$0xff]
        %v554 = vld [vmem:[#allocation4 + $0xc68] sm:$0xff]
        %v555 = vld [vmem:[#allocation4 + $0xc70] sm:$0xff]
        %v556 = vld [vmem:[#allocation4 + $0xc78] sm:$0xff]
        %v557 = vld [vmem:[#allocation4 + $0xc80] sm:$0xff]
        %v558 = vld [vmem:[#allocation4 + $0xc88] sm:$0xff]
        %v559 = vld [vmem:[#allocation4 + $0xc90] sm:$0xff]
        %v560 = vld [vmem:[#allocation4 + $0xc98] sm:$0xff]
        %v561 = vld [vmem:[#allocation4 + $0xca0] sm:$0xff]
        %v562 = vld [vmem:[#allocation4 + $0xca8] sm:$0xff]
        %v563 = vld [vmem:[#allocation4 + $0xcb0] sm:$0xff]
        %v564 = vld [vmem:[#allocation4 + $0xcb8] sm:$0xff]
        %v565 = vld [vmem:[#allocation4 + $0xcc0] sm:$0xff]
        %v566 = vld [vmem:[#allocation4 + $0xcc8] sm:$0xff]
        %v567 = vld [vmem:[#allocation4 + $0xcd0] sm:$0xff]
        %v568 = vld [vmem:[#allocation4 + $0xcd8] sm:$0xff]
        %v569 = vld [vmem:[#allocation4 + $0xce0] sm:$0xff]
        %v570 = vld [vmem:[#allocation4 + $0xce8] sm:$0xff]
        %v571 = vld [vmem:[#allocation4 + $0xcf0] sm:$0xff]
        %v572 = vld [vmem:[#allocation4 + $0xcf8] sm:$0xff]
        %v573 = vld [vmem:[#allocation4 + $0xd00] sm:$0xff]
        %v574 = vld [vmem:[#allocation4 + $0xd08] sm:$0xff]
        %v575 = vld [vmem:[#allocation4 + $0xd10] sm:$0xff]
        %v576 = vld [vmem:[#allocation4 + $0xd18] sm:$0xff]
        %v577 = vld [vmem:[#allocation4 + $0xd20] sm:$0xff]
        %v578 = vld [vmem:[#allocation4 + $0xd28] sm:$0xff]
        %v579 = vld [vmem:[#allocation4 + $0xd30] sm:$0xff]
        %v580 = vld [vmem:[#allocation4 + $0xd38] sm:$0xff]
        %v581 = vld [vmem:[#allocation4 + $0xd40] sm:$0xff]
        %v582 = vld [vmem:[#allocation4 + $0xd48] sm:$0xff]
        %v583 = vld [vmem:[#allocation4 + $0xd50] sm:$0xff]
        %v584 = vld [vmem:[#allocation4 + $0xd58] sm:$0xff]
        %v585 = vld [vmem:[#allocation4 + $0xd60] sm:$0xff]
        %v586 = vld [vmem:[#allocation4 + $0xd68] sm:$0xff]
        %v587 = vld [vmem:[#allocation4 + $0xd70] sm:$0xff]
        %v588 = vld [vmem:[#allocation4 + $0xd78] sm:$0xff]
        %v589 = vld [vmem:[#allocation4 + $0xd80] sm:$0xff]
        %v590 = vld [vmem:[#allocation4 + $0xd88] sm:$0xff]
        %v591 = vld [vmem:[#allocation4 + $0xd90] sm:$0xff]
        %v592 = vld [vmem:[#allocation4 + $0xd98] sm:$0xff]
        %v593 = vld [vmem:[#allocation4 + $0xda0] sm:$0xff]
        %v594 = vld [vmem:[#allocation4 + $0xda8] sm:$0xff]
        %v595 = vld [vmem:[#allocation4 + $0xdb0] sm:$0xff]
        %v596 = vld [vmem:[#allocation4 + $0xdb8] sm:$0xff]
        %v597 = vld [vmem:[#allocation4 + $0xdc0] sm:$0xff]
        %v598 = vld [vmem:[#allocation4 + $0xdc8] sm:$0xff]
        %v599 = vld [vmem:[#allocation4 + $0xdd0] sm:$0xff]
        %v600 = vld [vmem:[#allocation4 + $0xdd8] sm:$0xff]
        %v601 = vld [vmem:[#allocation4 + $0xde0] sm:$0xff]
        %v602 = vld [vmem:[#allocation4 + $0xde8] sm:$0xff]
        %v603 = vld [vmem:[#allocation4 + $0xdf0] sm:$0xff]
        %v604 = vld [vmem:[#allocation4 + $0xdf8] sm:$0xff]
        %v605 = vld [vmem:[#allocation4 + $0xe00] sm:$0xff]
        %v606 = vld [vmem:[#allocation4 + $0xe08] sm:$0xff]
        %v607 = vld [vmem:[#allocation4 + $0xe10] sm:$0xff]
        %v608 = vld [vmem:[#allocation4 + $0xe18] sm:$0xff]
        %v609 = vld [vmem:[#allocation4 + $0xe20] sm:$0xff]
        %v610 = vld [vmem:[#allocation4 + $0xe28] sm:$0xff]
        %v611 = vld [vmem:[#allocation4 + $0xe30] sm:$0xff]
        %v612 = vld [vmem:[#allocation4 + $0xe38] sm:$0xff]
        %v613 = vld [vmem:[#allocation4 + $0xe40] sm:$0xff]
        %v614 = vld [vmem:[#allocation4 + $0xe48] sm:$0xff]
        %v615 = vld [vmem:[#allocation4 + $0xe50] sm:$0xff]
        %v616 = vld [vmem:[#allocation4 + $0xe58] sm:$0xff]
        %v617 = vld [vmem:[#allocation4 + $0xe60] sm:$0xff]
        %v618 = vld [vmem:[#allocation4 + $0xe68] sm:$0xff]
        %v619 = vld [vmem:[#allocation4 + $0xe70] sm:$0xff]
        %v620 = vld [vmem:[#allocation4 + $0xe78] sm:$0xff]
        %v621 = vld [vmem:[#allocation4 + $0xe80] sm:$0xff]
        %v622 = vld [vmem:[#allocation4 + $0xe88] sm:$0xff]
        %v623 = vld [vmem:[#allocation4 + $0xe90] sm:$0xff]
        %v624 = vld [vmem:[#allocation4 + $0xe98] sm:$0xff]
        %v625 = vld [vmem:[#allocation4 + $0xea0] sm:$0xff]
        %v626 = vld [vmem:[#allocation4 + $0xea8] sm:$0xff]
        %v627 = vld [vmem:[#allocation4 + $0xeb0] sm:$0xff]
        %v628 = vld [vmem:[#allocation4 + $0xeb8] sm:$0xff]
        %v629 = vld [vmem:[#allocation4 + $0xec0] sm:$0xff]
        %v630 = vld [vmem:[#allocation4 + $0xec8] sm:$0xff]
        %v631 = vld [vmem:[#allocation4 + $0xed0] sm:$0xff]
        %v632 = vld [vmem:[#allocation4 + $0xed8] sm:$0xff]
        %v633 = vld [vmem:[#allocation4 + $0xee0] sm:$0xff]
        %v634 = vld [vmem:[#allocation4 + $0xee8] sm:$0xff]
        %v635 = vld [vmem:[#allocation4 + $0xef0] sm:$0xff]
        %v636 = vld [vmem:[#allocation4 + $0xef8] sm:$0xff]
        %v637 = vld [vmem:[#allocation4 + $0xf00] sm:$0xff]
        %v638 = vld [vmem:[#allocation4 + $0xf08] sm:$0xff]
        %v639 = vld [vmem:[#allocation4 + $0xf10] sm:$0xff]
        %v640 = vld [vmem:[#allocation4 + $0xf18] sm:$0xff]
        %v641 = vld [vmem:[#allocation4 + $0xf20] sm:$0xff]
        %v642 = vld [vmem:[#allocation4 + $0xf28] sm:$0xff]
        %v643 = vld [vmem:[#allocation4 + $0xf30] sm:$0xff]
        %v644 = vld [vmem:[#allocation4 + $0xf38] sm:$0xff]
        %v645 = vld [vmem:[#allocation4 + $0xf40] sm:$0xff]
        %v646 = vld [vmem:[#allocation4 + $0xf48] sm:$0xff]
        %v647 = vld [vmem:[#allocation4 + $0xf50] sm:$0xff]
        %v648 = vld [vmem:[#allocation4 + $0xf58] sm:$0xff]
        %v649 = vld [vmem:[#allocation4 + $0xf60] sm:$0xff]
        %v650 = vld [vmem:[#allocation4 + $0xf68] sm:$0xff]
        %v651 = vld [vmem:[#allocation4 + $0xf70] sm:$0xff]
        %v652 = vld [vmem:[#allocation4 + $0xf78] sm:$0xff]
        %v653 = vld [vmem:[#allocation4 + $0xf80] sm:$0xff]
        %v654 = vld [vmem:[#allocation4 + $0xf88] sm:$0xff]
        %v655 = vld [vmem:[#allocation4 + $0xf90] sm:$0xff]
        %v656 = vld [vmem:[#allocation4 + $0xf98] sm:$0xff]
        %v657 = vld [vmem:[#allocation4 + $0xfa0] sm:$0xff]
        %v658 = vld [vmem:[#allocation4 + $0xfa8] sm:$0xff]
        %v659 = vld [vmem:[#allocation4 + $0xfb0] sm:$0xff]
        %v660 = vld [vmem:[#allocation4 + $0xfb8] sm:$0xff]
        %v661 = vld [vmem:[#allocation4 + $0xfc0] sm:$0xff]
        %v662 = vld [vmem:[#allocation4 + $0xfc8] sm:$0xff]
        %v663 = vld [vmem:[#allocation4 + $0xfd0] sm:$0xff]
        %v664 = vld [vmem:[#allocation4 + $0xfd8] sm:$0xff]
        %v665 = vld [vmem:[#allocation4 + $0xfe0] sm:$0xff]
        %v666 = vld [vmem:[#allocation4 + $0xfe8] sm:$0xff]
        %v667 = vld [vmem:[#allocation4 + $0xff0] sm:$0xff]
        %v668 = vld [vmem:[#allocation4 + $0xff8] sm:$0xff]
        %v669 = vld [vmem:[#allocation4 + $0x1000] sm:$0xff]
        %v670 = vld [vmem:[#allocation4 + $0x1008] sm:$0xff]
        %v671 = vld [vmem:[#allocation4 + $0x1010] sm:$0xff]
        %v672 = vld [vmem:[#allocation4 + $0x1018] sm:$0xff]
        %v673 = vld [vmem:[#allocation4 + $0x1020] sm:$0xff]
        %v674 = vld [vmem:[#allocation4 + $0x1028] sm:$0xff]
        %v675 = vld [vmem:[#allocation4 + $0x1030] sm:$0xff]
        %v676 = vld [vmem:[#allocation4 + $0x1038] sm:$0xff]
        %v677 = vld [vmem:[#allocation4 + $0x1040] sm:$0xff]
        %v678 = vld [vmem:[#allocation4 + $0x1048] sm:$0xff]
        %v679 = vld [vmem:[#allocation4 + $0x1050] sm:$0xff]
        %v680 = vld [vmem:[#allocation4 + $0x1058] sm:$0xff]
        %v681 = vld [vmem:[#allocation4 + $0x1060] sm:$0xff]
        %v682 = vld [vmem:[#allocation4 + $0x1068] sm:$0xff]
        %v683 = vld [vmem:[#allocation4 + $0x1070] sm:$0xff]
        %v684 = vld [vmem:[#allocation4 + $0x1078] sm:$0xff]
        %v685 = vld [vmem:[#allocation4 + $0x1080] sm:$0xff]
        %v686 = vld [vmem:[#allocation4 + $0x1088] sm:$0xff]
        %v687 = vld [vmem:[#allocation4 + $0x1090] sm:$0xff]
        %v688 = vld [vmem:[#allocation4 + $0x1098] sm:$0xff]
        %v689 = vld [vmem:[#allocation4 + $0x10a0] sm:$0xff]
        %v690 = vld [vmem:[#allocation4 + $0x10a8] sm:$0xff]
        %v691 = vld [vmem:[#allocation4 + $0x10b0] sm:$0xff]
        %v692 = vld [vmem:[#allocation4 + $0x10b8] sm:$0xff]
        %v693 = vld [vmem:[#allocation4 + $0x10c0] sm:$0xff]
        %v694 = vld [vmem:[#allocation4 + $0x10c8] sm:$0xff]
        %v695 = vld [vmem:[#allocation4 + $0x10d0] sm:$0xff]
        %v696 = vld [vmem:[#allocation4 + $0x10d8] sm:$0xff]
        %v697 = vld [vmem:[#allocation4 + $0x10e0] sm:$0xff]
        %v698 = vld [vmem:[#allocation4 + $0x10e8] sm:$0xff]
        %v699 = vld [vmem:[#allocation4 + $0x10f0] sm:$0xff]
        %v700 = vld [vmem:[#allocation4 + $0x10f8] sm:$0xff]
        %v701 = vld [vmem:[#allocation4 + $0x1100] sm:$0xff]
        %v702 = vld [vmem:[#allocation4 + $0x1108] sm:$0xff]
        %v703 = vld [vmem:[#allocation4 + $0x1110] sm:$0xff]
        %v704 = vld [vmem:[#allocation4 + $0x1118] sm:$0xff]
        %v705 = vld [vmem:[#allocation4 + $0x1120] sm:$0xff]
        %v706 = vld [vmem:[#allocation4 + $0x1128] sm:$0xff]
        %v707 = vld [vmem:[#allocation4 + $0x1130] sm:$0xff]
        %v708 = vld [vmem:[#allocation4 + $0x1138] sm:$0xff]
        %v709 = vld [vmem:[#allocation4 + $0x1140] sm:$0xff]
        %v710 = vld [vmem:[#allocation4 + $0x1148] sm:$0xff]
        %v711 = vld [vmem:[#allocation4 + $0x1150] sm:$0xff]
        %v712 = vld [vmem:[#allocation4 + $0x1158] sm:$0xff]
        %v713 = vld [vmem:[#allocation4 + $0x1160] sm:$0xff]
        %v714 = vld [vmem:[#allocation4 + $0x1168] sm:$0xff]
        %v715 = vld [vmem:[#allocation4 + $0x1170] sm:$0xff]
        %v716 = vld [vmem:[#allocation4 + $0x1178] sm:$0xff]
        %v717 = vld [vmem:[#allocation4 + $0x1180] sm:$0xff]
        %v718 = vld [vmem:[#allocation4 + $0x1188] sm:$0xff]
        %v719 = vld [vmem:[#allocation4 + $0x1190] sm:$0xff]
        %v720 = vld [vmem:[#allocation4 + $0x1198] sm:$0xff]
        %v721 = vld [vmem:[#allocation4 + $0x11a0] sm:$0xff]
        %v722 = vld [vmem:[#allocation4 + $0x11a8] sm:$0xff]
        %v723 = vld [vmem:[#allocation4 + $0x11b0] sm:$0xff]
        %v724 = vld [vmem:[#allocation4 + $0x11b8] sm:$0xff]
        %v725 = vld [vmem:[#allocation4 + $0x11c0] sm:$0xff]
        %v726 = vld [vmem:[#allocation4 + $0x11c8] sm:$0xff]
        %v727 = vld [vmem:[#allocation4 + $0x11d0] sm:$0xff]
        %v728 = vld [vmem:[#allocation4 + $0x11d8] sm:$0xff]
        %v729 = vld [vmem:[#allocation4 + $0x11e0] sm:$0xff]
        %v730 = vld [vmem:[#allocation4 + $0x11e8] sm:$0xff]
        %v731 = vld [vmem:[#allocation4 + $0x11f0] sm:$0xff]
        %v732 = vld [vmem:[#allocation4 + $0x11f8] sm:$0xff]
        %v733 = vld [vmem:[#allocation4 + $0x1200] sm:$0xff]
        %v734 = vld [vmem:[#allocation4 + $0x1208] sm:$0xff]
        %v735 = vld [vmem:[#allocation4 + $0x1210] sm:$0xff]
        %v736 = vld [vmem:[#allocation4 + $0x1218] sm:$0xff]
        %v737 = vld [vmem:[#allocation4 + $0x1220] sm:$0xff]
        %v738 = vld [vmem:[#allocation4 + $0x1228] sm:$0xff]
        %v739 = vld [vmem:[#allocation4 + $0x1230] sm:$0xff]
        %v740 = vld [vmem:[#allocation4 + $0x1238] sm:$0xff]
        %v741 = vld [vmem:[#allocation4 + $0x1240] sm:$0xff]
        %v742 = vld [vmem:[#allocation4 + $0x1248] sm:$0xff]
        %v743 = vld [vmem:[#allocation4 + $0x1250] sm:$0xff]
        %v744 = vld [vmem:[#allocation4 + $0x1258] sm:$0xff]
        %v745 = vld [vmem:[#allocation4 + $0x1260] sm:$0xff]
        %v746 = vld [vmem:[#allocation4 + $0x1268] sm:$0xff]
        %v747 = vld [vmem:[#allocation4 + $0x1270] sm:$0xff]
        %v748 = vld [vmem:[#allocation4 + $0x1278] sm:$0xff]
        %v749 = vld [vmem:[#allocation4 + $0x1280] sm:$0xff]
        %v750 = vld [vmem:[#allocation4 + $0x1288] sm:$0xff]
        %v751 = vld [vmem:[#allocation4 + $0x1290] sm:$0xff]
        %v752 = vld [vmem:[#allocation4 + $0x1298] sm:$0xff]
        %v753 = vld [vmem:[#allocation4 + $0x12a0] sm:$0xff]
        %v754 = vld [vmem:[#allocation4 + $0x12a8] sm:$0xff]
        %v755 = vld [vmem:[#allocation4 + $0x12b0] sm:$0xff]
        %v756 = vld [vmem:[#allocation4 + $0x12b8] sm:$0xff]
        %v757 = vld [vmem:[#allocation4 + $0x12c0] sm:$0xff]
        %v758 = vld [vmem:[#allocation4 + $0x12c8] sm:$0xff]
        %v759 = vld [vmem:[#allocation4 + $0x12d0] sm:$0xff]
        %v760 = vld [vmem:[#allocation4 + $0x12d8] sm:$0xff]
        %v761 = vld [vmem:[#allocation4 + $0x12e0] sm:$0xff]
        %v762 = vld [vmem:[#allocation4 + $0x12e8] sm:$0xff]
        %v763 = vld [vmem:[#allocation4 + $0x12f0] sm:$0xff]
        %v764 = vld [vmem:[#allocation4 + $0x12f8] sm:$0xff]
        %v765 = vld [vmem:[#allocation4 + $0x1300] sm:$0xff]
        %v766 = vld [vmem:[#allocation4 + $0x1308] sm:$0xff]
        %v767 = vld [vmem:[#allocation4 + $0x1310] sm:$0xff]
        %v768 = vld [vmem:[#allocation4 + $0x1318] sm:$0xff]
        %v769 = vld [vmem:[#allocation4 + $0x1320] sm:$0xff]
        %v770 = vld [vmem:[#allocation4 + $0x1328] sm:$0xff]
        %v771 = vld [vmem:[#allocation4 + $0x1330] sm:$0xff]
        %v772 = vld [vmem:[#allocation4 + $0x1338] sm:$0xff]
        %v773 = vld [vmem:[#allocation4 + $0x1340] sm:$0xff]
        %v774 = vld [vmem:[#allocation4 + $0x1348] sm:$0xff]
        %v775 = vld [vmem:[#allocation4 + $0x1350] sm:$0xff]
        %v776 = vld [vmem:[#allocation4 + $0x1358] sm:$0xff]
        %v777 = vld [vmem:[#allocation4 + $0x1360] sm:$0xff]
        %v778 = vld [vmem:[#allocation4 + $0x1368] sm:$0xff]
        %v779 = vld [vmem:[#allocation4 + $0x1370] sm:$0xff]
        %v780 = vld [vmem:[#allocation4 + $0x1378] sm:$0xff]
        %v781 = vld [vmem:[#allocation4 + $0x1380] sm:$0xff]
        %v782 = vld [vmem:[#allocation4 + $0x1388] sm:$0xff]
        %v783 = vld [vmem:[#allocation4 + $0x1390] sm:$0xff]
        %v784 = vld [vmem:[#allocation4 + $0x1398] sm:$0xff]
        %v785 = vld [vmem:[#allocation4 + $0x13a0] sm:$0xff]
        %v786 = vld [vmem:[#allocation4 + $0x13a8] sm:$0xff]
        %v787 = vld [vmem:[#allocation4 + $0x13b0] sm:$0xff]
        %v788 = vld [vmem:[#allocation4 + $0x13b8] sm:$0xff]
        %v789 = vld [vmem:[#allocation4 + $0x13c0] sm:$0xff]
        %v790 = vld [vmem:[#allocation4 + $0x13c8] sm:$0xff]
        %v791 = vld [vmem:[#allocation4 + $0x13d0] sm:$0xff]
        %v792 = vld [vmem:[#allocation4 + $0x13d8] sm:$0xff]
        %v793 = vld [vmem:[#allocation4 + $0x13e0] sm:$0xff]
        %v794 = vld [vmem:[#allocation4 + $0x13e8] sm:$0xff]
        %v795 = vld [vmem:[#allocation4 + $0x13f0] sm:$0xff]
        %v796 = vld [vmem:[#allocation4 + $0x13f8] sm:$0xff]
        %v797 = vld [vmem:[#allocation4 + $0x1400] sm:$0xff]
        %v798 = vld [vmem:[#allocation4 + $0x1408] sm:$0xff]
        %v799 = vld [vmem:[#allocation4 + $0x1410] sm:$0xff]
        %v800 = vld [vmem:[#allocation4 + $0x1418] sm:$0xff]
        %v801 = vld [vmem:[#allocation4 + $0x1420] sm:$0xff]
        %v802 = vld [vmem:[#allocation4 + $0x1428] sm:$0xff]
        %v803 = vld [vmem:[#allocation4 + $0x1430] sm:$0xff]
        %v804 = vld [vmem:[#allocation4 + $0x1438] sm:$0xff]
        %v805 = vld [vmem:[#allocation4 + $0x1440] sm:$0xff]
        %v806 = vld [vmem:[#allocation4 + $0x1448] sm:$0xff]
        %v807 = vld [vmem:[#allocation4 + $0x1450] sm:$0xff]
        %v808 = vld [vmem:[#allocation4 + $0x1458] sm:$0xff]
        %v809 = vld [vmem:[#allocation4 + $0x1460] sm:$0xff]
        %v810 = vld [vmem:[#allocation4 + $0x1468] sm:$0xff]
        %v811 = vld [vmem:[#allocation4 + $0x1470] sm:$0xff]
        %v812 = vld [vmem:[#allocation4 + $0x1478] sm:$0xff]
        %v813 = vld [vmem:[#allocation4 + $0x1480] sm:$0xff]
        %v814 = vld [vmem:[#allocation4 + $0x1488] sm:$0xff]
        %v815 = vld [vmem:[#allocation4 + $0x1490] sm:$0xff]
        %v816 = vld [vmem:[#allocation4 + $0x1498] sm:$0xff]
        %v817 = vld [vmem:[#allocation4 + $0x14a0] sm:$0xff]
        %v818 = vld [vmem:[#allocation4 + $0x14a8] sm:$0xff]
        %v819 = vld [vmem:[#allocation4 + $0x14b0] sm:$0xff]
        %v820 = vld [vmem:[#allocation4 + $0x14b8] sm:$0xff]
        %v821 = vld [vmem:[#allocation4 + $0x14c0] sm:$0xff]
        %v822 = vld [vmem:[#allocation4 + $0x14c8] sm:$0xff]
        %v823 = vld [vmem:[#allocation4 + $0x14d0] sm:$0xff]
        %v824 = vld [vmem:[#allocation4 + $0x14d8] sm:$0xff]
        %v825 = vld [vmem:[#allocation4 + $0x14e0] sm:$0xff]
        %v826 = vld [vmem:[#allocation4 + $0x14e8] sm:$0xff]
        %v827 = vld [vmem:[#allocation4 + $0x14f0] sm:$0xff]
        %v828 = vld [vmem:[#allocation4 + $0x14f8] sm:$0xff]
        %v829 = vld [vmem:[#allocation4 + $0x1500] sm:$0xff]
        %v830 = vld [vmem:[#allocation4 + $0x1508] sm:$0xff]
        %v831 = vld [vmem:[#allocation4 + $0x1510] sm:$0xff]
        %v832 = vld [vmem:[#allocation4 + $0x1518] sm:$0xff]
        %v833 = vld [vmem:[#allocation4 + $0x1520] sm:$0xff]
        %v834 = vld [vmem:[#allocation4 + $0x1528] sm:$0xff]
        %v835 = vld [vmem:[#allocation4 + $0x1530] sm:$0xff]
        %v836 = vld [vmem:[#allocation4 + $0x1538] sm:$0xff]
        %v837 = vld [vmem:[#allocation4 + $0x1540] sm:$0xff]
        %v838 = vld [vmem:[#allocation4 + $0x1548] sm:$0xff]
        %v839 = vld [vmem:[#allocation4 + $0x1550] sm:$0xff]
        %v840 = vld [vmem:[#allocation4 + $0x1558] sm:$0xff]
        %v841 = vld [vmem:[#allocation4 + $0x1560] sm:$0xff]
        %v842 = vld [vmem:[#allocation4 + $0x1568] sm:$0xff]
        %v843 = vld [vmem:[#allocation4 + $0x1570] sm:$0xff]
        %v844 = vld [vmem:[#allocation4 + $0x1578] sm:$0xff]
        %v845 = vld [vmem:[#allocation4 + $0x1580] sm:$0xff]
        %v846 = vld [vmem:[#allocation4 + $0x1588] sm:$0xff]
        %v847 = vld [vmem:[#allocation4 + $0x1590] sm:$0xff]
        %v848 = vld [vmem:[#allocation4 + $0x1598] sm:$0xff]
        %v849 = vld [vmem:[#allocation4 + $0x15a0] sm:$0xff]
        %v850 = vld [vmem:[#allocation4 + $0x15a8] sm:$0xff]
        %v851 = vld [vmem:[#allocation4 + $0x15b0] sm:$0xff]
        %v852 = vld [vmem:[#allocation4 + $0x15b8] sm:$0xff]
        %v853 = vld [vmem:[#allocation4 + $0x15c0] sm:$0xff]
        %v854 = vld [vmem:[#allocation4 + $0x15c8] sm:$0xff]
        %v855 = vld [vmem:[#allocation4 + $0x15d0] sm:$0xff]
        %v856 = vld [vmem:[#allocation4 + $0x15d8] sm:$0xff]
        %v857 = vld [vmem:[#allocation4 + $0x15e0] sm:$0xff]
        %v858 = vld [vmem:[#allocation4 + $0x15e8] sm:$0xff]
        %v859 = vld [vmem:[#allocation4 + $0x15f0] sm:$0xff]
        %v860 = vld [vmem:[#allocation4 + $0x15f8] sm:$0xff]
        %v861 = vld [vmem:[#allocation4 + $0x1600] sm:$0xff]
        %v862 = vld [vmem:[#allocation4 + $0x1608] sm:$0xff]
        %v863 = vld [vmem:[#allocation4 + $0x1610] sm:$0xff]
        %v864 = vld [vmem:[#allocation4 + $0x1618] sm:$0xff]
        %v865 = vld [vmem:[#allocation4 + $0x1620] sm:$0xff]
        %v866 = vld [vmem:[#allocation4 + $0x1628] sm:$0xff]
        %v867 = vld [vmem:[#allocation4 + $0x1630] sm:$0xff]
        %v868 = vld [vmem:[#allocation4 + $0x1638] sm:$0xff]
        %v869 = vld [vmem:[#allocation4 + $0x1640] sm:$0xff]
        %v870 = vld [vmem:[#allocation4 + $0x1648] sm:$0xff]
        %v871 = vld [vmem:[#allocation4 + $0x1650] sm:$0xff]
        %v872 = vld [vmem:[#allocation4 + $0x1658] sm:$0xff]
        %v873 = vld [vmem:[#allocation4 + $0x1660] sm:$0xff]
        %v874 = vld [vmem:[#allocation4 + $0x1668] sm:$0xff]
        %v875 = vld [vmem:[#allocation4 + $0x1670] sm:$0xff]
        %v876 = vld [vmem:[#allocation4 + $0x1678] sm:$0xff]
        %v877 = vld [vmem:[#allocation4 + $0x1680] sm:$0xff]
        %v878 = vld [vmem:[#allocation4 + $0x1688] sm:$0xff]
        %v879 = vld [vmem:[#allocation4 + $0x1690] sm:$0xff]
        %v880 = vld [vmem:[#allocation4 + $0x1698] sm:$0xff]
        %v881 = vld [vmem:[#allocation4 + $0x16a0] sm:$0xff]
        %v882 = vld [vmem:[#allocation4 + $0x16a8] sm:$0xff]
        %v883 = vld [vmem:[#allocation4 + $0x16b0] sm:$0xff]
        %v884 = vld [vmem:[#allocation4 + $0x16b8] sm:$0xff]
        %v885 = vld [vmem:[#allocation4 + $0x16c0] sm:$0xff]
        %v886 = vld [vmem:[#allocation4 + $0x16c8] sm:$0xff]
        %v887 = vld [vmem:[#allocation4 + $0x16d0] sm:$0xff]
        %v888 = vld [vmem:[#allocation4 + $0x16d8] sm:$0xff]
        %v889 = vld [vmem:[#allocation4 + $0x16e0] sm:$0xff]
        %v890 = vld [vmem:[#allocation4 + $0x16e8] sm:$0xff]
        %v891 = vld [vmem:[#allocation4 + $0x16f0] sm:$0xff]
        %v892 = vld [vmem:[#allocation4 + $0x16f8] sm:$0xff]
        %v893 = vld [vmem:[#allocation4 + $0x1700] sm:$0xff]
        %v894 = vld [vmem:[#allocation4 + $0x1708] sm:$0xff]
        %v895 = vld [vmem:[#allocation4 + $0x1710] sm:$0xff]
        %v896 = vld [vmem:[#allocation4 + $0x1718] sm:$0xff]
        %v897 = vld [vmem:[#allocation4 + $0x1720] sm:$0xff]
        %v898 = vld [vmem:[#allocation4 + $0x1728] sm:$0xff]
        %v899 = vld [vmem:[#allocation4 + $0x1730] sm:$0xff]
        %v900 = vld [vmem:[#allocation4 + $0x1738] sm:$0xff]
        %v901 = vld [vmem:[#allocation4 + $0x1740] sm:$0xff]
        %v902 = vld [vmem:[#allocation4 + $0x1748] sm:$0xff]
        %v903 = vld [vmem:[#allocation4 + $0x1750] sm:$0xff]
        %v904 = vld [vmem:[#allocation4 + $0x1758] sm:$0xff]
        %v905 = vld [vmem:[#allocation4 + $0x1760] sm:$0xff]
        %v906 = vld [vmem:[#allocation4 + $0x1768] sm:$0xff]
        %v907 = vld [vmem:[#allocation4 + $0x1770] sm:$0xff]
        %v908 = vld [vmem:[#allocation4 + $0x1778] sm:$0xff]
        %v909 = vld [vmem:[#allocation4 + $0x1780] sm:$0xff]
        %v910 = vld [vmem:[#allocation4 + $0x1788] sm:$0xff]
        %v911 = vld [vmem:[#allocation4 + $0x1790] sm:$0xff]
        %v912 = vld [vmem:[#allocation4 + $0x1798] sm:$0xff]
        %v913 = vld [vmem:[#allocation4 + $0x17a0] sm:$0xff]
        %v914 = vld [vmem:[#allocation4 + $0x17a8] sm:$0xff]
        %v915 = vld [vmem:[#allocation4 + $0x17b0] sm:$0xff]
        %v916 = vld [vmem:[#allocation4 + $0x17b8] sm:$0xff]
        %v917 = vld [vmem:[#allocation4 + $0x17c0] sm:$0xff]
        %v918 = vld [vmem:[#allocation4 + $0x17c8] sm:$0xff]
        %v919 = vld [vmem:[#allocation4 + $0x17d0] sm:$0xff]
        %v920 = vld [vmem:[#allocation4 + $0x17d8] sm:$0xff]
        %v921 = vld [vmem:[#allocation4 + $0x17e0] sm:$0xff]
        %v922 = vld [vmem:[#allocation4 + $0x17e8] sm:$0xff]
        %v923 = vld [vmem:[#allocation4 + $0x17f0] sm:$0xff]
        %v924 = vld [vmem:[#allocation4 + $0x17f8] sm:$0xff]
        %v925 = vld [vmem:[#allocation4 + $0x1800] sm:$0xff]
        %v926 = vld [vmem:[#allocation4 + $0x1808] sm:$0xff]
        %v927 = vld [vmem:[#allocation4 + $0x1810] sm:$0xff]
        %v928 = vld [vmem:[#allocation4 + $0x1818] sm:$0xff]
        %v929 = vld [vmem:[#allocation4 + $0x1820] sm:$0xff]
        %v930 = vld [vmem:[#allocation4 + $0x1828] sm:$0xff]
        %v931 = vld [vmem:[#allocation4 + $0x1830] sm:$0xff]
        %v932 = vld [vmem:[#allocation4 + $0x1838] sm:$0xff]
        %v933 = vld [vmem:[#allocation4 + $0x1840] sm:$0xff]
        %v934 = vld [vmem:[#allocation4 + $0x1848] sm:$0xff]
        %v935 = vld [vmem:[#allocation4 + $0x1850] sm:$0xff]
        %v936 = vld [vmem:[#allocation4 + $0x1858] sm:$0xff]
        %v937 = vld [vmem:[#allocation4 + $0x1860] sm:$0xff]
        %v938 = vld [vmem:[#allocation4 + $0x1868] sm:$0xff]
        %v939 = vld [vmem:[#allocation4 + $0x1870] sm:$0xff]
        %v940 = vld [vmem:[#allocation4 + $0x1878] sm:$0xff]
        %v941 = vld [vmem:[#allocation4 + $0x1880] sm:$0xff]
        %v942 = vld [vmem:[#allocation4 + $0x1888] sm:$0xff]
        %v943 = vld [vmem:[#allocation4 + $0x1890] sm:$0xff]
        %v944 = vld [vmem:[#allocation4 + $0x1898] sm:$0xff]
        %v945 = vld [vmem:[#allocation4 + $0x18a0] sm:$0xff]
        %v946 = vld [vmem:[#allocation4 + $0x18a8] sm:$0xff]
        %v947 = vld [vmem:[#allocation4 + $0x18b0] sm:$0xff]
        %v948 = vld [vmem:[#allocation4 + $0x18b8] sm:$0xff]
        %v949 = vld [vmem:[#allocation4 + $0x18c0] sm:$0xff]
        %v950 = vld [vmem:[#allocation4 + $0x18c8] sm:$0xff]
        %v951 = vld [vmem:[#allocation4 + $0x18d0] sm:$0xff]
        %v952 = vld [vmem:[#allocation4 + $0x18d8] sm:$0xff]
        %v953 = vld [vmem:[#allocation4 + $0x18e0] sm:$0xff]
        %v954 = vld [vmem:[#allocation4 + $0x18e8] sm:$0xff]
        %v955 = vld [vmem:[#allocation4 + $0x18f0] sm:$0xff]
        %v956 = vld [vmem:[#allocation4 + $0x18f8] sm:$0xff]
        %v957 = vld [vmem:[#allocation4 + $0x1900] sm:$0xff]
        %v958 = vld [vmem:[#allocation4 + $0x1908] sm:$0xff]
        %v959 = vld [vmem:[#allocation4 + $0x1910] sm:$0xff]
        %v960 = vld [vmem:[#allocation4 + $0x1918] sm:$0xff]
        %v961 = vld [vmem:[#allocation4 + $0x1920] sm:$0xff]
        %v962 = vld [vmem:[#allocation4 + $0x1928] sm:$0xff]
        %v963 = vld [vmem:[#allocation4 + $0x1930] sm:$0xff]
        %v964 = vld [vmem:[#allocation4 + $0x1938] sm:$0xff]
        %v965 = vld [vmem:[#allocation4 + $0x1940] sm:$0xff]
        %v966 = vld [vmem:[#allocation4 + $0x1948] sm:$0xff]
        %v967 = vld [vmem:[#allocation4 + $0x1950] sm:$0xff]
        %v968 = vld [vmem:[#allocation4 + $0x1958] sm:$0xff]
        %v969 = vld [vmem:[#allocation4 + $0x1960] sm:$0xff]
        %v970 = vld [vmem:[#allocation4 + $0x1968] sm:$0xff]
        %v971 = vld [vmem:[#allocation4 + $0x1970] sm:$0xff]
        %v972 = vld [vmem:[#allocation4 + $0x1978] sm:$0xff]
        %v973 = vld [vmem:[#allocation4 + $0x1980] sm:$0xff]
        %v974 = vld [vmem:[#allocation4 + $0x1988] sm:$0xff]
        %v975 = vld [vmem:[#allocation4 + $0x1990] sm:$0xff]
        %v976 = vld [vmem:[#allocation4 + $0x1998] sm:$0xff]
        %v977 = vld [vmem:[#allocation4 + $0x19a0] sm:$0xff]
        %v978 = vld [vmem:[#allocation4 + $0x19a8] sm:$0xff]
        %v979 = vld [vmem:[#allocation4 + $0x19b0] sm:$0xff]
        %v980 = vld [vmem:[#allocation4 + $0x19b8] sm:$0xff]
        %v981 = vld [vmem:[#allocation4 + $0x19c0] sm:$0xff]
        %v982 = vld [vmem:[#allocation4 + $0x19c8] sm:$0xff]
        %v983 = vld [vmem:[#allocation4 + $0x19d0] sm:$0xff]
        %v984 = vld [vmem:[#allocation4 + $0x19d8] sm:$0xff]
        %v985 = vld [vmem:[#allocation4 + $0x19e0] sm:$0xff]
        %v986 = vld [vmem:[#allocation4 + $0x19e8] sm:$0xff]
        %v987 = vld [vmem:[#allocation4 + $0x19f0] sm:$0xff]
        %v988 = vld [vmem:[#allocation4 + $0x19f8] sm:$0xff]
        %v989 = vld [vmem:[#allocation4 + $0x1a00] sm:$0xff]
        %v990 = vld [vmem:[#allocation4 + $0x1a08] sm:$0xff]
        %v991 = vld [vmem:[#allocation4 + $0x1a10] sm:$0xff]
        %v992 = vld [vmem:[#allocation4 + $0x1a18] sm:$0xff]
        %v993 = vld [vmem:[#allocation4 + $0x1a20] sm:$0xff]
        %v994 = vld [vmem:[#allocation4 + $0x1a28] sm:$0xff]
        %v995 = vld [vmem:[#allocation4 + $0x1a30] sm:$0xff]
        %v996 = vld [vmem:[#allocation4 + $0x1a38] sm:$0xff]
        %v997 = vld [vmem:[#allocation4 + $0x1a40] sm:$0xff]
        %v998 = vld [vmem:[#allocation4 + $0x1a48] sm:$0xff]
        %v999 = vld [vmem:[#allocation4 + $0x1a50] sm:$0xff]
        %v1000 = vld [vmem:[#allocation4 + $0x1a58] sm:$0xff]
        %v1001 = vld [vmem:[#allocation4 + $0x1a60] sm:$0xff]
        %v1002 = vld [vmem:[#allocation4 + $0x1a68] sm:$0xff]
        %v1003 = vld [vmem:[#allocation4 + $0x1a70] sm:$0xff]
        %v1004 = vld [vmem:[#allocation4 + $0x1a78] sm:$0xff]
        %v1005 = vld [vmem:[#allocation4 + $0x1a80] sm:$0xff]
        %v1006 = vld [vmem:[#allocation4 + $0x1a88] sm:$0xff]
        %v1007 = vld [vmem:[#allocation4 + $0x1a90] sm:$0xff]
        %v1008 = vld [vmem:[#allocation4 + $0x1a98] sm:$0xff]
        %v1009 = vld [vmem:[#allocation4 + $0x1aa0] sm:$0xff]
        %v1010 = vld [vmem:[#allocation4 + $0x1aa8] sm:$0xff]
        %v1011 = vld [vmem:[#allocation4 + $0x1ab0] sm:$0xff]
        %v1012 = vld [vmem:[#allocation4 + $0x1ab8] sm:$0xff]
        %v1013 = vld [vmem:[#allocation4 + $0x1ac0] sm:$0xff]
        %v1014 = vld [vmem:[#allocation4 + $0x1ac8] sm:$0xff]
        %v1015 = vld [vmem:[#allocation4 + $0x1ad0] sm:$0xff]
        %v1016 = vld [vmem:[#allocation4 + $0x1ad8] sm:$0xff]
        %v1017 = vld [vmem:[#allocation4 + $0x1ae0] sm:$0xff]
        %v1018 = vld [vmem:[#allocation4 + $0x1ae8] sm:$0xff]
        %v1019 = vld [vmem:[#allocation4 + $0x1af0] sm:$0xff]
        %v1020 = vld [vmem:[#allocation4 + $0x1af8] sm:$0xff]
        %v1021 = vld [vmem:[#allocation4 + $0x1b00] sm:$0xff]
        %v1022 = vld [vmem:[#allocation4 + $0x1b08] sm:$0xff]
        %v1023 = vld [vmem:[#allocation4 + $0x1b10] sm:$0xff]
        %v1024 = vld [vmem:[#allocation4 + $0x1b18] sm:$0xff]
        %v1025 = vld [vmem:[#allocation4 + $0x1b20] sm:$0xff]
        %v1026 = vld [vmem:[#allocation4 + $0x1b28] sm:$0xff]
        %v1027 = vld [vmem:[#allocation4 + $0x1b30] sm:$0xff]
        %v1028 = vld [vmem:[#allocation4 + $0x1b38] sm:$0xff]
        %v1029 = vld [vmem:[#allocation4 + $0x1b40] sm:$0xff]
        %v1030 = vld [vmem:[#allocation4 + $0x1b48] sm:$0xff]
        %v1031 = vld [vmem:[#allocation4 + $0x1b50] sm:$0xff]
        %v1032 = vld [vmem:[#allocation4 + $0x1b58] sm:$0xff]
        %v1033 = vld [vmem:[#allocation4 + $0x1b60] sm:$0xff]
        %v1034 = vld [vmem:[#allocation4 + $0x1b68] sm:$0xff]
        %v1035 = vld [vmem:[#allocation4 + $0x1b70] sm:$0xff]
        %v1036 = vld [vmem:[#allocation4 + $0x1b78] sm:$0xff]
        %v1037 = vld [vmem:[#allocation4 + $0x1b80] sm:$0xff]
        %v1038 = vld [vmem:[#allocation4 + $0x1b88] sm:$0xff]
        %v1039 = vld [vmem:[#allocation4 + $0x1b90] sm:$0xff]
        %v1040 = vld [vmem:[#allocation4 + $0x1b98] sm:$0xff]
        %v1041 = vld [vmem:[#allocation4 + $0x1ba0] sm:$0xff]
        %v1042 = vld [vmem:[#allocation4 + $0x1ba8] sm:$0xff]
        %v1043 = vld [vmem:[#allocation4 + $0x1bb0] sm:$0xff]
        %v1044 = vld [vmem:[#allocation4 + $0x1bb8] sm:$0xff]
        %v1045 = vld [vmem:[#allocation4 + $0x1bc0] sm:$0xff]
        %v1046 = vld [vmem:[#allocation4 + $0x1bc8] sm:$0xff]
        %v1047 = vld [vmem:[#allocation4 + $0x1bd0] sm:$0xff]
        %v1048 = vld [vmem:[#allocation4 + $0x1bd8] sm:$0xff]
        %v1049 = vld [vmem:[#allocation4 + $0x1be0] sm:$0xff]
        %v1050 = vld [vmem:[#allocation4 + $0x1be8] sm:$0xff]
        %v1051 = vld [vmem:[#allocation4 + $0x1bf0] sm:$0xff]
        %v1052 = vld [vmem:[#allocation4 + $0x1bf8] sm:$0xff]
        %v1053 = vld [vmem:[#allocation4 + $0x1c00] sm:$0xff]
        %v1054 = vld [vmem:[#allocation4 + $0x1c08] sm:$0xff]
        %v1055 = vld [vmem:[#allocation4 + $0x1c10] sm:$0xff]
        %v1056 = vld [vmem:[#allocation4 + $0x1c18] sm:$0xff]
        %v1057 = vld [vmem:[#allocation4 + $0x1c20] sm:$0xff]
        %v1058 = vld [vmem:[#allocation4 + $0x1c28] sm:$0xff]
        %v1059 = vld [vmem:[#allocation4 + $0x1c30] sm:$0xff]
        %v1060 = vld [vmem:[#allocation4 + $0x1c38] sm:$0xff]
        %v1061 = vld [vmem:[#allocation4 + $0x1c40] sm:$0xff]
        %v1062 = vld [vmem:[#allocation4 + $0x1c48] sm:$0xff]
        %v1063 = vld [vmem:[#allocation4 + $0x1c50] sm:$0xff]
        %v1064 = vld [vmem:[#allocation4 + $0x1c58] sm:$0xff]
        %v1065 = vld [vmem:[#allocation4 + $0x1c60] sm:$0xff]
        %v1066 = vld [vmem:[#allocation4 + $0x1c68] sm:$0xff]
        %v1067 = vld [vmem:[#allocation4 + $0x1c70] sm:$0xff]
        %v1068 = vld [vmem:[#allocation4 + $0x1c78] sm:$0xff]
        %v1069 = vld [vmem:[#allocation4 + $0x1c80] sm:$0xff]
        %v1070 = vld [vmem:[#allocation4 + $0x1c88] sm:$0xff]
        %v1071 = vld [vmem:[#allocation4 + $0x1c90] sm:$0xff]
        %v1072 = vld [vmem:[#allocation4 + $0x1c98] sm:$0xff]
        %v1073 = vld [vmem:[#allocation4 + $0x1ca0] sm:$0xff]
        %v1074 = vld [vmem:[#allocation4 + $0x1ca8] sm:$0xff]
        %v1075 = vld [vmem:[#allocation4 + $0x1cb0] sm:$0xff]
        %v1076 = vld [vmem:[#allocation4 + $0x1cb8] sm:$0xff]
        %v1077 = vld [vmem:[#allocation4 + $0x1cc0] sm:$0xff]
        %v1078 = vld [vmem:[#allocation4 + $0x1cc8] sm:$0xff]
        %v1079 = vld [vmem:[#allocation4 + $0x1cd0] sm:$0xff]
        %v1080 = vld [vmem:[#allocation4 + $0x1cd8] sm:$0xff]
        %v1081 = vld [vmem:[#allocation4 + $0x1ce0] sm:$0xff]
        %v1082 = vld [vmem:[#allocation4 + $0x1ce8] sm:$0xff]
        %v1083 = vld [vmem:[#allocation4 + $0x1cf0] sm:$0xff]
        %v1084 = vld [vmem:[#allocation4 + $0x1cf8] sm:$0xff]
        %v1085 = vld [vmem:[#allocation4 + $0x1d00] sm:$0xff]
        %v1086 = vld [vmem:[#allocation4 + $0x1d08] sm:$0xff]
        %v1087 = vld [vmem:[#allocation4 + $0x1d10] sm:$0xff]
        %v1088 = vld [vmem:[#allocation4 + $0x1d18] sm:$0xff]
        %v1089 = vld [vmem:[#allocation4 + $0x1d20] sm:$0xff]
        %v1090 = vld [vmem:[#allocation4 + $0x1d28] sm:$0xff]
        %v1091 = vld [vmem:[#allocation4 + $0x1d30] sm:$0xff]
        %v1092 = vld [vmem:[#allocation4 + $0x1d38] sm:$0xff]
        %v1093 = vld [vmem:[#allocation4 + $0x1d40] sm:$0xff]
        %v1094 = vld [vmem:[#allocation4 + $0x1d48] sm:$0xff]
        %v1095 = vld [vmem:[#allocation4 + $0x1d50] sm:$0xff]
        %v1096 = vld [vmem:[#allocation4 + $0x1d58] sm:$0xff]
        %v1097 = vld [vmem:[#allocation4 + $0x1d60] sm:$0xff]
        %v1098 = vld [vmem:[#allocation4 + $0x1d68] sm:$0xff]
        %v1099 = vld [vmem:[#allocation4 + $0x1d70] sm:$0xff]
        %v1100 = vld [vmem:[#allocation4 + $0x1d78] sm:$0xff]
        %v1101 = vld [vmem:[#allocation4 + $0x1d80] sm:$0xff]
        %v1102 = vld [vmem:[#allocation4 + $0x1d88] sm:$0xff]
        %v1103 = vld [vmem:[#allocation4 + $0x1d90] sm:$0xff]
        %v1104 = vld [vmem:[#allocation4 + $0x1d98] sm:$0xff]
        %v1105 = vld [vmem:[#allocation4 + $0x1da0] sm:$0xff]
        %v1106 = vld [vmem:[#allocation4 + $0x1da8] sm:$0xff]
        %v1107 = vld [vmem:[#allocation4 + $0x1db0] sm:$0xff]
        %v1108 = vld [vmem:[#allocation4 + $0x1db8] sm:$0xff]
        %v1109 = vld [vmem:[#allocation4 + $0x1dc0] sm:$0xff]
        %v1110 = vld [vmem:[#allocation4 + $0x1dc8] sm:$0xff]
        %v1111 = vld [vmem:[#allocation4 + $0x1dd0] sm:$0xff]
        %v1112 = vld [vmem:[#allocation4 + $0x1dd8] sm:$0xff]
        %v1113 = vld [vmem:[#allocation4 + $0x1de0] sm:$0xff]
        %v1114 = vld [vmem:[#allocation4 + $0x1de8] sm:$0xff]
        %v1115 = vld [vmem:[#allocation4 + $0x1df0] sm:$0xff]
        %v1116 = vld [vmem:[#allocation4 + $0x1df8] sm:$0xff]
        %v1117 = vld [vmem:[#allocation4 + $0x1e00] sm:$0xff]
        %v1118 = vld [vmem:[#allocation4 + $0x1e08] sm:$0xff]
        %v1119 = vld [vmem:[#allocation4 + $0x1e10] sm:$0xff]
        %v1120 = vld [vmem:[#allocation4 + $0x1e18] sm:$0xff]
        %v1121 = vld [vmem:[#allocation4 + $0x1e20] sm:$0xff]
        %v1122 = vld [vmem:[#allocation4 + $0x1e28] sm:$0xff]
        %v1123 = vld [vmem:[#allocation4 + $0x1e30] sm:$0xff]
        %v1124 = vld [vmem:[#allocation4 + $0x1e38] sm:$0xff]
        %v1125 = vld [vmem:[#allocation4 + $0x1e40] sm:$0xff]
        %v1126 = vld [vmem:[#allocation4 + $0x1e48] sm:$0xff]
        %v1127 = vld [vmem:[#allocation4 + $0x1e50] sm:$0xff]
        %v1128 = vld [vmem:[#allocation4 + $0x1e58] sm:$0xff]
        %v1129 = vld [vmem:[#allocation4 + $0x1e60] sm:$0xff]
        %v1130 = vld [vmem:[#allocation4 + $0x1e68] sm:$0xff]
        %v1131 = vld [vmem:[#allocation4 + $0x1e70] sm:$0xff]
        %v1132 = vld [vmem:[#allocation4 + $0x1e78] sm:$0xff]
        %v1133 = vld [vmem:[#allocation4 + $0x1e80] sm:$0xff]
        %v1134 = vld [vmem:[#allocation4 + $0x1e88] sm:$0xff]
        %v1135 = vld [vmem:[#allocation4 + $0x1e90] sm:$0xff]
        %v1136 = vld [vmem:[#allocation4 + $0x1e98] sm:$0xff]
        %v1137 = vld [vmem:[#allocation4 + $0x1ea0] sm:$0xff]
        %v1138 = vld [vmem:[#allocation4 + $0x1ea8] sm:$0xff]
        %v1139 = vld [vmem:[#allocation4 + $0x1eb0] sm:$0xff]
        %v1140 = vld [vmem:[#allocation4 + $0x1eb8] sm:$0xff]
        %v1141 = vld [vmem:[#allocation4 + $0x1ec0] sm:$0xff]
        %v1142 = vld [vmem:[#allocation4 + $0x1ec8] sm:$0xff]
        %v1143 = vld [vmem:[#allocation4 + $0x1ed0] sm:$0xff]
        %v1144 = vld [vmem:[#allocation4 + $0x1ed8] sm:$0xff]
        %v1145 = vld [vmem:[#allocation4 + $0x1ee0] sm:$0xff]
        %v1146 = vld [vmem:[#allocation4 + $0x1ee8] sm:$0xff]
        %v1147 = vld [vmem:[#allocation4 + $0x1ef0] sm:$0xff]
        %v1148 = vld [vmem:[#allocation4 + $0x1ef8] sm:$0xff]
        %v1149 = vld [vmem:[#allocation4 + $0x1f00] sm:$0xff]
        %v1150 = vld [vmem:[#allocation4 + $0x1f08] sm:$0xff]
        %v1151 = vld [vmem:[#allocation4 + $0x1f10] sm:$0xff]
        %v1152 = vld [vmem:[#allocation4 + $0x1f18] sm:$0xff]
        %v1153 = vld [vmem:[#allocation4 + $0x1f20] sm:$0xff]
        %v1154 = vld [vmem:[#allocation4 + $0x1f28] sm:$0xff]
        %v1155 = vld [vmem:[#allocation4 + $0x1f30] sm:$0xff]
        %v1156 = vld [vmem:[#allocation4 + $0x1f38] sm:$0xff]
        %v1157 = vld [vmem:[#allocation4 + $0x1f40] sm:$0xff]
        %v1158 = vld [vmem:[#allocation4 + $0x1f48] sm:$0xff]
        %v1159 = vld [vmem:[#allocation4 + $0x1f50] sm:$0xff]
        %v1160 = vld [vmem:[#allocation4 + $0x1f58] sm:$0xff]
        %v1161 = vld [vmem:[#allocation4 + $0x1f60] sm:$0xff]
        %v1162 = vld [vmem:[#allocation4 + $0x1f68] sm:$0xff]
        %v1163 = vld [vmem:[#allocation4 + $0x1f70] sm:$0xff]
        %v1164 = vld [vmem:[#allocation4 + $0x1f78] sm:$0xff]
        %v1165 = vld [vmem:[#allocation4 + $0x1f80] sm:$0xff]
        %v1166 = vld [vmem:[#allocation4 + $0x1f88] sm:$0xff]
        %v1167 = vld [vmem:[#allocation4 + $0x1f90] sm:$0xff]
        %v1168 = vld [vmem:[#allocation4 + $0x1f98] sm:$0xff]
        %v1169 = vld [vmem:[#allocation4 + $0x1fa0] sm:$0xff]
        %v1170 = vld [vmem:[#allocation4 + $0x1fa8] sm:$0xff]
        %v1171 = vld [vmem:[#allocation4 + $0x1fb0] sm:$0xff]
        %v1172 = vld [vmem:[#allocation4 + $0x1fb8] sm:$0xff]
        %v1173 = vld [vmem:[#allocation4 + $0x1fc0] sm:$0xff]
        %v1174 = vld [vmem:[#allocation4 + $0x1fc8] sm:$0xff]
        %v1175 = vld [vmem:[#allocation4 + $0x1fd0] sm:$0xff]
        %v1176 = vld [vmem:[#allocation4 + $0x1fd8] sm:$0xff]
        %v1177 = vld [vmem:[#allocation4 + $0x1fe0] sm:$0xff]
        %v1178 = vld [vmem:[#allocation4 + $0x1fe8] sm:$0xff]
        %v1179 = vld [vmem:[#allocation4 + $0x1ff0] sm:$0xff]
        %v1180 = vld [vmem:[#allocation4 + $0x1ff8] sm:$0xff]
        %1182 = vst [vmem:[#allocation1] ss:$4 sm:$0xff] %v156
        %v1183 = vld.sshfl [vmem:[#allocation1] sm:$0xff pattern:$0x73625140]
        %v1184 = vld.sshfl [vmem:[#allocation1 + $0x8] sm:$0xff pattern:$0x73625140]
        %v1185 = vld.sshfl [vmem:[#allocation1 + $0x10] sm:$0xff pattern:$0x73625140]
        %v1186 = vld.sshfl [vmem:[#allocation1 + $0x18] sm:$0xff pattern:$0x73625140]
        %1191 = vmatpush.msra.mxu0 %v397
        %1192 = vmatpush.msra.mxu0 %v381
        %1193 = vmatpush.msra.mxu0 %v365
        %1194 = vmatpush.msra.mxu0 %v349
        %1195 = vmatpush.msra.mxu0 %v333
        %1196 = vmatpush.msra.mxu0 %v317
        %1197 = vmatpush.msra.mxu0 %v301
        %1198 = vmatpush.msra.mxu0 %v285
        %1199 = vmatpush.msra.mxu0 %v269
        %1200 = vmatpush.msra.mxu0 %v253
        %1201 = vmatpush.msra.mxu0 %v237
        %1202 = vmatpush.msra.mxu0 %v221
        %1203 = vmatpush.msra.mxu0 %v205
        %1204 = vmatpush.msra.mxu0 %v189
        %1205 = vmatpush.msra.mxu0 %v173
        %1206 = vmatpush.msra.mxu0 %v157
        %1207 = vmatmul.f32.gmra.mxu0 %v1183
        %v1208 = vpop.f32.mrf.mxu0
        %v1209 = vadd.f32 0.0, %v1208
        %1210 = vdwg.mxu0
        %1211 = vmatpush.msra.mxu0 %v653
        %1212 = vmatpush.msra.mxu0 %v637
        %1213 = vmatpush.msra.mxu0 %v621
        %1214 = vmatpush.msra.mxu0 %v605
        %1215 = vmatpush.msra.mxu0 %v589
        %1216 = vmatpush.msra.mxu0 %v573
        %1217 = vmatpush.msra.mxu0 %v557
        %1218 = vmatpush.msra.mxu0 %v541
        %1219 = vmatpush.msra.mxu0 %v525
        %1220 = vmatpush.msra.mxu0 %v509
        %1221 = vmatpush.msra.mxu0 %v493
        %1222 = vmatpush.msra.mxu0 %v477
        %1223 = vmatpush.msra.mxu0 %v461
        %1224 = vmatpush.msra.mxu0 %v445
        %1225 = vmatpush.msra.mxu0 %v429
        %1226 = vmatpush.msra.mxu0 %v413
        %1227 = vmatmul.f32.gmra.mxu0 %v1184
        %v1228 = vpop.f32.mrf.mxu0
        %v1229 = vadd.f32 %v1209, %v1228
        %1230 = vdwg.mxu0
        %1231 = vmatpush.msra.mxu0 %v909
        %1232 = vmatpush.msra.mxu0 %v893
        %1233 = vmatpush.msra.mxu0 %v877
        %1234 = vmatpush.msra.mxu0 %v861
        %1235 = vmatpush.msra.mxu0 %v845
        %1236 = vmatpush.msra.mxu0 %v829
        %1237 = vmatpush.msra.mxu0 %v813
        %1238 = vmatpush.msra.mxu0 %v797
        %1239 = vmatpush.msra.mxu0 %v781
        %1240 = vmatpush.msra.mxu0 %v765
        %1241 = vmatpush.msra.mxu0 %v749
        %1242 = vmatpush.msra.mxu0 %v733
        %1243 = vmatpush.msra.mxu0 %v717
        %1244 = vmatpush.msra.mxu0 %v701
        %1245 = vmatpush.msra.mxu0 %v685
        %1246 = vmatpush.msra.mxu0 %v669
        %1247 = vmatmul.f32.gmra.mxu0 %v1185
        %v1248 = vpop.f32.mrf.mxu0
        %v1249 = vadd.f32 %v1229, %v1248
        %1250 = vdwg.mxu0
        %1251 = vmatpush.msra.mxu0 %v1165
        %1252 = vmatpush.msra.mxu0 %v1149
        %1253 = vmatpush.msra.mxu0 %v1133
        %1254 = vmatpush.msra.mxu0 %v1117
        %1255 = vmatpush.msra.mxu0 %v1101
        %1256 = vmatpush.msra.mxu0 %v1085
        %1257 = vmatpush.msra.mxu0 %v1069
        %1258 = vmatpush.msra.mxu0 %v1053
        %1259 = vmatpush.msra.mxu0 %v1037
        %1260 = vmatpush.msra.mxu0 %v1021
        %1261 = vmatpush.msra.mxu0 %v1005
        %1262 = vmatpush.msra.mxu0 %v989
        %1263 = vmatpush.msra.mxu0 %v973
        %1264 = vmatpush.msra.mxu0 %v957
        %1265 = vmatpush.msra.mxu0 %v941
        %1266 = vmatpush.msra.mxu0 %v925
        %1267 = vmatmul.f32.gmra.mxu0 %v1186
        %v1268 = vpop.f32.mrf.mxu0
        %v1269 = vadd.f32 %v1249, %v1268
        %1270 = vdwg.mxu0
        %1271 = vmatpush.msra.mxu0 %v398
        %1272 = vmatpush.msra.mxu0 %v382
        %1273 = vmatpush.msra.mxu0 %v366
        %1274 = vmatpush.msra.mxu0 %v350
        %1275 = vmatpush.msra.mxu0 %v334
        %1276 = vmatpush.msra.mxu0 %v318
        %1277 = vmatpush.msra.mxu0 %v302
        %1278 = vmatpush.msra.mxu0 %v286
        %1279 = vmatpush.msra.mxu0 %v270
        %1280 = vmatpush.msra.mxu0 %v254
        %1281 = vmatpush.msra.mxu0 %v238
        %1282 = vmatpush.msra.mxu0 %v222
        %1283 = vmatpush.msra.mxu0 %v206
        %1284 = vmatpush.msra.mxu0 %v190
        %1285 = vmatpush.msra.mxu0 %v174
        %1286 = vmatpush.msra.mxu0 %v158
        %1287 = vmatmul.f32.gmra.mxu0 %v1183
        %v1288 = vpop.f32.mrf.mxu0
        %v1289 = vadd.f32 0.0, %v1288
        %1290 = vdwg.mxu0
        %1291 = vmatpush.msra.mxu0 %v654
        %1292 = vmatpush.msra.mxu0 %v638
        %1293 = vmatpush.msra.mxu0 %v622
        %1294 = vmatpush.msra.mxu0 %v606
        %1295 = vmatpush.msra.mxu0 %v590
        %1296 = vmatpush.msra.mxu0 %v574
        %1297 = vmatpush.msra.mxu0 %v558
        %1298 = vmatpush.msra.mxu0 %v542
        %1299 = vmatpush.msra.mxu0 %v526
        %1300 = vmatpush.msra.mxu0 %v510
        %1301 = vmatpush.msra.mxu0 %v494
        %1302 = vmatpush.msra.mxu0 %v478
        %1303 = vmatpush.msra.mxu0 %v462
        %1304 = vmatpush.msra.mxu0 %v446
        %1305 = vmatpush.msra.mxu0 %v430
        %1306 = vmatpush.msra.mxu0 %v414
        %1307 = vmatmul.f32.gmra.mxu0 %v1184
        %v1308 = vpop.f32.mrf.mxu0
        %v1309 = vadd.f32 %v1289, %v1308
        %1310 = vdwg.mxu0
        %1311 = vmatpush.msra.mxu0 %v910
        %1312 = vmatpush.msra.mxu0 %v894
        %1313 = vmatpush.msra.mxu0 %v878
        %1314 = vmatpush.msra.mxu0 %v862
        %1315 = vmatpush.msra.mxu0 %v846
        %1316 = vmatpush.msra.mxu0 %v830
        %1317 = vmatpush.msra.mxu0 %v814
        %1318 = vmatpush.msra.mxu0 %v798
        %1319 = vmatpush.msra.mxu0 %v782
        %1320 = vmatpush.msra.mxu0 %v766
        %1321 = vmatpush.msra.mxu0 %v750
        %1322 = vmatpush.msra.mxu0 %v734
        %1323 = vmatpush.msra.mxu0 %v718
        %1324 = vmatpush.msra.mxu0 %v702
        %1325 = vmatpush.msra.mxu0 %v686
        %1326 = vmatpush.msra.mxu0 %v670
        %1327 = vmatmul.f32.gmra.mxu0 %v1185
        %v1328 = vpop.f32.mrf.mxu0
        %v1329 = vadd.f32 %v1309, %v1328
        %1330 = vdwg.mxu0
        %1331 = vmatpush.msra.mxu0 %v1166
        %1332 = vmatpush.msra.mxu0 %v1150
        %1333 = vmatpush.msra.mxu0 %v1134
        %1334 = vmatpush.msra.mxu0 %v1118
        %1335 = vmatpush.msra.mxu0 %v1102
        %1336 = vmatpush.msra.mxu0 %v1086
        %1337 = vmatpush.msra.mxu0 %v1070
        %1338 = vmatpush.msra.mxu0 %v1054
        %1339 = vmatpush.msra.mxu0 %v1038
        %1340 = vmatpush.msra.mxu0 %v1022
        %1341 = vmatpush.msra.mxu0 %v1006
        %1342 = vmatpush.msra.mxu0 %v990
        %1343 = vmatpush.msra.mxu0 %v974
        %1344 = vmatpush.msra.mxu0 %v958
        %1345 = vmatpush.msra.mxu0 %v942
        %1346 = vmatpush.msra.mxu0 %v926
        %1347 = vmatmul.f32.gmra.mxu0 %v1186
        %v1348 = vpop.f32.mrf.mxu0
        %v1349 = vadd.f32 %v1329, %v1348
        %1350 = vdwg.mxu0
        %1351 = vmatpush.msra.mxu0 %v399
        %1352 = vmatpush.msra.mxu0 %v383
        %1353 = vmatpush.msra.mxu0 %v367
        %1354 = vmatpush.msra.mxu0 %v351
        %1355 = vmatpush.msra.mxu0 %v335
        %1356 = vmatpush.msra.mxu0 %v319
        %1357 = vmatpush.msra.mxu0 %v303
        %1358 = vmatpush.msra.mxu0 %v287
        %1359 = vmatpush.msra.mxu0 %v271
        %1360 = vmatpush.msra.mxu0 %v255
        %1361 = vmatpush.msra.mxu0 %v239
        %1362 = vmatpush.msra.mxu0 %v223
        %1363 = vmatpush.msra.mxu0 %v207
        %1364 = vmatpush.msra.mxu0 %v191
        %1365 = vmatpush.msra.mxu0 %v175
        %1366 = vmatpush.msra.mxu0 %v159
        %1367 = vmatmul.f32.gmra.mxu0 %v1183
        %v1368 = vpop.f32.mrf.mxu0
        %v1369 = vadd.f32 0.0, %v1368
        %1370 = vdwg.mxu0
        %1371 = vmatpush.msra.mxu0 %v655
        %1372 = vmatpush.msra.mxu0 %v639
        %1373 = vmatpush.msra.mxu0 %v623
        %1374 = vmatpush.msra.mxu0 %v607
        %1375 = vmatpush.msra.mxu0 %v591
        %1376 = vmatpush.msra.mxu0 %v575
        %1377 = vmatpush.msra.mxu0 %v559
        %1378 = vmatpush.msra.mxu0 %v543
        %1379 = vmatpush.msra.mxu0 %v527
        %1380 = vmatpush.msra.mxu0 %v511
        %1381 = vmatpush.msra.mxu0 %v495
        %1382 = vmatpush.msra.mxu0 %v479
        %1383 = vmatpush.msra.mxu0 %v463
        %1384 = vmatpush.msra.mxu0 %v447
        %1385 = vmatpush.msra.mxu0 %v431
        %1386 = vmatpush.msra.mxu0 %v415
        %1387 = vmatmul.f32.gmra.mxu0 %v1184
        %v1388 = vpop.f32.mrf.mxu0
        %v1389 = vadd.f32 %v1369, %v1388
        %1390 = vdwg.mxu0
        %1391 = vmatpush.msra.mxu0 %v911
        %1392 = vmatpush.msra.mxu0 %v895
        %1393 = vmatpush.msra.mxu0 %v879
        %1394 = vmatpush.msra.mxu0 %v863
        %1395 = vmatpush.msra.mxu0 %v847
        %1396 = vmatpush.msra.mxu0 %v831
        %1397 = vmatpush.msra.mxu0 %v815
        %1398 = vmatpush.msra.mxu0 %v799
        %1399 = vmatpush.msra.mxu0 %v783
        %1400 = vmatpush.msra.mxu0 %v767
        %1401 = vmatpush.msra.mxu0 %v751
        %1402 = vmatpush.msra.mxu0 %v735
        %1403 = vmatpush.msra.mxu0 %v719
        %1404 = vmatpush.msra.mxu0 %v703
        %1405 = vmatpush.msra.mxu0 %v687
        %1406 = vmatpush.msra.mxu0 %v671
        %1407 = vmatmul.f32.gmra.mxu0 %v1185
        %v1408 = vpop.f32.mrf.mxu0
        %v1409 = vadd.f32 %v1389, %v1408
        %1410 = vdwg.mxu0
        %1411 = vmatpush.msra.mxu0 %v1167
        %1412 = vmatpush.msra.mxu0 %v1151
        %1413 = vmatpush.msra.mxu0 %v1135
        %1414 = vmatpush.msra.mxu0 %v1119
        %1415 = vmatpush.msra.mxu0 %v1103
        %1416 = vmatpush.msra.mxu0 %v1087
        %1417 = vmatpush.msra.mxu0 %v1071
        %1418 = vmatpush.msra.mxu0 %v1055
        %1419 = vmatpush.msra.mxu0 %v1039
        %1420 = vmatpush.msra.mxu0 %v1023
        %1421 = vmatpush.msra.mxu0 %v1007
        %1422 = vmatpush.msra.mxu0 %v991
        %1423 = vmatpush.msra.mxu0 %v975
        %1424 = vmatpush.msra.mxu0 %v959
        %1425 = vmatpush.msra.mxu0 %v943
        %1426 = vmatpush.msra.mxu0 %v927
        %1427 = vmatmul.f32.gmra.mxu0 %v1186
        %v1428 = vpop.f32.mrf.mxu0
        %v1429 = vadd.f32 %v1409, %v1428
        %1430 = vdwg.mxu0
        %1431 = vmatpush.msra.mxu0 %v400
        %1432 = vmatpush.msra.mxu0 %v384
        %1433 = vmatpush.msra.mxu0 %v368
        %1434 = vmatpush.msra.mxu0 %v352
        %1435 = vmatpush.msra.mxu0 %v336
        %1436 = vmatpush.msra.mxu0 %v320
        %1437 = vmatpush.msra.mxu0 %v304
        %1438 = vmatpush.msra.mxu0 %v288
        %1439 = vmatpush.msra.mxu0 %v272
        %1440 = vmatpush.msra.mxu0 %v256
        %1441 = vmatpush.msra.mxu0 %v240
        %1442 = vmatpush.msra.mxu0 %v224
        %1443 = vmatpush.msra.mxu0 %v208
        %1444 = vmatpush.msra.mxu0 %v192
        %1445 = vmatpush.msra.mxu0 %v176
        %1446 = vmatpush.msra.mxu0 %v160
        %1447 = vmatmul.f32.gmra.mxu0 %v1183
        %v1448 = vpop.f32.mrf.mxu0
        %v1449 = vadd.f32 0.0, %v1448
        %1450 = vdwg.mxu0
        %1451 = vmatpush.msra.mxu0 %v656
        %1452 = vmatpush.msra.mxu0 %v640
        %1453 = vmatpush.msra.mxu0 %v624
        %1454 = vmatpush.msra.mxu0 %v608
        %1455 = vmatpush.msra.mxu0 %v592
        %1456 = vmatpush.msra.mxu0 %v576
        %1457 = vmatpush.msra.mxu0 %v560
        %1458 = vmatpush.msra.mxu0 %v544
        %1459 = vmatpush.msra.mxu0 %v528
        %1460 = vmatpush.msra.mxu0 %v512
        %1461 = vmatpush.msra.mxu0 %v496
        %1462 = vmatpush.msra.mxu0 %v480
        %1463 = vmatpush.msra.mxu0 %v464
        %1464 = vmatpush.msra.mxu0 %v448
        %1465 = vmatpush.msra.mxu0 %v432
        %1466 = vmatpush.msra.mxu0 %v416
        %1467 = vmatmul.f32.gmra.mxu0 %v1184
        %v1468 = vpop.f32.mrf.mxu0
        %v1469 = vadd.f32 %v1449, %v1468
        %1470 = vdwg.mxu0
        %1471 = vmatpush.msra.mxu0 %v912
        %1472 = vmatpush.msra.mxu0 %v896
        %1473 = vmatpush.msra.mxu0 %v880
        %1474 = vmatpush.msra.mxu0 %v864
        %1475 = vmatpush.msra.mxu0 %v848
        %1476 = vmatpush.msra.mxu0 %v832
        %1477 = vmatpush.msra.mxu0 %v816
        %1478 = vmatpush.msra.mxu0 %v800
        %1479 = vmatpush.msra.mxu0 %v784
        %1480 = vmatpush.msra.mxu0 %v768
        %1481 = vmatpush.msra.mxu0 %v752
        %1482 = vmatpush.msra.mxu0 %v736
        %1483 = vmatpush.msra.mxu0 %v720
        %1484 = vmatpush.msra.mxu0 %v704
        %1485 = vmatpush.msra.mxu0 %v688
        %1486 = vmatpush.msra.mxu0 %v672
        %1487 = vmatmul.f32.gmra.mxu0 %v1185
        %v1488 = vpop.f32.mrf.mxu0
        %v1489 = vadd.f32 %v1469, %v1488
        %1490 = vdwg.mxu0
        %1491 = vmatpush.msra.mxu0 %v1168
        %1492 = vmatpush.msra.mxu0 %v1152
        %1493 = vmatpush.msra.mxu0 %v1136
        %1494 = vmatpush.msra.mxu0 %v1120
        %1495 = vmatpush.msra.mxu0 %v1104
        %1496 = vmatpush.msra.mxu0 %v1088
        %1497 = vmatpush.msra.mxu0 %v1072
        %1498 = vmatpush.msra.mxu0 %v1056
        %1499 = vmatpush.msra.mxu0 %v1040
        %1500 = vmatpush.msra.mxu0 %v1024
        %1501 = vmatpush.msra.mxu0 %v1008
        %1502 = vmatpush.msra.mxu0 %v992
        %1503 = vmatpush.msra.mxu0 %v976
        %1504 = vmatpush.msra.mxu0 %v960
        %1505 = vmatpush.msra.mxu0 %v944
        %1506 = vmatpush.msra.mxu0 %v928
        %1507 = vmatmul.f32.gmra.mxu0 %v1186
        %v1508 = vpop.f32.mrf.mxu0
        %v1509 = vadd.f32 %v1489, %v1508
        %1510 = vdwg.mxu0
        %1511 = vmatpush.msra.mxu0 %v401
        %1512 = vmatpush.msra.mxu0 %v385
        %1513 = vmatpush.msra.mxu0 %v369
        %1514 = vmatpush.msra.mxu0 %v353
        %1515 = vmatpush.msra.mxu0 %v337
        %1516 = vmatpush.msra.mxu0 %v321
        %1517 = vmatpush.msra.mxu0 %v305
        %1518 = vmatpush.msra.mxu0 %v289
        %1519 = vmatpush.msra.mxu0 %v273
        %1520 = vmatpush.msra.mxu0 %v257
        %1521 = vmatpush.msra.mxu0 %v241
        %1522 = vmatpush.msra.mxu0 %v225
        %1523 = vmatpush.msra.mxu0 %v209
        %1524 = vmatpush.msra.mxu0 %v193
        %1525 = vmatpush.msra.mxu0 %v177
        %1526 = vmatpush.msra.mxu0 %v161
        %1527 = vmatmul.f32.gmra.mxu0 %v1183
        %v1528 = vpop.f32.mrf.mxu0
        %v1529 = vadd.f32 0.0, %v1528
        %1530 = vdwg.mxu0
        %1531 = vmatpush.msra.mxu0 %v657
        %1532 = vmatpush.msra.mxu0 %v641
        %1533 = vmatpush.msra.mxu0 %v625
        %1534 = vmatpush.msra.mxu0 %v609
        %1535 = vmatpush.msra.mxu0 %v593
        %1536 = vmatpush.msra.mxu0 %v577
        %1537 = vmatpush.msra.mxu0 %v561
        %1538 = vmatpush.msra.mxu0 %v545
        %1539 = vmatpush.msra.mxu0 %v529
        %1540 = vmatpush.msra.mxu0 %v513
        %1541 = vmatpush.msra.mxu0 %v497
        %1542 = vmatpush.msra.mxu0 %v481
        %1543 = vmatpush.msra.mxu0 %v465
        %1544 = vmatpush.msra.mxu0 %v449
        %1545 = vmatpush.msra.mxu0 %v433
        %1546 = vmatpush.msra.mxu0 %v417
        %1547 = vmatmul.f32.gmra.mxu0 %v1184
        %v1548 = vpop.f32.mrf.mxu0
        %v1549 = vadd.f32 %v1529, %v1548
        %1550 = vdwg.mxu0
        %1551 = vmatpush.msra.mxu0 %v913
        %1552 = vmatpush.msra.mxu0 %v897
        %1553 = vmatpush.msra.mxu0 %v881
        %1554 = vmatpush.msra.mxu0 %v865
        %1555 = vmatpush.msra.mxu0 %v849
        %1556 = vmatpush.msra.mxu0 %v833
        %1557 = vmatpush.msra.mxu0 %v817
        %1558 = vmatpush.msra.mxu0 %v801
        %1559 = vmatpush.msra.mxu0 %v785
        %1560 = vmatpush.msra.mxu0 %v769
        %1561 = vmatpush.msra.mxu0 %v753
        %1562 = vmatpush.msra.mxu0 %v737
        %1563 = vmatpush.msra.mxu0 %v721
        %1564 = vmatpush.msra.mxu0 %v705
        %1565 = vmatpush.msra.mxu0 %v689
        %1566 = vmatpush.msra.mxu0 %v673
        %1567 = vmatmul.f32.gmra.mxu0 %v1185
        %v1568 = vpop.f32.mrf.mxu0
        %v1569 = vadd.f32 %v1549, %v1568
        %1570 = vdwg.mxu0
        %1571 = vmatpush.msra.mxu0 %v1169
        %1572 = vmatpush.msra.mxu0 %v1153
        %1573 = vmatpush.msra.mxu0 %v1137
        %1574 = vmatpush.msra.mxu0 %v1121
        %1575 = vmatpush.msra.mxu0 %v1105
        %1576 = vmatpush.msra.mxu0 %v1089
        %1577 = vmatpush.msra.mxu0 %v1073
        %1578 = vmatpush.msra.mxu0 %v1057
        %1579 = vmatpush.msra.mxu0 %v1041
        %1580 = vmatpush.msra.mxu0 %v1025
        %1581 = vmatpush.msra.mxu0 %v1009
        %1582 = vmatpush.msra.mxu0 %v993
        %1583 = vmatpush.msra.mxu0 %v977
        %1584 = vmatpush.msra.mxu0 %v961
        %1585 = vmatpush.msra.mxu0 %v945
        %1586 = vmatpush.msra.mxu0 %v929
        %1587 = vmatmul.f32.gmra.mxu0 %v1186
        %v1588 = vpop.f32.mrf.mxu0
        %v1589 = vadd.f32 %v1569, %v1588
        %1590 = vdwg.mxu0
        %1591 = vmatpush.msra.mxu0 %v402
        %1592 = vmatpush.msra.mxu0 %v386
        %1593 = vmatpush.msra.mxu0 %v370
        %1594 = vmatpush.msra.mxu0 %v354
        %1595 = vmatpush.msra.mxu0 %v338
        %1596 = vmatpush.msra.mxu0 %v322
        %1597 = vmatpush.msra.mxu0 %v306
        %1598 = vmatpush.msra.mxu0 %v290
        %1599 = vmatpush.msra.mxu0 %v274
        %1600 = vmatpush.msra.mxu0 %v258
        %1601 = vmatpush.msra.mxu0 %v242
        %1602 = vmatpush.msra.mxu0 %v226
        %1603 = vmatpush.msra.mxu0 %v210
        %1604 = vmatpush.msra.mxu0 %v194
        %1605 = vmatpush.msra.mxu0 %v178
        %1606 = vmatpush.msra.mxu0 %v162
        %1607 = vmatmul.f32.gmra.mxu0 %v1183
        %v1608 = vpop.f32.mrf.mxu0
        %v1609 = vadd.f32 0.0, %v1608
        %1610 = vdwg.mxu0
        %1611 = vmatpush.msra.mxu0 %v658
        %1612 = vmatpush.msra.mxu0 %v642
        %1613 = vmatpush.msra.mxu0 %v626
        %1614 = vmatpush.msra.mxu0 %v610
        %1615 = vmatpush.msra.mxu0 %v594
        %1616 = vmatpush.msra.mxu0 %v578
        %1617 = vmatpush.msra.mxu0 %v562
        %1618 = vmatpush.msra.mxu0 %v546
        %1619 = vmatpush.msra.mxu0 %v530
        %1620 = vmatpush.msra.mxu0 %v514
        %1621 = vmatpush.msra.mxu0 %v498
        %1622 = vmatpush.msra.mxu0 %v482
        %1623 = vmatpush.msra.mxu0 %v466
        %1624 = vmatpush.msra.mxu0 %v450
        %1625 = vmatpush.msra.mxu0 %v434
        %1626 = vmatpush.msra.mxu0 %v418
        %1627 = vmatmul.f32.gmra.mxu0 %v1184
        %v1628 = vpop.f32.mrf.mxu0
        %v1629 = vadd.f32 %v1609, %v1628
        %1630 = vdwg.mxu0
        %1631 = vmatpush.msra.mxu0 %v914
        %1632 = vmatpush.msra.mxu0 %v898
        %1633 = vmatpush.msra.mxu0 %v882
        %1634 = vmatpush.msra.mxu0 %v866
        %1635 = vmatpush.msra.mxu0 %v850
        %1636 = vmatpush.msra.mxu0 %v834
        %1637 = vmatpush.msra.mxu0 %v818
        %1638 = vmatpush.msra.mxu0 %v802
        %1639 = vmatpush.msra.mxu0 %v786
        %1640 = vmatpush.msra.mxu0 %v770
        %1641 = vmatpush.msra.mxu0 %v754
        %1642 = vmatpush.msra.mxu0 %v738
        %1643 = vmatpush.msra.mxu0 %v722
        %1644 = vmatpush.msra.mxu0 %v706
        %1645 = vmatpush.msra.mxu0 %v690
        %1646 = vmatpush.msra.mxu0 %v674
        %1647 = vmatmul.f32.gmra.mxu0 %v1185
        %v1648 = vpop.f32.mrf.mxu0
        %v1649 = vadd.f32 %v1629, %v1648
        %1650 = vdwg.mxu0
        %1651 = vmatpush.msra.mxu0 %v1170
        %1652 = vmatpush.msra.mxu0 %v1154
        %1653 = vmatpush.msra.mxu0 %v1138
        %1654 = vmatpush.msra.mxu0 %v1122
        %1655 = vmatpush.msra.mxu0 %v1106
        %1656 = vmatpush.msra.mxu0 %v1090
        %1657 = vmatpush.msra.mxu0 %v1074
        %1658 = vmatpush.msra.mxu0 %v1058
        %1659 = vmatpush.msra.mxu0 %v1042
        %1660 = vmatpush.msra.mxu0 %v1026
        %1661 = vmatpush.msra.mxu0 %v1010
        %1662 = vmatpush.msra.mxu0 %v994
        %1663 = vmatpush.msra.mxu0 %v978
        %1664 = vmatpush.msra.mxu0 %v962
        %1665 = vmatpush.msra.mxu0 %v946
        %1666 = vmatpush.msra.mxu0 %v930
        %1667 = vmatmul.f32.gmra.mxu0 %v1186
        %v1668 = vpop.f32.mrf.mxu0
        %v1669 = vadd.f32 %v1649, %v1668
        %1670 = vdwg.mxu0
        %1671 = vmatpush.msra.mxu0 %v403
        %1672 = vmatpush.msra.mxu0 %v387
        %1673 = vmatpush.msra.mxu0 %v371
        %1674 = vmatpush.msra.mxu0 %v355
        %1675 = vmatpush.msra.mxu0 %v339
        %1676 = vmatpush.msra.mxu0 %v323
        %1677 = vmatpush.msra.mxu0 %v307
        %1678 = vmatpush.msra.mxu0 %v291
        %1679 = vmatpush.msra.mxu0 %v275
        %1680 = vmatpush.msra.mxu0 %v259
        %1681 = vmatpush.msra.mxu0 %v243
        %1682 = vmatpush.msra.mxu0 %v227
        %1683 = vmatpush.msra.mxu0 %v211
        %1684 = vmatpush.msra.mxu0 %v195
        %1685 = vmatpush.msra.mxu0 %v179
        %1686 = vmatpush.msra.mxu0 %v163
        %1687 = vmatmul.f32.gmra.mxu0 %v1183
        %v1688 = vpop.f32.mrf.mxu0
        %v1689 = vadd.f32 0.0, %v1688
        %1690 = vdwg.mxu0
        %1691 = vmatpush.msra.mxu0 %v659
        %1692 = vmatpush.msra.mxu0 %v643
        %1693 = vmatpush.msra.mxu0 %v627
        %1694 = vmatpush.msra.mxu0 %v611
        %1695 = vmatpush.msra.mxu0 %v595
        %1696 = vmatpush.msra.mxu0 %v579
        %1697 = vmatpush.msra.mxu0 %v563
        %1698 = vmatpush.msra.mxu0 %v547
        %1699 = vmatpush.msra.mxu0 %v531
        %1700 = vmatpush.msra.mxu0 %v515
        %1701 = vmatpush.msra.mxu0 %v499
        %1702 = vmatpush.msra.mxu0 %v483
        %1703 = vmatpush.msra.mxu0 %v467
        %1704 = vmatpush.msra.mxu0 %v451
        %1705 = vmatpush.msra.mxu0 %v435
        %1706 = vmatpush.msra.mxu0 %v419
        %1707 = vmatmul.f32.gmra.mxu0 %v1184
        %v1708 = vpop.f32.mrf.mxu0
        %v1709 = vadd.f32 %v1689, %v1708
        %1710 = vdwg.mxu0
        %1711 = vmatpush.msra.mxu0 %v915
        %1712 = vmatpush.msra.mxu0 %v899
        %1713 = vmatpush.msra.mxu0 %v883
        %1714 = vmatpush.msra.mxu0 %v867
        %1715 = vmatpush.msra.mxu0 %v851
        %1716 = vmatpush.msra.mxu0 %v835
        %1717 = vmatpush.msra.mxu0 %v819
        %1718 = vmatpush.msra.mxu0 %v803
        %1719 = vmatpush.msra.mxu0 %v787
        %1720 = vmatpush.msra.mxu0 %v771
        %1721 = vmatpush.msra.mxu0 %v755
        %1722 = vmatpush.msra.mxu0 %v739
        %1723 = vmatpush.msra.mxu0 %v723
        %1724 = vmatpush.msra.mxu0 %v707
        %1725 = vmatpush.msra.mxu0 %v691
        %1726 = vmatpush.msra.mxu0 %v675
        %1727 = vmatmul.f32.gmra.mxu0 %v1185
        %v1728 = vpop.f32.mrf.mxu0
        %v1729 = vadd.f32 %v1709, %v1728
        %1730 = vdwg.mxu0
        %1731 = vmatpush.msra.mxu0 %v1171
        %1732 = vmatpush.msra.mxu0 %v1155
        %1733 = vmatpush.msra.mxu0 %v1139
        %1734 = vmatpush.msra.mxu0 %v1123
        %1735 = vmatpush.msra.mxu0 %v1107
        %1736 = vmatpush.msra.mxu0 %v1091
        %1737 = vmatpush.msra.mxu0 %v1075
        %1738 = vmatpush.msra.mxu0 %v1059
        %1739 = vmatpush.msra.mxu0 %v1043
        %1740 = vmatpush.msra.mxu0 %v1027
        %1741 = vmatpush.msra.mxu0 %v1011
        %1742 = vmatpush.msra.mxu0 %v995
        %1743 = vmatpush.msra.mxu0 %v979
        %1744 = vmatpush.msra.mxu0 %v963
        %1745 = vmatpush.msra.mxu0 %v947
        %1746 = vmatpush.msra.mxu0 %v931
        %1747 = vmatmul.f32.gmra.mxu0 %v1186
        %v1748 = vpop.f32.mrf.mxu0
        %v1749 = vadd.f32 %v1729, %v1748
        %1750 = vdwg.mxu0
        %1751 = vmatpush.msra.mxu0 %v404
        %1752 = vmatpush.msra.mxu0 %v388
        %1753 = vmatpush.msra.mxu0 %v372
        %1754 = vmatpush.msra.mxu0 %v356
        %1755 = vmatpush.msra.mxu0 %v340
        %1756 = vmatpush.msra.mxu0 %v324
        %1757 = vmatpush.msra.mxu0 %v308
        %1758 = vmatpush.msra.mxu0 %v292
        %1759 = vmatpush.msra.mxu0 %v276
        %1760 = vmatpush.msra.mxu0 %v260
        %1761 = vmatpush.msra.mxu0 %v244
        %1762 = vmatpush.msra.mxu0 %v228
        %1763 = vmatpush.msra.mxu0 %v212
        %1764 = vmatpush.msra.mxu0 %v196
        %1765 = vmatpush.msra.mxu0 %v180
        %1766 = vmatpush.msra.mxu0 %v164
        %1767 = vmatmul.f32.gmra.mxu0 %v1183
        %v1768 = vpop.f32.mrf.mxu0
        %v1769 = vadd.f32 0.0, %v1768
        %1770 = vdwg.mxu0
        %1771 = vmatpush.msra.mxu0 %v660
        %1772 = vmatpush.msra.mxu0 %v644
        %1773 = vmatpush.msra.mxu0 %v628
        %1774 = vmatpush.msra.mxu0 %v612
        %1775 = vmatpush.msra.mxu0 %v596
        %1776 = vmatpush.msra.mxu0 %v580
        %1777 = vmatpush.msra.mxu0 %v564
        %1778 = vmatpush.msra.mxu0 %v548
        %1779 = vmatpush.msra.mxu0 %v532
        %1780 = vmatpush.msra.mxu0 %v516
        %1781 = vmatpush.msra.mxu0 %v500
        %1782 = vmatpush.msra.mxu0 %v484
        %1783 = vmatpush.msra.mxu0 %v468
        %1784 = vmatpush.msra.mxu0 %v452
        %1785 = vmatpush.msra.mxu0 %v436
        %1786 = vmatpush.msra.mxu0 %v420
        %1787 = vmatmul.f32.gmra.mxu0 %v1184
        %v1788 = vpop.f32.mrf.mxu0
        %v1789 = vadd.f32 %v1769, %v1788
        %1790 = vdwg.mxu0
        %1791 = vmatpush.msra.mxu0 %v916
        %1792 = vmatpush.msra.mxu0 %v900
        %1793 = vmatpush.msra.mxu0 %v884
        %1794 = vmatpush.msra.mxu0 %v868
        %1795 = vmatpush.msra.mxu0 %v852
        %1796 = vmatpush.msra.mxu0 %v836
        %1797 = vmatpush.msra.mxu0 %v820
        %1798 = vmatpush.msra.mxu0 %v804
        %1799 = vmatpush.msra.mxu0 %v788
        %1800 = vmatpush.msra.mxu0 %v772
        %1801 = vmatpush.msra.mxu0 %v756
        %1802 = vmatpush.msra.mxu0 %v740
        %1803 = vmatpush.msra.mxu0 %v724
        %1804 = vmatpush.msra.mxu0 %v708
        %1805 = vmatpush.msra.mxu0 %v692
        %1806 = vmatpush.msra.mxu0 %v676
        %1807 = vmatmul.f32.gmra.mxu0 %v1185
        %v1808 = vpop.f32.mrf.mxu0
        %v1809 = vadd.f32 %v1789, %v1808
        %1810 = vdwg.mxu0
        %1811 = vmatpush.msra.mxu0 %v1172
        %1812 = vmatpush.msra.mxu0 %v1156
        %1813 = vmatpush.msra.mxu0 %v1140
        %1814 = vmatpush.msra.mxu0 %v1124
        %1815 = vmatpush.msra.mxu0 %v1108
        %1816 = vmatpush.msra.mxu0 %v1092
        %1817 = vmatpush.msra.mxu0 %v1076
        %1818 = vmatpush.msra.mxu0 %v1060
        %1819 = vmatpush.msra.mxu0 %v1044
        %1820 = vmatpush.msra.mxu0 %v1028
        %1821 = vmatpush.msra.mxu0 %v1012
        %1822 = vmatpush.msra.mxu0 %v996
        %1823 = vmatpush.msra.mxu0 %v980
        %1824 = vmatpush.msra.mxu0 %v964
        %1825 = vmatpush.msra.mxu0 %v948
        %1826 = vmatpush.msra.mxu0 %v932
        %1827 = vmatmul.f32.gmra.mxu0 %v1186
        %v1828 = vpop.f32.mrf.mxu0
        %v1829 = vadd.f32 %v1809, %v1828
        %1830 = vdwg.mxu0
        %1831 = vmatpush.msra.mxu0 %v405
        %1832 = vmatpush.msra.mxu0 %v389
        %1833 = vmatpush.msra.mxu0 %v373
        %1834 = vmatpush.msra.mxu0 %v357
        %1835 = vmatpush.msra.mxu0 %v341
        %1836 = vmatpush.msra.mxu0 %v325
        %1837 = vmatpush.msra.mxu0 %v309
        %1838 = vmatpush.msra.mxu0 %v293
        %1839 = vmatpush.msra.mxu0 %v277
        %1840 = vmatpush.msra.mxu0 %v261
        %1841 = vmatpush.msra.mxu0 %v245
        %1842 = vmatpush.msra.mxu0 %v229
        %1843 = vmatpush.msra.mxu0 %v213
        %1844 = vmatpush.msra.mxu0 %v197
        %1845 = vmatpush.msra.mxu0 %v181
        %1846 = vmatpush.msra.mxu0 %v165
        %1847 = vmatmul.f32.gmra.mxu0 %v1183
        %v1848 = vpop.f32.mrf.mxu0
        %v1849 = vadd.f32 0.0, %v1848
        %1850 = vdwg.mxu0
        %1851 = vmatpush.msra.mxu0 %v661
        %1852 = vmatpush.msra.mxu0 %v645
        %1853 = vmatpush.msra.mxu0 %v629
        %1854 = vmatpush.msra.mxu0 %v613
        %1855 = vmatpush.msra.mxu0 %v597
        %1856 = vmatpush.msra.mxu0 %v581
        %1857 = vmatpush.msra.mxu0 %v565
        %1858 = vmatpush.msra.mxu0 %v549
        %1859 = vmatpush.msra.mxu0 %v533
        %1860 = vmatpush.msra.mxu0 %v517
        %1861 = vmatpush.msra.mxu0 %v501
        %1862 = vmatpush.msra.mxu0 %v485
        %1863 = vmatpush.msra.mxu0 %v469
        %1864 = vmatpush.msra.mxu0 %v453
        %1865 = vmatpush.msra.mxu0 %v437
        %1866 = vmatpush.msra.mxu0 %v421
        %1867 = vmatmul.f32.gmra.mxu0 %v1184
        %v1868 = vpop.f32.mrf.mxu0
        %v1869 = vadd.f32 %v1849, %v1868
        %1870 = vdwg.mxu0
        %1871 = vmatpush.msra.mxu0 %v917
        %1872 = vmatpush.msra.mxu0 %v901
        %1873 = vmatpush.msra.mxu0 %v885
        %1874 = vmatpush.msra.mxu0 %v869
        %1875 = vmatpush.msra.mxu0 %v853
        %1876 = vmatpush.msra.mxu0 %v837
        %1877 = vmatpush.msra.mxu0 %v821
        %1878 = vmatpush.msra.mxu0 %v805
        %1879 = vmatpush.msra.mxu0 %v789
        %1880 = vmatpush.msra.mxu0 %v773
        %1881 = vmatpush.msra.mxu0 %v757
        %1882 = vmatpush.msra.mxu0 %v741
        %1883 = vmatpush.msra.mxu0 %v725
        %1884 = vmatpush.msra.mxu0 %v709
        %1885 = vmatpush.msra.mxu0 %v693
        %1886 = vmatpush.msra.mxu0 %v677
        %1887 = vmatmul.f32.gmra.mxu0 %v1185
        %v1888 = vpop.f32.mrf.mxu0
        %v1889 = vadd.f32 %v1869, %v1888
        %1890 = vdwg.mxu0
        %1891 = vmatpush.msra.mxu0 %v1173
        %1892 = vmatpush.msra.mxu0 %v1157
        %1893 = vmatpush.msra.mxu0 %v1141
        %1894 = vmatpush.msra.mxu0 %v1125
        %1895 = vmatpush.msra.mxu0 %v1109
        %1896 = vmatpush.msra.mxu0 %v1093
        %1897 = vmatpush.msra.mxu0 %v1077
        %1898 = vmatpush.msra.mxu0 %v1061
        %1899 = vmatpush.msra.mxu0 %v1045
        %1900 = vmatpush.msra.mxu0 %v1029
        %1901 = vmatpush.msra.mxu0 %v1013
        %1902 = vmatpush.msra.mxu0 %v997
        %1903 = vmatpush.msra.mxu0 %v981
        %1904 = vmatpush.msra.mxu0 %v965
        %1905 = vmatpush.msra.mxu0 %v949
        %1906 = vmatpush.msra.mxu0 %v933
        %1907 = vmatmul.f32.gmra.mxu0 %v1186
        %v1908 = vpop.f32.mrf.mxu0
        %v1909 = vadd.f32 %v1889, %v1908
        %1910 = vdwg.mxu0
        %1911 = vmatpush.msra.mxu0 %v406
        %1912 = vmatpush.msra.mxu0 %v390
        %1913 = vmatpush.msra.mxu0 %v374
        %1914 = vmatpush.msra.mxu0 %v358
        %1915 = vmatpush.msra.mxu0 %v342
        %1916 = vmatpush.msra.mxu0 %v326
        %1917 = vmatpush.msra.mxu0 %v310
        %1918 = vmatpush.msra.mxu0 %v294
        %1919 = vmatpush.msra.mxu0 %v278
        %1920 = vmatpush.msra.mxu0 %v262
        %1921 = vmatpush.msra.mxu0 %v246
        %1922 = vmatpush.msra.mxu0 %v230
        %1923 = vmatpush.msra.mxu0 %v214
        %1924 = vmatpush.msra.mxu0 %v198
        %1925 = vmatpush.msra.mxu0 %v182
        %1926 = vmatpush.msra.mxu0 %v166
        %1927 = vmatmul.f32.gmra.mxu0 %v1183
        %v1928 = vpop.f32.mrf.mxu0
        %v1929 = vadd.f32 0.0, %v1928
        %1930 = vdwg.mxu0
        %1931 = vmatpush.msra.mxu0 %v662
        %1932 = vmatpush.msra.mxu0 %v646
        %1933 = vmatpush.msra.mxu0 %v630
        %1934 = vmatpush.msra.mxu0 %v614
        %1935 = vmatpush.msra.mxu0 %v598
        %1936 = vmatpush.msra.mxu0 %v582
        %1937 = vmatpush.msra.mxu0 %v566
        %1938 = vmatpush.msra.mxu0 %v550
        %1939 = vmatpush.msra.mxu0 %v534
        %1940 = vmatpush.msra.mxu0 %v518
        %1941 = vmatpush.msra.mxu0 %v502
        %1942 = vmatpush.msra.mxu0 %v486
        %1943 = vmatpush.msra.mxu0 %v470
        %1944 = vmatpush.msra.mxu0 %v454
        %1945 = vmatpush.msra.mxu0 %v438
        %1946 = vmatpush.msra.mxu0 %v422
        %1947 = vmatmul.f32.gmra.mxu0 %v1184
        %v1948 = vpop.f32.mrf.mxu0
        %v1949 = vadd.f32 %v1929, %v1948
        %1950 = vdwg.mxu0
        %1951 = vmatpush.msra.mxu0 %v918
        %1952 = vmatpush.msra.mxu0 %v902
        %1953 = vmatpush.msra.mxu0 %v886
        %1954 = vmatpush.msra.mxu0 %v870
        %1955 = vmatpush.msra.mxu0 %v854
        %1956 = vmatpush.msra.mxu0 %v838
        %1957 = vmatpush.msra.mxu0 %v822
        %1958 = vmatpush.msra.mxu0 %v806
        %1959 = vmatpush.msra.mxu0 %v790
        %1960 = vmatpush.msra.mxu0 %v774
        %1961 = vmatpush.msra.mxu0 %v758
        %1962 = vmatpush.msra.mxu0 %v742
        %1963 = vmatpush.msra.mxu0 %v726
        %1964 = vmatpush.msra.mxu0 %v710
        %1965 = vmatpush.msra.mxu0 %v694
        %1966 = vmatpush.msra.mxu0 %v678
        %1967 = vmatmul.f32.gmra.mxu0 %v1185
        %v1968 = vpop.f32.mrf.mxu0
        %v1969 = vadd.f32 %v1949, %v1968
        %1970 = vdwg.mxu0
        %1971 = vmatpush.msra.mxu0 %v1174
        %1972 = vmatpush.msra.mxu0 %v1158
        %1973 = vmatpush.msra.mxu0 %v1142
        %1974 = vmatpush.msra.mxu0 %v1126
        %1975 = vmatpush.msra.mxu0 %v1110
        %1976 = vmatpush.msra.mxu0 %v1094
        %1977 = vmatpush.msra.mxu0 %v1078
        %1978 = vmatpush.msra.mxu0 %v1062
        %1979 = vmatpush.msra.mxu0 %v1046
        %1980 = vmatpush.msra.mxu0 %v1030
        %1981 = vmatpush.msra.mxu0 %v1014
        %1982 = vmatpush.msra.mxu0 %v998
        %1983 = vmatpush.msra.mxu0 %v982
        %1984 = vmatpush.msra.mxu0 %v966
        %1985 = vmatpush.msra.mxu0 %v950
        %1986 = vmatpush.msra.mxu0 %v934
        %1987 = vmatmul.f32.gmra.mxu0 %v1186
        %v1988 = vpop.f32.mrf.mxu0
        %v1989 = vadd.f32 %v1969, %v1988
        %1990 = vdwg.mxu0
        %1991 = vmatpush.msra.mxu0 %v407
        %1992 = vmatpush.msra.mxu0 %v391
        %1993 = vmatpush.msra.mxu0 %v375
        %1994 = vmatpush.msra.mxu0 %v359
        %1995 = vmatpush.msra.mxu0 %v343
        %1996 = vmatpush.msra.mxu0 %v327
        %1997 = vmatpush.msra.mxu0 %v311
        %1998 = vmatpush.msra.mxu0 %v295
        %1999 = vmatpush.msra.mxu0 %v279
        %2000 = vmatpush.msra.mxu0 %v263
        %2001 = vmatpush.msra.mxu0 %v247
        %2002 = vmatpush.msra.mxu0 %v231
        %2003 = vmatpush.msra.mxu0 %v215
        %2004 = vmatpush.msra.mxu0 %v199
        %2005 = vmatpush.msra.mxu0 %v183
        %2006 = vmatpush.msra.mxu0 %v167
        %2007 = vmatmul.f32.gmra.mxu0 %v1183
        %v2008 = vpop.f32.mrf.mxu0
        %v2009 = vadd.f32 0.0, %v2008
        %2010 = vdwg.mxu0
        %2011 = vmatpush.msra.mxu0 %v663
        %2012 = vmatpush.msra.mxu0 %v647
        %2013 = vmatpush.msra.mxu0 %v631
        %2014 = vmatpush.msra.mxu0 %v615
        %2015 = vmatpush.msra.mxu0 %v599
        %2016 = vmatpush.msra.mxu0 %v583
        %2017 = vmatpush.msra.mxu0 %v567
        %2018 = vmatpush.msra.mxu0 %v551
        %2019 = vmatpush.msra.mxu0 %v535
        %2020 = vmatpush.msra.mxu0 %v519
        %2021 = vmatpush.msra.mxu0 %v503
        %2022 = vmatpush.msra.mxu0 %v487
        %2023 = vmatpush.msra.mxu0 %v471
        %2024 = vmatpush.msra.mxu0 %v455
        %2025 = vmatpush.msra.mxu0 %v439
        %2026 = vmatpush.msra.mxu0 %v423
        %2027 = vmatmul.f32.gmra.mxu0 %v1184
        %v2028 = vpop.f32.mrf.mxu0
        %v2029 = vadd.f32 %v2009, %v2028
        %2030 = vdwg.mxu0
        %2031 = vmatpush.msra.mxu0 %v919
        %2032 = vmatpush.msra.mxu0 %v903
        %2033 = vmatpush.msra.mxu0 %v887
        %2034 = vmatpush.msra.mxu0 %v871
        %2035 = vmatpush.msra.mxu0 %v855
        %2036 = vmatpush.msra.mxu0 %v839
        %2037 = vmatpush.msra.mxu0 %v823
        %2038 = vmatpush.msra.mxu0 %v807
        %2039 = vmatpush.msra.mxu0 %v791
        %2040 = vmatpush.msra.mxu0 %v775
        %2041 = vmatpush.msra.mxu0 %v759
        %2042 = vmatpush.msra.mxu0 %v743
        %2043 = vmatpush.msra.mxu0 %v727
        %2044 = vmatpush.msra.mxu0 %v711
        %2045 = vmatpush.msra.mxu0 %v695
        %2046 = vmatpush.msra.mxu0 %v679
        %2047 = vmatmul.f32.gmra.mxu0 %v1185
        %v2048 = vpop.f32.mrf.mxu0
        %v2049 = vadd.f32 %v2029, %v2048
        %2050 = vdwg.mxu0
        %2051 = vmatpush.msra.mxu0 %v1175
        %2052 = vmatpush.msra.mxu0 %v1159
        %2053 = vmatpush.msra.mxu0 %v1143
        %2054 = vmatpush.msra.mxu0 %v1127
        %2055 = vmatpush.msra.mxu0 %v1111
        %2056 = vmatpush.msra.mxu0 %v1095
        %2057 = vmatpush.msra.mxu0 %v1079
        %2058 = vmatpush.msra.mxu0 %v1063
        %2059 = vmatpush.msra.mxu0 %v1047
        %2060 = vmatpush.msra.mxu0 %v1031
        %2061 = vmatpush.msra.mxu0 %v1015
        %2062 = vmatpush.msra.mxu0 %v999
        %2063 = vmatpush.msra.mxu0 %v983
        %2064 = vmatpush.msra.mxu0 %v967
        %2065 = vmatpush.msra.mxu0 %v951
        %2066 = vmatpush.msra.mxu0 %v935
        %2067 = vmatmul.f32.gmra.mxu0 %v1186
        %v2068 = vpop.f32.mrf.mxu0
        %v2069 = vadd.f32 %v2049, %v2068
        %2070 = vdwg.mxu0
        %2071 = vmatpush.msra.mxu0 %v408
        %2072 = vmatpush.msra.mxu0 %v392
        %2073 = vmatpush.msra.mxu0 %v376
        %2074 = vmatpush.msra.mxu0 %v360
        %2075 = vmatpush.msra.mxu0 %v344
        %2076 = vmatpush.msra.mxu0 %v328
        %2077 = vmatpush.msra.mxu0 %v312
        %2078 = vmatpush.msra.mxu0 %v296
        %2079 = vmatpush.msra.mxu0 %v280
        %2080 = vmatpush.msra.mxu0 %v264
        %2081 = vmatpush.msra.mxu0 %v248
        %2082 = vmatpush.msra.mxu0 %v232
        %2083 = vmatpush.msra.mxu0 %v216
        %2084 = vmatpush.msra.mxu0 %v200
        %2085 = vmatpush.msra.mxu0 %v184
        %2086 = vmatpush.msra.mxu0 %v168
        %2087 = vmatmul.f32.gmra.mxu0 %v1183
        %v2088 = vpop.f32.mrf.mxu0
        %v2089 = vadd.f32 0.0, %v2088
        %2090 = vdwg.mxu0
        %2091 = vmatpush.msra.mxu0 %v664
        %2092 = vmatpush.msra.mxu0 %v648
        %2093 = vmatpush.msra.mxu0 %v632
        %2094 = vmatpush.msra.mxu0 %v616
        %2095 = vmatpush.msra.mxu0 %v600
        %2096 = vmatpush.msra.mxu0 %v584
        %2097 = vmatpush.msra.mxu0 %v568
        %2098 = vmatpush.msra.mxu0 %v552
        %2099 = vmatpush.msra.mxu0 %v536
        %2100 = vmatpush.msra.mxu0 %v520
        %2101 = vmatpush.msra.mxu0 %v504
        %2102 = vmatpush.msra.mxu0 %v488
        %2103 = vmatpush.msra.mxu0 %v472
        %2104 = vmatpush.msra.mxu0 %v456
        %2105 = vmatpush.msra.mxu0 %v440
        %2106 = vmatpush.msra.mxu0 %v424
        %2107 = vmatmul.f32.gmra.mxu0 %v1184
        %v2108 = vpop.f32.mrf.mxu0
        %v2109 = vadd.f32 %v2089, %v2108
        %2110 = vdwg.mxu0
        %2111 = vmatpush.msra.mxu0 %v920
        %2112 = vmatpush.msra.mxu0 %v904
        %2113 = vmatpush.msra.mxu0 %v888
        %2114 = vmatpush.msra.mxu0 %v872
        %2115 = vmatpush.msra.mxu0 %v856
        %2116 = vmatpush.msra.mxu0 %v840
        %2117 = vmatpush.msra.mxu0 %v824
        %2118 = vmatpush.msra.mxu0 %v808
        %2119 = vmatpush.msra.mxu0 %v792
        %2120 = vmatpush.msra.mxu0 %v776
        %2121 = vmatpush.msra.mxu0 %v760
        %2122 = vmatpush.msra.mxu0 %v744
        %2123 = vmatpush.msra.mxu0 %v728
        %2124 = vmatpush.msra.mxu0 %v712
        %2125 = vmatpush.msra.mxu0 %v696
        %2126 = vmatpush.msra.mxu0 %v680
        %2127 = vmatmul.f32.gmra.mxu0 %v1185
        %v2128 = vpop.f32.mrf.mxu0
        %v2129 = vadd.f32 %v2109, %v2128
        %2130 = vdwg.mxu0
        %2131 = vmatpush.msra.mxu0 %v1176
        %2132 = vmatpush.msra.mxu0 %v1160
        %2133 = vmatpush.msra.mxu0 %v1144
        %2134 = vmatpush.msra.mxu0 %v1128
        %2135 = vmatpush.msra.mxu0 %v1112
        %2136 = vmatpush.msra.mxu0 %v1096
        %2137 = vmatpush.msra.mxu0 %v1080
        %2138 = vmatpush.msra.mxu0 %v1064
        %2139 = vmatpush.msra.mxu0 %v1048
        %2140 = vmatpush.msra.mxu0 %v1032
        %2141 = vmatpush.msra.mxu0 %v1016
        %2142 = vmatpush.msra.mxu0 %v1000
        %2143 = vmatpush.msra.mxu0 %v984
        %2144 = vmatpush.msra.mxu0 %v968
        %2145 = vmatpush.msra.mxu0 %v952
        %2146 = vmatpush.msra.mxu0 %v936
        %2147 = vmatmul.f32.gmra.mxu0 %v1186
        %v2148 = vpop.f32.mrf.mxu0
        %v2149 = vadd.f32 %v2129, %v2148
        %2150 = vdwg.mxu0
        %2151 = vmatpush.msra.mxu0 %v409
        %2152 = vmatpush.msra.mxu0 %v393
        %2153 = vmatpush.msra.mxu0 %v377
        %2154 = vmatpush.msra.mxu0 %v361
        %2155 = vmatpush.msra.mxu0 %v345
        %2156 = vmatpush.msra.mxu0 %v329
        %2157 = vmatpush.msra.mxu0 %v313
        %2158 = vmatpush.msra.mxu0 %v297
        %2159 = vmatpush.msra.mxu0 %v281
        %2160 = vmatpush.msra.mxu0 %v265
        %2161 = vmatpush.msra.mxu0 %v249
        %2162 = vmatpush.msra.mxu0 %v233
        %2163 = vmatpush.msra.mxu0 %v217
        %2164 = vmatpush.msra.mxu0 %v201
        %2165 = vmatpush.msra.mxu0 %v185
        %2166 = vmatpush.msra.mxu0 %v169
        %2167 = vmatmul.f32.gmra.mxu0 %v1183
        %v2168 = vpop.f32.mrf.mxu0
        %v2169 = vadd.f32 0.0, %v2168
        %2170 = vdwg.mxu0
        %2171 = vmatpush.msra.mxu0 %v665
        %2172 = vmatpush.msra.mxu0 %v649
        %2173 = vmatpush.msra.mxu0 %v633
        %2174 = vmatpush.msra.mxu0 %v617
        %2175 = vmatpush.msra.mxu0 %v601
        %2176 = vmatpush.msra.mxu0 %v585
        %2177 = vmatpush.msra.mxu0 %v569
        %2178 = vmatpush.msra.mxu0 %v553
        %2179 = vmatpush.msra.mxu0 %v537
        %2180 = vmatpush.msra.mxu0 %v521
        %2181 = vmatpush.msra.mxu0 %v505
        %2182 = vmatpush.msra.mxu0 %v489
        %2183 = vmatpush.msra.mxu0 %v473
        %2184 = vmatpush.msra.mxu0 %v457
        %2185 = vmatpush.msra.mxu0 %v441
        %2186 = vmatpush.msra.mxu0 %v425
        %2187 = vmatmul.f32.gmra.mxu0 %v1184
        %v2188 = vpop.f32.mrf.mxu0
        %v2189 = vadd.f32 %v2169, %v2188
        %2190 = vdwg.mxu0
        %2191 = vmatpush.msra.mxu0 %v921
        %2192 = vmatpush.msra.mxu0 %v905
        %2193 = vmatpush.msra.mxu0 %v889
        %2194 = vmatpush.msra.mxu0 %v873
        %2195 = vmatpush.msra.mxu0 %v857
        %2196 = vmatpush.msra.mxu0 %v841
        %2197 = vmatpush.msra.mxu0 %v825
        %2198 = vmatpush.msra.mxu0 %v809
        %2199 = vmatpush.msra.mxu0 %v793
        %2200 = vmatpush.msra.mxu0 %v777
        %2201 = vmatpush.msra.mxu0 %v761
        %2202 = vmatpush.msra.mxu0 %v745
        %2203 = vmatpush.msra.mxu0 %v729
        %2204 = vmatpush.msra.mxu0 %v713
        %2205 = vmatpush.msra.mxu0 %v697
        %2206 = vmatpush.msra.mxu0 %v681
        %2207 = vmatmul.f32.gmra.mxu0 %v1185
        %v2208 = vpop.f32.mrf.mxu0
        %v2209 = vadd.f32 %v2189, %v2208
        %2210 = vdwg.mxu0
        %2211 = vmatpush.msra.mxu0 %v1177
        %2212 = vmatpush.msra.mxu0 %v1161
        %2213 = vmatpush.msra.mxu0 %v1145
        %2214 = vmatpush.msra.mxu0 %v1129
        %2215 = vmatpush.msra.mxu0 %v1113
        %2216 = vmatpush.msra.mxu0 %v1097
        %2217 = vmatpush.msra.mxu0 %v1081
        %2218 = vmatpush.msra.mxu0 %v1065
        %2219 = vmatpush.msra.mxu0 %v1049
        %2220 = vmatpush.msra.mxu0 %v1033
        %2221 = vmatpush.msra.mxu0 %v1017
        %2222 = vmatpush.msra.mxu0 %v1001
        %2223 = vmatpush.msra.mxu0 %v985
        %2224 = vmatpush.msra.mxu0 %v969
        %2225 = vmatpush.msra.mxu0 %v953
        %2226 = vmatpush.msra.mxu0 %v937
        %2227 = vmatmul.f32.gmra.mxu0 %v1186
        %v2228 = vpop.f32.mrf.mxu0
        %v2229 = vadd.f32 %v2209, %v2228
        %2230 = vdwg.mxu0
        %2231 = vmatpush.msra.mxu0 %v410
        %2232 = vmatpush.msra.mxu0 %v394
        %2233 = vmatpush.msra.mxu0 %v378
        %2234 = vmatpush.msra.mxu0 %v362
        %2235 = vmatpush.msra.mxu0 %v346
        %2236 = vmatpush.msra.mxu0 %v330
        %2237 = vmatpush.msra.mxu0 %v314
        %2238 = vmatpush.msra.mxu0 %v298
        %2239 = vmatpush.msra.mxu0 %v282
        %2240 = vmatpush.msra.mxu0 %v266
        %2241 = vmatpush.msra.mxu0 %v250
        %2242 = vmatpush.msra.mxu0 %v234
        %2243 = vmatpush.msra.mxu0 %v218
        %2244 = vmatpush.msra.mxu0 %v202
        %2245 = vmatpush.msra.mxu0 %v186
        %2246 = vmatpush.msra.mxu0 %v170
        %2247 = vmatmul.f32.gmra.mxu0 %v1183
        %v2248 = vpop.f32.mrf.mxu0
        %v2249 = vadd.f32 0.0, %v2248
        %2250 = vdwg.mxu0
        %2251 = vmatpush.msra.mxu0 %v666
        %2252 = vmatpush.msra.mxu0 %v650
        %2253 = vmatpush.msra.mxu0 %v634
        %2254 = vmatpush.msra.mxu0 %v618
        %2255 = vmatpush.msra.mxu0 %v602
        %2256 = vmatpush.msra.mxu0 %v586
        %2257 = vmatpush.msra.mxu0 %v570
        %2258 = vmatpush.msra.mxu0 %v554
        %2259 = vmatpush.msra.mxu0 %v538
        %2260 = vmatpush.msra.mxu0 %v522
        %2261 = vmatpush.msra.mxu0 %v506
        %2262 = vmatpush.msra.mxu0 %v490
        %2263 = vmatpush.msra.mxu0 %v474
        %2264 = vmatpush.msra.mxu0 %v458
        %2265 = vmatpush.msra.mxu0 %v442
        %2266 = vmatpush.msra.mxu0 %v426
        %2267 = vmatmul.f32.gmra.mxu0 %v1184
        %v2268 = vpop.f32.mrf.mxu0
        %v2269 = vadd.f32 %v2249, %v2268
        %2270 = vdwg.mxu0
        %2271 = vmatpush.msra.mxu0 %v922
        %2272 = vmatpush.msra.mxu0 %v906
        %2273 = vmatpush.msra.mxu0 %v890
        %2274 = vmatpush.msra.mxu0 %v874
        %2275 = vmatpush.msra.mxu0 %v858
        %2276 = vmatpush.msra.mxu0 %v842
        %2277 = vmatpush.msra.mxu0 %v826
        %2278 = vmatpush.msra.mxu0 %v810
        %2279 = vmatpush.msra.mxu0 %v794
        %2280 = vmatpush.msra.mxu0 %v778
        %2281 = vmatpush.msra.mxu0 %v762
        %2282 = vmatpush.msra.mxu0 %v746
        %2283 = vmatpush.msra.mxu0 %v730
        %2284 = vmatpush.msra.mxu0 %v714
        %2285 = vmatpush.msra.mxu0 %v698
        %2286 = vmatpush.msra.mxu0 %v682
        %2287 = vmatmul.f32.gmra.mxu0 %v1185
        %v2288 = vpop.f32.mrf.mxu0
        %v2289 = vadd.f32 %v2269, %v2288
        %2290 = vdwg.mxu0
        %2291 = vmatpush.msra.mxu0 %v1178
        %2292 = vmatpush.msra.mxu0 %v1162
        %2293 = vmatpush.msra.mxu0 %v1146
        %2294 = vmatpush.msra.mxu0 %v1130
        %2295 = vmatpush.msra.mxu0 %v1114
        %2296 = vmatpush.msra.mxu0 %v1098
        %2297 = vmatpush.msra.mxu0 %v1082
        %2298 = vmatpush.msra.mxu0 %v1066
        %2299 = vmatpush.msra.mxu0 %v1050
        %2300 = vmatpush.msra.mxu0 %v1034
        %2301 = vmatpush.msra.mxu0 %v1018
        %2302 = vmatpush.msra.mxu0 %v1002
        %2303 = vmatpush.msra.mxu0 %v986
        %2304 = vmatpush.msra.mxu0 %v970
        %2305 = vmatpush.msra.mxu0 %v954
        %2306 = vmatpush.msra.mxu0 %v938
        %2307 = vmatmul.f32.gmra.mxu0 %v1186
        %v2308 = vpop.f32.mrf.mxu0
        %v2309 = vadd.f32 %v2289, %v2308
        %2310 = vdwg.mxu0
        %2311 = vmatpush.msra.mxu0 %v411
        %2312 = vmatpush.msra.mxu0 %v395
        %2313 = vmatpush.msra.mxu0 %v379
        %2314 = vmatpush.msra.mxu0 %v363
        %2315 = vmatpush.msra.mxu0 %v347
        %2316 = vmatpush.msra.mxu0 %v331
        %2317 = vmatpush.msra.mxu0 %v315
        %2318 = vmatpush.msra.mxu0 %v299
        %2319 = vmatpush.msra.mxu0 %v283
        %2320 = vmatpush.msra.mxu0 %v267
        %2321 = vmatpush.msra.mxu0 %v251
        %2322 = vmatpush.msra.mxu0 %v235
        %2323 = vmatpush.msra.mxu0 %v219
        %2324 = vmatpush.msra.mxu0 %v203
        %2325 = vmatpush.msra.mxu0 %v187
        %2326 = vmatpush.msra.mxu0 %v171
        %2327 = vmatmul.f32.gmra.mxu0 %v1183
        %v2328 = vpop.f32.mrf.mxu0
        %v2329 = vadd.f32 0.0, %v2328
        %2330 = vdwg.mxu0
        %2331 = vmatpush.msra.mxu0 %v667
        %2332 = vmatpush.msra.mxu0 %v651
        %2333 = vmatpush.msra.mxu0 %v635
        %2334 = vmatpush.msra.mxu0 %v619
        %2335 = vmatpush.msra.mxu0 %v603
        %2336 = vmatpush.msra.mxu0 %v587
        %2337 = vmatpush.msra.mxu0 %v571
        %2338 = vmatpush.msra.mxu0 %v555
        %2339 = vmatpush.msra.mxu0 %v539
        %2340 = vmatpush.msra.mxu0 %v523
        %2341 = vmatpush.msra.mxu0 %v507
        %2342 = vmatpush.msra.mxu0 %v491
        %2343 = vmatpush.msra.mxu0 %v475
        %2344 = vmatpush.msra.mxu0 %v459
        %2345 = vmatpush.msra.mxu0 %v443
        %2346 = vmatpush.msra.mxu0 %v427
        %2347 = vmatmul.f32.gmra.mxu0 %v1184
        %v2348 = vpop.f32.mrf.mxu0
        %v2349 = vadd.f32 %v2329, %v2348
        %2350 = vdwg.mxu0
        %2351 = vmatpush.msra.mxu0 %v923
        %2352 = vmatpush.msra.mxu0 %v907
        %2353 = vmatpush.msra.mxu0 %v891
        %2354 = vmatpush.msra.mxu0 %v875
        %2355 = vmatpush.msra.mxu0 %v859
        %2356 = vmatpush.msra.mxu0 %v843
        %2357 = vmatpush.msra.mxu0 %v827
        %2358 = vmatpush.msra.mxu0 %v811
        %2359 = vmatpush.msra.mxu0 %v795
        %2360 = vmatpush.msra.mxu0 %v779
        %2361 = vmatpush.msra.mxu0 %v763
        %2362 = vmatpush.msra.mxu0 %v747
        %2363 = vmatpush.msra.mxu0 %v731
        %2364 = vmatpush.msra.mxu0 %v715
        %2365 = vmatpush.msra.mxu0 %v699
        %2366 = vmatpush.msra.mxu0 %v683
        %2367 = vmatmul.f32.gmra.mxu0 %v1185
        %v2368 = vpop.f32.mrf.mxu0
        %v2369 = vadd.f32 %v2349, %v2368
        %2370 = vdwg.mxu0
        %2371 = vmatpush.msra.mxu0 %v1179
        %2372 = vmatpush.msra.mxu0 %v1163
        %2373 = vmatpush.msra.mxu0 %v1147
        %2374 = vmatpush.msra.mxu0 %v1131
        %2375 = vmatpush.msra.mxu0 %v1115
        %2376 = vmatpush.msra.mxu0 %v1099
        %2377 = vmatpush.msra.mxu0 %v1083
        %2378 = vmatpush.msra.mxu0 %v1067
        %2379 = vmatpush.msra.mxu0 %v1051
        %2380 = vmatpush.msra.mxu0 %v1035
        %2381 = vmatpush.msra.mxu0 %v1019
        %2382 = vmatpush.msra.mxu0 %v1003
        %2383 = vmatpush.msra.mxu0 %v987
        %2384 = vmatpush.msra.mxu0 %v971
        %2385 = vmatpush.msra.mxu0 %v955
        %2386 = vmatpush.msra.mxu0 %v939
        %2387 = vmatmul.f32.gmra.mxu0 %v1186
        %v2388 = vpop.f32.mrf.mxu0
        %v2389 = vadd.f32 %v2369, %v2388
        %2390 = vdwg.mxu0
        %2391 = vmatpush.msra.mxu0 %v412
        %2392 = vmatpush.msra.mxu0 %v396
        %2393 = vmatpush.msra.mxu0 %v380
        %2394 = vmatpush.msra.mxu0 %v364
        %2395 = vmatpush.msra.mxu0 %v348
        %2396 = vmatpush.msra.mxu0 %v332
        %2397 = vmatpush.msra.mxu0 %v316
        %2398 = vmatpush.msra.mxu0 %v300
        %2399 = vmatpush.msra.mxu0 %v284
        %2400 = vmatpush.msra.mxu0 %v268
        %2401 = vmatpush.msra.mxu0 %v252
        %2402 = vmatpush.msra.mxu0 %v236
        %2403 = vmatpush.msra.mxu0 %v220
        %2404 = vmatpush.msra.mxu0 %v204
        %2405 = vmatpush.msra.mxu0 %v188
        %2406 = vmatpush.msra.mxu0 %v172
        %2407 = vmatmul.f32.gmra.mxu0 %v1183
        %v2408 = vpop.f32.mrf.mxu0
        %v2409 = vadd.f32 0.0, %v2408
        %2410 = vdwg.mxu0
        %2411 = vmatpush.msra.mxu0 %v668
        %2412 = vmatpush.msra.mxu0 %v652
        %2413 = vmatpush.msra.mxu0 %v636
        %2414 = vmatpush.msra.mxu0 %v620
        %2415 = vmatpush.msra.mxu0 %v604
        %2416 = vmatpush.msra.mxu0 %v588
        %2417 = vmatpush.msra.mxu0 %v572
        %2418 = vmatpush.msra.mxu0 %v556
        %2419 = vmatpush.msra.mxu0 %v540
        %2420 = vmatpush.msra.mxu0 %v524
        %2421 = vmatpush.msra.mxu0 %v508
        %2422 = vmatpush.msra.mxu0 %v492
        %2423 = vmatpush.msra.mxu0 %v476
        %2424 = vmatpush.msra.mxu0 %v460
        %2425 = vmatpush.msra.mxu0 %v444
        %2426 = vmatpush.msra.mxu0 %v428
        %2427 = vmatmul.f32.gmra.mxu0 %v1184
        %v2428 = vpop.f32.mrf.mxu0
        %v2429 = vadd.f32 %v2409, %v2428
        %2430 = vdwg.mxu0
        %2431 = vmatpush.msra.mxu0 %v924
        %2432 = vmatpush.msra.mxu0 %v908
        %2433 = vmatpush.msra.mxu0 %v892
        %2434 = vmatpush.msra.mxu0 %v876
        %2435 = vmatpush.msra.mxu0 %v860
        %2436 = vmatpush.msra.mxu0 %v844
        %2437 = vmatpush.msra.mxu0 %v828
        %2438 = vmatpush.msra.mxu0 %v812
        %2439 = vmatpush.msra.mxu0 %v796
        %2440 = vmatpush.msra.mxu0 %v780
        %2441 = vmatpush.msra.mxu0 %v764
        %2442 = vmatpush.msra.mxu0 %v748
        %2443 = vmatpush.msra.mxu0 %v732
        %2444 = vmatpush.msra.mxu0 %v716
        %2445 = vmatpush.msra.mxu0 %v700
        %2446 = vmatpush.msra.mxu0 %v684
        %2447 = vmatmul.f32.gmra.mxu0 %v1185
        %v2448 = vpop.f32.mrf.mxu0
        %v2449 = vadd.f32 %v2429, %v2448
        %2450 = vdwg.mxu0
        %2451 = vmatpush.msra.mxu0 %v1180
        %2452 = vmatpush.msra.mxu0 %v1164
        %2453 = vmatpush.msra.mxu0 %v1148
        %2454 = vmatpush.msra.mxu0 %v1132
        %2455 = vmatpush.msra.mxu0 %v1116
        %2456 = vmatpush.msra.mxu0 %v1100
        %2457 = vmatpush.msra.mxu0 %v1084
        %2458 = vmatpush.msra.mxu0 %v1068
        %2459 = vmatpush.msra.mxu0 %v1052
        %2460 = vmatpush.msra.mxu0 %v1036
        %2461 = vmatpush.msra.mxu0 %v1020
        %2462 = vmatpush.msra.mxu0 %v1004
        %2463 = vmatpush.msra.mxu0 %v988
        %2464 = vmatpush.msra.mxu0 %v972
        %2465 = vmatpush.msra.mxu0 %v956
        %2466 = vmatpush.msra.mxu0 %v940
        %2467 = vmatmul.f32.gmra.mxu0 %v1186
        %v2468 = vpop.f32.mrf.mxu0
        %v2469 = vadd.f32 %v2449, %v2468
        %2470 = vdwg.mxu0
        %v2487 = vrot.slane %v1349, 6
        %v2488 = vrot.slane %v1429, 4
        %v2489 = vrot.slane %v1509, 2
        %v2490 = vrot.slane %v1669, 6
        %v2491 = vrot.slane %v1749, 4
        %v2492 = vrot.slane %v1829, 2
        %v2493 = vrot.slane %v1989, 6
        %v2494 = vrot.slane %v2069, 4
        %v2495 = vrot.slane %v2149, 2
        %v2496 = vrot.slane %v2309, 6
        %v2497 = vrot.slane %v2389, 4
        %v2498 = vrot.slane %v2469, 2
        %vm2499 = vcmask 1041408
        %v2500 = vsel %vm2499, %v1269, %v2487
        %vm2501 = vcmask 1045508
        %v2502 = vsel %vm2501, %v2488, %v2489
        %vm2503 = vcmask 1043456
        %v2504 = vsel %vm2503, %v2500, %v2502
        %v2505 = vsel %vm2499, %v1589, %v2490
        %v2506 = vsel %vm2501, %v2491, %v2492
        %v2507 = vsel %vm2503, %v2505, %v2506
        %v2508 = vsel %vm2499, %v1909, %v2493
        %v2509 = vsel %vm2501, %v2494, %v2495
        %v2510 = vsel %vm2503, %v2508, %v2509
        %v2511 = vsel %vm2499, %v2229, %v2496
        %v2512 = vsel %vm2501, %v2497, %v2498
        %v2513 = vsel %vm2503, %v2511, %v2512
        %v2518 = vadd.f32 %v152, %v2504
        %v2519 = vadd.f32 %v153, %v2507
        %v2520 = vadd.f32 %v154, %v2510
        %v2521 = vadd.f32 %v155, %v2513
        %v2522 = vld [vmem:[#allocation3] sm:$0xff]
        %v2523 = vxor.u32 %v2518, 2147483648
        %v2524 = vmul.f32 %v2523, 1.442695
        %v2525 = vpow.pop %v2524
        %v2526 = vadd.f32 %v2525, 1.0
        %v2527 = vrcp.pop %v2526
        %v2528 = vmul.f32 %v2526, %v2527
        %v2529 = vsub.f32 1.0, %v2528
        %v2530 = vmul.f32 %v2527, %v2529
        %v2531 = vadd.f32 %v2527, %v2530
        %vm2532 = vweird.f32 %v2526
        %vm2533 = vweird.f32 %v2527
        %vm2534 = vmor %vm2532, %vm2533
        %v2535 = vsel %vm2534, %v2527, %v2531
        %v2536 = vand.u32 2147483647, %v2526
        %vm2537 = vcmp.eq.f32.partialorder %v2536, 8.507059e+37
        %v2538 = vand.u32 %v2526, 2147483648
        %v2539 = vor.u32 1.1754944e-38, %v2538
        %v2540 = vsel %vm2537, %v2539, %v2535
        %v2541 = vmul.f32 1.0, %v2540
        %v2542 = vxor.u32 %v2519, 2147483648
        %v2543 = vmul.f32 %v2542, 1.442695
        %v2544 = vpow.pop %v2543
        %v2545 = vadd.f32 %v2544, 1.0
        %v2546 = vrcp.pop %v2545
        %v2547 = vmul.f32 %v2545, %v2546
        %v2548 = vsub.f32 1.0, %v2547
        %v2549 = vmul.f32 %v2546, %v2548
        %v2550 = vadd.f32 %v2546, %v2549
        %vm2551 = vweird.f32 %v2545
        %vm2552 = vweird.f32 %v2546
        %vm2553 = vmor %vm2551, %vm2552
        %v2554 = vsel %vm2553, %v2546, %v2550
        %v2555 = vand.u32 2147483647, %v2545
        %vm2556 = vcmp.eq.f32.partialorder %v2555, 8.507059e+37
        %v2557 = vand.u32 %v2545, 2147483648
        %v2558 = vor.u32 1.1754944e-38, %v2557
        %v2559 = vsel %vm2556, %v2558, %v2554
        %v2560 = vmul.f32 1.0, %v2559
        %v2561 = vtanh.pop %v2520
        %v2562 = vxor.u32 %v2521, 2147483648
        %v2563 = vmul.f32 %v2562, 1.442695
        %v2564 = vpow.pop %v2563
        %v2565 = vadd.f32 %v2564, 1.0
        %v2566 = vrcp.pop %v2565
        %v2567 = vmul.f32 %v2565, %v2566
        %v2568 = vsub.f32 1.0, %v2567
        %v2569 = vmul.f32 %v2566, %v2568
        %v2570 = vadd.f32 %v2566, %v2569
        %vm2571 = vweird.f32 %v2565
        %vm2572 = vweird.f32 %v2566
        %vm2573 = vmor %vm2571, %vm2572
        %v2574 = vsel %vm2573, %v2566, %v2570
        %v2575 = vand.u32 2147483647, %v2565
        %vm2576 = vcmp.eq.f32.partialorder %v2575, 8.507059e+37
        %v2577 = vand.u32 %v2565, 2147483648
        %v2578 = vor.u32 1.1754944e-38, %v2577
        %v2579 = vsel %vm2576, %v2578, %v2574
        %v2580 = vmul.f32 1.0, %v2579
        %v2581 = vmul.f32 %v2560, %v2522
        %v2582 = vmul.f32 %v2541, %v2561
        %v2583 = vadd.f32 %v2581, %v2582
        %v2584 = vtanh.pop %v2583
        %v2585 = vmul.f32 %v2580, %v2584
        %2586 = vst [vmem:[#allocation2] sm:$0xff] %v2585
        %2587 = vst [vmem:[#allocation3] sm:$0xff] %v2583
        %p2588 = scmp.eq.s32.totalorder %s14, 7
        // Predicated region
        $region37: #{decoder_forward_train.6} parent=27 // pred_check
          %p2589 = pneg %p2588
        $region38: #{decoder_forward_train.6} parent=27 // pred_check_branch
          %2591 = sbr.rel (%p2589) target = $region40
        $region39: #{decoder_forward_train.6} parent=27 // pred_region
          %2592 = vst [vmem:[%s2] sm:$0xff] %v2583
        $region40: #{decoder_forward_train.6} parent=27 // pred_fallthru
          _
        // Predicated region
        $region41: #{decoder_forward_train.6} parent=27 // pred_check
          %p2593 = pneg %p74
        $region42: #{decoder_forward_train.6} parent=27 // pred_check_branch
          %2595 = sbr.rel (%p2593) target = $region44
        $region43: #{decoder_forward_train.6} parent=27 // pred_region
          _
        $region44: #{decoder_forward_train.6} parent=27 // pred_fallthru
          _
        // Predicated region
        $region45: #{decoder_forward_train.6} parent=27 // pred_check
          %p2596 = pneg %p74
        $region46: #{decoder_forward_train.6} parent=27 // pred_check_branch
          %2598 = sbr.rel (%p2596) target = $region48
        $region47: #{decoder_forward_train.6} parent=27 // pred_region
          _
        $region48: #{decoder_forward_train.6} parent=27 // pred_fallthru
          _
      $region28: #{decoder_forward_train.6} parent=5 // pred_fallthru
        _
      %p2599 = scmp.le.s32.totalorder 2, %s9
      // Predicated region
      $region49: #{decoder_forward_train.6} parent=5 // pred_check
        %p2600 = pneg %p2599
      $region50: #{decoder_forward_train.6} parent=5 // pred_check_branch
        %2602 = sbr.rel (%p2600) target = $region52
      $region51: #{decoder_forward_train.6} parent=5 // pred_region
        %s2603 = ssub.s32 %s9, 2
      $region52: #{decoder_forward_train.6} parent=5 // pred_fallthru
        _
    $region6: #{decoder_forward_train.6} parent=1 // loop_footer
      %s13 = sadd.s32 1, %s9
    $region7: #{decoder_forward_train.6} parent=1 // loop_footer_branch
      %8 = sbr.rel target = $region3
    $region8: #{decoder_forward_train.6} parent=1 // loop_exit
      _
    %2604 = vsyncpa [#allocation5], 1
    %s2605 = scalar_lea.sflag [#allocation5], 1
    %2606 = vsyncpa %s2605, 1

// kernel: decoder_forward_train.9
$region0: #{decoder_forward_train.9}
  #allocation0 [shape = 'u32[]', space=smem, size = 0x4, offset = 0x4, fixed_abs, tag = 'smem constant byte address 0x4 - core index']
  #allocation1 [shape = 'u32[72,128]{1,0:T(1,128)}', space=vmem, size = 0x9000, scoped, tag = 'internal scratch']
  #allocation2 [shape = 'f32[2,512]{1,0:T(2,128)}', space=vmem, size = 0x1000, scoped, tag = 'scratch operand']
  #allocation3 [shape = 'f32[2,512]{1,0:T(2,128)}', space=vmem, size = 0x1000, scoped, tag = 'scratch operand']
  %s0 = inlined_call_operand.vmem [shape: f32[7,2,2048], index: 0, kind: input, shape index: {}]
  %s1 = inlined_call_operand.hbm [shape: f32[512,2048], index: 1, kind: input, shape index: {}]
  %s2 = inlined_call_operand.vmem [shape: f32[2,512], index: 2, kind: input, shape index: {}]
  %s3 = inlined_call_operand.hbm [shape: f32[512,128], index: 3, kind: input, shape index: {}]
  %s4 = inlined_call_operand.hbm [shape: f32[1,128], index: 4, kind: input, shape index: {}]
  %s5 = inlined_call_operand.hbm [shape: f32[7,2,128], index: 5, kind: output, shape index: {}]
  %s6 = sld [smem:[#allocation0]]
  $region69: #{decoder_forward_train.9} parent=0
    _
  %s8 = ssub.s32 1, %s6
  %s9 = scalar_select 0, %s8, %s6
  $region1: #{decoder_forward_train.9} parent=0
    #allocation4 [shape = 'u8[4194304]{0}', space=vmem, size = 0x400000, scoped, tag = 'input window, operand 1, single buffered']
    #allocation5 [shape = 's32[2]{0}', space=sflag, size = 0x8, scoped, tag = 'scoped memory for decoder_forward_train.9']
    #allocation6 [shape = 's32[2]{0}', space=sflag, size = 0x8, scoped, tag = 'scoped memory for decoder_forward_train.9']
    #allocation7 [shape = 'u8[262144]{0}', space=vmem, size = 0x40000, scoped, tag = 'input window, operand 3, single buffered']
    #allocation8 [shape = 's32[1]{0}', space=sflag, size = 0x4, scoped, tag = 'scoped memory for decoder_forward_train.9']
    #allocation9 [shape = 'u8[512]{0}', space=vmem, size = 0x400, scoped, tag = 'input window, operand 4, single buffered']
    #allocation10 [shape = 'u8[2048]{0}', space=vmem, size = 0x800, scoped, tag = 'output window, operand 0']
    %10 = vsyncpa [#allocation5], 0
    %11 = vsyncpa [#allocation8], 0
    %12 = vsyncpa [#allocation6], 0
    %s13 = scalar_lea.sflag [#allocation6], 1
    %14 = vsyncpa %s13, 0
    loop: start=0, step=1, limit=9
    $region2: #{decoder_forward_train.9} parent=1 // loop_pre_header
      _
    $region3: #{decoder_forward_train.9} parent=1 // loop_header
      %s16 = sphi 0, %s20
      %p17 = scmp.ge.s32.totalorder %s16, 9
      %s26 = sphi 0, %s28
      %s29 = sphi 0, %s26
      %s30 = sphi 0, %s29
      %s46 = sphi 0, %s30
      %s50 = sphi 0, %s50
      %s52 = sphi 0, %s50
      %s53 = sphi 0, %s52
      %s67 = sphi 0, %s53
      %s71 = sphi 0, %s71
      %s73 = sphi 0, %s71
      %s74 = sphi 0, %s73
      %s88 = sphi 0, %s74
      %s92 = sphi 0, %s92
      %s94 = sphi 0, %s92
      %s95 = sphi 0, %s94
      %s109 = sphi 0, %s95
      %s113 = sphi 0, %s113
      %s115 = sphi 0, %s113
      %s116 = sphi 0, %s115
      %s130 = sphi 0, %s116
      %s136 = sphi 0, %s138
      %s139 = sphi 0, %s136
      %s140 = sphi 0, %s139
      %s156 = sphi 0, %s140
    $region4: #{decoder_forward_train.9} parent=1 // loop_header_branch
      %19 = sbr.rel (%p17) target = $region8
    $region5: #{decoder_forward_train.9} parent=1 // loop_body
      %s21 = ssub.s32 %s16, 1
      %s22 = ssub.s32 %s16, 2
      %s23 = sadd.s32 %s16, 1
      %s24 = ssub.s32 %s16, %s23
      %p25 = scmp.eq.s32.totalorder %s24, 0
      %s27 = sadd.s32 %s26, 1
      %s28 = scalar_select %p25, %s26, %s27
      %p31 = pneg %p25
      %p32 = scmp.eq.s32.totalorder %s16, 6
      %p33 = por %p31, %p32
      %p34 = scmp.ne.s32.totalorder %s26, %s29
      %p35 = scmp.eq.s32.totalorder %s16, 0
      %p36 = por %p34, %p35
      %p37 = scmp.ne.s32.totalorder %s26, %s29
      %p38 = scmp.eq.s32.totalorder %s21, 6
      %p39 = por %p37, %p38
      %p40 = scmp.ne.s32.totalorder %s29, %s30
      %p41 = scmp.eq.s32.totalorder %s21, 0
      %p42 = por %p40, %p41
      %p43 = scmp.ne.s32.totalorder %s29, %s30
      %p44 = scmp.eq.s32.totalorder %s22, 6
      %p45 = por %p43, %p44
      %p47 = scmp.ne.s32.totalorder %s30, %s46
      %p48 = scmp.eq.s32.totalorder %s22, 0
      %p49 = por %p47, %p48
      %s51 = sadd.s32 %s50, 1
      %p54 = scmp.eq.s32.totalorder %s16, 6
      %p55 = scmp.ne.s32.totalorder %s50, %s52
      %p56 = scmp.eq.s32.totalorder %s16, 0
      %p57 = por %p55, %p56
      %p58 = scmp.ne.s32.totalorder %s50, %s52
      %p59 = scmp.eq.s32.totalorder %s21, 6
      %p60 = por %p58, %p59
      %p61 = scmp.ne.s32.totalorder %s52, %s53
      %p62 = scmp.eq.s32.totalorder %s21, 0
      %p63 = por %p61, %p62
      %p64 = scmp.ne.s32.totalorder %s52, %s53
      %p65 = scmp.eq.s32.totalorder %s22, 6
      %p66 = por %p64, %p65
      %p68 = scmp.ne.s32.totalorder %s53, %s67
      %p69 = scmp.eq.s32.totalorder %s22, 0
      %p70 = por %p68, %p69
      %s72 = sadd.s32 %s71, 1
      %p75 = scmp.eq.s32.totalorder %s16, 6
      %p76 = scmp.ne.s32.totalorder %s71, %s73
      %p77 = scmp.eq.s32.totalorder %s16, 0
      %p78 = por %p76, %p77
      %p79 = scmp.ne.s32.totalorder %s71, %s73
      %p80 = scmp.eq.s32.totalorder %s21, 6
      %p81 = por %p79, %p80
      %p82 = scmp.ne.s32.totalorder %s73, %s74
      %p83 = scmp.eq.s32.totalorder %s21, 0
      %p84 = por %p82, %p83
      %p85 = scmp.ne.s32.totalorder %s73, %s74
      %p86 = scmp.eq.s32.totalorder %s22, 6
      %p87 = por %p85, %p86
      %p89 = scmp.ne.s32.totalorder %s74, %s88
      %p90 = scmp.eq.s32.totalorder %s22, 0
      %p91 = por %p89, %p90
      %s93 = sadd.s32 %s92, 1
      %p96 = scmp.eq.s32.totalorder %s16, 6
      %p97 = scmp.ne.s32.totalorder %s92, %s94
      %p98 = scmp.eq.s32.totalorder %s16, 0
      %p99 = por %p97, %p98
      %p100 = scmp.ne.s32.totalorder %s92, %s94
      %p101 = scmp.eq.s32.totalorder %s21, 6
      %p102 = por %p100, %p101
      %p103 = scmp.ne.s32.totalorder %s94, %s95
      %p104 = scmp.eq.s32.totalorder %s21, 0
      %p105 = por %p103, %p104
      %p106 = scmp.ne.s32.totalorder %s94, %s95
      %p107 = scmp.eq.s32.totalorder %s22, 6
      %p108 = por %p106, %p107
      %p110 = scmp.ne.s32.totalorder %s95, %s109
      %p111 = scmp.eq.s32.totalorder %s22, 0
      %p112 = por %p110, %p111
      %s114 = sadd.s32 %s113, 1
      %p117 = scmp.eq.s32.totalorder %s16, 6
      %p118 = scmp.ne.s32.totalorder %s113, %s115
      %p119 = scmp.eq.s32.totalorder %s16, 0
      %p120 = por %p118, %p119
      %p121 = scmp.ne.s32.totalorder %s113, %s115
      %p122 = scmp.eq.s32.totalorder %s21, 6
      %p123 = por %p121, %p122
      %p124 = scmp.ne.s32.totalorder %s115, %s116
      %p125 = scmp.eq.s32.totalorder %s21, 0
      %p126 = por %p124, %p125
      %p127 = scmp.ne.s32.totalorder %s115, %s116
      %p128 = scmp.eq.s32.totalorder %s22, 6
      %p129 = por %p127, %p128
      %p131 = scmp.ne.s32.totalorder %s116, %s130
      %p132 = scmp.eq.s32.totalorder %s22, 0
      %p133 = por %p131, %p132
      %s134 = ssub.s32 %s16, %s23
      %p135 = scmp.eq.s32.totalorder %s134, 0
      %s137 = sadd.s32 %s136, 1
      %s138 = scalar_select %p135, %s136, %s137
      %p141 = pneg %p135
      %p142 = scmp.eq.s32.totalorder %s16, 6
      %p143 = por %p141, %p142
      %p144 = scmp.ne.s32.totalorder %s136, %s139
      %p145 = scmp.eq.s32.totalorder %s16, 0
      %p146 = por %p144, %p145
      %p147 = scmp.ne.s32.totalorder %s136, %s139
      %p148 = scmp.eq.s32.totalorder %s21, 6
      %p149 = por %p147, %p148
      %p150 = scmp.ne.s32.totalorder %s139, %s140
      %p151 = scmp.eq.s32.totalorder %s21, 0
      %p152 = por %p150, %p151
      %p153 = scmp.ne.s32.totalorder %s139, %s140
      %p154 = scmp.eq.s32.totalorder %s22, 6
      %p155 = por %p153, %p154
      %p157 = scmp.ne.s32.totalorder %s140, %s156
      %p158 = scmp.eq.s32.totalorder %s22, 0
      %p159 = por %p157, %p158
      %p160 = scmp.le.s32.totalorder 1, %s16
      %p161 = scmp.lt.s32.totalorder %s16, 8
      %p162 = pnand %p160, %p161
      %p163 = pneg %p162
      // Predicated region
      $region9: #{decoder_forward_train.9} parent=5 // pred_check
        _
      $region10: #{decoder_forward_train.9} parent=5 // pred_check_branch
        %165 = sbr.rel (%p162) target = $region12
      $region11: #{decoder_forward_train.9} parent=5 // pred_region
        %s166 = ssub.s32 %s16, 1
        // Predicated region
        $region13: #{decoder_forward_train.9} parent=11 // pred_check
          %p167 = pneg %p63
        $region14: #{decoder_forward_train.9} parent=11 // pred_check_branch
          %169 = sbr.rel (%p167) target = $region16
        $region15: #{decoder_forward_train.9} parent=11 // pred_region
          %171 = vsyncadd [#allocation5], 0
          %s172 = sshll.u32 %s1, 4
          %s173 = int_to_ptr.hbm [resolvable:$true] %s172
          %s174 = sshll.u32 [#allocation4], 4
          %s175 = int_to_ptr.vmem [resolvable:$true] %s174
          %180 = dma.hbm_to_vmem [thread:$0]  %s173, 131072, %s175, [#allocation5], 2048, 2048, 128
        $region16: #{decoder_forward_train.9} parent=11 // pred_fallthru
          _
        // Predicated region
        $region17: #{decoder_forward_train.9} parent=11 // pred_check
          %p181 = pneg %p84
        $region18: #{decoder_forward_train.9} parent=11 // pred_check_branch
          %183 = sbr.rel (%p181) target = $region20
        $region19: #{decoder_forward_train.9} parent=11 // pred_region
          _
        $region20: #{decoder_forward_train.9} parent=11 // pred_fallthru
          _
        // Predicated region
        $region21: #{decoder_forward_train.9} parent=11 // pred_check
          %p184 = pneg %p105
        $region22: #{decoder_forward_train.9} parent=11 // pred_check_branch
          %186 = sbr.rel (%p184) target = $region24
        $region23: #{decoder_forward_train.9} parent=11 // pred_region
          %188 = vsyncadd [#allocation8], 0
          %s189 = sshll.u32 %s3, 4
          %s190 = int_to_ptr.hbm [resolvable:$true] %s189
          %s191 = sshll.u32 [#allocation7], 4
          %s192 = int_to_ptr.vmem [resolvable:$true] %s191
          %197 = dma.hbm_to_vmem [thread:$0]  %s190, 8192, %s192, [#allocation8], 128, 128, 8
        $region24: #{decoder_forward_train.9} parent=11 // pred_fallthru
          _
        // Predicated region
        $region25: #{decoder_forward_train.9} parent=11 // pred_check
          %p198 = pneg %p126
        $region26: #{decoder_forward_train.9} parent=11 // pred_check_branch
          %200 = sbr.rel (%p198) target = $region28
        $region27: #{decoder_forward_train.9} parent=11 // pred_region
          %202 = vsyncadd [#allocation8], 0
          %s204 = sshll.u32 %s4, 4
          %s205 = int_to_ptr.hbm [resolvable:$true] %s204
          %s206 = sshll.u32 [#allocation9], 4
          %s207 = int_to_ptr.vmem [resolvable:$true] %s206
          %209 = dma.hbm_to_vmem [thread:$0]  %s205, 16, %s207, [#allocation8]
        $region28: #{decoder_forward_train.9} parent=11 // pred_fallthru
          _
      $region12: #{decoder_forward_train.9} parent=5 // pred_fallthru
        _
      %p210 = scmp.lt.s32.totalorder %s16, 7
      // Predicated region
      $region29: #{decoder_forward_train.9} parent=5 // pred_check
        %p211 = pneg %p210
      $region30: #{decoder_forward_train.9} parent=5 // pred_check_branch
        %213 = sbr.rel (%p211) target = $region32
      $region31: #{decoder_forward_train.9} parent=5 // pred_region
        // Predicated region
        $region33: #{decoder_forward_train.9} parent=31 // pred_check
          %p214 = pneg %p36
        $region34: #{decoder_forward_train.9} parent=31 // pred_check_branch
          %216 = sbr.rel (%p214) target = $region36
        $region35: #{decoder_forward_train.9} parent=31 // pred_region
          %p217 = scmp.lt.s32.totalorder %s16, 6
          %s218 = scalar_select %p217, %s16, 6
          %s219 = smul.addr %s218, 16
          %s220 = smul.addr %s219, 2
          %s221 = scalar_lea.vmem %s0, %s220
        $region36: #{decoder_forward_train.9} parent=31 // pred_fallthru
          _
      $region32: #{decoder_forward_train.9} parent=5 // pred_fallthru
        _
      %p222 = scmp.le.s32.totalorder 1, %s16
      %p223 = scmp.lt.s32.totalorder %s16, 8
      %p224 = pnand %p222, %p223
      %p225 = pneg %p224
      // Predicated region
      $region37: #{decoder_forward_train.9} parent=5 // pred_check
        _
      $region38: #{decoder_forward_train.9} parent=5 // pred_check_branch
        %227 = sbr.rel (%p224) target = $region40
      $region39: #{decoder_forward_train.9} parent=5 // pred_region
        %s228 = ssub.s32 %s16, 1
        // Predicated region
        $region41: #{decoder_forward_train.9} parent=39 // pred_check
          %p229 = pneg %p63
        $region42: #{decoder_forward_train.9} parent=39 // pred_check_branch
          %231 = sbr.rel (%p229) target = $region44
        $region43: #{decoder_forward_train.9} parent=39 // pred_region
          %233 = dma.done [#allocation5], 131072
        $region44: #{decoder_forward_train.9} parent=39 // pred_fallthru
          _
        // Predicated region
        $region45: #{decoder_forward_train.9} parent=39 // pred_check
          %p234 = pneg %p105
        $region46: #{decoder_forward_train.9} parent=39 // pred_check_branch
          %236 = sbr.rel (%p234) target = $region48
        $region47: #{decoder_forward_train.9} parent=39 // pred_region
          %238 = dma.done [#allocation8], 8192
        $region48: #{decoder_forward_train.9} parent=39 // pred_fallthru
          _
        // Predicated region
        $region49: #{decoder_forward_train.9} parent=39 // pred_check
          %p239 = pneg %p126
        $region50: #{decoder_forward_train.9} parent=39 // pred_check_branch
          %241 = sbr.rel (%p239) target = $region52
        $region51: #{decoder_forward_train.9} parent=39 // pred_region
          %243 = dma.done [#allocation8], 16
        $region52: #{decoder_forward_train.9} parent=39 // pred_fallthru
          _
        %p244 = scmp.lt.s32.totalorder %s21, 6
        %s245 = scalar_select %p244, %s21, 6
        %s246 = smul.addr %s245, 16
        %s247 = smul.addr %s246, 2
        %s248 = scalar_lea.vmem %s0, %s247
        %p249 = pneg %p42
        %p250 = pneg %p39
        %p251 = pneg %p63
        %p252 = pneg %p60
        %p253 = pneg %p84
        %p254 = pneg %p81
        %p255 = pneg %p105
        %p256 = pneg %p102
        %p257 = pneg %p126
        %p258 = pneg %p123
        %p259 = pneg %p152
        %p260 = pneg %p149
        %s261 = sand.u32 %s139, 1
        %s262 = scalar_lea.sflag [#allocation6], %s261
        %s263 = sand.u32 %s139, 1
        %s264 = smul.addr %s263, 2
        %s265 = scalar_lea.vmem [#allocation10], %s264
        %p266 = scmp.lt.s32.totalorder %s21, 6
        %s267 = scalar_select %p266, %s21, 6
        %s268 = smul.addr %s267, 16
        %s269 = smul.addr %s268, 2
        %s270 = scalar_lea.vmem %s0, %s269
        %p271 = scmp.eq.s32.totalorder %s21, 0
        // Predicated region
        $region53: #{decoder_forward_train.9} parent=39 // pred_check
          %p272 = pneg %p271
        $region54: #{decoder_forward_train.9} parent=39 // pred_check_branch
          %274 = sbr.rel (%p272) target = $region56
        $region55: #{decoder_forward_train.9} parent=39 // pred_region
          %275 = vst [vmem:[#allocation2] sm:$0xff] 0.0
          %v276 = vld [vmem:[%s2] sm:$0xff]
          %277 = vst [vmem:[#allocation3] sm:$0xff] %v276
        $region56: #{decoder_forward_train.9} parent=39 // pred_fallthru
          _
        %v278 = vld [vmem:[%s270] sm:$0xff]
        %v279 = vld [vmem:[%s270 + $0x8] sm:$0xff]
        %v280 = vld [vmem:[%s270 + $0x10] sm:$0xff]
        %v281 = vld [vmem:[%s270 + $0x18] sm:$0xff]
        %v282 = vld [vmem:[#allocation2] sm:$0xff]
        %v283 = vld [vmem:[#allocation4] sm:$0xff]
        %v284 = vld [vmem:[#allocation4 + $0x8] sm:$0xff]
        %v285 = vld [vmem:[#allocation4 + $0x10] sm:$0xff]
        %v286 = vld [vmem:[#allocation4 + $0x18] sm:$0xff]
        %v287 = vld [vmem:[#allocation4 + $0x20] sm:$0xff]
        %v288 = vld [vmem:[#allocation4 + $0x28] sm:$0xff]
        %v289 = vld [vmem:[#allocation4 + $0x30] sm:$0xff]
        %v290 = vld [vmem:[#allocation4 + $0x38] sm:$0xff]
        %v291 = vld [vmem:[#allocation4 + $0x40] sm:$0xff]
        %v292 = vld [vmem:[#allocation4 + $0x48] sm:$0xff]
        %v293 = vld [vmem:[#allocation4 + $0x50] sm:$0xff]
        %v294 = vld [vmem:[#allocation4 + $0x58] sm:$0xff]
        %v295 = vld [vmem:[#allocation4 + $0x60] sm:$0xff]
        %v296 = vld [vmem:[#allocation4 + $0x68] sm:$0xff]
        %v297 = vld [vmem:[#allocation4 + $0x70] sm:$0xff]
        %v298 = vld [vmem:[#allocation4 + $0x78] sm:$0xff]
        %v299 = vld [vmem:[#allocation4 + $0x80] sm:$0xff]
        %v300 = vld [vmem:[#allocation4 + $0x88] sm:$0xff]
        %v301 = vld [vmem:[#allocation4 + $0x90] sm:$0xff]
        %v302 = vld [vmem:[#allocation4 + $0x98] sm:$0xff]
        %v303 = vld [vmem:[#allocation4 + $0xa0] sm:$0xff]
        %v304 = vld [vmem:[#allocation4 + $0xa8] sm:$0xff]
        %v305 = vld [vmem:[#allocation4 + $0xb0] sm:$0xff]
        %v306 = vld [vmem:[#allocation4 + $0xb8] sm:$0xff]
        %v307 = vld [vmem:[#allocation4 + $0xc0] sm:$0xff]
        %v308 = vld [vmem:[#allocation4 + $0xc8] sm:$0xff]
        %v309 = vld [vmem:[#allocation4 + $0xd0] sm:$0xff]
        %v310 = vld [vmem:[#allocation4 + $0xd8] sm:$0xff]
        %v311 = vld [vmem:[#allocation4 + $0xe0] sm:$0xff]
        %v312 = vld [vmem:[#allocation4 + $0xe8] sm:$0xff]
        %v313 = vld [vmem:[#allocation4 + $0xf0] sm:$0xff]
        %v314 = vld [vmem:[#allocation4 + $0xf8] sm:$0xff]
        %v315 = vld [vmem:[#allocation4 + $0x100] sm:$0xff]
        %v316 = vld [vmem:[#allocation4 + $0x108] sm:$0xff]
        %v317 = vld [vmem:[#allocation4 + $0x110] sm:$0xff]
        %v318 = vld [vmem:[#allocation4 + $0x118] sm:$0xff]
        %v319 = vld [vmem:[#allocation4 + $0x120] sm:$0xff]
        %v320 = vld [vmem:[#allocation4 + $0x128] sm:$0xff]
        %v321 = vld [vmem:[#allocation4 + $0x130] sm:$0xff]
        %v322 = vld [vmem:[#allocation4 + $0x138] sm:$0xff]
        %v323 = vld [vmem:[#allocation4 + $0x140] sm:$0xff]
        %v324 = vld [vmem:[#allocation4 + $0x148] sm:$0xff]
        %v325 = vld [vmem:[#allocation4 + $0x150] sm:$0xff]
        %v326 = vld [vmem:[#allocation4 + $0x158] sm:$0xff]
        %v327 = vld [vmem:[#allocation4 + $0x160] sm:$0xff]
        %v328 = vld [vmem:[#allocation4 + $0x168] sm:$0xff]
        %v329 = vld [vmem:[#allocation4 + $0x170] sm:$0xff]
        %v330 = vld [vmem:[#allocation4 + $0x178] sm:$0xff]
        %v331 = vld [vmem:[#allocation4 + $0x180] sm:$0xff]
        %v332 = vld [vmem:[#allocation4 + $0x188] sm:$0xff]
        %v333 = vld [vmem:[#allocation4 + $0x190] sm:$0xff]
        %v334 = vld [vmem:[#allocation4 + $0x198] sm:$0xff]
        %v335 = vld [vmem:[#allocation4 + $0x1a0] sm:$0xff]
        %v336 = vld [vmem:[#allocation4 + $0x1a8] sm:$0xff]
        %v337 = vld [vmem:[#allocation4 + $0x1b0] sm:$0xff]
        %v338 = vld [vmem:[#allocation4 + $0x1b8] sm:$0xff]
        %v339 = vld [vmem:[#allocation4 + $0x1c0] sm:$0xff]
        %v340 = vld [vmem:[#allocation4 + $0x1c8] sm:$0xff]
        %v341 = vld [vmem:[#allocation4 + $0x1d0] sm:$0xff]
        %v342 = vld [vmem:[#allocation4 + $0x1d8] sm:$0xff]
        %v343 = vld [vmem:[#allocation4 + $0x1e0] sm:$0xff]
        %v344 = vld [vmem:[#allocation4 + $0x1e8] sm:$0xff]
        %v345 = vld [vmem:[#allocation4 + $0x1f0] sm:$0xff]
        %v346 = vld [vmem:[#allocation4 + $0x1f8] sm:$0xff]
        %v347 = vld [vmem:[#allocation4 + $0x200] sm:$0xff]
        %v348 = vld [vmem:[#allocation4 + $0x208] sm:$0xff]
        %v349 = vld [vmem:[#allocation4 + $0x210] sm:$0xff]
        %v350 = vld [vmem:[#allocation4 + $0x218] sm:$0xff]
        %v351 = vld [vmem:[#allocation4 + $0x220] sm:$0xff]
        %v352 = vld [vmem:[#allocation4 + $0x228] sm:$0xff]
        %v353 = vld [vmem:[#allocation4 + $0x230] sm:$0xff]
        %v354 = vld [vmem:[#allocation4 + $0x238] sm:$0xff]
        %v355 = vld [vmem:[#allocation4 + $0x240] sm:$0xff]
        %v356 = vld [vmem:[#allocation4 + $0x248] sm:$0xff]
        %v357 = vld [vmem:[#allocation4 + $0x250] sm:$0xff]
        %v358 = vld [vmem:[#allocation4 + $0x258] sm:$0xff]
        %v359 = vld [vmem:[#allocation4 + $0x260] sm:$0xff]
        %v360 = vld [vmem:[#allocation4 + $0x268] sm:$0xff]
        %v361 = vld [vmem:[#allocation4 + $0x270] sm:$0xff]
        %v362 = vld [vmem:[#allocation4 + $0x278] sm:$0xff]
        %v363 = vld [vmem:[#allocation4 + $0x280] sm:$0xff]
        %v364 = vld [vmem:[#allocation4 + $0x288] sm:$0xff]
        %v365 = vld [vmem:[#allocation4 + $0x290] sm:$0xff]
        %v366 = vld [vmem:[#allocation4 + $0x298] sm:$0xff]
        %v367 = vld [vmem:[#allocation4 + $0x2a0] sm:$0xff]
        %v368 = vld [vmem:[#allocation4 + $0x2a8] sm:$0xff]
        %v369 = vld [vmem:[#allocation4 + $0x2b0] sm:$0xff]
        %v370 = vld [vmem:[#allocation4 + $0x2b8] sm:$0xff]
        %v371 = vld [vmem:[#allocation4 + $0x2c0] sm:$0xff]
        %v372 = vld [vmem:[#allocation4 + $0x2c8] sm:$0xff]
        %v373 = vld [vmem:[#allocation4 + $0x2d0] sm:$0xff]
        %v374 = vld [vmem:[#allocation4 + $0x2d8] sm:$0xff]
        %v375 = vld [vmem:[#allocation4 + $0x2e0] sm:$0xff]
        %v376 = vld [vmem:[#allocation4 + $0x2e8] sm:$0xff]
        %v377 = vld [vmem:[#allocation4 + $0x2f0] sm:$0xff]
        %v378 = vld [vmem:[#allocation4 + $0x2f8] sm:$0xff]
        %v379 = vld [vmem:[#allocation4 + $0x300] sm:$0xff]
        %v380 = vld [vmem:[#allocation4 + $0x308] sm:$0xff]
        %v381 = vld [vmem:[#allocation4 + $0x310] sm:$0xff]
        %v382 = vld [vmem:[#allocation4 + $0x318] sm:$0xff]
        %v383 = vld [vmem:[#allocation4 + $0x320] sm:$0xff]
        %v384 = vld [vmem:[#allocation4 + $0x328] sm:$0xff]
        %v385 = vld [vmem:[#allocation4 + $0x330] sm:$0xff]
        %v386 = vld [vmem:[#allocation4 + $0x338] sm:$0xff]
        %v387 = vld [vmem:[#allocation4 + $0x340] sm:$0xff]
        %v388 = vld [vmem:[#allocation4 + $0x348] sm:$0xff]
        %v389 = vld [vmem:[#allocation4 + $0x350] sm:$0xff]
        %v390 = vld [vmem:[#allocation4 + $0x358] sm:$0xff]
        %v391 = vld [vmem:[#allocation4 + $0x360] sm:$0xff]
        %v392 = vld [vmem:[#allocation4 + $0x368] sm:$0xff]
        %v393 = vld [vmem:[#allocation4 + $0x370] sm:$0xff]
        %v394 = vld [vmem:[#allocation4 + $0x378] sm:$0xff]
        %v395 = vld [vmem:[#allocation4 + $0x380] sm:$0xff]
        %v396 = vld [vmem:[#allocation4 + $0x388] sm:$0xff]
        %v397 = vld [vmem:[#allocation4 + $0x390] sm:$0xff]
        %v398 = vld [vmem:[#allocation4 + $0x398] sm:$0xff]
        %v399 = vld [vmem:[#allocation4 + $0x3a0] sm:$0xff]
        %v400 = vld [vmem:[#allocation4 + $0x3a8] sm:$0xff]
        %v401 = vld [vmem:[#allocation4 + $0x3b0] sm:$0xff]
        %v402 = vld [vmem:[#allocation4 + $0x3b8] sm:$0xff]
        %v403 = vld [vmem:[#allocation4 + $0x3c0] sm:$0xff]
        %v404 = vld [vmem:[#allocation4 + $0x3c8] sm:$0xff]
        %v405 = vld [vmem:[#allocation4 + $0x3d0] sm:$0xff]
        %v406 = vld [vmem:[#allocation4 + $0x3d8] sm:$0xff]
        %v407 = vld [vmem:[#allocation4 + $0x3e0] sm:$0xff]
        %v408 = vld [vmem:[#allocation4 + $0x3e8] sm:$0xff]
        %v409 = vld [vmem:[#allocation4 + $0x3f0] sm:$0xff]
        %v410 = vld [vmem:[#allocation4 + $0x3f8] sm:$0xff]
        %v411 = vld [vmem:[#allocation4 + $0x400] sm:$0xff]
        %v412 = vld [vmem:[#allocation4 + $0x408] sm:$0xff]
        %v413 = vld [vmem:[#allocation4 + $0x410] sm:$0xff]
        %v414 = vld [vmem:[#allocation4 + $0x418] sm:$0xff]
        %v415 = vld [vmem:[#allocation4 + $0x420] sm:$0xff]
        %v416 = vld [vmem:[#allocation4 + $0x428] sm:$0xff]
        %v417 = vld [vmem:[#allocation4 + $0x430] sm:$0xff]
        %v418 = vld [vmem:[#allocation4 + $0x438] sm:$0xff]
        %v419 = vld [vmem:[#allocation4 + $0x440] sm:$0xff]
        %v420 = vld [vmem:[#allocation4 + $0x448] sm:$0xff]
        %v421 = vld [vmem:[#allocation4 + $0x450] sm:$0xff]
        %v422 = vld [vmem:[#allocation4 + $0x458] sm:$0xff]
        %v423 = vld [vmem:[#allocation4 + $0x460] sm:$0xff]
        %v424 = vld [vmem:[#allocation4 + $0x468] sm:$0xff]
        %v425 = vld [vmem:[#allocation4 + $0x470] sm:$0xff]
        %v426 = vld [vmem:[#allocation4 + $0x478] sm:$0xff]
        %v427 = vld [vmem:[#allocation4 + $0x480] sm:$0xff]
        %v428 = vld [vmem:[#allocation4 + $0x488] sm:$0xff]
        %v429 = vld [vmem:[#allocation4 + $0x490] sm:$0xff]
        %v430 = vld [vmem:[#allocation4 + $0x498] sm:$0xff]
        %v431 = vld [vmem:[#allocation4 + $0x4a0] sm:$0xff]
        %v432 = vld [vmem:[#allocation4 + $0x4a8] sm:$0xff]
        %v433 = vld [vmem:[#allocation4 + $0x4b0] sm:$0xff]
        %v434 = vld [vmem:[#allocation4 + $0x4b8] sm:$0xff]
        %v435 = vld [vmem:[#allocation4 + $0x4c0] sm:$0xff]
        %v436 = vld [vmem:[#allocation4 + $0x4c8] sm:$0xff]
        %v437 = vld [vmem:[#allocation4 + $0x4d0] sm:$0xff]
        %v438 = vld [vmem:[#allocation4 + $0x4d8] sm:$0xff]
        %v439 = vld [vmem:[#allocation4 + $0x4e0] sm:$0xff]
        %v440 = vld [vmem:[#allocation4 + $0x4e8] sm:$0xff]
        %v441 = vld [vmem:[#allocation4 + $0x4f0] sm:$0xff]
        %v442 = vld [vmem:[#allocation4 + $0x4f8] sm:$0xff]
        %v443 = vld [vmem:[#allocation4 + $0x500] sm:$0xff]
        %v444 = vld [vmem:[#allocation4 + $0x508] sm:$0xff]
        %v445 = vld [vmem:[#allocation4 + $0x510] sm:$0xff]
        %v446 = vld [vmem:[#allocation4 + $0x518] sm:$0xff]
        %v447 = vld [vmem:[#allocation4 + $0x520] sm:$0xff]
        %v448 = vld [vmem:[#allocation4 + $0x528] sm:$0xff]
        %v449 = vld [vmem:[#allocation4 + $0x530] sm:$0xff]
        %v450 = vld [vmem:[#allocation4 + $0x538] sm:$0xff]
        %v451 = vld [vmem:[#allocation4 + $0x540] sm:$0xff]
        %v452 = vld [vmem:[#allocation4 + $0x548] sm:$0xff]
        %v453 = vld [vmem:[#allocation4 + $0x550] sm:$0xff]
        %v454 = vld [vmem:[#allocation4 + $0x558] sm:$0xff]
        %v455 = vld [vmem:[#allocation4 + $0x560] sm:$0xff]
        %v456 = vld [vmem:[#allocation4 + $0x568] sm:$0xff]
        %v457 = vld [vmem:[#allocation4 + $0x570] sm:$0xff]
        %v458 = vld [vmem:[#allocation4 + $0x578] sm:$0xff]
        %v459 = vld [vmem:[#allocation4 + $0x580] sm:$0xff]
        %v460 = vld [vmem:[#allocation4 + $0x588] sm:$0xff]
        %v461 = vld [vmem:[#allocation4 + $0x590] sm:$0xff]
        %v462 = vld [vmem:[#allocation4 + $0x598] sm:$0xff]
        %v463 = vld [vmem:[#allocation4 + $0x5a0] sm:$0xff]
        %v464 = vld [vmem:[#allocation4 + $0x5a8] sm:$0xff]
        %v465 = vld [vmem:[#allocation4 + $0x5b0] sm:$0xff]
        %v466 = vld [vmem:[#allocation4 + $0x5b8] sm:$0xff]
        %v467 = vld [vmem:[#allocation4 + $0x5c0] sm:$0xff]
        %v468 = vld [vmem:[#allocation4 + $0x5c8] sm:$0xff]
        %v469 = vld [vmem:[#allocation4 + $0x5d0] sm:$0xff]
        %v470 = vld [vmem:[#allocation4 + $0x5d8] sm:$0xff]
        %v471 = vld [vmem:[#allocation4 + $0x5e0] sm:$0xff]
        %v472 = vld [vmem:[#allocation4 + $0x5e8] sm:$0xff]
        %v473 = vld [vmem:[#allocation4 + $0x5f0] sm:$0xff]
        %v474 = vld [vmem:[#allocation4 + $0x5f8] sm:$0xff]
        %v475 = vld [vmem:[#allocation4 + $0x600] sm:$0xff]
        %v476 = vld [vmem:[#allocation4 + $0x608] sm:$0xff]
        %v477 = vld [vmem:[#allocation4 + $0x610] sm:$0xff]
        %v478 = vld [vmem:[#allocation4 + $0x618] sm:$0xff]
        %v479 = vld [vmem:[#allocation4 + $0x620] sm:$0xff]
        %v480 = vld [vmem:[#allocation4 + $0x628] sm:$0xff]
        %v481 = vld [vmem:[#allocation4 + $0x630] sm:$0xff]
        %v482 = vld [vmem:[#allocation4 + $0x638] sm:$0xff]
        %v483 = vld [vmem:[#allocation4 + $0x640] sm:$0xff]
        %v484 = vld [vmem:[#allocation4 + $0x648] sm:$0xff]
        %v485 = vld [vmem:[#allocation4 + $0x650] sm:$0xff]
        %v486 = vld [vmem:[#allocation4 + $0x658] sm:$0xff]
        %v487 = vld [vmem:[#allocation4 + $0x660] sm:$0xff]
        %v488 = vld [vmem:[#allocation4 + $0x668] sm:$0xff]
        %v489 = vld [vmem:[#allocation4 + $0x670] sm:$0xff]
        %v490 = vld [vmem:[#allocation4 + $0x678] sm:$0xff]
        %v491 = vld [vmem:[#allocation4 + $0x680] sm:$0xff]
        %v492 = vld [vmem:[#allocation4 + $0x688] sm:$0xff]
        %v493 = vld [vmem:[#allocation4 + $0x690] sm:$0xff]
        %v494 = vld [vmem:[#allocation4 + $0x698] sm:$0xff]
        %v495 = vld [vmem:[#allocation4 + $0x6a0] sm:$0xff]
        %v496 = vld [vmem:[#allocation4 + $0x6a8] sm:$0xff]
        %v497 = vld [vmem:[#allocation4 + $0x6b0] sm:$0xff]
        %v498 = vld [vmem:[#allocation4 + $0x6b8] sm:$0xff]
        %v499 = vld [vmem:[#allocation4 + $0x6c0] sm:$0xff]
        %v500 = vld [vmem:[#allocation4 + $0x6c8] sm:$0xff]
        %v501 = vld [vmem:[#allocation4 + $0x6d0] sm:$0xff]
        %v502 = vld [vmem:[#allocation4 + $0x6d8] sm:$0xff]
        %v503 = vld [vmem:[#allocation4 + $0x6e0] sm:$0xff]
        %v504 = vld [vmem:[#allocation4 + $0x6e8] sm:$0xff]
        %v505 = vld [vmem:[#allocation4 + $0x6f0] sm:$0xff]
        %v506 = vld [vmem:[#allocation4 + $0x6f8] sm:$0xff]
        %v507 = vld [vmem:[#allocation4 + $0x700] sm:$0xff]
        %v508 = vld [vmem:[#allocation4 + $0x708] sm:$0xff]
        %v509 = vld [vmem:[#allocation4 + $0x710] sm:$0xff]
        %v510 = vld [vmem:[#allocation4 + $0x718] sm:$0xff]
        %v511 = vld [vmem:[#allocation4 + $0x720] sm:$0xff]
        %v512 = vld [vmem:[#allocation4 + $0x728] sm:$0xff]
        %v513 = vld [vmem:[#allocation4 + $0x730] sm:$0xff]
        %v514 = vld [vmem:[#allocation4 + $0x738] sm:$0xff]
        %v515 = vld [vmem:[#allocation4 + $0x740] sm:$0xff]
        %v516 = vld [vmem:[#allocation4 + $0x748] sm:$0xff]
        %v517 = vld [vmem:[#allocation4 + $0x750] sm:$0xff]
        %v518 = vld [vmem:[#allocation4 + $0x758] sm:$0xff]
        %v519 = vld [vmem:[#allocation4 + $0x760] sm:$0xff]
        %v520 = vld [vmem:[#allocation4 + $0x768] sm:$0xff]
        %v521 = vld [vmem:[#allocation4 + $0x770] sm:$0xff]
        %v522 = vld [vmem:[#allocation4 + $0x778] sm:$0xff]
        %v523 = vld [vmem:[#allocation4 + $0x780] sm:$0xff]
        %v524 = vld [vmem:[#allocation4 + $0x788] sm:$0xff]
        %v525 = vld [vmem:[#allocation4 + $0x790] sm:$0xff]
        %v526 = vld [vmem:[#allocation4 + $0x798] sm:$0xff]
        %v527 = vld [vmem:[#allocation4 + $0x7a0] sm:$0xff]
        %v528 = vld [vmem:[#allocation4 + $0x7a8] sm:$0xff]
        %v529 = vld [vmem:[#allocation4 + $0x7b0] sm:$0xff]
        %v530 = vld [vmem:[#allocation4 + $0x7b8] sm:$0xff]
        %v531 = vld [vmem:[#allocation4 + $0x7c0] sm:$0xff]
        %v532 = vld [vmem:[#allocation4 + $0x7c8] sm:$0xff]
        %v533 = vld [vmem:[#allocation4 + $0x7d0] sm:$0xff]
        %v534 = vld [vmem:[#allocation4 + $0x7d8] sm:$0xff]
        %v535 = vld [vmem:[#allocation4 + $0x7e0] sm:$0xff]
        %v536 = vld [vmem:[#allocation4 + $0x7e8] sm:$0xff]
        %v537 = vld [vmem:[#allocation4 + $0x7f0] sm:$0xff]
        %v538 = vld [vmem:[#allocation4 + $0x7f8] sm:$0xff]
        %v539 = vld [vmem:[#allocation4 + $0x800] sm:$0xff]
        %v540 = vld [vmem:[#allocation4 + $0x808] sm:$0xff]
        %v541 = vld [vmem:[#allocation4 + $0x810] sm:$0xff]
        %v542 = vld [vmem:[#allocation4 + $0x818] sm:$0xff]
        %v543 = vld [vmem:[#allocation4 + $0x820] sm:$0xff]
        %v544 = vld [vmem:[#allocation4 + $0x828] sm:$0xff]
        %v545 = vld [vmem:[#allocation4 + $0x830] sm:$0xff]
        %v546 = vld [vmem:[#allocation4 + $0x838] sm:$0xff]
        %v547 = vld [vmem:[#allocation4 + $0x840] sm:$0xff]
        %v548 = vld [vmem:[#allocation4 + $0x848] sm:$0xff]
        %v549 = vld [vmem:[#allocation4 + $0x850] sm:$0xff]
        %v550 = vld [vmem:[#allocation4 + $0x858] sm:$0xff]
        %v551 = vld [vmem:[#allocation4 + $0x860] sm:$0xff]
        %v552 = vld [vmem:[#allocation4 + $0x868] sm:$0xff]
        %v553 = vld [vmem:[#allocation4 + $0x870] sm:$0xff]
        %v554 = vld [vmem:[#allocation4 + $0x878] sm:$0xff]
        %v555 = vld [vmem:[#allocation4 + $0x880] sm:$0xff]
        %v556 = vld [vmem:[#allocation4 + $0x888] sm:$0xff]
        %v557 = vld [vmem:[#allocation4 + $0x890] sm:$0xff]
        %v558 = vld [vmem:[#allocation4 + $0x898] sm:$0xff]
        %v559 = vld [vmem:[#allocation4 + $0x8a0] sm:$0xff]
        %v560 = vld [vmem:[#allocation4 + $0x8a8] sm:$0xff]
        %v561 = vld [vmem:[#allocation4 + $0x8b0] sm:$0xff]
        %v562 = vld [vmem:[#allocation4 + $0x8b8] sm:$0xff]
        %v563 = vld [vmem:[#allocation4 + $0x8c0] sm:$0xff]
        %v564 = vld [vmem:[#allocation4 + $0x8c8] sm:$0xff]
        %v565 = vld [vmem:[#allocation4 + $0x8d0] sm:$0xff]
        %v566 = vld [vmem:[#allocation4 + $0x8d8] sm:$0xff]
        %v567 = vld [vmem:[#allocation4 + $0x8e0] sm:$0xff]
        %v568 = vld [vmem:[#allocation4 + $0x8e8] sm:$0xff]
        %v569 = vld [vmem:[#allocation4 + $0x8f0] sm:$0xff]
        %v570 = vld [vmem:[#allocation4 + $0x8f8] sm:$0xff]
        %v571 = vld [vmem:[#allocation4 + $0x900] sm:$0xff]
        %v572 = vld [vmem:[#allocation4 + $0x908] sm:$0xff]
        %v573 = vld [vmem:[#allocation4 + $0x910] sm:$0xff]
        %v574 = vld [vmem:[#allocation4 + $0x918] sm:$0xff]
        %v575 = vld [vmem:[#allocation4 + $0x920] sm:$0xff]
        %v576 = vld [vmem:[#allocation4 + $0x928] sm:$0xff]
        %v577 = vld [vmem:[#allocation4 + $0x930] sm:$0xff]
        %v578 = vld [vmem:[#allocation4 + $0x938] sm:$0xff]
        %v579 = vld [vmem:[#allocation4 + $0x940] sm:$0xff]
        %v580 = vld [vmem:[#allocation4 + $0x948] sm:$0xff]
        %v581 = vld [vmem:[#allocation4 + $0x950] sm:$0xff]
        %v582 = vld [vmem:[#allocation4 + $0x958] sm:$0xff]
        %v583 = vld [vmem:[#allocation4 + $0x960] sm:$0xff]
        %v584 = vld [vmem:[#allocation4 + $0x968] sm:$0xff]
        %v585 = vld [vmem:[#allocation4 + $0x970] sm:$0xff]
        %v586 = vld [vmem:[#allocation4 + $0x978] sm:$0xff]
        %v587 = vld [vmem:[#allocation4 + $0x980] sm:$0xff]
        %v588 = vld [vmem:[#allocation4 + $0x988] sm:$0xff]
        %v589 = vld [vmem:[#allocation4 + $0x990] sm:$0xff]
        %v590 = vld [vmem:[#allocation4 + $0x998] sm:$0xff]
        %v591 = vld [vmem:[#allocation4 + $0x9a0] sm:$0xff]
        %v592 = vld [vmem:[#allocation4 + $0x9a8] sm:$0xff]
        %v593 = vld [vmem:[#allocation4 + $0x9b0] sm:$0xff]
        %v594 = vld [vmem:[#allocation4 + $0x9b8] sm:$0xff]
        %v595 = vld [vmem:[#allocation4 + $0x9c0] sm:$0xff]
        %v596 = vld [vmem:[#allocation4 + $0x9c8] sm:$0xff]
        %v597 = vld [vmem:[#allocation4 + $0x9d0] sm:$0xff]
        %v598 = vld [vmem:[#allocation4 + $0x9d8] sm:$0xff]
        %v599 = vld [vmem:[#allocation4 + $0x9e0] sm:$0xff]
        %v600 = vld [vmem:[#allocation4 + $0x9e8] sm:$0xff]
        %v601 = vld [vmem:[#allocation4 + $0x9f0] sm:$0xff]
        %v602 = vld [vmem:[#allocation4 + $0x9f8] sm:$0xff]
        %v603 = vld [vmem:[#allocation4 + $0xa00] sm:$0xff]
        %v604 = vld [vmem:[#allocation4 + $0xa08] sm:$0xff]
        %v605 = vld [vmem:[#allocation4 + $0xa10] sm:$0xff]
        %v606 = vld [vmem:[#allocation4 + $0xa18] sm:$0xff]
        %v607 = vld [vmem:[#allocation4 + $0xa20] sm:$0xff]
        %v608 = vld [vmem:[#allocation4 + $0xa28] sm:$0xff]
        %v609 = vld [vmem:[#allocation4 + $0xa30] sm:$0xff]
        %v610 = vld [vmem:[#allocation4 + $0xa38] sm:$0xff]
        %v611 = vld [vmem:[#allocation4 + $0xa40] sm:$0xff]
        %v612 = vld [vmem:[#allocation4 + $0xa48] sm:$0xff]
        %v613 = vld [vmem:[#allocation4 + $0xa50] sm:$0xff]
        %v614 = vld [vmem:[#allocation4 + $0xa58] sm:$0xff]
        %v615 = vld [vmem:[#allocation4 + $0xa60] sm:$0xff]
        %v616 = vld [vmem:[#allocation4 + $0xa68] sm:$0xff]
        %v617 = vld [vmem:[#allocation4 + $0xa70] sm:$0xff]
        %v618 = vld [vmem:[#allocation4 + $0xa78] sm:$0xff]
        %v619 = vld [vmem:[#allocation4 + $0xa80] sm:$0xff]
        %v620 = vld [vmem:[#allocation4 + $0xa88] sm:$0xff]
        %v621 = vld [vmem:[#allocation4 + $0xa90] sm:$0xff]
        %v622 = vld [vmem:[#allocation4 + $0xa98] sm:$0xff]
        %v623 = vld [vmem:[#allocation4 + $0xaa0] sm:$0xff]
        %v624 = vld [vmem:[#allocation4 + $0xaa8] sm:$0xff]
        %v625 = vld [vmem:[#allocation4 + $0xab0] sm:$0xff]
        %v626 = vld [vmem:[#allocation4 + $0xab8] sm:$0xff]
        %v627 = vld [vmem:[#allocation4 + $0xac0] sm:$0xff]
        %v628 = vld [vmem:[#allocation4 + $0xac8] sm:$0xff]
        %v629 = vld [vmem:[#allocation4 + $0xad0] sm:$0xff]
        %v630 = vld [vmem:[#allocation4 + $0xad8] sm:$0xff]
        %v631 = vld [vmem:[#allocation4 + $0xae0] sm:$0xff]
        %v632 = vld [vmem:[#allocation4 + $0xae8] sm:$0xff]
        %v633 = vld [vmem:[#allocation4 + $0xaf0] sm:$0xff]
        %v634 = vld [vmem:[#allocation4 + $0xaf8] sm:$0xff]
        %v635 = vld [vmem:[#allocation4 + $0xb00] sm:$0xff]
        %v636 = vld [vmem:[#allocation4 + $0xb08] sm:$0xff]
        %v637 = vld [vmem:[#allocation4 + $0xb10] sm:$0xff]
        %v638 = vld [vmem:[#allocation4 + $0xb18] sm:$0xff]
        %v639 = vld [vmem:[#allocation4 + $0xb20] sm:$0xff]
        %v640 = vld [vmem:[#allocation4 + $0xb28] sm:$0xff]
        %v641 = vld [vmem:[#allocation4 + $0xb30] sm:$0xff]
        %v642 = vld [vmem:[#allocation4 + $0xb38] sm:$0xff]
        %v643 = vld [vmem:[#allocation4 + $0xb40] sm:$0xff]
        %v644 = vld [vmem:[#allocation4 + $0xb48] sm:$0xff]
        %v645 = vld [vmem:[#allocation4 + $0xb50] sm:$0xff]
        %v646 = vld [vmem:[#allocation4 + $0xb58] sm:$0xff]
        %v647 = vld [vmem:[#allocation4 + $0xb60] sm:$0xff]
        %v648 = vld [vmem:[#allocation4 + $0xb68] sm:$0xff]
        %v649 = vld [vmem:[#allocation4 + $0xb70] sm:$0xff]
        %v650 = vld [vmem:[#allocation4 + $0xb78] sm:$0xff]
        %v651 = vld [vmem:[#allocation4 + $0xb80] sm:$0xff]
        %v652 = vld [vmem:[#allocation4 + $0xb88] sm:$0xff]
        %v653 = vld [vmem:[#allocation4 + $0xb90] sm:$0xff]
        %v654 = vld [vmem:[#allocation4 + $0xb98] sm:$0xff]
        %v655 = vld [vmem:[#allocation4 + $0xba0] sm:$0xff]
        %v656 = vld [vmem:[#allocation4 + $0xba8] sm:$0xff]
        %v657 = vld [vmem:[#allocation4 + $0xbb0] sm:$0xff]
        %v658 = vld [vmem:[#allocation4 + $0xbb8] sm:$0xff]
        %v659 = vld [vmem:[#allocation4 + $0xbc0] sm:$0xff]
        %v660 = vld [vmem:[#allocation4 + $0xbc8] sm:$0xff]
        %v661 = vld [vmem:[#allocation4 + $0xbd0] sm:$0xff]
        %v662 = vld [vmem:[#allocation4 + $0xbd8] sm:$0xff]
        %v663 = vld [vmem:[#allocation4 + $0xbe0] sm:$0xff]
        %v664 = vld [vmem:[#allocation4 + $0xbe8] sm:$0xff]
        %v665 = vld [vmem:[#allocation4 + $0xbf0] sm:$0xff]
        %v666 = vld [vmem:[#allocation4 + $0xbf8] sm:$0xff]
        %v667 = vld [vmem:[#allocation4 + $0xc00] sm:$0xff]
        %v668 = vld [vmem:[#allocation4 + $0xc08] sm:$0xff]
        %v669 = vld [vmem:[#allocation4 + $0xc10] sm:$0xff]
        %v670 = vld [vmem:[#allocation4 + $0xc18] sm:$0xff]
        %v671 = vld [vmem:[#allocation4 + $0xc20] sm:$0xff]
        %v672 = vld [vmem:[#allocation4 + $0xc28] sm:$0xff]
        %v673 = vld [vmem:[#allocation4 + $0xc30] sm:$0xff]
        %v674 = vld [vmem:[#allocation4 + $0xc38] sm:$0xff]
        %v675 = vld [vmem:[#allocation4 + $0xc40] sm:$0xff]
        %v676 = vld [vmem:[#allocation4 + $0xc48] sm:$0xff]
        %v677 = vld [vmem:[#allocation4 + $0xc50] sm:$0xff]
        %v678 = vld [vmem:[#allocation4 + $0xc58] sm:$0xff]
        %v679 = vld [vmem:[#allocation4 + $0xc60] sm:$0xff]
        %v680 = vld [vmem:[#allocation4 + $0xc68] sm:$0xff]
        %v681 = vld [vmem:[#allocation4 + $0xc70] sm:$0xff]
        %v682 = vld [vmem:[#allocation4 + $0xc78] sm:$0xff]
        %v683 = vld [vmem:[#allocation4 + $0xc80] sm:$0xff]
        %v684 = vld [vmem:[#allocation4 + $0xc88] sm:$0xff]
        %v685 = vld [vmem:[#allocation4 + $0xc90] sm:$0xff]
        %v686 = vld [vmem:[#allocation4 + $0xc98] sm:$0xff]
        %v687 = vld [vmem:[#allocation4 + $0xca0] sm:$0xff]
        %v688 = vld [vmem:[#allocation4 + $0xca8] sm:$0xff]
        %v689 = vld [vmem:[#allocation4 + $0xcb0] sm:$0xff]
        %v690 = vld [vmem:[#allocation4 + $0xcb8] sm:$0xff]
        %v691 = vld [vmem:[#allocation4 + $0xcc0] sm:$0xff]
        %v692 = vld [vmem:[#allocation4 + $0xcc8] sm:$0xff]
        %v693 = vld [vmem:[#allocation4 + $0xcd0] sm:$0xff]
        %v694 = vld [vmem:[#allocation4 + $0xcd8] sm:$0xff]
        %v695 = vld [vmem:[#allocation4 + $0xce0] sm:$0xff]
        %v696 = vld [vmem:[#allocation4 + $0xce8] sm:$0xff]
        %v697 = vld [vmem:[#allocation4 + $0xcf0] sm:$0xff]
        %v698 = vld [vmem:[#allocation4 + $0xcf8] sm:$0xff]
        %v699 = vld [vmem:[#allocation4 + $0xd00] sm:$0xff]
        %v700 = vld [vmem:[#allocation4 + $0xd08] sm:$0xff]
        %v701 = vld [vmem:[#allocation4 + $0xd10] sm:$0xff]
        %v702 = vld [vmem:[#allocation4 + $0xd18] sm:$0xff]
        %v703 = vld [vmem:[#allocation4 + $0xd20] sm:$0xff]
        %v704 = vld [vmem:[#allocation4 + $0xd28] sm:$0xff]
        %v705 = vld [vmem:[#allocation4 + $0xd30] sm:$0xff]
        %v706 = vld [vmem:[#allocation4 + $0xd38] sm:$0xff]
        %v707 = vld [vmem:[#allocation4 + $0xd40] sm:$0xff]
        %v708 = vld [vmem:[#allocation4 + $0xd48] sm:$0xff]
        %v709 = vld [vmem:[#allocation4 + $0xd50] sm:$0xff]
        %v710 = vld [vmem:[#allocation4 + $0xd58] sm:$0xff]
        %v711 = vld [vmem:[#allocation4 + $0xd60] sm:$0xff]
        %v712 = vld [vmem:[#allocation4 + $0xd68] sm:$0xff]
        %v713 = vld [vmem:[#allocation4 + $0xd70] sm:$0xff]
        %v714 = vld [vmem:[#allocation4 + $0xd78] sm:$0xff]
        %v715 = vld [vmem:[#allocation4 + $0xd80] sm:$0xff]
        %v716 = vld [vmem:[#allocation4 + $0xd88] sm:$0xff]
        %v717 = vld [vmem:[#allocation4 + $0xd90] sm:$0xff]
        %v718 = vld [vmem:[#allocation4 + $0xd98] sm:$0xff]
        %v719 = vld [vmem:[#allocation4 + $0xda0] sm:$0xff]
        %v720 = vld [vmem:[#allocation4 + $0xda8] sm:$0xff]
        %v721 = vld [vmem:[#allocation4 + $0xdb0] sm:$0xff]
        %v722 = vld [vmem:[#allocation4 + $0xdb8] sm:$0xff]
        %v723 = vld [vmem:[#allocation4 + $0xdc0] sm:$0xff]
        %v724 = vld [vmem:[#allocation4 + $0xdc8] sm:$0xff]
        %v725 = vld [vmem:[#allocation4 + $0xdd0] sm:$0xff]
        %v726 = vld [vmem:[#allocation4 + $0xdd8] sm:$0xff]
        %v727 = vld [vmem:[#allocation4 + $0xde0] sm:$0xff]
        %v728 = vld [vmem:[#allocation4 + $0xde8] sm:$0xff]
        %v729 = vld [vmem:[#allocation4 + $0xdf0] sm:$0xff]
        %v730 = vld [vmem:[#allocation4 + $0xdf8] sm:$0xff]
        %v731 = vld [vmem:[#allocation4 + $0xe00] sm:$0xff]
        %v732 = vld [vmem:[#allocation4 + $0xe08] sm:$0xff]
        %v733 = vld [vmem:[#allocation4 + $0xe10] sm:$0xff]
        %v734 = vld [vmem:[#allocation4 + $0xe18] sm:$0xff]
        %v735 = vld [vmem:[#allocation4 + $0xe20] sm:$0xff]
        %v736 = vld [vmem:[#allocation4 + $0xe28] sm:$0xff]
        %v737 = vld [vmem:[#allocation4 + $0xe30] sm:$0xff]
        %v738 = vld [vmem:[#allocation4 + $0xe38] sm:$0xff]
        %v739 = vld [vmem:[#allocation4 + $0xe40] sm:$0xff]
        %v740 = vld [vmem:[#allocation4 + $0xe48] sm:$0xff]
        %v741 = vld [vmem:[#allocation4 + $0xe50] sm:$0xff]
        %v742 = vld [vmem:[#allocation4 + $0xe58] sm:$0xff]
        %v743 = vld [vmem:[#allocation4 + $0xe60] sm:$0xff]
        %v744 = vld [vmem:[#allocation4 + $0xe68] sm:$0xff]
        %v745 = vld [vmem:[#allocation4 + $0xe70] sm:$0xff]
        %v746 = vld [vmem:[#allocation4 + $0xe78] sm:$0xff]
        %v747 = vld [vmem:[#allocation4 + $0xe80] sm:$0xff]
        %v748 = vld [vmem:[#allocation4 + $0xe88] sm:$0xff]
        %v749 = vld [vmem:[#allocation4 + $0xe90] sm:$0xff]
        %v750 = vld [vmem:[#allocation4 + $0xe98] sm:$0xff]
        %v751 = vld [vmem:[#allocation4 + $0xea0] sm:$0xff]
        %v752 = vld [vmem:[#allocation4 + $0xea8] sm:$0xff]
        %v753 = vld [vmem:[#allocation4 + $0xeb0] sm:$0xff]
        %v754 = vld [vmem:[#allocation4 + $0xeb8] sm:$0xff]
        %v755 = vld [vmem:[#allocation4 + $0xec0] sm:$0xff]
        %v756 = vld [vmem:[#allocation4 + $0xec8] sm:$0xff]
        %v757 = vld [vmem:[#allocation4 + $0xed0] sm:$0xff]
        %v758 = vld [vmem:[#allocation4 + $0xed8] sm:$0xff]
        %v759 = vld [vmem:[#allocation4 + $0xee0] sm:$0xff]
        %v760 = vld [vmem:[#allocation4 + $0xee8] sm:$0xff]
        %v761 = vld [vmem:[#allocation4 + $0xef0] sm:$0xff]
        %v762 = vld [vmem:[#allocation4 + $0xef8] sm:$0xff]
        %v763 = vld [vmem:[#allocation4 + $0xf00] sm:$0xff]
        %v764 = vld [vmem:[#allocation4 + $0xf08] sm:$0xff]
        %v765 = vld [vmem:[#allocation4 + $0xf10] sm:$0xff]
        %v766 = vld [vmem:[#allocation4 + $0xf18] sm:$0xff]
        %v767 = vld [vmem:[#allocation4 + $0xf20] sm:$0xff]
        %v768 = vld [vmem:[#allocation4 + $0xf28] sm:$0xff]
        %v769 = vld [vmem:[#allocation4 + $0xf30] sm:$0xff]
        %v770 = vld [vmem:[#allocation4 + $0xf38] sm:$0xff]
        %v771 = vld [vmem:[#allocation4 + $0xf40] sm:$0xff]
        %v772 = vld [vmem:[#allocation4 + $0xf48] sm:$0xff]
        %v773 = vld [vmem:[#allocation4 + $0xf50] sm:$0xff]
        %v774 = vld [vmem:[#allocation4 + $0xf58] sm:$0xff]
        %v775 = vld [vmem:[#allocation4 + $0xf60] sm:$0xff]
        %v776 = vld [vmem:[#allocation4 + $0xf68] sm:$0xff]
        %v777 = vld [vmem:[#allocation4 + $0xf70] sm:$0xff]
        %v778 = vld [vmem:[#allocation4 + $0xf78] sm:$0xff]
        %v779 = vld [vmem:[#allocation4 + $0xf80] sm:$0xff]
        %v780 = vld [vmem:[#allocation4 + $0xf88] sm:$0xff]
        %v781 = vld [vmem:[#allocation4 + $0xf90] sm:$0xff]
        %v782 = vld [vmem:[#allocation4 + $0xf98] sm:$0xff]
        %v783 = vld [vmem:[#allocation4 + $0xfa0] sm:$0xff]
        %v784 = vld [vmem:[#allocation4 + $0xfa8] sm:$0xff]
        %v785 = vld [vmem:[#allocation4 + $0xfb0] sm:$0xff]
        %v786 = vld [vmem:[#allocation4 + $0xfb8] sm:$0xff]
        %v787 = vld [vmem:[#allocation4 + $0xfc0] sm:$0xff]
        %v788 = vld [vmem:[#allocation4 + $0xfc8] sm:$0xff]
        %v789 = vld [vmem:[#allocation4 + $0xfd0] sm:$0xff]
        %v790 = vld [vmem:[#allocation4 + $0xfd8] sm:$0xff]
        %v791 = vld [vmem:[#allocation4 + $0xfe0] sm:$0xff]
        %v792 = vld [vmem:[#allocation4 + $0xfe8] sm:$0xff]
        %v793 = vld [vmem:[#allocation4 + $0xff0] sm:$0xff]
        %v794 = vld [vmem:[#allocation4 + $0xff8] sm:$0xff]
        %v795 = vld [vmem:[#allocation4 + $0x1000] sm:$0xff]
        %v796 = vld [vmem:[#allocation4 + $0x1008] sm:$0xff]
        %v797 = vld [vmem:[#allocation4 + $0x1010] sm:$0xff]
        %v798 = vld [vmem:[#allocation4 + $0x1018] sm:$0xff]
        %v799 = vld [vmem:[#allocation4 + $0x1020] sm:$0xff]
        %v800 = vld [vmem:[#allocation4 + $0x1028] sm:$0xff]
        %v801 = vld [vmem:[#allocation4 + $0x1030] sm:$0xff]
        %v802 = vld [vmem:[#allocation4 + $0x1038] sm:$0xff]
        %v803 = vld [vmem:[#allocation4 + $0x1040] sm:$0xff]
        %v804 = vld [vmem:[#allocation4 + $0x1048] sm:$0xff]
        %v805 = vld [vmem:[#allocation4 + $0x1050] sm:$0xff]
        %v806 = vld [vmem:[#allocation4 + $0x1058] sm:$0xff]
        %v807 = vld [vmem:[#allocation4 + $0x1060] sm:$0xff]
        %v808 = vld [vmem:[#allocation4 + $0x1068] sm:$0xff]
        %v809 = vld [vmem:[#allocation4 + $0x1070] sm:$0xff]
        %v810 = vld [vmem:[#allocation4 + $0x1078] sm:$0xff]
        %v811 = vld [vmem:[#allocation4 + $0x1080] sm:$0xff]
        %v812 = vld [vmem:[#allocation4 + $0x1088] sm:$0xff]
        %v813 = vld [vmem:[#allocation4 + $0x1090] sm:$0xff]
        %v814 = vld [vmem:[#allocation4 + $0x1098] sm:$0xff]
        %v815 = vld [vmem:[#allocation4 + $0x10a0] sm:$0xff]
        %v816 = vld [vmem:[#allocation4 + $0x10a8] sm:$0xff]
        %v817 = vld [vmem:[#allocation4 + $0x10b0] sm:$0xff]
        %v818 = vld [vmem:[#allocation4 + $0x10b8] sm:$0xff]
        %v819 = vld [vmem:[#allocation4 + $0x10c0] sm:$0xff]
        %v820 = vld [vmem:[#allocation4 + $0x10c8] sm:$0xff]
        %v821 = vld [vmem:[#allocation4 + $0x10d0] sm:$0xff]
        %v822 = vld [vmem:[#allocation4 + $0x10d8] sm:$0xff]
        %v823 = vld [vmem:[#allocation4 + $0x10e0] sm:$0xff]
        %v824 = vld [vmem:[#allocation4 + $0x10e8] sm:$0xff]
        %v825 = vld [vmem:[#allocation4 + $0x10f0] sm:$0xff]
        %v826 = vld [vmem:[#allocation4 + $0x10f8] sm:$0xff]
        %v827 = vld [vmem:[#allocation4 + $0x1100] sm:$0xff]
        %v828 = vld [vmem:[#allocation4 + $0x1108] sm:$0xff]
        %v829 = vld [vmem:[#allocation4 + $0x1110] sm:$0xff]
        %v830 = vld [vmem:[#allocation4 + $0x1118] sm:$0xff]
        %v831 = vld [vmem:[#allocation4 + $0x1120] sm:$0xff]
        %v832 = vld [vmem:[#allocation4 + $0x1128] sm:$0xff]
        %v833 = vld [vmem:[#allocation4 + $0x1130] sm:$0xff]
        %v834 = vld [vmem:[#allocation4 + $0x1138] sm:$0xff]
        %v835 = vld [vmem:[#allocation4 + $0x1140] sm:$0xff]
        %v836 = vld [vmem:[#allocation4 + $0x1148] sm:$0xff]
        %v837 = vld [vmem:[#allocation4 + $0x1150] sm:$0xff]
        %v838 = vld [vmem:[#allocation4 + $0x1158] sm:$0xff]
        %v839 = vld [vmem:[#allocation4 + $0x1160] sm:$0xff]
        %v840 = vld [vmem:[#allocation4 + $0x1168] sm:$0xff]
        %v841 = vld [vmem:[#allocation4 + $0x1170] sm:$0xff]
        %v842 = vld [vmem:[#allocation4 + $0x1178] sm:$0xff]
        %v843 = vld [vmem:[#allocation4 + $0x1180] sm:$0xff]
        %v844 = vld [vmem:[#allocation4 + $0x1188] sm:$0xff]
        %v845 = vld [vmem:[#allocation4 + $0x1190] sm:$0xff]
        %v846 = vld [vmem:[#allocation4 + $0x1198] sm:$0xff]
        %v847 = vld [vmem:[#allocation4 + $0x11a0] sm:$0xff]
        %v848 = vld [vmem:[#allocation4 + $0x11a8] sm:$0xff]
        %v849 = vld [vmem:[#allocation4 + $0x11b0] sm:$0xff]
        %v850 = vld [vmem:[#allocation4 + $0x11b8] sm:$0xff]
        %v851 = vld [vmem:[#allocation4 + $0x11c0] sm:$0xff]
        %v852 = vld [vmem:[#allocation4 + $0x11c8] sm:$0xff]
        %v853 = vld [vmem:[#allocation4 + $0x11d0] sm:$0xff]
        %v854 = vld [vmem:[#allocation4 + $0x11d8] sm:$0xff]
        %v855 = vld [vmem:[#allocation4 + $0x11e0] sm:$0xff]
        %v856 = vld [vmem:[#allocation4 + $0x11e8] sm:$0xff]
        %v857 = vld [vmem:[#allocation4 + $0x11f0] sm:$0xff]
        %v858 = vld [vmem:[#allocation4 + $0x11f8] sm:$0xff]
        %v859 = vld [vmem:[#allocation4 + $0x1200] sm:$0xff]
        %v860 = vld [vmem:[#allocation4 + $0x1208] sm:$0xff]
        %v861 = vld [vmem:[#allocation4 + $0x1210] sm:$0xff]
        %v862 = vld [vmem:[#allocation4 + $0x1218] sm:$0xff]
        %v863 = vld [vmem:[#allocation4 + $0x1220] sm:$0xff]
        %v864 = vld [vmem:[#allocation4 + $0x1228] sm:$0xff]
        %v865 = vld [vmem:[#allocation4 + $0x1230] sm:$0xff]
        %v866 = vld [vmem:[#allocation4 + $0x1238] sm:$0xff]
        %v867 = vld [vmem:[#allocation4 + $0x1240] sm:$0xff]
        %v868 = vld [vmem:[#allocation4 + $0x1248] sm:$0xff]
        %v869 = vld [vmem:[#allocation4 + $0x1250] sm:$0xff]
        %v870 = vld [vmem:[#allocation4 + $0x1258] sm:$0xff]
        %v871 = vld [vmem:[#allocation4 + $0x1260] sm:$0xff]
        %v872 = vld [vmem:[#allocation4 + $0x1268] sm:$0xff]
        %v873 = vld [vmem:[#allocation4 + $0x1270] sm:$0xff]
        %v874 = vld [vmem:[#allocation4 + $0x1278] sm:$0xff]
        %v875 = vld [vmem:[#allocation4 + $0x1280] sm:$0xff]
        %v876 = vld [vmem:[#allocation4 + $0x1288] sm:$0xff]
        %v877 = vld [vmem:[#allocation4 + $0x1290] sm:$0xff]
        %v878 = vld [vmem:[#allocation4 + $0x1298] sm:$0xff]
        %v879 = vld [vmem:[#allocation4 + $0x12a0] sm:$0xff]
        %v880 = vld [vmem:[#allocation4 + $0x12a8] sm:$0xff]
        %v881 = vld [vmem:[#allocation4 + $0x12b0] sm:$0xff]
        %v882 = vld [vmem:[#allocation4 + $0x12b8] sm:$0xff]
        %v883 = vld [vmem:[#allocation4 + $0x12c0] sm:$0xff]
        %v884 = vld [vmem:[#allocation4 + $0x12c8] sm:$0xff]
        %v885 = vld [vmem:[#allocation4 + $0x12d0] sm:$0xff]
        %v886 = vld [vmem:[#allocation4 + $0x12d8] sm:$0xff]
        %v887 = vld [vmem:[#allocation4 + $0x12e0] sm:$0xff]
        %v888 = vld [vmem:[#allocation4 + $0x12e8] sm:$0xff]
        %v889 = vld [vmem:[#allocation4 + $0x12f0] sm:$0xff]
        %v890 = vld [vmem:[#allocation4 + $0x12f8] sm:$0xff]
        %v891 = vld [vmem:[#allocation4 + $0x1300] sm:$0xff]
        %v892 = vld [vmem:[#allocation4 + $0x1308] sm:$0xff]
        %v893 = vld [vmem:[#allocation4 + $0x1310] sm:$0xff]
        %v894 = vld [vmem:[#allocation4 + $0x1318] sm:$0xff]
        %v895 = vld [vmem:[#allocation4 + $0x1320] sm:$0xff]
        %v896 = vld [vmem:[#allocation4 + $0x1328] sm:$0xff]
        %v897 = vld [vmem:[#allocation4 + $0x1330] sm:$0xff]
        %v898 = vld [vmem:[#allocation4 + $0x1338] sm:$0xff]
        %v899 = vld [vmem:[#allocation4 + $0x1340] sm:$0xff]
        %v900 = vld [vmem:[#allocation4 + $0x1348] sm:$0xff]
        %v901 = vld [vmem:[#allocation4 + $0x1350] sm:$0xff]
        %v902 = vld [vmem:[#allocation4 + $0x1358] sm:$0xff]
        %v903 = vld [vmem:[#allocation4 + $0x1360] sm:$0xff]
        %v904 = vld [vmem:[#allocation4 + $0x1368] sm:$0xff]
        %v905 = vld [vmem:[#allocation4 + $0x1370] sm:$0xff]
        %v906 = vld [vmem:[#allocation4 + $0x1378] sm:$0xff]
        %v907 = vld [vmem:[#allocation4 + $0x1380] sm:$0xff]
        %v908 = vld [vmem:[#allocation4 + $0x1388] sm:$0xff]
        %v909 = vld [vmem:[#allocation4 + $0x1390] sm:$0xff]
        %v910 = vld [vmem:[#allocation4 + $0x1398] sm:$0xff]
        %v911 = vld [vmem:[#allocation4 + $0x13a0] sm:$0xff]
        %v912 = vld [vmem:[#allocation4 + $0x13a8] sm:$0xff]
        %v913 = vld [vmem:[#allocation4 + $0x13b0] sm:$0xff]
        %v914 = vld [vmem:[#allocation4 + $0x13b8] sm:$0xff]
        %v915 = vld [vmem:[#allocation4 + $0x13c0] sm:$0xff]
        %v916 = vld [vmem:[#allocation4 + $0x13c8] sm:$0xff]
        %v917 = vld [vmem:[#allocation4 + $0x13d0] sm:$0xff]
        %v918 = vld [vmem:[#allocation4 + $0x13d8] sm:$0xff]
        %v919 = vld [vmem:[#allocation4 + $0x13e0] sm:$0xff]
        %v920 = vld [vmem:[#allocation4 + $0x13e8] sm:$0xff]
        %v921 = vld [vmem:[#allocation4 + $0x13f0] sm:$0xff]
        %v922 = vld [vmem:[#allocation4 + $0x13f8] sm:$0xff]
        %v923 = vld [vmem:[#allocation4 + $0x1400] sm:$0xff]
        %v924 = vld [vmem:[#allocation4 + $0x1408] sm:$0xff]
        %v925 = vld [vmem:[#allocation4 + $0x1410] sm:$0xff]
        %v926 = vld [vmem:[#allocation4 + $0x1418] sm:$0xff]
        %v927 = vld [vmem:[#allocation4 + $0x1420] sm:$0xff]
        %v928 = vld [vmem:[#allocation4 + $0x1428] sm:$0xff]
        %v929 = vld [vmem:[#allocation4 + $0x1430] sm:$0xff]
        %v930 = vld [vmem:[#allocation4 + $0x1438] sm:$0xff]
        %v931 = vld [vmem:[#allocation4 + $0x1440] sm:$0xff]
        %v932 = vld [vmem:[#allocation4 + $0x1448] sm:$0xff]
        %v933 = vld [vmem:[#allocation4 + $0x1450] sm:$0xff]
        %v934 = vld [vmem:[#allocation4 + $0x1458] sm:$0xff]
        %v935 = vld [vmem:[#allocation4 + $0x1460] sm:$0xff]
        %v936 = vld [vmem:[#allocation4 + $0x1468] sm:$0xff]
        %v937 = vld [vmem:[#allocation4 + $0x1470] sm:$0xff]
        %v938 = vld [vmem:[#allocation4 + $0x1478] sm:$0xff]
        %v939 = vld [vmem:[#allocation4 + $0x1480] sm:$0xff]
        %v940 = vld [vmem:[#allocation4 + $0x1488] sm:$0xff]
        %v941 = vld [vmem:[#allocation4 + $0x1490] sm:$0xff]
        %v942 = vld [vmem:[#allocation4 + $0x1498] sm:$0xff]
        %v943 = vld [vmem:[#allocation4 + $0x14a0] sm:$0xff]
        %v944 = vld [vmem:[#allocation4 + $0x14a8] sm:$0xff]
        %v945 = vld [vmem:[#allocation4 + $0x14b0] sm:$0xff]
        %v946 = vld [vmem:[#allocation4 + $0x14b8] sm:$0xff]
        %v947 = vld [vmem:[#allocation4 + $0x14c0] sm:$0xff]
        %v948 = vld [vmem:[#allocation4 + $0x14c8] sm:$0xff]
        %v949 = vld [vmem:[#allocation4 + $0x14d0] sm:$0xff]
        %v950 = vld [vmem:[#allocation4 + $0x14d8] sm:$0xff]
        %v951 = vld [vmem:[#allocation4 + $0x14e0] sm:$0xff]
        %v952 = vld [vmem:[#allocation4 + $0x14e8] sm:$0xff]
        %v953 = vld [vmem:[#allocation4 + $0x14f0] sm:$0xff]
        %v954 = vld [vmem:[#allocation4 + $0x14f8] sm:$0xff]
        %v955 = vld [vmem:[#allocation4 + $0x1500] sm:$0xff]
        %v956 = vld [vmem:[#allocation4 + $0x1508] sm:$0xff]
        %v957 = vld [vmem:[#allocation4 + $0x1510] sm:$0xff]
        %v958 = vld [vmem:[#allocation4 + $0x1518] sm:$0xff]
        %v959 = vld [vmem:[#allocation4 + $0x1520] sm:$0xff]
        %v960 = vld [vmem:[#allocation4 + $0x1528] sm:$0xff]
        %v961 = vld [vmem:[#allocation4 + $0x1530] sm:$0xff]
        %v962 = vld [vmem:[#allocation4 + $0x1538] sm:$0xff]
        %v963 = vld [vmem:[#allocation4 + $0x1540] sm:$0xff]
        %v964 = vld [vmem:[#allocation4 + $0x1548] sm:$0xff]
        %v965 = vld [vmem:[#allocation4 + $0x1550] sm:$0xff]
        %v966 = vld [vmem:[#allocation4 + $0x1558] sm:$0xff]
        %v967 = vld [vmem:[#allocation4 + $0x1560] sm:$0xff]
        %v968 = vld [vmem:[#allocation4 + $0x1568] sm:$0xff]
        %v969 = vld [vmem:[#allocation4 + $0x1570] sm:$0xff]
        %v970 = vld [vmem:[#allocation4 + $0x1578] sm:$0xff]
        %v971 = vld [vmem:[#allocation4 + $0x1580] sm:$0xff]
        %v972 = vld [vmem:[#allocation4 + $0x1588] sm:$0xff]
        %v973 = vld [vmem:[#allocation4 + $0x1590] sm:$0xff]
        %v974 = vld [vmem:[#allocation4 + $0x1598] sm:$0xff]
        %v975 = vld [vmem:[#allocation4 + $0x15a0] sm:$0xff]
        %v976 = vld [vmem:[#allocation4 + $0x15a8] sm:$0xff]
        %v977 = vld [vmem:[#allocation4 + $0x15b0] sm:$0xff]
        %v978 = vld [vmem:[#allocation4 + $0x15b8] sm:$0xff]
        %v979 = vld [vmem:[#allocation4 + $0x15c0] sm:$0xff]
        %v980 = vld [vmem:[#allocation4 + $0x15c8] sm:$0xff]
        %v981 = vld [vmem:[#allocation4 + $0x15d0] sm:$0xff]
        %v982 = vld [vmem:[#allocation4 + $0x15d8] sm:$0xff]
        %v983 = vld [vmem:[#allocation4 + $0x15e0] sm:$0xff]
        %v984 = vld [vmem:[#allocation4 + $0x15e8] sm:$0xff]
        %v985 = vld [vmem:[#allocation4 + $0x15f0] sm:$0xff]
        %v986 = vld [vmem:[#allocation4 + $0x15f8] sm:$0xff]
        %v987 = vld [vmem:[#allocation4 + $0x1600] sm:$0xff]
        %v988 = vld [vmem:[#allocation4 + $0x1608] sm:$0xff]
        %v989 = vld [vmem:[#allocation4 + $0x1610] sm:$0xff]
        %v990 = vld [vmem:[#allocation4 + $0x1618] sm:$0xff]
        %v991 = vld [vmem:[#allocation4 + $0x1620] sm:$0xff]
        %v992 = vld [vmem:[#allocation4 + $0x1628] sm:$0xff]
        %v993 = vld [vmem:[#allocation4 + $0x1630] sm:$0xff]
        %v994 = vld [vmem:[#allocation4 + $0x1638] sm:$0xff]
        %v995 = vld [vmem:[#allocation4 + $0x1640] sm:$0xff]
        %v996 = vld [vmem:[#allocation4 + $0x1648] sm:$0xff]
        %v997 = vld [vmem:[#allocation4 + $0x1650] sm:$0xff]
        %v998 = vld [vmem:[#allocation4 + $0x1658] sm:$0xff]
        %v999 = vld [vmem:[#allocation4 + $0x1660] sm:$0xff]
        %v1000 = vld [vmem:[#allocation4 + $0x1668] sm:$0xff]
        %v1001 = vld [vmem:[#allocation4 + $0x1670] sm:$0xff]
        %v1002 = vld [vmem:[#allocation4 + $0x1678] sm:$0xff]
        %v1003 = vld [vmem:[#allocation4 + $0x1680] sm:$0xff]
        %v1004 = vld [vmem:[#allocation4 + $0x1688] sm:$0xff]
        %v1005 = vld [vmem:[#allocation4 + $0x1690] sm:$0xff]
        %v1006 = vld [vmem:[#allocation4 + $0x1698] sm:$0xff]
        %v1007 = vld [vmem:[#allocation4 + $0x16a0] sm:$0xff]
        %v1008 = vld [vmem:[#allocation4 + $0x16a8] sm:$0xff]
        %v1009 = vld [vmem:[#allocation4 + $0x16b0] sm:$0xff]
        %v1010 = vld [vmem:[#allocation4 + $0x16b8] sm:$0xff]
        %v1011 = vld [vmem:[#allocation4 + $0x16c0] sm:$0xff]
        %v1012 = vld [vmem:[#allocation4 + $0x16c8] sm:$0xff]
        %v1013 = vld [vmem:[#allocation4 + $0x16d0] sm:$0xff]
        %v1014 = vld [vmem:[#allocation4 + $0x16d8] sm:$0xff]
        %v1015 = vld [vmem:[#allocation4 + $0x16e0] sm:$0xff]
        %v1016 = vld [vmem:[#allocation4 + $0x16e8] sm:$0xff]
        %v1017 = vld [vmem:[#allocation4 + $0x16f0] sm:$0xff]
        %v1018 = vld [vmem:[#allocation4 + $0x16f8] sm:$0xff]
        %v1019 = vld [vmem:[#allocation4 + $0x1700] sm:$0xff]
        %v1020 = vld [vmem:[#allocation4 + $0x1708] sm:$0xff]
        %v1021 = vld [vmem:[#allocation4 + $0x1710] sm:$0xff]
        %v1022 = vld [vmem:[#allocation4 + $0x1718] sm:$0xff]
        %v1023 = vld [vmem:[#allocation4 + $0x1720] sm:$0xff]
        %v1024 = vld [vmem:[#allocation4 + $0x1728] sm:$0xff]
        %v1025 = vld [vmem:[#allocation4 + $0x1730] sm:$0xff]
        %v1026 = vld [vmem:[#allocation4 + $0x1738] sm:$0xff]
        %v1027 = vld [vmem:[#allocation4 + $0x1740] sm:$0xff]
        %v1028 = vld [vmem:[#allocation4 + $0x1748] sm:$0xff]
        %v1029 = vld [vmem:[#allocation4 + $0x1750] sm:$0xff]
        %v1030 = vld [vmem:[#allocation4 + $0x1758] sm:$0xff]
        %v1031 = vld [vmem:[#allocation4 + $0x1760] sm:$0xff]
        %v1032 = vld [vmem:[#allocation4 + $0x1768] sm:$0xff]
        %v1033 = vld [vmem:[#allocation4 + $0x1770] sm:$0xff]
        %v1034 = vld [vmem:[#allocation4 + $0x1778] sm:$0xff]
        %v1035 = vld [vmem:[#allocation4 + $0x1780] sm:$0xff]
        %v1036 = vld [vmem:[#allocation4 + $0x1788] sm:$0xff]
        %v1037 = vld [vmem:[#allocation4 + $0x1790] sm:$0xff]
        %v1038 = vld [vmem:[#allocation4 + $0x1798] sm:$0xff]
        %v1039 = vld [vmem:[#allocation4 + $0x17a0] sm:$0xff]
        %v1040 = vld [vmem:[#allocation4 + $0x17a8] sm:$0xff]
        %v1041 = vld [vmem:[#allocation4 + $0x17b0] sm:$0xff]
        %v1042 = vld [vmem:[#allocation4 + $0x17b8] sm:$0xff]
        %v1043 = vld [vmem:[#allocation4 + $0x17c0] sm:$0xff]
        %v1044 = vld [vmem:[#allocation4 + $0x17c8] sm:$0xff]
        %v1045 = vld [vmem:[#allocation4 + $0x17d0] sm:$0xff]
        %v1046 = vld [vmem:[#allocation4 + $0x17d8] sm:$0xff]
        %v1047 = vld [vmem:[#allocation4 + $0x17e0] sm:$0xff]
        %v1048 = vld [vmem:[#allocation4 + $0x17e8] sm:$0xff]
        %v1049 = vld [vmem:[#allocation4 + $0x17f0] sm:$0xff]
        %v1050 = vld [vmem:[#allocation4 + $0x17f8] sm:$0xff]
        %v1051 = vld [vmem:[#allocation4 + $0x1800] sm:$0xff]
        %v1052 = vld [vmem:[#allocation4 + $0x1808] sm:$0xff]
        %v1053 = vld [vmem:[#allocation4 + $0x1810] sm:$0xff]
        %v1054 = vld [vmem:[#allocation4 + $0x1818] sm:$0xff]
        %v1055 = vld [vmem:[#allocation4 + $0x1820] sm:$0xff]
        %v1056 = vld [vmem:[#allocation4 + $0x1828] sm:$0xff]
        %v1057 = vld [vmem:[#allocation4 + $0x1830] sm:$0xff]
        %v1058 = vld [vmem:[#allocation4 + $0x1838] sm:$0xff]
        %v1059 = vld [vmem:[#allocation4 + $0x1840] sm:$0xff]
        %v1060 = vld [vmem:[#allocation4 + $0x1848] sm:$0xff]
        %v1061 = vld [vmem:[#allocation4 + $0x1850] sm:$0xff]
        %v1062 = vld [vmem:[#allocation4 + $0x1858] sm:$0xff]
        %v1063 = vld [vmem:[#allocation4 + $0x1860] sm:$0xff]
        %v1064 = vld [vmem:[#allocation4 + $0x1868] sm:$0xff]
        %v1065 = vld [vmem:[#allocation4 + $0x1870] sm:$0xff]
        %v1066 = vld [vmem:[#allocation4 + $0x1878] sm:$0xff]
        %v1067 = vld [vmem:[#allocation4 + $0x1880] sm:$0xff]
        %v1068 = vld [vmem:[#allocation4 + $0x1888] sm:$0xff]
        %v1069 = vld [vmem:[#allocation4 + $0x1890] sm:$0xff]
        %v1070 = vld [vmem:[#allocation4 + $0x1898] sm:$0xff]
        %v1071 = vld [vmem:[#allocation4 + $0x18a0] sm:$0xff]
        %v1072 = vld [vmem:[#allocation4 + $0x18a8] sm:$0xff]
        %v1073 = vld [vmem:[#allocation4 + $0x18b0] sm:$0xff]
        %v1074 = vld [vmem:[#allocation4 + $0x18b8] sm:$0xff]
        %v1075 = vld [vmem:[#allocation4 + $0x18c0] sm:$0xff]
        %v1076 = vld [vmem:[#allocation4 + $0x18c8] sm:$0xff]
        %v1077 = vld [vmem:[#allocation4 + $0x18d0] sm:$0xff]
        %v1078 = vld [vmem:[#allocation4 + $0x18d8] sm:$0xff]
        %v1079 = vld [vmem:[#allocation4 + $0x18e0] sm:$0xff]
        %v1080 = vld [vmem:[#allocation4 + $0x18e8] sm:$0xff]
        %v1081 = vld [vmem:[#allocation4 + $0x18f0] sm:$0xff]
        %v1082 = vld [vmem:[#allocation4 + $0x18f8] sm:$0xff]
        %v1083 = vld [vmem:[#allocation4 + $0x1900] sm:$0xff]
        %v1084 = vld [vmem:[#allocation4 + $0x1908] sm:$0xff]
        %v1085 = vld [vmem:[#allocation4 + $0x1910] sm:$0xff]
        %v1086 = vld [vmem:[#allocation4 + $0x1918] sm:$0xff]
        %v1087 = vld [vmem:[#allocation4 + $0x1920] sm:$0xff]
        %v1088 = vld [vmem:[#allocation4 + $0x1928] sm:$0xff]
        %v1089 = vld [vmem:[#allocation4 + $0x1930] sm:$0xff]
        %v1090 = vld [vmem:[#allocation4 + $0x1938] sm:$0xff]
        %v1091 = vld [vmem:[#allocation4 + $0x1940] sm:$0xff]
        %v1092 = vld [vmem:[#allocation4 + $0x1948] sm:$0xff]
        %v1093 = vld [vmem:[#allocation4 + $0x1950] sm:$0xff]
        %v1094 = vld [vmem:[#allocation4 + $0x1958] sm:$0xff]
        %v1095 = vld [vmem:[#allocation4 + $0x1960] sm:$0xff]
        %v1096 = vld [vmem:[#allocation4 + $0x1968] sm:$0xff]
        %v1097 = vld [vmem:[#allocation4 + $0x1970] sm:$0xff]
        %v1098 = vld [vmem:[#allocation4 + $0x1978] sm:$0xff]
        %v1099 = vld [vmem:[#allocation4 + $0x1980] sm:$0xff]
        %v1100 = vld [vmem:[#allocation4 + $0x1988] sm:$0xff]
        %v1101 = vld [vmem:[#allocation4 + $0x1990] sm:$0xff]
        %v1102 = vld [vmem:[#allocation4 + $0x1998] sm:$0xff]
        %v1103 = vld [vmem:[#allocation4 + $0x19a0] sm:$0xff]
        %v1104 = vld [vmem:[#allocation4 + $0x19a8] sm:$0xff]
        %v1105 = vld [vmem:[#allocation4 + $0x19b0] sm:$0xff]
        %v1106 = vld [vmem:[#allocation4 + $0x19b8] sm:$0xff]
        %v1107 = vld [vmem:[#allocation4 + $0x19c0] sm:$0xff]
        %v1108 = vld [vmem:[#allocation4 + $0x19c8] sm:$0xff]
        %v1109 = vld [vmem:[#allocation4 + $0x19d0] sm:$0xff]
        %v1110 = vld [vmem:[#allocation4 + $0x19d8] sm:$0xff]
        %v1111 = vld [vmem:[#allocation4 + $0x19e0] sm:$0xff]
        %v1112 = vld [vmem:[#allocation4 + $0x19e8] sm:$0xff]
        %v1113 = vld [vmem:[#allocation4 + $0x19f0] sm:$0xff]
        %v1114 = vld [vmem:[#allocation4 + $0x19f8] sm:$0xff]
        %v1115 = vld [vmem:[#allocation4 + $0x1a00] sm:$0xff]
        %v1116 = vld [vmem:[#allocation4 + $0x1a08] sm:$0xff]
        %v1117 = vld [vmem:[#allocation4 + $0x1a10] sm:$0xff]
        %v1118 = vld [vmem:[#allocation4 + $0x1a18] sm:$0xff]
        %v1119 = vld [vmem:[#allocation4 + $0x1a20] sm:$0xff]
        %v1120 = vld [vmem:[#allocation4 + $0x1a28] sm:$0xff]
        %v1121 = vld [vmem:[#allocation4 + $0x1a30] sm:$0xff]
        %v1122 = vld [vmem:[#allocation4 + $0x1a38] sm:$0xff]
        %v1123 = vld [vmem:[#allocation4 + $0x1a40] sm:$0xff]
        %v1124 = vld [vmem:[#allocation4 + $0x1a48] sm:$0xff]
        %v1125 = vld [vmem:[#allocation4 + $0x1a50] sm:$0xff]
        %v1126 = vld [vmem:[#allocation4 + $0x1a58] sm:$0xff]
        %v1127 = vld [vmem:[#allocation4 + $0x1a60] sm:$0xff]
        %v1128 = vld [vmem:[#allocation4 + $0x1a68] sm:$0xff]
        %v1129 = vld [vmem:[#allocation4 + $0x1a70] sm:$0xff]
        %v1130 = vld [vmem:[#allocation4 + $0x1a78] sm:$0xff]
        %v1131 = vld [vmem:[#allocation4 + $0x1a80] sm:$0xff]
        %v1132 = vld [vmem:[#allocation4 + $0x1a88] sm:$0xff]
        %v1133 = vld [vmem:[#allocation4 + $0x1a90] sm:$0xff]
        %v1134 = vld [vmem:[#allocation4 + $0x1a98] sm:$0xff]
        %v1135 = vld [vmem:[#allocation4 + $0x1aa0] sm:$0xff]
        %v1136 = vld [vmem:[#allocation4 + $0x1aa8] sm:$0xff]
        %v1137 = vld [vmem:[#allocation4 + $0x1ab0] sm:$0xff]
        %v1138 = vld [vmem:[#allocation4 + $0x1ab8] sm:$0xff]
        %v1139 = vld [vmem:[#allocation4 + $0x1ac0] sm:$0xff]
        %v1140 = vld [vmem:[#allocation4 + $0x1ac8] sm:$0xff]
        %v1141 = vld [vmem:[#allocation4 + $0x1ad0] sm:$0xff]
        %v1142 = vld [vmem:[#allocation4 + $0x1ad8] sm:$0xff]
        %v1143 = vld [vmem:[#allocation4 + $0x1ae0] sm:$0xff]
        %v1144 = vld [vmem:[#allocation4 + $0x1ae8] sm:$0xff]
        %v1145 = vld [vmem:[#allocation4 + $0x1af0] sm:$0xff]
        %v1146 = vld [vmem:[#allocation4 + $0x1af8] sm:$0xff]
        %v1147 = vld [vmem:[#allocation4 + $0x1b00] sm:$0xff]
        %v1148 = vld [vmem:[#allocation4 + $0x1b08] sm:$0xff]
        %v1149 = vld [vmem:[#allocation4 + $0x1b10] sm:$0xff]
        %v1150 = vld [vmem:[#allocation4 + $0x1b18] sm:$0xff]
        %v1151 = vld [vmem:[#allocation4 + $0x1b20] sm:$0xff]
        %v1152 = vld [vmem:[#allocation4 + $0x1b28] sm:$0xff]
        %v1153 = vld [vmem:[#allocation4 + $0x1b30] sm:$0xff]
        %v1154 = vld [vmem:[#allocation4 + $0x1b38] sm:$0xff]
        %v1155 = vld [vmem:[#allocation4 + $0x1b40] sm:$0xff]
        %v1156 = vld [vmem:[#allocation4 + $0x1b48] sm:$0xff]
        %v1157 = vld [vmem:[#allocation4 + $0x1b50] sm:$0xff]
        %v1158 = vld [vmem:[#allocation4 + $0x1b58] sm:$0xff]
        %v1159 = vld [vmem:[#allocation4 + $0x1b60] sm:$0xff]
        %v1160 = vld [vmem:[#allocation4 + $0x1b68] sm:$0xff]
        %v1161 = vld [vmem:[#allocation4 + $0x1b70] sm:$0xff]
        %v1162 = vld [vmem:[#allocation4 + $0x1b78] sm:$0xff]
        %v1163 = vld [vmem:[#allocation4 + $0x1b80] sm:$0xff]
        %v1164 = vld [vmem:[#allocation4 + $0x1b88] sm:$0xff]
        %v1165 = vld [vmem:[#allocation4 + $0x1b90] sm:$0xff]
        %v1166 = vld [vmem:[#allocation4 + $0x1b98] sm:$0xff]
        %v1167 = vld [vmem:[#allocation4 + $0x1ba0] sm:$0xff]
        %v1168 = vld [vmem:[#allocation4 + $0x1ba8] sm:$0xff]
        %v1169 = vld [vmem:[#allocation4 + $0x1bb0] sm:$0xff]
        %v1170 = vld [vmem:[#allocation4 + $0x1bb8] sm:$0xff]
        %v1171 = vld [vmem:[#allocation4 + $0x1bc0] sm:$0xff]
        %v1172 = vld [vmem:[#allocation4 + $0x1bc8] sm:$0xff]
        %v1173 = vld [vmem:[#allocation4 + $0x1bd0] sm:$0xff]
        %v1174 = vld [vmem:[#allocation4 + $0x1bd8] sm:$0xff]
        %v1175 = vld [vmem:[#allocation4 + $0x1be0] sm:$0xff]
        %v1176 = vld [vmem:[#allocation4 + $0x1be8] sm:$0xff]
        %v1177 = vld [vmem:[#allocation4 + $0x1bf0] sm:$0xff]
        %v1178 = vld [vmem:[#allocation4 + $0x1bf8] sm:$0xff]
        %v1179 = vld [vmem:[#allocation4 + $0x1c00] sm:$0xff]
        %v1180 = vld [vmem:[#allocation4 + $0x1c08] sm:$0xff]
        %v1181 = vld [vmem:[#allocation4 + $0x1c10] sm:$0xff]
        %v1182 = vld [vmem:[#allocation4 + $0x1c18] sm:$0xff]
        %v1183 = vld [vmem:[#allocation4 + $0x1c20] sm:$0xff]
        %v1184 = vld [vmem:[#allocation4 + $0x1c28] sm:$0xff]
        %v1185 = vld [vmem:[#allocation4 + $0x1c30] sm:$0xff]
        %v1186 = vld [vmem:[#allocation4 + $0x1c38] sm:$0xff]
        %v1187 = vld [vmem:[#allocation4 + $0x1c40] sm:$0xff]
        %v1188 = vld [vmem:[#allocation4 + $0x1c48] sm:$0xff]
        %v1189 = vld [vmem:[#allocation4 + $0x1c50] sm:$0xff]
        %v1190 = vld [vmem:[#allocation4 + $0x1c58] sm:$0xff]
        %v1191 = vld [vmem:[#allocation4 + $0x1c60] sm:$0xff]
        %v1192 = vld [vmem:[#allocation4 + $0x1c68] sm:$0xff]
        %v1193 = vld [vmem:[#allocation4 + $0x1c70] sm:$0xff]
        %v1194 = vld [vmem:[#allocation4 + $0x1c78] sm:$0xff]
        %v1195 = vld [vmem:[#allocation4 + $0x1c80] sm:$0xff]
        %v1196 = vld [vmem:[#allocation4 + $0x1c88] sm:$0xff]
        %v1197 = vld [vmem:[#allocation4 + $0x1c90] sm:$0xff]
        %v1198 = vld [vmem:[#allocation4 + $0x1c98] sm:$0xff]
        %v1199 = vld [vmem:[#allocation4 + $0x1ca0] sm:$0xff]
        %v1200 = vld [vmem:[#allocation4 + $0x1ca8] sm:$0xff]
        %v1201 = vld [vmem:[#allocation4 + $0x1cb0] sm:$0xff]
        %v1202 = vld [vmem:[#allocation4 + $0x1cb8] sm:$0xff]
        %v1203 = vld [vmem:[#allocation4 + $0x1cc0] sm:$0xff]
        %v1204 = vld [vmem:[#allocation4 + $0x1cc8] sm:$0xff]
        %v1205 = vld [vmem:[#allocation4 + $0x1cd0] sm:$0xff]
        %v1206 = vld [vmem:[#allocation4 + $0x1cd8] sm:$0xff]
        %v1207 = vld [vmem:[#allocation4 + $0x1ce0] sm:$0xff]
        %v1208 = vld [vmem:[#allocation4 + $0x1ce8] sm:$0xff]
        %v1209 = vld [vmem:[#allocation4 + $0x1cf0] sm:$0xff]
        %v1210 = vld [vmem:[#allocation4 + $0x1cf8] sm:$0xff]
        %v1211 = vld [vmem:[#allocation4 + $0x1d00] sm:$0xff]
        %v1212 = vld [vmem:[#allocation4 + $0x1d08] sm:$0xff]
        %v1213 = vld [vmem:[#allocation4 + $0x1d10] sm:$0xff]
        %v1214 = vld [vmem:[#allocation4 + $0x1d18] sm:$0xff]
        %v1215 = vld [vmem:[#allocation4 + $0x1d20] sm:$0xff]
        %v1216 = vld [vmem:[#allocation4 + $0x1d28] sm:$0xff]
        %v1217 = vld [vmem:[#allocation4 + $0x1d30] sm:$0xff]
        %v1218 = vld [vmem:[#allocation4 + $0x1d38] sm:$0xff]
        %v1219 = vld [vmem:[#allocation4 + $0x1d40] sm:$0xff]
        %v1220 = vld [vmem:[#allocation4 + $0x1d48] sm:$0xff]
        %v1221 = vld [vmem:[#allocation4 + $0x1d50] sm:$0xff]
        %v1222 = vld [vmem:[#allocation4 + $0x1d58] sm:$0xff]
        %v1223 = vld [vmem:[#allocation4 + $0x1d60] sm:$0xff]
        %v1224 = vld [vmem:[#allocation4 + $0x1d68] sm:$0xff]
        %v1225 = vld [vmem:[#allocation4 + $0x1d70] sm:$0xff]
        %v1226 = vld [vmem:[#allocation4 + $0x1d78] sm:$0xff]
        %v1227 = vld [vmem:[#allocation4 + $0x1d80] sm:$0xff]
        %v1228 = vld [vmem:[#allocation4 + $0x1d88] sm:$0xff]
        %v1229 = vld [vmem:[#allocation4 + $0x1d90] sm:$0xff]
        %v1230 = vld [vmem:[#allocation4 + $0x1d98] sm:$0xff]
        %v1231 = vld [vmem:[#allocation4 + $0x1da0] sm:$0xff]
        %v1232 = vld [vmem:[#allocation4 + $0x1da8] sm:$0xff]
        %v1233 = vld [vmem:[#allocation4 + $0x1db0] sm:$0xff]
        %v1234 = vld [vmem:[#allocation4 + $0x1db8] sm:$0xff]
        %v1235 = vld [vmem:[#allocation4 + $0x1dc0] sm:$0xff]
        %v1236 = vld [vmem:[#allocation4 + $0x1dc8] sm:$0xff]
        %v1237 = vld [vmem:[#allocation4 + $0x1dd0] sm:$0xff]
        %v1238 = vld [vmem:[#allocation4 + $0x1dd8] sm:$0xff]
        %v1239 = vld [vmem:[#allocation4 + $0x1de0] sm:$0xff]
        %v1240 = vld [vmem:[#allocation4 + $0x1de8] sm:$0xff]
        %v1241 = vld [vmem:[#allocation4 + $0x1df0] sm:$0xff]
        %v1242 = vld [vmem:[#allocation4 + $0x1df8] sm:$0xff]
        %v1243 = vld [vmem:[#allocation4 + $0x1e00] sm:$0xff]
        %v1244 = vld [vmem:[#allocation4 + $0x1e08] sm:$0xff]
        %v1245 = vld [vmem:[#allocation4 + $0x1e10] sm:$0xff]
        %v1246 = vld [vmem:[#allocation4 + $0x1e18] sm:$0xff]
        %v1247 = vld [vmem:[#allocation4 + $0x1e20] sm:$0xff]
        %v1248 = vld [vmem:[#allocation4 + $0x1e28] sm:$0xff]
        %v1249 = vld [vmem:[#allocation4 + $0x1e30] sm:$0xff]
        %v1250 = vld [vmem:[#allocation4 + $0x1e38] sm:$0xff]
        %v1251 = vld [vmem:[#allocation4 + $0x1e40] sm:$0xff]
        %v1252 = vld [vmem:[#allocation4 + $0x1e48] sm:$0xff]
        %v1253 = vld [vmem:[#allocation4 + $0x1e50] sm:$0xff]
        %v1254 = vld [vmem:[#allocation4 + $0x1e58] sm:$0xff]
        %v1255 = vld [vmem:[#allocation4 + $0x1e60] sm:$0xff]
        %v1256 = vld [vmem:[#allocation4 + $0x1e68] sm:$0xff]
        %v1257 = vld [vmem:[#allocation4 + $0x1e70] sm:$0xff]
        %v1258 = vld [vmem:[#allocation4 + $0x1e78] sm:$0xff]
        %v1259 = vld [vmem:[#allocation4 + $0x1e80] sm:$0xff]
        %v1260 = vld [vmem:[#allocation4 + $0x1e88] sm:$0xff]
        %v1261 = vld [vmem:[#allocation4 + $0x1e90] sm:$0xff]
        %v1262 = vld [vmem:[#allocation4 + $0x1e98] sm:$0xff]
        %v1263 = vld [vmem:[#allocation4 + $0x1ea0] sm:$0xff]
        %v1264 = vld [vmem:[#allocation4 + $0x1ea8] sm:$0xff]
        %v1265 = vld [vmem:[#allocation4 + $0x1eb0] sm:$0xff]
        %v1266 = vld [vmem:[#allocation4 + $0x1eb8] sm:$0xff]
        %v1267 = vld [vmem:[#allocation4 + $0x1ec0] sm:$0xff]
        %v1268 = vld [vmem:[#allocation4 + $0x1ec8] sm:$0xff]
        %v1269 = vld [vmem:[#allocation4 + $0x1ed0] sm:$0xff]
        %v1270 = vld [vmem:[#allocation4 + $0x1ed8] sm:$0xff]
        %v1271 = vld [vmem:[#allocation4 + $0x1ee0] sm:$0xff]
        %v1272 = vld [vmem:[#allocation4 + $0x1ee8] sm:$0xff]
        %v1273 = vld [vmem:[#allocation4 + $0x1ef0] sm:$0xff]
        %v1274 = vld [vmem:[#allocation4 + $0x1ef8] sm:$0xff]
        %v1275 = vld [vmem:[#allocation4 + $0x1f00] sm:$0xff]
        %v1276 = vld [vmem:[#allocation4 + $0x1f08] sm:$0xff]
        %v1277 = vld [vmem:[#allocation4 + $0x1f10] sm:$0xff]
        %v1278 = vld [vmem:[#allocation4 + $0x1f18] sm:$0xff]
        %v1279 = vld [vmem:[#allocation4 + $0x1f20] sm:$0xff]
        %v1280 = vld [vmem:[#allocation4 + $0x1f28] sm:$0xff]
        %v1281 = vld [vmem:[#allocation4 + $0x1f30] sm:$0xff]
        %v1282 = vld [vmem:[#allocation4 + $0x1f38] sm:$0xff]
        %v1283 = vld [vmem:[#allocation4 + $0x1f40] sm:$0xff]
        %v1284 = vld [vmem:[#allocation4 + $0x1f48] sm:$0xff]
        %v1285 = vld [vmem:[#allocation4 + $0x1f50] sm:$0xff]
        %v1286 = vld [vmem:[#allocation4 + $0x1f58] sm:$0xff]
        %v1287 = vld [vmem:[#allocation4 + $0x1f60] sm:$0xff]
        %v1288 = vld [vmem:[#allocation4 + $0x1f68] sm:$0xff]
        %v1289 = vld [vmem:[#allocation4 + $0x1f70] sm:$0xff]
        %v1290 = vld [vmem:[#allocation4 + $0x1f78] sm:$0xff]
        %v1291 = vld [vmem:[#allocation4 + $0x1f80] sm:$0xff]
        %v1292 = vld [vmem:[#allocation4 + $0x1f88] sm:$0xff]
        %v1293 = vld [vmem:[#allocation4 + $0x1f90] sm:$0xff]
        %v1294 = vld [vmem:[#allocation4 + $0x1f98] sm:$0xff]
        %v1295 = vld [vmem:[#allocation4 + $0x1fa0] sm:$0xff]
        %v1296 = vld [vmem:[#allocation4 + $0x1fa8] sm:$0xff]
        %v1297 = vld [vmem:[#allocation4 + $0x1fb0] sm:$0xff]
        %v1298 = vld [vmem:[#allocation4 + $0x1fb8] sm:$0xff]
        %v1299 = vld [vmem:[#allocation4 + $0x1fc0] sm:$0xff]
        %v1300 = vld [vmem:[#allocation4 + $0x1fc8] sm:$0xff]
        %v1301 = vld [vmem:[#allocation4 + $0x1fd0] sm:$0xff]
        %v1302 = vld [vmem:[#allocation4 + $0x1fd8] sm:$0xff]
        %v1303 = vld [vmem:[#allocation4 + $0x1fe0] sm:$0xff]
        %v1304 = vld [vmem:[#allocation4 + $0x1fe8] sm:$0xff]
        %v1305 = vld [vmem:[#allocation4 + $0x1ff0] sm:$0xff]
        %v1306 = vld [vmem:[#allocation4 + $0x1ff8] sm:$0xff]
        %1308 = vst [vmem:[#allocation1] ss:$4 sm:$0xff] %v282
        %v1309 = vld.sshfl [vmem:[#allocation1] sm:$0xff pattern:$0x73625140]
        %v1310 = vld.sshfl [vmem:[#allocation1 + $0x8] sm:$0xff pattern:$0x73625140]
        %v1311 = vld.sshfl [vmem:[#allocation1 + $0x10] sm:$0xff pattern:$0x73625140]
        %v1312 = vld.sshfl [vmem:[#allocation1 + $0x18] sm:$0xff pattern:$0x73625140]
        %1317 = vmatpush.msra.mxu0 %v523
        %1318 = vmatpush.msra.mxu0 %v507
        %1319 = vmatpush.msra.mxu0 %v491
        %1320 = vmatpush.msra.mxu0 %v475
        %1321 = vmatpush.msra.mxu0 %v459
        %1322 = vmatpush.msra.mxu0 %v443
        %1323 = vmatpush.msra.mxu0 %v427
        %1324 = vmatpush.msra.mxu0 %v411
        %1325 = vmatpush.msra.mxu0 %v395
        %1326 = vmatpush.msra.mxu0 %v379
        %1327 = vmatpush.msra.mxu0 %v363
        %1328 = vmatpush.msra.mxu0 %v347
        %1329 = vmatpush.msra.mxu0 %v331
        %1330 = vmatpush.msra.mxu0 %v315
        %1331 = vmatpush.msra.mxu0 %v299
        %1332 = vmatpush.msra.mxu0 %v283
        %1333 = vmatmul.f32.gmra.mxu0 %v1309
        %v1334 = vpop.f32.mrf.mxu0
        %v1335 = vadd.f32 0.0, %v1334
        %1336 = vdwg.mxu0
        %1337 = vmatpush.msra.mxu0 %v779
        %1338 = vmatpush.msra.mxu0 %v763
        %1339 = vmatpush.msra.mxu0 %v747
        %1340 = vmatpush.msra.mxu0 %v731
        %1341 = vmatpush.msra.mxu0 %v715
        %1342 = vmatpush.msra.mxu0 %v699
        %1343 = vmatpush.msra.mxu0 %v683
        %1344 = vmatpush.msra.mxu0 %v667
        %1345 = vmatpush.msra.mxu0 %v651
        %1346 = vmatpush.msra.mxu0 %v635
        %1347 = vmatpush.msra.mxu0 %v619
        %1348 = vmatpush.msra.mxu0 %v603
        %1349 = vmatpush.msra.mxu0 %v587
        %1350 = vmatpush.msra.mxu0 %v571
        %1351 = vmatpush.msra.mxu0 %v555
        %1352 = vmatpush.msra.mxu0 %v539
        %1353 = vmatmul.f32.gmra.mxu0 %v1310
        %v1354 = vpop.f32.mrf.mxu0
        %v1355 = vadd.f32 %v1335, %v1354
        %1356 = vdwg.mxu0
        %1357 = vmatpush.msra.mxu0 %v1035
        %1358 = vmatpush.msra.mxu0 %v1019
        %1359 = vmatpush.msra.mxu0 %v1003
        %1360 = vmatpush.msra.mxu0 %v987
        %1361 = vmatpush.msra.mxu0 %v971
        %1362 = vmatpush.msra.mxu0 %v955
        %1363 = vmatpush.msra.mxu0 %v939
        %1364 = vmatpush.msra.mxu0 %v923
        %1365 = vmatpush.msra.mxu0 %v907
        %1366 = vmatpush.msra.mxu0 %v891
        %1367 = vmatpush.msra.mxu0 %v875
        %1368 = vmatpush.msra.mxu0 %v859
        %1369 = vmatpush.msra.mxu0 %v843
        %1370 = vmatpush.msra.mxu0 %v827
        %1371 = vmatpush.msra.mxu0 %v811
        %1372 = vmatpush.msra.mxu0 %v795
        %1373 = vmatmul.f32.gmra.mxu0 %v1311
        %v1374 = vpop.f32.mrf.mxu0
        %v1375 = vadd.f32 %v1355, %v1374
        %1376 = vdwg.mxu0
        %1377 = vmatpush.msra.mxu0 %v1291
        %1378 = vmatpush.msra.mxu0 %v1275
        %1379 = vmatpush.msra.mxu0 %v1259
        %1380 = vmatpush.msra.mxu0 %v1243
        %1381 = vmatpush.msra.mxu0 %v1227
        %1382 = vmatpush.msra.mxu0 %v1211
        %1383 = vmatpush.msra.mxu0 %v1195
        %1384 = vmatpush.msra.mxu0 %v1179
        %1385 = vmatpush.msra.mxu0 %v1163
        %1386 = vmatpush.msra.mxu0 %v1147
        %1387 = vmatpush.msra.mxu0 %v1131
        %1388 = vmatpush.msra.mxu0 %v1115
        %1389 = vmatpush.msra.mxu0 %v1099
        %1390 = vmatpush.msra.mxu0 %v1083
        %1391 = vmatpush.msra.mxu0 %v1067
        %1392 = vmatpush.msra.mxu0 %v1051
        %1393 = vmatmul.f32.gmra.mxu0 %v1312
        %v1394 = vpop.f32.mrf.mxu0
        %v1395 = vadd.f32 %v1375, %v1394
        %1396 = vdwg.mxu0
        %1397 = vmatpush.msra.mxu0 %v524
        %1398 = vmatpush.msra.mxu0 %v508
        %1399 = vmatpush.msra.mxu0 %v492
        %1400 = vmatpush.msra.mxu0 %v476
        %1401 = vmatpush.msra.mxu0 %v460
        %1402 = vmatpush.msra.mxu0 %v444
        %1403 = vmatpush.msra.mxu0 %v428
        %1404 = vmatpush.msra.mxu0 %v412
        %1405 = vmatpush.msra.mxu0 %v396
        %1406 = vmatpush.msra.mxu0 %v380
        %1407 = vmatpush.msra.mxu0 %v364
        %1408 = vmatpush.msra.mxu0 %v348
        %1409 = vmatpush.msra.mxu0 %v332
        %1410 = vmatpush.msra.mxu0 %v316
        %1411 = vmatpush.msra.mxu0 %v300
        %1412 = vmatpush.msra.mxu0 %v284
        %1413 = vmatmul.f32.gmra.mxu0 %v1309
        %v1414 = vpop.f32.mrf.mxu0
        %v1415 = vadd.f32 0.0, %v1414
        %1416 = vdwg.mxu0
        %1417 = vmatpush.msra.mxu0 %v780
        %1418 = vmatpush.msra.mxu0 %v764
        %1419 = vmatpush.msra.mxu0 %v748
        %1420 = vmatpush.msra.mxu0 %v732
        %1421 = vmatpush.msra.mxu0 %v716
        %1422 = vmatpush.msra.mxu0 %v700
        %1423 = vmatpush.msra.mxu0 %v684
        %1424 = vmatpush.msra.mxu0 %v668
        %1425 = vmatpush.msra.mxu0 %v652
        %1426 = vmatpush.msra.mxu0 %v636
        %1427 = vmatpush.msra.mxu0 %v620
        %1428 = vmatpush.msra.mxu0 %v604
        %1429 = vmatpush.msra.mxu0 %v588
        %1430 = vmatpush.msra.mxu0 %v572
        %1431 = vmatpush.msra.mxu0 %v556
        %1432 = vmatpush.msra.mxu0 %v540
        %1433 = vmatmul.f32.gmra.mxu0 %v1310
        %v1434 = vpop.f32.mrf.mxu0
        %v1435 = vadd.f32 %v1415, %v1434
        %1436 = vdwg.mxu0
        %1437 = vmatpush.msra.mxu0 %v1036
        %1438 = vmatpush.msra.mxu0 %v1020
        %1439 = vmatpush.msra.mxu0 %v1004
        %1440 = vmatpush.msra.mxu0 %v988
        %1441 = vmatpush.msra.mxu0 %v972
        %1442 = vmatpush.msra.mxu0 %v956
        %1443 = vmatpush.msra.mxu0 %v940
        %1444 = vmatpush.msra.mxu0 %v924
        %1445 = vmatpush.msra.mxu0 %v908
        %1446 = vmatpush.msra.mxu0 %v892
        %1447 = vmatpush.msra.mxu0 %v876
        %1448 = vmatpush.msra.mxu0 %v860
        %1449 = vmatpush.msra.mxu0 %v844
        %1450 = vmatpush.msra.mxu0 %v828
        %1451 = vmatpush.msra.mxu0 %v812
        %1452 = vmatpush.msra.mxu0 %v796
        %1453 = vmatmul.f32.gmra.mxu0 %v1311
        %v1454 = vpop.f32.mrf.mxu0
        %v1455 = vadd.f32 %v1435, %v1454
        %1456 = vdwg.mxu0
        %1457 = vmatpush.msra.mxu0 %v1292
        %1458 = vmatpush.msra.mxu0 %v1276
        %1459 = vmatpush.msra.mxu0 %v1260
        %1460 = vmatpush.msra.mxu0 %v1244
        %1461 = vmatpush.msra.mxu0 %v1228
        %1462 = vmatpush.msra.mxu0 %v1212
        %1463 = vmatpush.msra.mxu0 %v1196
        %1464 = vmatpush.msra.mxu0 %v1180
        %1465 = vmatpush.msra.mxu0 %v1164
        %1466 = vmatpush.msra.mxu0 %v1148
        %1467 = vmatpush.msra.mxu0 %v1132
        %1468 = vmatpush.msra.mxu0 %v1116
        %1469 = vmatpush.msra.mxu0 %v1100
        %1470 = vmatpush.msra.mxu0 %v1084
        %1471 = vmatpush.msra.mxu0 %v1068
        %1472 = vmatpush.msra.mxu0 %v1052
        %1473 = vmatmul.f32.gmra.mxu0 %v1312
        %v1474 = vpop.f32.mrf.mxu0
        %v1475 = vadd.f32 %v1455, %v1474
        %1476 = vdwg.mxu0
        %1477 = vmatpush.msra.mxu0 %v525
        %1478 = vmatpush.msra.mxu0 %v509
        %1479 = vmatpush.msra.mxu0 %v493
        %1480 = vmatpush.msra.mxu0 %v477
        %1481 = vmatpush.msra.mxu0 %v461
        %1482 = vmatpush.msra.mxu0 %v445
        %1483 = vmatpush.msra.mxu0 %v429
        %1484 = vmatpush.msra.mxu0 %v413
        %1485 = vmatpush.msra.mxu0 %v397
        %1486 = vmatpush.msra.mxu0 %v381
        %1487 = vmatpush.msra.mxu0 %v365
        %1488 = vmatpush.msra.mxu0 %v349
        %1489 = vmatpush.msra.mxu0 %v333
        %1490 = vmatpush.msra.mxu0 %v317
        %1491 = vmatpush.msra.mxu0 %v301
        %1492 = vmatpush.msra.mxu0 %v285
        %1493 = vmatmul.f32.gmra.mxu0 %v1309
        %v1494 = vpop.f32.mrf.mxu0
        %v1495 = vadd.f32 0.0, %v1494
        %1496 = vdwg.mxu0
        %1497 = vmatpush.msra.mxu0 %v781
        %1498 = vmatpush.msra.mxu0 %v765
        %1499 = vmatpush.msra.mxu0 %v749
        %1500 = vmatpush.msra.mxu0 %v733
        %1501 = vmatpush.msra.mxu0 %v717
        %1502 = vmatpush.msra.mxu0 %v701
        %1503 = vmatpush.msra.mxu0 %v685
        %1504 = vmatpush.msra.mxu0 %v669
        %1505 = vmatpush.msra.mxu0 %v653
        %1506 = vmatpush.msra.mxu0 %v637
        %1507 = vmatpush.msra.mxu0 %v621
        %1508 = vmatpush.msra.mxu0 %v605
        %1509 = vmatpush.msra.mxu0 %v589
        %1510 = vmatpush.msra.mxu0 %v573
        %1511 = vmatpush.msra.mxu0 %v557
        %1512 = vmatpush.msra.mxu0 %v541
        %1513 = vmatmul.f32.gmra.mxu0 %v1310
        %v1514 = vpop.f32.mrf.mxu0
        %v1515 = vadd.f32 %v1495, %v1514
        %1516 = vdwg.mxu0
        %1517 = vmatpush.msra.mxu0 %v1037
        %1518 = vmatpush.msra.mxu0 %v1021
        %1519 = vmatpush.msra.mxu0 %v1005
        %1520 = vmatpush.msra.mxu0 %v989
        %1521 = vmatpush.msra.mxu0 %v973
        %1522 = vmatpush.msra.mxu0 %v957
        %1523 = vmatpush.msra.mxu0 %v941
        %1524 = vmatpush.msra.mxu0 %v925
        %1525 = vmatpush.msra.mxu0 %v909
        %1526 = vmatpush.msra.mxu0 %v893
        %1527 = vmatpush.msra.mxu0 %v877
        %1528 = vmatpush.msra.mxu0 %v861
        %1529 = vmatpush.msra.mxu0 %v845
        %1530 = vmatpush.msra.mxu0 %v829
        %1531 = vmatpush.msra.mxu0 %v813
        %1532 = vmatpush.msra.mxu0 %v797
        %1533 = vmatmul.f32.gmra.mxu0 %v1311
        %v1534 = vpop.f32.mrf.mxu0
        %v1535 = vadd.f32 %v1515, %v1534
        %1536 = vdwg.mxu0
        %1537 = vmatpush.msra.mxu0 %v1293
        %1538 = vmatpush.msra.mxu0 %v1277
        %1539 = vmatpush.msra.mxu0 %v1261
        %1540 = vmatpush.msra.mxu0 %v1245
        %1541 = vmatpush.msra.mxu0 %v1229
        %1542 = vmatpush.msra.mxu0 %v1213
        %1543 = vmatpush.msra.mxu0 %v1197
        %1544 = vmatpush.msra.mxu0 %v1181
        %1545 = vmatpush.msra.mxu0 %v1165
        %1546 = vmatpush.msra.mxu0 %v1149
        %1547 = vmatpush.msra.mxu0 %v1133
        %1548 = vmatpush.msra.mxu0 %v1117
        %1549 = vmatpush.msra.mxu0 %v1101
        %1550 = vmatpush.msra.mxu0 %v1085
        %1551 = vmatpush.msra.mxu0 %v1069
        %1552 = vmatpush.msra.mxu0 %v1053
        %1553 = vmatmul.f32.gmra.mxu0 %v1312
        %v1554 = vpop.f32.mrf.mxu0
        %v1555 = vadd.f32 %v1535, %v1554
        %1556 = vdwg.mxu0
        %1557 = vmatpush.msra.mxu0 %v526
        %1558 = vmatpush.msra.mxu0 %v510
        %1559 = vmatpush.msra.mxu0 %v494
        %1560 = vmatpush.msra.mxu0 %v478
        %1561 = vmatpush.msra.mxu0 %v462
        %1562 = vmatpush.msra.mxu0 %v446
        %1563 = vmatpush.msra.mxu0 %v430
        %1564 = vmatpush.msra.mxu0 %v414
        %1565 = vmatpush.msra.mxu0 %v398
        %1566 = vmatpush.msra.mxu0 %v382
        %1567 = vmatpush.msra.mxu0 %v366
        %1568 = vmatpush.msra.mxu0 %v350
        %1569 = vmatpush.msra.mxu0 %v334
        %1570 = vmatpush.msra.mxu0 %v318
        %1571 = vmatpush.msra.mxu0 %v302
        %1572 = vmatpush.msra.mxu0 %v286
        %1573 = vmatmul.f32.gmra.mxu0 %v1309
        %v1574 = vpop.f32.mrf.mxu0
        %v1575 = vadd.f32 0.0, %v1574
        %1576 = vdwg.mxu0
        %1577 = vmatpush.msra.mxu0 %v782
        %1578 = vmatpush.msra.mxu0 %v766
        %1579 = vmatpush.msra.mxu0 %v750
        %1580 = vmatpush.msra.mxu0 %v734
        %1581 = vmatpush.msra.mxu0 %v718
        %1582 = vmatpush.msra.mxu0 %v702
        %1583 = vmatpush.msra.mxu0 %v686
        %1584 = vmatpush.msra.mxu0 %v670
        %1585 = vmatpush.msra.mxu0 %v654
        %1586 = vmatpush.msra.mxu0 %v638
        %1587 = vmatpush.msra.mxu0 %v622
        %1588 = vmatpush.msra.mxu0 %v606
        %1589 = vmatpush.msra.mxu0 %v590
        %1590 = vmatpush.msra.mxu0 %v574
        %1591 = vmatpush.msra.mxu0 %v558
        %1592 = vmatpush.msra.mxu0 %v542
        %1593 = vmatmul.f32.gmra.mxu0 %v1310
        %v1594 = vpop.f32.mrf.mxu0
        %v1595 = vadd.f32 %v1575, %v1594
        %1596 = vdwg.mxu0
        %1597 = vmatpush.msra.mxu0 %v1038
        %1598 = vmatpush.msra.mxu0 %v1022
        %1599 = vmatpush.msra.mxu0 %v1006
        %1600 = vmatpush.msra.mxu0 %v990
        %1601 = vmatpush.msra.mxu0 %v974
        %1602 = vmatpush.msra.mxu0 %v958
        %1603 = vmatpush.msra.mxu0 %v942
        %1604 = vmatpush.msra.mxu0 %v926
        %1605 = vmatpush.msra.mxu0 %v910
        %1606 = vmatpush.msra.mxu0 %v894
        %1607 = vmatpush.msra.mxu0 %v878
        %1608 = vmatpush.msra.mxu0 %v862
        %1609 = vmatpush.msra.mxu0 %v846
        %1610 = vmatpush.msra.mxu0 %v830
        %1611 = vmatpush.msra.mxu0 %v814
        %1612 = vmatpush.msra.mxu0 %v798
        %1613 = vmatmul.f32.gmra.mxu0 %v1311
        %v1614 = vpop.f32.mrf.mxu0
        %v1615 = vadd.f32 %v1595, %v1614
        %1616 = vdwg.mxu0
        %1617 = vmatpush.msra.mxu0 %v1294
        %1618 = vmatpush.msra.mxu0 %v1278
        %1619 = vmatpush.msra.mxu0 %v1262
        %1620 = vmatpush.msra.mxu0 %v1246
        %1621 = vmatpush.msra.mxu0 %v1230
        %1622 = vmatpush.msra.mxu0 %v1214
        %1623 = vmatpush.msra.mxu0 %v1198
        %1624 = vmatpush.msra.mxu0 %v1182
        %1625 = vmatpush.msra.mxu0 %v1166
        %1626 = vmatpush.msra.mxu0 %v1150
        %1627 = vmatpush.msra.mxu0 %v1134
        %1628 = vmatpush.msra.mxu0 %v1118
        %1629 = vmatpush.msra.mxu0 %v1102
        %1630 = vmatpush.msra.mxu0 %v1086
        %1631 = vmatpush.msra.mxu0 %v1070
        %1632 = vmatpush.msra.mxu0 %v1054
        %1633 = vmatmul.f32.gmra.mxu0 %v1312
        %v1634 = vpop.f32.mrf.mxu0
        %v1635 = vadd.f32 %v1615, %v1634
        %1636 = vdwg.mxu0
        %1637 = vmatpush.msra.mxu0 %v527
        %1638 = vmatpush.msra.mxu0 %v511
        %1639 = vmatpush.msra.mxu0 %v495
        %1640 = vmatpush.msra.mxu0 %v479
        %1641 = vmatpush.msra.mxu0 %v463
        %1642 = vmatpush.msra.mxu0 %v447
        %1643 = vmatpush.msra.mxu0 %v431
        %1644 = vmatpush.msra.mxu0 %v415
        %1645 = vmatpush.msra.mxu0 %v399
        %1646 = vmatpush.msra.mxu0 %v383
        %1647 = vmatpush.msra.mxu0 %v367
        %1648 = vmatpush.msra.mxu0 %v351
        %1649 = vmatpush.msra.mxu0 %v335
        %1650 = vmatpush.msra.mxu0 %v319
        %1651 = vmatpush.msra.mxu0 %v303
        %1652 = vmatpush.msra.mxu0 %v287
        %1653 = vmatmul.f32.gmra.mxu0 %v1309
        %v1654 = vpop.f32.mrf.mxu0
        %v1655 = vadd.f32 0.0, %v1654
        %1656 = vdwg.mxu0
        %1657 = vmatpush.msra.mxu0 %v783
        %1658 = vmatpush.msra.mxu0 %v767
        %1659 = vmatpush.msra.mxu0 %v751
        %1660 = vmatpush.msra.mxu0 %v735
        %1661 = vmatpush.msra.mxu0 %v719
        %1662 = vmatpush.msra.mxu0 %v703
        %1663 = vmatpush.msra.mxu0 %v687
        %1664 = vmatpush.msra.mxu0 %v671
        %1665 = vmatpush.msra.mxu0 %v655
        %1666 = vmatpush.msra.mxu0 %v639
        %1667 = vmatpush.msra.mxu0 %v623
        %1668 = vmatpush.msra.mxu0 %v607
        %1669 = vmatpush.msra.mxu0 %v591
        %1670 = vmatpush.msra.mxu0 %v575
        %1671 = vmatpush.msra.mxu0 %v559
        %1672 = vmatpush.msra.mxu0 %v543
        %1673 = vmatmul.f32.gmra.mxu0 %v1310
        %v1674 = vpop.f32.mrf.mxu0
        %v1675 = vadd.f32 %v1655, %v1674
        %1676 = vdwg.mxu0
        %1677 = vmatpush.msra.mxu0 %v1039
        %1678 = vmatpush.msra.mxu0 %v1023
        %1679 = vmatpush.msra.mxu0 %v1007
        %1680 = vmatpush.msra.mxu0 %v991
        %1681 = vmatpush.msra.mxu0 %v975
        %1682 = vmatpush.msra.mxu0 %v959
        %1683 = vmatpush.msra.mxu0 %v943
        %1684 = vmatpush.msra.mxu0 %v927
        %1685 = vmatpush.msra.mxu0 %v911
        %1686 = vmatpush.msra.mxu0 %v895
        %1687 = vmatpush.msra.mxu0 %v879
        %1688 = vmatpush.msra.mxu0 %v863
        %1689 = vmatpush.msra.mxu0 %v847
        %1690 = vmatpush.msra.mxu0 %v831
        %1691 = vmatpush.msra.mxu0 %v815
        %1692 = vmatpush.msra.mxu0 %v799
        %1693 = vmatmul.f32.gmra.mxu0 %v1311
        %v1694 = vpop.f32.mrf.mxu0
        %v1695 = vadd.f32 %v1675, %v1694
        %1696 = vdwg.mxu0
        %1697 = vmatpush.msra.mxu0 %v1295
        %1698 = vmatpush.msra.mxu0 %v1279
        %1699 = vmatpush.msra.mxu0 %v1263
        %1700 = vmatpush.msra.mxu0 %v1247
        %1701 = vmatpush.msra.mxu0 %v1231
        %1702 = vmatpush.msra.mxu0 %v1215
        %1703 = vmatpush.msra.mxu0 %v1199
        %1704 = vmatpush.msra.mxu0 %v1183
        %1705 = vmatpush.msra.mxu0 %v1167
        %1706 = vmatpush.msra.mxu0 %v1151
        %1707 = vmatpush.msra.mxu0 %v1135
        %1708 = vmatpush.msra.mxu0 %v1119
        %1709 = vmatpush.msra.mxu0 %v1103
        %1710 = vmatpush.msra.mxu0 %v1087
        %1711 = vmatpush.msra.mxu0 %v1071
        %1712 = vmatpush.msra.mxu0 %v1055
        %1713 = vmatmul.f32.gmra.mxu0 %v1312
        %v1714 = vpop.f32.mrf.mxu0
        %v1715 = vadd.f32 %v1695, %v1714
        %1716 = vdwg.mxu0
        %1717 = vmatpush.msra.mxu0 %v528
        %1718 = vmatpush.msra.mxu0 %v512
        %1719 = vmatpush.msra.mxu0 %v496
        %1720 = vmatpush.msra.mxu0 %v480
        %1721 = vmatpush.msra.mxu0 %v464
        %1722 = vmatpush.msra.mxu0 %v448
        %1723 = vmatpush.msra.mxu0 %v432
        %1724 = vmatpush.msra.mxu0 %v416
        %1725 = vmatpush.msra.mxu0 %v400
        %1726 = vmatpush.msra.mxu0 %v384
        %1727 = vmatpush.msra.mxu0 %v368
        %1728 = vmatpush.msra.mxu0 %v352
        %1729 = vmatpush.msra.mxu0 %v336
        %1730 = vmatpush.msra.mxu0 %v320
        %1731 = vmatpush.msra.mxu0 %v304
        %1732 = vmatpush.msra.mxu0 %v288
        %1733 = vmatmul.f32.gmra.mxu0 %v1309
        %v1734 = vpop.f32.mrf.mxu0
        %v1735 = vadd.f32 0.0, %v1734
        %1736 = vdwg.mxu0
        %1737 = vmatpush.msra.mxu0 %v784
        %1738 = vmatpush.msra.mxu0 %v768
        %1739 = vmatpush.msra.mxu0 %v752
        %1740 = vmatpush.msra.mxu0 %v736
        %1741 = vmatpush.msra.mxu0 %v720
        %1742 = vmatpush.msra.mxu0 %v704
        %1743 = vmatpush.msra.mxu0 %v688
        %1744 = vmatpush.msra.mxu0 %v672
        %1745 = vmatpush.msra.mxu0 %v656
        %1746 = vmatpush.msra.mxu0 %v640
        %1747 = vmatpush.msra.mxu0 %v624
        %1748 = vmatpush.msra.mxu0 %v608
        %1749 = vmatpush.msra.mxu0 %v592
        %1750 = vmatpush.msra.mxu0 %v576
        %1751 = vmatpush.msra.mxu0 %v560
        %1752 = vmatpush.msra.mxu0 %v544
        %1753 = vmatmul.f32.gmra.mxu0 %v1310
        %v1754 = vpop.f32.mrf.mxu0
        %v1755 = vadd.f32 %v1735, %v1754
        %1756 = vdwg.mxu0
        %1757 = vmatpush.msra.mxu0 %v1040
        %1758 = vmatpush.msra.mxu0 %v1024
        %1759 = vmatpush.msra.mxu0 %v1008
        %1760 = vmatpush.msra.mxu0 %v992
        %1761 = vmatpush.msra.mxu0 %v976
        %1762 = vmatpush.msra.mxu0 %v960
        %1763 = vmatpush.msra.mxu0 %v944
        %1764 = vmatpush.msra.mxu0 %v928
        %1765 = vmatpush.msra.mxu0 %v912
        %1766 = vmatpush.msra.mxu0 %v896
        %1767 = vmatpush.msra.mxu0 %v880
        %1768 = vmatpush.msra.mxu0 %v864
        %1769 = vmatpush.msra.mxu0 %v848
        %1770 = vmatpush.msra.mxu0 %v832
        %1771 = vmatpush.msra.mxu0 %v816
        %1772 = vmatpush.msra.mxu0 %v800
        %1773 = vmatmul.f32.gmra.mxu0 %v1311
        %v1774 = vpop.f32.mrf.mxu0
        %v1775 = vadd.f32 %v1755, %v1774
        %1776 = vdwg.mxu0
        %1777 = vmatpush.msra.mxu0 %v1296
        %1778 = vmatpush.msra.mxu0 %v1280
        %1779 = vmatpush.msra.mxu0 %v1264
        %1780 = vmatpush.msra.mxu0 %v1248
        %1781 = vmatpush.msra.mxu0 %v1232
        %1782 = vmatpush.msra.mxu0 %v1216
        %1783 = vmatpush.msra.mxu0 %v1200
        %1784 = vmatpush.msra.mxu0 %v1184
        %1785 = vmatpush.msra.mxu0 %v1168
        %1786 = vmatpush.msra.mxu0 %v1152
        %1787 = vmatpush.msra.mxu0 %v1136
        %1788 = vmatpush.msra.mxu0 %v1120
        %1789 = vmatpush.msra.mxu0 %v1104
        %1790 = vmatpush.msra.mxu0 %v1088
        %1791 = vmatpush.msra.mxu0 %v1072
        %1792 = vmatpush.msra.mxu0 %v1056
        %1793 = vmatmul.f32.gmra.mxu0 %v1312
        %v1794 = vpop.f32.mrf.mxu0
        %v1795 = vadd.f32 %v1775, %v1794
        %1796 = vdwg.mxu0
        %1797 = vmatpush.msra.mxu0 %v529
        %1798 = vmatpush.msra.mxu0 %v513
        %1799 = vmatpush.msra.mxu0 %v497
        %1800 = vmatpush.msra.mxu0 %v481
        %1801 = vmatpush.msra.mxu0 %v465
        %1802 = vmatpush.msra.mxu0 %v449
        %1803 = vmatpush.msra.mxu0 %v433
        %1804 = vmatpush.msra.mxu0 %v417
        %1805 = vmatpush.msra.mxu0 %v401
        %1806 = vmatpush.msra.mxu0 %v385
        %1807 = vmatpush.msra.mxu0 %v369
        %1808 = vmatpush.msra.mxu0 %v353
        %1809 = vmatpush.msra.mxu0 %v337
        %1810 = vmatpush.msra.mxu0 %v321
        %1811 = vmatpush.msra.mxu0 %v305
        %1812 = vmatpush.msra.mxu0 %v289
        %1813 = vmatmul.f32.gmra.mxu0 %v1309
        %v1814 = vpop.f32.mrf.mxu0
        %v1815 = vadd.f32 0.0, %v1814
        %1816 = vdwg.mxu0
        %1817 = vmatpush.msra.mxu0 %v785
        %1818 = vmatpush.msra.mxu0 %v769
        %1819 = vmatpush.msra.mxu0 %v753
        %1820 = vmatpush.msra.mxu0 %v737
        %1821 = vmatpush.msra.mxu0 %v721
        %1822 = vmatpush.msra.mxu0 %v705
        %1823 = vmatpush.msra.mxu0 %v689
        %1824 = vmatpush.msra.mxu0 %v673
        %1825 = vmatpush.msra.mxu0 %v657
        %1826 = vmatpush.msra.mxu0 %v641
        %1827 = vmatpush.msra.mxu0 %v625
        %1828 = vmatpush.msra.mxu0 %v609
        %1829 = vmatpush.msra.mxu0 %v593
        %1830 = vmatpush.msra.mxu0 %v577
        %1831 = vmatpush.msra.mxu0 %v561
        %1832 = vmatpush.msra.mxu0 %v545
        %1833 = vmatmul.f32.gmra.mxu0 %v1310
        %v1834 = vpop.f32.mrf.mxu0
        %v1835 = vadd.f32 %v1815, %v1834
        %1836 = vdwg.mxu0
        %1837 = vmatpush.msra.mxu0 %v1041
        %1838 = vmatpush.msra.mxu0 %v1025
        %1839 = vmatpush.msra.mxu0 %v1009
        %1840 = vmatpush.msra.mxu0 %v993
        %1841 = vmatpush.msra.mxu0 %v977
        %1842 = vmatpush.msra.mxu0 %v961
        %1843 = vmatpush.msra.mxu0 %v945
        %1844 = vmatpush.msra.mxu0 %v929
        %1845 = vmatpush.msra.mxu0 %v913
        %1846 = vmatpush.msra.mxu0 %v897
        %1847 = vmatpush.msra.mxu0 %v881
        %1848 = vmatpush.msra.mxu0 %v865
        %1849 = vmatpush.msra.mxu0 %v849
        %1850 = vmatpush.msra.mxu0 %v833
        %1851 = vmatpush.msra.mxu0 %v817
        %1852 = vmatpush.msra.mxu0 %v801
        %1853 = vmatmul.f32.gmra.mxu0 %v1311
        %v1854 = vpop.f32.mrf.mxu0
        %v1855 = vadd.f32 %v1835, %v1854
        %1856 = vdwg.mxu0
        %1857 = vmatpush.msra.mxu0 %v1297
        %1858 = vmatpush.msra.mxu0 %v1281
        %1859 = vmatpush.msra.mxu0 %v1265
        %1860 = vmatpush.msra.mxu0 %v1249
        %1861 = vmatpush.msra.mxu0 %v1233
        %1862 = vmatpush.msra.mxu0 %v1217
        %1863 = vmatpush.msra.mxu0 %v1201
        %1864 = vmatpush.msra.mxu0 %v1185
        %1865 = vmatpush.msra.mxu0 %v1169
        %1866 = vmatpush.msra.mxu0 %v1153
        %1867 = vmatpush.msra.mxu0 %v1137
        %1868 = vmatpush.msra.mxu0 %v1121
        %1869 = vmatpush.msra.mxu0 %v1105
        %1870 = vmatpush.msra.mxu0 %v1089
        %1871 = vmatpush.msra.mxu0 %v1073
        %1872 = vmatpush.msra.mxu0 %v1057
        %1873 = vmatmul.f32.gmra.mxu0 %v1312
        %v1874 = vpop.f32.mrf.mxu0
        %v1875 = vadd.f32 %v1855, %v1874
        %1876 = vdwg.mxu0
        %1877 = vmatpush.msra.mxu0 %v530
        %1878 = vmatpush.msra.mxu0 %v514
        %1879 = vmatpush.msra.mxu0 %v498
        %1880 = vmatpush.msra.mxu0 %v482
        %1881 = vmatpush.msra.mxu0 %v466
        %1882 = vmatpush.msra.mxu0 %v450
        %1883 = vmatpush.msra.mxu0 %v434
        %1884 = vmatpush.msra.mxu0 %v418
        %1885 = vmatpush.msra.mxu0 %v402
        %1886 = vmatpush.msra.mxu0 %v386
        %1887 = vmatpush.msra.mxu0 %v370
        %1888 = vmatpush.msra.mxu0 %v354
        %1889 = vmatpush.msra.mxu0 %v338
        %1890 = vmatpush.msra.mxu0 %v322
        %1891 = vmatpush.msra.mxu0 %v306
        %1892 = vmatpush.msra.mxu0 %v290
        %1893 = vmatmul.f32.gmra.mxu0 %v1309
        %v1894 = vpop.f32.mrf.mxu0
        %v1895 = vadd.f32 0.0, %v1894
        %1896 = vdwg.mxu0
        %1897 = vmatpush.msra.mxu0 %v786
        %1898 = vmatpush.msra.mxu0 %v770
        %1899 = vmatpush.msra.mxu0 %v754
        %1900 = vmatpush.msra.mxu0 %v738
        %1901 = vmatpush.msra.mxu0 %v722
        %1902 = vmatpush.msra.mxu0 %v706
        %1903 = vmatpush.msra.mxu0 %v690
        %1904 = vmatpush.msra.mxu0 %v674
        %1905 = vmatpush.msra.mxu0 %v658
        %1906 = vmatpush.msra.mxu0 %v642
        %1907 = vmatpush.msra.mxu0 %v626
        %1908 = vmatpush.msra.mxu0 %v610
        %1909 = vmatpush.msra.mxu0 %v594
        %1910 = vmatpush.msra.mxu0 %v578
        %1911 = vmatpush.msra.mxu0 %v562
        %1912 = vmatpush.msra.mxu0 %v546
        %1913 = vmatmul.f32.gmra.mxu0 %v1310
        %v1914 = vpop.f32.mrf.mxu0
        %v1915 = vadd.f32 %v1895, %v1914
        %1916 = vdwg.mxu0
        %1917 = vmatpush.msra.mxu0 %v1042
        %1918 = vmatpush.msra.mxu0 %v1026
        %1919 = vmatpush.msra.mxu0 %v1010
        %1920 = vmatpush.msra.mxu0 %v994
        %1921 = vmatpush.msra.mxu0 %v978
        %1922 = vmatpush.msra.mxu0 %v962
        %1923 = vmatpush.msra.mxu0 %v946
        %1924 = vmatpush.msra.mxu0 %v930
        %1925 = vmatpush.msra.mxu0 %v914
        %1926 = vmatpush.msra.mxu0 %v898
        %1927 = vmatpush.msra.mxu0 %v882
        %1928 = vmatpush.msra.mxu0 %v866
        %1929 = vmatpush.msra.mxu0 %v850
        %1930 = vmatpush.msra.mxu0 %v834
        %1931 = vmatpush.msra.mxu0 %v818
        %1932 = vmatpush.msra.mxu0 %v802
        %1933 = vmatmul.f32.gmra.mxu0 %v1311
        %v1934 = vpop.f32.mrf.mxu0
        %v1935 = vadd.f32 %v1915, %v1934
        %1936 = vdwg.mxu0
        %1937 = vmatpush.msra.mxu0 %v1298
        %1938 = vmatpush.msra.mxu0 %v1282
        %1939 = vmatpush.msra.mxu0 %v1266
        %1940 = vmatpush.msra.mxu0 %v1250
        %1941 = vmatpush.msra.mxu0 %v1234
        %1942 = vmatpush.msra.mxu0 %v1218
        %1943 = vmatpush.msra.mxu0 %v1202
        %1944 = vmatpush.msra.mxu0 %v1186
        %1945 = vmatpush.msra.mxu0 %v1170
        %1946 = vmatpush.msra.mxu0 %v1154
        %1947 = vmatpush.msra.mxu0 %v1138
        %1948 = vmatpush.msra.mxu0 %v1122
        %1949 = vmatpush.msra.mxu0 %v1106
        %1950 = vmatpush.msra.mxu0 %v1090
        %1951 = vmatpush.msra.mxu0 %v1074
        %1952 = vmatpush.msra.mxu0 %v1058
        %1953 = vmatmul.f32.gmra.mxu0 %v1312
        %v1954 = vpop.f32.mrf.mxu0
        %v1955 = vadd.f32 %v1935, %v1954
        %1956 = vdwg.mxu0
        %1957 = vmatpush.msra.mxu0 %v531
        %1958 = vmatpush.msra.mxu0 %v515
        %1959 = vmatpush.msra.mxu0 %v499
        %1960 = vmatpush.msra.mxu0 %v483
        %1961 = vmatpush.msra.mxu0 %v467
        %1962 = vmatpush.msra.mxu0 %v451
        %1963 = vmatpush.msra.mxu0 %v435
        %1964 = vmatpush.msra.mxu0 %v419
        %1965 = vmatpush.msra.mxu0 %v403
        %1966 = vmatpush.msra.mxu0 %v387
        %1967 = vmatpush.msra.mxu0 %v371
        %1968 = vmatpush.msra.mxu0 %v355
        %1969 = vmatpush.msra.mxu0 %v339
        %1970 = vmatpush.msra.mxu0 %v323
        %1971 = vmatpush.msra.mxu0 %v307
        %1972 = vmatpush.msra.mxu0 %v291
        %1973 = vmatmul.f32.gmra.mxu0 %v1309
        %v1974 = vpop.f32.mrf.mxu0
        %v1975 = vadd.f32 0.0, %v1974
        %1976 = vdwg.mxu0
        %1977 = vmatpush.msra.mxu0 %v787
        %1978 = vmatpush.msra.mxu0 %v771
        %1979 = vmatpush.msra.mxu0 %v755
        %1980 = vmatpush.msra.mxu0 %v739
        %1981 = vmatpush.msra.mxu0 %v723
        %1982 = vmatpush.msra.mxu0 %v707
        %1983 = vmatpush.msra.mxu0 %v691
        %1984 = vmatpush.msra.mxu0 %v675
        %1985 = vmatpush.msra.mxu0 %v659
        %1986 = vmatpush.msra.mxu0 %v643
        %1987 = vmatpush.msra.mxu0 %v627
        %1988 = vmatpush.msra.mxu0 %v611
        %1989 = vmatpush.msra.mxu0 %v595
        %1990 = vmatpush.msra.mxu0 %v579
        %1991 = vmatpush.msra.mxu0 %v563
        %1992 = vmatpush.msra.mxu0 %v547
        %1993 = vmatmul.f32.gmra.mxu0 %v1310
        %v1994 = vpop.f32.mrf.mxu0
        %v1995 = vadd.f32 %v1975, %v1994
        %1996 = vdwg.mxu0
        %1997 = vmatpush.msra.mxu0 %v1043
        %1998 = vmatpush.msra.mxu0 %v1027
        %1999 = vmatpush.msra.mxu0 %v1011
        %2000 = vmatpush.msra.mxu0 %v995
        %2001 = vmatpush.msra.mxu0 %v979
        %2002 = vmatpush.msra.mxu0 %v963
        %2003 = vmatpush.msra.mxu0 %v947
        %2004 = vmatpush.msra.mxu0 %v931
        %2005 = vmatpush.msra.mxu0 %v915
        %2006 = vmatpush.msra.mxu0 %v899
        %2007 = vmatpush.msra.mxu0 %v883
        %2008 = vmatpush.msra.mxu0 %v867
        %2009 = vmatpush.msra.mxu0 %v851
        %2010 = vmatpush.msra.mxu0 %v835
        %2011 = vmatpush.msra.mxu0 %v819
        %2012 = vmatpush.msra.mxu0 %v803
        %2013 = vmatmul.f32.gmra.mxu0 %v1311
        %v2014 = vpop.f32.mrf.mxu0
        %v2015 = vadd.f32 %v1995, %v2014
        %2016 = vdwg.mxu0
        %2017 = vmatpush.msra.mxu0 %v1299
        %2018 = vmatpush.msra.mxu0 %v1283
        %2019 = vmatpush.msra.mxu0 %v1267
        %2020 = vmatpush.msra.mxu0 %v1251
        %2021 = vmatpush.msra.mxu0 %v1235
        %2022 = vmatpush.msra.mxu0 %v1219
        %2023 = vmatpush.msra.mxu0 %v1203
        %2024 = vmatpush.msra.mxu0 %v1187
        %2025 = vmatpush.msra.mxu0 %v1171
        %2026 = vmatpush.msra.mxu0 %v1155
        %2027 = vmatpush.msra.mxu0 %v1139
        %2028 = vmatpush.msra.mxu0 %v1123
        %2029 = vmatpush.msra.mxu0 %v1107
        %2030 = vmatpush.msra.mxu0 %v1091
        %2031 = vmatpush.msra.mxu0 %v1075
        %2032 = vmatpush.msra.mxu0 %v1059
        %2033 = vmatmul.f32.gmra.mxu0 %v1312
        %v2034 = vpop.f32.mrf.mxu0
        %v2035 = vadd.f32 %v2015, %v2034
        %2036 = vdwg.mxu0
        %2037 = vmatpush.msra.mxu0 %v532
        %2038 = vmatpush.msra.mxu0 %v516
        %2039 = vmatpush.msra.mxu0 %v500
        %2040 = vmatpush.msra.mxu0 %v484
        %2041 = vmatpush.msra.mxu0 %v468
        %2042 = vmatpush.msra.mxu0 %v452
        %2043 = vmatpush.msra.mxu0 %v436
        %2044 = vmatpush.msra.mxu0 %v420
        %2045 = vmatpush.msra.mxu0 %v404
        %2046 = vmatpush.msra.mxu0 %v388
        %2047 = vmatpush.msra.mxu0 %v372
        %2048 = vmatpush.msra.mxu0 %v356
        %2049 = vmatpush.msra.mxu0 %v340
        %2050 = vmatpush.msra.mxu0 %v324
        %2051 = vmatpush.msra.mxu0 %v308
        %2052 = vmatpush.msra.mxu0 %v292
        %2053 = vmatmul.f32.gmra.mxu0 %v1309
        %v2054 = vpop.f32.mrf.mxu0
        %v2055 = vadd.f32 0.0, %v2054
        %2056 = vdwg.mxu0
        %2057 = vmatpush.msra.mxu0 %v788
        %2058 = vmatpush.msra.mxu0 %v772
        %2059 = vmatpush.msra.mxu0 %v756
        %2060 = vmatpush.msra.mxu0 %v740
        %2061 = vmatpush.msra.mxu0 %v724
        %2062 = vmatpush.msra.mxu0 %v708
        %2063 = vmatpush.msra.mxu0 %v692
        %2064 = vmatpush.msra.mxu0 %v676
        %2065 = vmatpush.msra.mxu0 %v660
        %2066 = vmatpush.msra.mxu0 %v644
        %2067 = vmatpush.msra.mxu0 %v628
        %2068 = vmatpush.msra.mxu0 %v612
        %2069 = vmatpush.msra.mxu0 %v596
        %2070 = vmatpush.msra.mxu0 %v580
        %2071 = vmatpush.msra.mxu0 %v564
        %2072 = vmatpush.msra.mxu0 %v548
        %2073 = vmatmul.f32.gmra.mxu0 %v1310
        %v2074 = vpop.f32.mrf.mxu0
        %v2075 = vadd.f32 %v2055, %v2074
        %2076 = vdwg.mxu0
        %2077 = vmatpush.msra.mxu0 %v1044
        %2078 = vmatpush.msra.mxu0 %v1028
        %2079 = vmatpush.msra.mxu0 %v1012
        %2080 = vmatpush.msra.mxu0 %v996
        %2081 = vmatpush.msra.mxu0 %v980
        %2082 = vmatpush.msra.mxu0 %v964
        %2083 = vmatpush.msra.mxu0 %v948
        %2084 = vmatpush.msra.mxu0 %v932
        %2085 = vmatpush.msra.mxu0 %v916
        %2086 = vmatpush.msra.mxu0 %v900
        %2087 = vmatpush.msra.mxu0 %v884
        %2088 = vmatpush.msra.mxu0 %v868
        %2089 = vmatpush.msra.mxu0 %v852
        %2090 = vmatpush.msra.mxu0 %v836
        %2091 = vmatpush.msra.mxu0 %v820
        %2092 = vmatpush.msra.mxu0 %v804
        %2093 = vmatmul.f32.gmra.mxu0 %v1311
        %v2094 = vpop.f32.mrf.mxu0
        %v2095 = vadd.f32 %v2075, %v2094
        %2096 = vdwg.mxu0
        %2097 = vmatpush.msra.mxu0 %v1300
        %2098 = vmatpush.msra.mxu0 %v1284
        %2099 = vmatpush.msra.mxu0 %v1268
        %2100 = vmatpush.msra.mxu0 %v1252
        %2101 = vmatpush.msra.mxu0 %v1236
        %2102 = vmatpush.msra.mxu0 %v1220
        %2103 = vmatpush.msra.mxu0 %v1204
        %2104 = vmatpush.msra.mxu0 %v1188
        %2105 = vmatpush.msra.mxu0 %v1172
        %2106 = vmatpush.msra.mxu0 %v1156
        %2107 = vmatpush.msra.mxu0 %v1140
        %2108 = vmatpush.msra.mxu0 %v1124
        %2109 = vmatpush.msra.mxu0 %v1108
        %2110 = vmatpush.msra.mxu0 %v1092
        %2111 = vmatpush.msra.mxu0 %v1076
        %2112 = vmatpush.msra.mxu0 %v1060
        %2113 = vmatmul.f32.gmra.mxu0 %v1312
        %v2114 = vpop.f32.mrf.mxu0
        %v2115 = vadd.f32 %v2095, %v2114
        %2116 = vdwg.mxu0
        %2117 = vmatpush.msra.mxu0 %v533
        %2118 = vmatpush.msra.mxu0 %v517
        %2119 = vmatpush.msra.mxu0 %v501
        %2120 = vmatpush.msra.mxu0 %v485
        %2121 = vmatpush.msra.mxu0 %v469
        %2122 = vmatpush.msra.mxu0 %v453
        %2123 = vmatpush.msra.mxu0 %v437
        %2124 = vmatpush.msra.mxu0 %v421
        %2125 = vmatpush.msra.mxu0 %v405
        %2126 = vmatpush.msra.mxu0 %v389
        %2127 = vmatpush.msra.mxu0 %v373
        %2128 = vmatpush.msra.mxu0 %v357
        %2129 = vmatpush.msra.mxu0 %v341
        %2130 = vmatpush.msra.mxu0 %v325
        %2131 = vmatpush.msra.mxu0 %v309
        %2132 = vmatpush.msra.mxu0 %v293
        %2133 = vmatmul.f32.gmra.mxu0 %v1309
        %v2134 = vpop.f32.mrf.mxu0
        %v2135 = vadd.f32 0.0, %v2134
        %2136 = vdwg.mxu0
        %2137 = vmatpush.msra.mxu0 %v789
        %2138 = vmatpush.msra.mxu0 %v773
        %2139 = vmatpush.msra.mxu0 %v757
        %2140 = vmatpush.msra.mxu0 %v741
        %2141 = vmatpush.msra.mxu0 %v725
        %2142 = vmatpush.msra.mxu0 %v709
        %2143 = vmatpush.msra.mxu0 %v693
        %2144 = vmatpush.msra.mxu0 %v677
        %2145 = vmatpush.msra.mxu0 %v661
        %2146 = vmatpush.msra.mxu0 %v645
        %2147 = vmatpush.msra.mxu0 %v629
        %2148 = vmatpush.msra.mxu0 %v613
        %2149 = vmatpush.msra.mxu0 %v597
        %2150 = vmatpush.msra.mxu0 %v581
        %2151 = vmatpush.msra.mxu0 %v565
        %2152 = vmatpush.msra.mxu0 %v549
        %2153 = vmatmul.f32.gmra.mxu0 %v1310
        %v2154 = vpop.f32.mrf.mxu0
        %v2155 = vadd.f32 %v2135, %v2154
        %2156 = vdwg.mxu0
        %2157 = vmatpush.msra.mxu0 %v1045
        %2158 = vmatpush.msra.mxu0 %v1029
        %2159 = vmatpush.msra.mxu0 %v1013
        %2160 = vmatpush.msra.mxu0 %v997
        %2161 = vmatpush.msra.mxu0 %v981
        %2162 = vmatpush.msra.mxu0 %v965
        %2163 = vmatpush.msra.mxu0 %v949
        %2164 = vmatpush.msra.mxu0 %v933
        %2165 = vmatpush.msra.mxu0 %v917
        %2166 = vmatpush.msra.mxu0 %v901
        %2167 = vmatpush.msra.mxu0 %v885
        %2168 = vmatpush.msra.mxu0 %v869
        %2169 = vmatpush.msra.mxu0 %v853
        %2170 = vmatpush.msra.mxu0 %v837
        %2171 = vmatpush.msra.mxu0 %v821
        %2172 = vmatpush.msra.mxu0 %v805
        %2173 = vmatmul.f32.gmra.mxu0 %v1311
        %v2174 = vpop.f32.mrf.mxu0
        %v2175 = vadd.f32 %v2155, %v2174
        %2176 = vdwg.mxu0
        %2177 = vmatpush.msra.mxu0 %v1301
        %2178 = vmatpush.msra.mxu0 %v1285
        %2179 = vmatpush.msra.mxu0 %v1269
        %2180 = vmatpush.msra.mxu0 %v1253
        %2181 = vmatpush.msra.mxu0 %v1237
        %2182 = vmatpush.msra.mxu0 %v1221
        %2183 = vmatpush.msra.mxu0 %v1205
        %2184 = vmatpush.msra.mxu0 %v1189
        %2185 = vmatpush.msra.mxu0 %v1173
        %2186 = vmatpush.msra.mxu0 %v1157
        %2187 = vmatpush.msra.mxu0 %v1141
        %2188 = vmatpush.msra.mxu0 %v1125
        %2189 = vmatpush.msra.mxu0 %v1109
        %2190 = vmatpush.msra.mxu0 %v1093
        %2191 = vmatpush.msra.mxu0 %v1077
        %2192 = vmatpush.msra.mxu0 %v1061
        %2193 = vmatmul.f32.gmra.mxu0 %v1312
        %v2194 = vpop.f32.mrf.mxu0
        %v2195 = vadd.f32 %v2175, %v2194
        %2196 = vdwg.mxu0
        %2197 = vmatpush.msra.mxu0 %v534
        %2198 = vmatpush.msra.mxu0 %v518
        %2199 = vmatpush.msra.mxu0 %v502
        %2200 = vmatpush.msra.mxu0 %v486
        %2201 = vmatpush.msra.mxu0 %v470
        %2202 = vmatpush.msra.mxu0 %v454
        %2203 = vmatpush.msra.mxu0 %v438
        %2204 = vmatpush.msra.mxu0 %v422
        %2205 = vmatpush.msra.mxu0 %v406
        %2206 = vmatpush.msra.mxu0 %v390
        %2207 = vmatpush.msra.mxu0 %v374
        %2208 = vmatpush.msra.mxu0 %v358
        %2209 = vmatpush.msra.mxu0 %v342
        %2210 = vmatpush.msra.mxu0 %v326
        %2211 = vmatpush.msra.mxu0 %v310
        %2212 = vmatpush.msra.mxu0 %v294
        %2213 = vmatmul.f32.gmra.mxu0 %v1309
        %v2214 = vpop.f32.mrf.mxu0
        %v2215 = vadd.f32 0.0, %v2214
        %2216 = vdwg.mxu0
        %2217 = vmatpush.msra.mxu0 %v790
        %2218 = vmatpush.msra.mxu0 %v774
        %2219 = vmatpush.msra.mxu0 %v758
        %2220 = vmatpush.msra.mxu0 %v742
        %2221 = vmatpush.msra.mxu0 %v726
        %2222 = vmatpush.msra.mxu0 %v710
        %2223 = vmatpush.msra.mxu0 %v694
        %2224 = vmatpush.msra.mxu0 %v678
        %2225 = vmatpush.msra.mxu0 %v662
        %2226 = vmatpush.msra.mxu0 %v646
        %2227 = vmatpush.msra.mxu0 %v630
        %2228 = vmatpush.msra.mxu0 %v614
        %2229 = vmatpush.msra.mxu0 %v598
        %2230 = vmatpush.msra.mxu0 %v582
        %2231 = vmatpush.msra.mxu0 %v566
        %2232 = vmatpush.msra.mxu0 %v550
        %2233 = vmatmul.f32.gmra.mxu0 %v1310
        %v2234 = vpop.f32.mrf.mxu0
        %v2235 = vadd.f32 %v2215, %v2234
        %2236 = vdwg.mxu0
        %2237 = vmatpush.msra.mxu0 %v1046
        %2238 = vmatpush.msra.mxu0 %v1030
        %2239 = vmatpush.msra.mxu0 %v1014
        %2240 = vmatpush.msra.mxu0 %v998
        %2241 = vmatpush.msra.mxu0 %v982
        %2242 = vmatpush.msra.mxu0 %v966
        %2243 = vmatpush.msra.mxu0 %v950
        %2244 = vmatpush.msra.mxu0 %v934
        %2245 = vmatpush.msra.mxu0 %v918
        %2246 = vmatpush.msra.mxu0 %v902
        %2247 = vmatpush.msra.mxu0 %v886
        %2248 = vmatpush.msra.mxu0 %v870
        %2249 = vmatpush.msra.mxu0 %v854
        %2250 = vmatpush.msra.mxu0 %v838
        %2251 = vmatpush.msra.mxu0 %v822
        %2252 = vmatpush.msra.mxu0 %v806
        %2253 = vmatmul.f32.gmra.mxu0 %v1311
        %v2254 = vpop.f32.mrf.mxu0
        %v2255 = vadd.f32 %v2235, %v2254
        %2256 = vdwg.mxu0
        %2257 = vmatpush.msra.mxu0 %v1302
        %2258 = vmatpush.msra.mxu0 %v1286
        %2259 = vmatpush.msra.mxu0 %v1270
        %2260 = vmatpush.msra.mxu0 %v1254
        %2261 = vmatpush.msra.mxu0 %v1238
        %2262 = vmatpush.msra.mxu0 %v1222
        %2263 = vmatpush.msra.mxu0 %v1206
        %2264 = vmatpush.msra.mxu0 %v1190
        %2265 = vmatpush.msra.mxu0 %v1174
        %2266 = vmatpush.msra.mxu0 %v1158
        %2267 = vmatpush.msra.mxu0 %v1142
        %2268 = vmatpush.msra.mxu0 %v1126
        %2269 = vmatpush.msra.mxu0 %v1110
        %2270 = vmatpush.msra.mxu0 %v1094
        %2271 = vmatpush.msra.mxu0 %v1078
        %2272 = vmatpush.msra.mxu0 %v1062
        %2273 = vmatmul.f32.gmra.mxu0 %v1312
        %v2274 = vpop.f32.mrf.mxu0
        %v2275 = vadd.f32 %v2255, %v2274
        %2276 = vdwg.mxu0
        %2277 = vmatpush.msra.mxu0 %v535
        %2278 = vmatpush.msra.mxu0 %v519
        %2279 = vmatpush.msra.mxu0 %v503
        %2280 = vmatpush.msra.mxu0 %v487
        %2281 = vmatpush.msra.mxu0 %v471
        %2282 = vmatpush.msra.mxu0 %v455
        %2283 = vmatpush.msra.mxu0 %v439
        %2284 = vmatpush.msra.mxu0 %v423
        %2285 = vmatpush.msra.mxu0 %v407
        %2286 = vmatpush.msra.mxu0 %v391
        %2287 = vmatpush.msra.mxu0 %v375
        %2288 = vmatpush.msra.mxu0 %v359
        %2289 = vmatpush.msra.mxu0 %v343
        %2290 = vmatpush.msra.mxu0 %v327
        %2291 = vmatpush.msra.mxu0 %v311
        %2292 = vmatpush.msra.mxu0 %v295
        %2293 = vmatmul.f32.gmra.mxu0 %v1309
        %v2294 = vpop.f32.mrf.mxu0
        %v2295 = vadd.f32 0.0, %v2294
        %2296 = vdwg.mxu0
        %2297 = vmatpush.msra.mxu0 %v791
        %2298 = vmatpush.msra.mxu0 %v775
        %2299 = vmatpush.msra.mxu0 %v759
        %2300 = vmatpush.msra.mxu0 %v743
        %2301 = vmatpush.msra.mxu0 %v727
        %2302 = vmatpush.msra.mxu0 %v711
        %2303 = vmatpush.msra.mxu0 %v695
        %2304 = vmatpush.msra.mxu0 %v679
        %2305 = vmatpush.msra.mxu0 %v663
        %2306 = vmatpush.msra.mxu0 %v647
        %2307 = vmatpush.msra.mxu0 %v631
        %2308 = vmatpush.msra.mxu0 %v615
        %2309 = vmatpush.msra.mxu0 %v599
        %2310 = vmatpush.msra.mxu0 %v583
        %2311 = vmatpush.msra.mxu0 %v567
        %2312 = vmatpush.msra.mxu0 %v551
        %2313 = vmatmul.f32.gmra.mxu0 %v1310
        %v2314 = vpop.f32.mrf.mxu0
        %v2315 = vadd.f32 %v2295, %v2314
        %2316 = vdwg.mxu0
        %2317 = vmatpush.msra.mxu0 %v1047
        %2318 = vmatpush.msra.mxu0 %v1031
        %2319 = vmatpush.msra.mxu0 %v1015
        %2320 = vmatpush.msra.mxu0 %v999
        %2321 = vmatpush.msra.mxu0 %v983
        %2322 = vmatpush.msra.mxu0 %v967
        %2323 = vmatpush.msra.mxu0 %v951
        %2324 = vmatpush.msra.mxu0 %v935
        %2325 = vmatpush.msra.mxu0 %v919
        %2326 = vmatpush.msra.mxu0 %v903
        %2327 = vmatpush.msra.mxu0 %v887
        %2328 = vmatpush.msra.mxu0 %v871
        %2329 = vmatpush.msra.mxu0 %v855
        %2330 = vmatpush.msra.mxu0 %v839
        %2331 = vmatpush.msra.mxu0 %v823
        %2332 = vmatpush.msra.mxu0 %v807
        %2333 = vmatmul.f32.gmra.mxu0 %v1311
        %v2334 = vpop.f32.mrf.mxu0
        %v2335 = vadd.f32 %v2315, %v2334
        %2336 = vdwg.mxu0
        %2337 = vmatpush.msra.mxu0 %v1303
        %2338 = vmatpush.msra.mxu0 %v1287
        %2339 = vmatpush.msra.mxu0 %v1271
        %2340 = vmatpush.msra.mxu0 %v1255
        %2341 = vmatpush.msra.mxu0 %v1239
        %2342 = vmatpush.msra.mxu0 %v1223
        %2343 = vmatpush.msra.mxu0 %v1207
        %2344 = vmatpush.msra.mxu0 %v1191
        %2345 = vmatpush.msra.mxu0 %v1175
        %2346 = vmatpush.msra.mxu0 %v1159
        %2347 = vmatpush.msra.mxu0 %v1143
        %2348 = vmatpush.msra.mxu0 %v1127
        %2349 = vmatpush.msra.mxu0 %v1111
        %2350 = vmatpush.msra.mxu0 %v1095
        %2351 = vmatpush.msra.mxu0 %v1079
        %2352 = vmatpush.msra.mxu0 %v1063
        %2353 = vmatmul.f32.gmra.mxu0 %v1312
        %v2354 = vpop.f32.mrf.mxu0
        %v2355 = vadd.f32 %v2335, %v2354
        %2356 = vdwg.mxu0
        %2357 = vmatpush.msra.mxu0 %v536
        %2358 = vmatpush.msra.mxu0 %v520
        %2359 = vmatpush.msra.mxu0 %v504
        %2360 = vmatpush.msra.mxu0 %v488
        %2361 = vmatpush.msra.mxu0 %v472
        %2362 = vmatpush.msra.mxu0 %v456
        %2363 = vmatpush.msra.mxu0 %v440
        %2364 = vmatpush.msra.mxu0 %v424
        %2365 = vmatpush.msra.mxu0 %v408
        %2366 = vmatpush.msra.mxu0 %v392
        %2367 = vmatpush.msra.mxu0 %v376
        %2368 = vmatpush.msra.mxu0 %v360
        %2369 = vmatpush.msra.mxu0 %v344
        %2370 = vmatpush.msra.mxu0 %v328
        %2371 = vmatpush.msra.mxu0 %v312
        %2372 = vmatpush.msra.mxu0 %v296
        %2373 = vmatmul.f32.gmra.mxu0 %v1309
        %v2374 = vpop.f32.mrf.mxu0
        %v2375 = vadd.f32 0.0, %v2374
        %2376 = vdwg.mxu0
        %2377 = vmatpush.msra.mxu0 %v792
        %2378 = vmatpush.msra.mxu0 %v776
        %2379 = vmatpush.msra.mxu0 %v760
        %2380 = vmatpush.msra.mxu0 %v744
        %2381 = vmatpush.msra.mxu0 %v728
        %2382 = vmatpush.msra.mxu0 %v712
        %2383 = vmatpush.msra.mxu0 %v696
        %2384 = vmatpush.msra.mxu0 %v680
        %2385 = vmatpush.msra.mxu0 %v664
        %2386 = vmatpush.msra.mxu0 %v648
        %2387 = vmatpush.msra.mxu0 %v632
        %2388 = vmatpush.msra.mxu0 %v616
        %2389 = vmatpush.msra.mxu0 %v600
        %2390 = vmatpush.msra.mxu0 %v584
        %2391 = vmatpush.msra.mxu0 %v568
        %2392 = vmatpush.msra.mxu0 %v552
        %2393 = vmatmul.f32.gmra.mxu0 %v1310
        %v2394 = vpop.f32.mrf.mxu0
        %v2395 = vadd.f32 %v2375, %v2394
        %2396 = vdwg.mxu0
        %2397 = vmatpush.msra.mxu0 %v1048
        %2398 = vmatpush.msra.mxu0 %v1032
        %2399 = vmatpush.msra.mxu0 %v1016
        %2400 = vmatpush.msra.mxu0 %v1000
        %2401 = vmatpush.msra.mxu0 %v984
        %2402 = vmatpush.msra.mxu0 %v968
        %2403 = vmatpush.msra.mxu0 %v952
        %2404 = vmatpush.msra.mxu0 %v936
        %2405 = vmatpush.msra.mxu0 %v920
        %2406 = vmatpush.msra.mxu0 %v904
        %2407 = vmatpush.msra.mxu0 %v888
        %2408 = vmatpush.msra.mxu0 %v872
        %2409 = vmatpush.msra.mxu0 %v856
        %2410 = vmatpush.msra.mxu0 %v840
        %2411 = vmatpush.msra.mxu0 %v824
        %2412 = vmatpush.msra.mxu0 %v808
        %2413 = vmatmul.f32.gmra.mxu0 %v1311
        %v2414 = vpop.f32.mrf.mxu0
        %v2415 = vadd.f32 %v2395, %v2414
        %2416 = vdwg.mxu0
        %2417 = vmatpush.msra.mxu0 %v1304
        %2418 = vmatpush.msra.mxu0 %v1288
        %2419 = vmatpush.msra.mxu0 %v1272
        %2420 = vmatpush.msra.mxu0 %v1256
        %2421 = vmatpush.msra.mxu0 %v1240
        %2422 = vmatpush.msra.mxu0 %v1224
        %2423 = vmatpush.msra.mxu0 %v1208
        %2424 = vmatpush.msra.mxu0 %v1192
        %2425 = vmatpush.msra.mxu0 %v1176
        %2426 = vmatpush.msra.mxu0 %v1160
        %2427 = vmatpush.msra.mxu0 %v1144
        %2428 = vmatpush.msra.mxu0 %v1128
        %2429 = vmatpush.msra.mxu0 %v1112
        %2430 = vmatpush.msra.mxu0 %v1096
        %2431 = vmatpush.msra.mxu0 %v1080
        %2432 = vmatpush.msra.mxu0 %v1064
        %2433 = vmatmul.f32.gmra.mxu0 %v1312
        %v2434 = vpop.f32.mrf.mxu0
        %v2435 = vadd.f32 %v2415, %v2434
        %2436 = vdwg.mxu0
        %2437 = vmatpush.msra.mxu0 %v537
        %2438 = vmatpush.msra.mxu0 %v521
        %2439 = vmatpush.msra.mxu0 %v505
        %2440 = vmatpush.msra.mxu0 %v489
        %2441 = vmatpush.msra.mxu0 %v473
        %2442 = vmatpush.msra.mxu0 %v457
        %2443 = vmatpush.msra.mxu0 %v441
        %2444 = vmatpush.msra.mxu0 %v425
        %2445 = vmatpush.msra.mxu0 %v409
        %2446 = vmatpush.msra.mxu0 %v393
        %2447 = vmatpush.msra.mxu0 %v377
        %2448 = vmatpush.msra.mxu0 %v361
        %2449 = vmatpush.msra.mxu0 %v345
        %2450 = vmatpush.msra.mxu0 %v329
        %2451 = vmatpush.msra.mxu0 %v313
        %2452 = vmatpush.msra.mxu0 %v297
        %2453 = vmatmul.f32.gmra.mxu0 %v1309
        %v2454 = vpop.f32.mrf.mxu0
        %v2455 = vadd.f32 0.0, %v2454
        %2456 = vdwg.mxu0
        %2457 = vmatpush.msra.mxu0 %v793
        %2458 = vmatpush.msra.mxu0 %v777
        %2459 = vmatpush.msra.mxu0 %v761
        %2460 = vmatpush.msra.mxu0 %v745
        %2461 = vmatpush.msra.mxu0 %v729
        %2462 = vmatpush.msra.mxu0 %v713
        %2463 = vmatpush.msra.mxu0 %v697
        %2464 = vmatpush.msra.mxu0 %v681
        %2465 = vmatpush.msra.mxu0 %v665
        %2466 = vmatpush.msra.mxu0 %v649
        %2467 = vmatpush.msra.mxu0 %v633
        %2468 = vmatpush.msra.mxu0 %v617
        %2469 = vmatpush.msra.mxu0 %v601
        %2470 = vmatpush.msra.mxu0 %v585
        %2471 = vmatpush.msra.mxu0 %v569
        %2472 = vmatpush.msra.mxu0 %v553
        %2473 = vmatmul.f32.gmra.mxu0 %v1310
        %v2474 = vpop.f32.mrf.mxu0
        %v2475 = vadd.f32 %v2455, %v2474
        %2476 = vdwg.mxu0
        %2477 = vmatpush.msra.mxu0 %v1049
        %2478 = vmatpush.msra.mxu0 %v1033
        %2479 = vmatpush.msra.mxu0 %v1017
        %2480 = vmatpush.msra.mxu0 %v1001
        %2481 = vmatpush.msra.mxu0 %v985
        %2482 = vmatpush.msra.mxu0 %v969
        %2483 = vmatpush.msra.mxu0 %v953
        %2484 = vmatpush.msra.mxu0 %v937
        %2485 = vmatpush.msra.mxu0 %v921
        %2486 = vmatpush.msra.mxu0 %v905
        %2487 = vmatpush.msra.mxu0 %v889
        %2488 = vmatpush.msra.mxu0 %v873
        %2489 = vmatpush.msra.mxu0 %v857
        %2490 = vmatpush.msra.mxu0 %v841
        %2491 = vmatpush.msra.mxu0 %v825
        %2492 = vmatpush.msra.mxu0 %v809
        %2493 = vmatmul.f32.gmra.mxu0 %v1311
        %v2494 = vpop.f32.mrf.mxu0
        %v2495 = vadd.f32 %v2475, %v2494
        %2496 = vdwg.mxu0
        %2497 = vmatpush.msra.mxu0 %v1305
        %2498 = vmatpush.msra.mxu0 %v1289
        %2499 = vmatpush.msra.mxu0 %v1273
        %2500 = vmatpush.msra.mxu0 %v1257
        %2501 = vmatpush.msra.mxu0 %v1241
        %2502 = vmatpush.msra.mxu0 %v1225
        %2503 = vmatpush.msra.mxu0 %v1209
        %2504 = vmatpush.msra.mxu0 %v1193
        %2505 = vmatpush.msra.mxu0 %v1177
        %2506 = vmatpush.msra.mxu0 %v1161
        %2507 = vmatpush.msra.mxu0 %v1145
        %2508 = vmatpush.msra.mxu0 %v1129
        %2509 = vmatpush.msra.mxu0 %v1113
        %2510 = vmatpush.msra.mxu0 %v1097
        %2511 = vmatpush.msra.mxu0 %v1081
        %2512 = vmatpush.msra.mxu0 %v1065
        %2513 = vmatmul.f32.gmra.mxu0 %v1312
        %v2514 = vpop.f32.mrf.mxu0
        %v2515 = vadd.f32 %v2495, %v2514
        %2516 = vdwg.mxu0
        %2517 = vmatpush.msra.mxu0 %v538
        %2518 = vmatpush.msra.mxu0 %v522
        %2519 = vmatpush.msra.mxu0 %v506
        %2520 = vmatpush.msra.mxu0 %v490
        %2521 = vmatpush.msra.mxu0 %v474
        %2522 = vmatpush.msra.mxu0 %v458
        %2523 = vmatpush.msra.mxu0 %v442
        %2524 = vmatpush.msra.mxu0 %v426
        %2525 = vmatpush.msra.mxu0 %v410
        %2526 = vmatpush.msra.mxu0 %v394
        %2527 = vmatpush.msra.mxu0 %v378
        %2528 = vmatpush.msra.mxu0 %v362
        %2529 = vmatpush.msra.mxu0 %v346
        %2530 = vmatpush.msra.mxu0 %v330
        %2531 = vmatpush.msra.mxu0 %v314
        %2532 = vmatpush.msra.mxu0 %v298
        %2533 = vmatmul.f32.gmra.mxu0 %v1309
        %v2534 = vpop.f32.mrf.mxu0
        %v2535 = vadd.f32 0.0, %v2534
        %2536 = vdwg.mxu0
        %2537 = vmatpush.msra.mxu0 %v794
        %2538 = vmatpush.msra.mxu0 %v778
        %2539 = vmatpush.msra.mxu0 %v762
        %2540 = vmatpush.msra.mxu0 %v746
        %2541 = vmatpush.msra.mxu0 %v730
        %2542 = vmatpush.msra.mxu0 %v714
        %2543 = vmatpush.msra.mxu0 %v698
        %2544 = vmatpush.msra.mxu0 %v682
        %2545 = vmatpush.msra.mxu0 %v666
        %2546 = vmatpush.msra.mxu0 %v650
        %2547 = vmatpush.msra.mxu0 %v634
        %2548 = vmatpush.msra.mxu0 %v618
        %2549 = vmatpush.msra.mxu0 %v602
        %2550 = vmatpush.msra.mxu0 %v586
        %2551 = vmatpush.msra.mxu0 %v570
        %2552 = vmatpush.msra.mxu0 %v554
        %2553 = vmatmul.f32.gmra.mxu0 %v1310
        %v2554 = vpop.f32.mrf.mxu0
        %v2555 = vadd.f32 %v2535, %v2554
        %2556 = vdwg.mxu0
        %2557 = vmatpush.msra.mxu0 %v1050
        %2558 = vmatpush.msra.mxu0 %v1034
        %2559 = vmatpush.msra.mxu0 %v1018
        %2560 = vmatpush.msra.mxu0 %v1002
        %2561 = vmatpush.msra.mxu0 %v986
        %2562 = vmatpush.msra.mxu0 %v970
        %2563 = vmatpush.msra.mxu0 %v954
        %2564 = vmatpush.msra.mxu0 %v938
        %2565 = vmatpush.msra.mxu0 %v922
        %2566 = vmatpush.msra.mxu0 %v906
        %2567 = vmatpush.msra.mxu0 %v890
        %2568 = vmatpush.msra.mxu0 %v874
        %2569 = vmatpush.msra.mxu0 %v858
        %2570 = vmatpush.msra.mxu0 %v842
        %2571 = vmatpush.msra.mxu0 %v826
        %2572 = vmatpush.msra.mxu0 %v810
        %2573 = vmatmul.f32.gmra.mxu0 %v1311
        %v2574 = vpop.f32.mrf.mxu0
        %v2575 = vadd.f32 %v2555, %v2574
        %2576 = vdwg.mxu0
        %2577 = vmatpush.msra.mxu0 %v1306
        %2578 = vmatpush.msra.mxu0 %v1290
        %2579 = vmatpush.msra.mxu0 %v1274
        %2580 = vmatpush.msra.mxu0 %v1258
        %2581 = vmatpush.msra.mxu0 %v1242
        %2582 = vmatpush.msra.mxu0 %v1226
        %2583 = vmatpush.msra.mxu0 %v1210
        %2584 = vmatpush.msra.mxu0 %v1194
        %2585 = vmatpush.msra.mxu0 %v1178
        %2586 = vmatpush.msra.mxu0 %v1162
        %2587 = vmatpush.msra.mxu0 %v1146
        %2588 = vmatpush.msra.mxu0 %v1130
        %2589 = vmatpush.msra.mxu0 %v1114
        %2590 = vmatpush.msra.mxu0 %v1098
        %2591 = vmatpush.msra.mxu0 %v1082
        %2592 = vmatpush.msra.mxu0 %v1066
        %2593 = vmatmul.f32.gmra.mxu0 %v1312
        %v2594 = vpop.f32.mrf.mxu0
        %v2595 = vadd.f32 %v2575, %v2594
        %2596 = vdwg.mxu0
        %v2613 = vrot.slane %v1475, 6
        %v2614 = vrot.slane %v1555, 4
        %v2615 = vrot.slane %v1635, 2
        %v2616 = vrot.slane %v1795, 6
        %v2617 = vrot.slane %v1875, 4
        %v2618 = vrot.slane %v1955, 2
        %v2619 = vrot.slane %v2115, 6
        %v2620 = vrot.slane %v2195, 4
        %v2621 = vrot.slane %v2275, 2
        %v2622 = vrot.slane %v2435, 6
        %v2623 = vrot.slane %v2515, 4
        %v2624 = vrot.slane %v2595, 2
        %vm2625 = vcmask 1041408
        %v2626 = vsel %vm2625, %v1395, %v2613
        %vm2627 = vcmask 1045508
        %v2628 = vsel %vm2627, %v2614, %v2615
        %vm2629 = vcmask 1043456
        %v2630 = vsel %vm2629, %v2626, %v2628
        %v2631 = vsel %vm2625, %v1715, %v2616
        %v2632 = vsel %vm2627, %v2617, %v2618
        %v2633 = vsel %vm2629, %v2631, %v2632
        %v2634 = vsel %vm2625, %v2035, %v2619
        %v2635 = vsel %vm2627, %v2620, %v2621
        %v2636 = vsel %vm2629, %v2634, %v2635
        %v2637 = vsel %vm2625, %v2355, %v2622
        %v2638 = vsel %vm2627, %v2623, %v2624
        %v2639 = vsel %vm2629, %v2637, %v2638
        %v2644 = vadd.f32 %v278, %v2630
        %v2645 = vadd.f32 %v279, %v2633
        %v2646 = vadd.f32 %v280, %v2636
        %v2647 = vadd.f32 %v281, %v2639
        %v2648 = vld [vmem:[#allocation3] sm:$0xff]
        %v2649 = vxor.u32 %v2644, 2147483648
        %v2650 = vmul.f32 %v2649, 1.442695
        %v2651 = vpow.pop %v2650
        %v2652 = vadd.f32 %v2651, 1.0
        %v2653 = vrcp.pop %v2652
        %v2654 = vmul.f32 %v2652, %v2653
        %v2655 = vsub.f32 1.0, %v2654
        %v2656 = vmul.f32 %v2653, %v2655
        %v2657 = vadd.f32 %v2653, %v2656
        %vm2658 = vweird.f32 %v2652
        %vm2659 = vweird.f32 %v2653
        %vm2660 = vmor %vm2658, %vm2659
        %v2661 = vsel %vm2660, %v2653, %v2657
        %v2662 = vand.u32 2147483647, %v2652
        %vm2663 = vcmp.eq.f32.partialorder %v2662, 8.507059e+37
        %v2664 = vand.u32 %v2652, 2147483648
        %v2665 = vor.u32 1.1754944e-38, %v2664
        %v2666 = vsel %vm2663, %v2665, %v2661
        %v2667 = vmul.f32 1.0, %v2666
        %v2668 = vxor.u32 %v2645, 2147483648
        %v2669 = vmul.f32 %v2668, 1.442695
        %v2670 = vpow.pop %v2669
        %v2671 = vadd.f32 %v2670, 1.0
        %v2672 = vrcp.pop %v2671
        %v2673 = vmul.f32 %v2671, %v2672
        %v2674 = vsub.f32 1.0, %v2673
        %v2675 = vmul.f32 %v2672, %v2674
        %v2676 = vadd.f32 %v2672, %v2675
        %vm2677 = vweird.f32 %v2671
        %vm2678 = vweird.f32 %v2672
        %vm2679 = vmor %vm2677, %vm2678
        %v2680 = vsel %vm2679, %v2672, %v2676
        %v2681 = vand.u32 2147483647, %v2671
        %vm2682 = vcmp.eq.f32.partialorder %v2681, 8.507059e+37
        %v2683 = vand.u32 %v2671, 2147483648
        %v2684 = vor.u32 1.1754944e-38, %v2683
        %v2685 = vsel %vm2682, %v2684, %v2680
        %v2686 = vmul.f32 1.0, %v2685
        %v2687 = vtanh.pop %v2646
        %v2688 = vxor.u32 %v2647, 2147483648
        %v2689 = vmul.f32 %v2688, 1.442695
        %v2690 = vpow.pop %v2689
        %v2691 = vadd.f32 %v2690, 1.0
        %v2692 = vrcp.pop %v2691
        %v2693 = vmul.f32 %v2691, %v2692
        %v2694 = vsub.f32 1.0, %v2693
        %v2695 = vmul.f32 %v2692, %v2694
        %v2696 = vadd.f32 %v2692, %v2695
        %vm2697 = vweird.f32 %v2691
        %vm2698 = vweird.f32 %v2692
        %vm2699 = vmor %vm2697, %vm2698
        %v2700 = vsel %vm2699, %v2692, %v2696
        %v2701 = vand.u32 2147483647, %v2691
        %vm2702 = vcmp.eq.f32.partialorder %v2701, 8.507059e+37
        %v2703 = vand.u32 %v2691, 2147483648
        %v2704 = vor.u32 1.1754944e-38, %v2703
        %v2705 = vsel %vm2702, %v2704, %v2700
        %v2706 = vmul.f32 1.0, %v2705
        %v2707 = vmul.f32 %v2686, %v2648
        %v2708 = vmul.f32 %v2667, %v2687
        %v2709 = vadd.f32 %v2707, %v2708
        %v2710 = vtanh.pop %v2709
        %v2711 = vmul.f32 %v2706, %v2710
        %2712 = vst [vmem:[#allocation2] sm:$0xff] %v2711
        %2713 = vst [vmem:[#allocation3] sm:$0xff] %v2709
        %v2714 = vld [vmem:[#allocation7] sm:$0xff]
        %v2715 = vld [vmem:[#allocation7 + $0x8] sm:$0xff]
        %v2716 = vld [vmem:[#allocation7 + $0x10] sm:$0xff]
        %v2717 = vld [vmem:[#allocation7 + $0x18] sm:$0xff]
        %v2718 = vld [vmem:[#allocation7 + $0x20] sm:$0xff]
        %v2719 = vld [vmem:[#allocation7 + $0x28] sm:$0xff]
        %v2720 = vld [vmem:[#allocation7 + $0x30] sm:$0xff]
        %v2721 = vld [vmem:[#allocation7 + $0x38] sm:$0xff]
        %v2722 = vld [vmem:[#allocation7 + $0x40] sm:$0xff]
        %v2723 = vld [vmem:[#allocation7 + $0x48] sm:$0xff]
        %v2724 = vld [vmem:[#allocation7 + $0x50] sm:$0xff]
        %v2725 = vld [vmem:[#allocation7 + $0x58] sm:$0xff]
        %v2726 = vld [vmem:[#allocation7 + $0x60] sm:$0xff]
        %v2727 = vld [vmem:[#allocation7 + $0x68] sm:$0xff]
        %v2728 = vld [vmem:[#allocation7 + $0x70] sm:$0xff]
        %v2729 = vld [vmem:[#allocation7 + $0x78] sm:$0xff]
        %v2730 = vld [vmem:[#allocation7 + $0x80] sm:$0xff]
        %v2731 = vld [vmem:[#allocation7 + $0x88] sm:$0xff]
        %v2732 = vld [vmem:[#allocation7 + $0x90] sm:$0xff]
        %v2733 = vld [vmem:[#allocation7 + $0x98] sm:$0xff]
        %v2734 = vld [vmem:[#allocation7 + $0xa0] sm:$0xff]
        %v2735 = vld [vmem:[#allocation7 + $0xa8] sm:$0xff]
        %v2736 = vld [vmem:[#allocation7 + $0xb0] sm:$0xff]
        %v2737 = vld [vmem:[#allocation7 + $0xb8] sm:$0xff]
        %v2738 = vld [vmem:[#allocation7 + $0xc0] sm:$0xff]
        %v2739 = vld [vmem:[#allocation7 + $0xc8] sm:$0xff]
        %v2740 = vld [vmem:[#allocation7 + $0xd0] sm:$0xff]
        %v2741 = vld [vmem:[#allocation7 + $0xd8] sm:$0xff]
        %v2742 = vld [vmem:[#allocation7 + $0xe0] sm:$0xff]
        %v2743 = vld [vmem:[#allocation7 + $0xe8] sm:$0xff]
        %v2744 = vld [vmem:[#allocation7 + $0xf0] sm:$0xff]
        %v2745 = vld [vmem:[#allocation7 + $0xf8] sm:$0xff]
        %v2746 = vld [vmem:[#allocation7 + $0x100] sm:$0xff]
        %v2747 = vld [vmem:[#allocation7 + $0x108] sm:$0xff]
        %v2748 = vld [vmem:[#allocation7 + $0x110] sm:$0xff]
        %v2749 = vld [vmem:[#allocation7 + $0x118] sm:$0xff]
        %v2750 = vld [vmem:[#allocation7 + $0x120] sm:$0xff]
        %v2751 = vld [vmem:[#allocation7 + $0x128] sm:$0xff]
        %v2752 = vld [vmem:[#allocation7 + $0x130] sm:$0xff]
        %v2753 = vld [vmem:[#allocation7 + $0x138] sm:$0xff]
        %v2754 = vld [vmem:[#allocation7 + $0x140] sm:$0xff]
        %v2755 = vld [vmem:[#allocation7 + $0x148] sm:$0xff]
        %v2756 = vld [vmem:[#allocation7 + $0x150] sm:$0xff]
        %v2757 = vld [vmem:[#allocation7 + $0x158] sm:$0xff]
        %v2758 = vld [vmem:[#allocation7 + $0x160] sm:$0xff]
        %v2759 = vld [vmem:[#allocation7 + $0x168] sm:$0xff]
        %v2760 = vld [vmem:[#allocation7 + $0x170] sm:$0xff]
        %v2761 = vld [vmem:[#allocation7 + $0x178] sm:$0xff]
        %v2762 = vld [vmem:[#allocation7 + $0x180] sm:$0xff]
        %v2763 = vld [vmem:[#allocation7 + $0x188] sm:$0xff]
        %v2764 = vld [vmem:[#allocation7 + $0x190] sm:$0xff]
        %v2765 = vld [vmem:[#allocation7 + $0x198] sm:$0xff]
        %v2766 = vld [vmem:[#allocation7 + $0x1a0] sm:$0xff]
        %v2767 = vld [vmem:[#allocation7 + $0x1a8] sm:$0xff]
        %v2768 = vld [vmem:[#allocation7 + $0x1b0] sm:$0xff]
        %v2769 = vld [vmem:[#allocation7 + $0x1b8] sm:$0xff]
        %v2770 = vld [vmem:[#allocation7 + $0x1c0] sm:$0xff]
        %v2771 = vld [vmem:[#allocation7 + $0x1c8] sm:$0xff]
        %v2772 = vld [vmem:[#allocation7 + $0x1d0] sm:$0xff]
        %v2773 = vld [vmem:[#allocation7 + $0x1d8] sm:$0xff]
        %v2774 = vld [vmem:[#allocation7 + $0x1e0] sm:$0xff]
        %v2775 = vld [vmem:[#allocation7 + $0x1e8] sm:$0xff]
        %v2776 = vld [vmem:[#allocation7 + $0x1f0] sm:$0xff]
        %v2777 = vld [vmem:[#allocation7 + $0x1f8] sm:$0xff]
        %v2778 = vld [vmem:[#allocation9] sm:$0x1]
        %v2780 = vperm.slane %v2778, 0
        %2783 = vst [vmem:[#allocation1] ss:$4 sm:$0xff] %v2711
        %v2784 = vld.sshfl [vmem:[#allocation1] sm:$0xff pattern:$0x73625140]
        %v2785 = vld.sshfl [vmem:[#allocation1 + $0x8] sm:$0xff pattern:$0x73625140]
        %v2786 = vld.sshfl [vmem:[#allocation1 + $0x10] sm:$0xff pattern:$0x73625140]
        %v2787 = vld.sshfl [vmem:[#allocation1 + $0x18] sm:$0xff pattern:$0x73625140]
        %2792 = vmatpush.msra.mxu0 %v2729
        %2793 = vmatpush.msra.mxu0 %v2728
        %2794 = vmatpush.msra.mxu0 %v2727
        %2795 = vmatpush.msra.mxu0 %v2726
        %2796 = vmatpush.msra.mxu0 %v2725
        %2797 = vmatpush.msra.mxu0 %v2724
        %2798 = vmatpush.msra.mxu0 %v2723
        %2799 = vmatpush.msra.mxu0 %v2722
        %2800 = vmatpush.msra.mxu0 %v2721
        %2801 = vmatpush.msra.mxu0 %v2720
        %2802 = vmatpush.msra.mxu0 %v2719
        %2803 = vmatpush.msra.mxu0 %v2718
        %2804 = vmatpush.msra.mxu0 %v2717
        %2805 = vmatpush.msra.mxu0 %v2716
        %2806 = vmatpush.msra.mxu0 %v2715
        %2807 = vmatpush.msra.mxu0 %v2714
        %2808 = vmatmul.f32.gmra.mxu0 %v2784
        %v2809 = vpop.f32.mrf.mxu0
        %v2810 = vadd.f32 %v2780, %v2809
        %2811 = vdwg.mxu0
        %2812 = vmatpush.msra.mxu0 %v2745
        %2813 = vmatpush.msra.mxu0 %v2744
        %2814 = vmatpush.msra.mxu0 %v2743
        %2815 = vmatpush.msra.mxu0 %v2742
        %2816 = vmatpush.msra.mxu0 %v2741
        %2817 = vmatpush.msra.mxu0 %v2740
        %2818 = vmatpush.msra.mxu0 %v2739
        %2819 = vmatpush.msra.mxu0 %v2738
        %2820 = vmatpush.msra.mxu0 %v2737
        %2821 = vmatpush.msra.mxu0 %v2736
        %2822 = vmatpush.msra.mxu0 %v2735
        %2823 = vmatpush.msra.mxu0 %v2734
        %2824 = vmatpush.msra.mxu0 %v2733
        %2825 = vmatpush.msra.mxu0 %v2732
        %2826 = vmatpush.msra.mxu0 %v2731
        %2827 = vmatpush.msra.mxu0 %v2730
        %2828 = vmatmul.f32.gmra.mxu0 %v2785
        %v2829 = vpop.f32.mrf.mxu0
        %v2830 = vadd.f32 %v2810, %v2829
        %2831 = vdwg.mxu0
        %2832 = vmatpush.msra.mxu0 %v2761
        %2833 = vmatpush.msra.mxu0 %v2760
        %2834 = vmatpush.msra.mxu0 %v2759
        %2835 = vmatpush.msra.mxu0 %v2758
        %2836 = vmatpush.msra.mxu0 %v2757
        %2837 = vmatpush.msra.mxu0 %v2756
        %2838 = vmatpush.msra.mxu0 %v2755
        %2839 = vmatpush.msra.mxu0 %v2754
        %2840 = vmatpush.msra.mxu0 %v2753
        %2841 = vmatpush.msra.mxu0 %v2752
        %2842 = vmatpush.msra.mxu0 %v2751
        %2843 = vmatpush.msra.mxu0 %v2750
        %2844 = vmatpush.msra.mxu0 %v2749
        %2845 = vmatpush.msra.mxu0 %v2748
        %2846 = vmatpush.msra.mxu0 %v2747
        %2847 = vmatpush.msra.mxu0 %v2746
        %2848 = vmatmul.f32.gmra.mxu0 %v2786
        %v2849 = vpop.f32.mrf.mxu0
        %v2850 = vadd.f32 %v2830, %v2849
        %2851 = vdwg.mxu0
        %2852 = vmatpush.msra.mxu0 %v2777
        %2853 = vmatpush.msra.mxu0 %v2776
        %2854 = vmatpush.msra.mxu0 %v2775
        %2855 = vmatpush.msra.mxu0 %v2774
        %2856 = vmatpush.msra.mxu0 %v2773
        %2857 = vmatpush.msra.mxu0 %v2772
        %2858 = vmatpush.msra.mxu0 %v2771
        %2859 = vmatpush.msra.mxu0 %v2770
        %2860 = vmatpush.msra.mxu0 %v2769
        %2861 = vmatpush.msra.mxu0 %v2768
        %2862 = vmatpush.msra.mxu0 %v2767
        %2863 = vmatpush.msra.mxu0 %v2766
        %2864 = vmatpush.msra.mxu0 %v2765
        %2865 = vmatpush.msra.mxu0 %v2764
        %2866 = vmatpush.msra.mxu0 %v2763
        %2867 = vmatpush.msra.mxu0 %v2762
        %2868 = vmatmul.f32.gmra.mxu0 %v2787
        %v2869 = vpop.f32.mrf.mxu0
        %v2870 = vadd.f32 %v2850, %v2869
        %2871 = vdwg.mxu0
        %2872 = vst [vmem:[%s265] sm:$0x3] %v2870
        %s2873 = sand.u32 %s139, 1
        %s2874 = scalar_lea.sflag [#allocation6], %s2873
        %s2875 = sand.u32 %s139, 1
        %s2876 = smul.addr %s2875, 2
        %s2877 = scalar_lea.vmem [#allocation10], %s2876
        // Predicated region
        $region57: #{decoder_forward_train.9} parent=39 // pred_check
          %p2878 = pneg %p149
        $region58: #{decoder_forward_train.9} parent=39 // pred_check_branch
          %2880 = sbr.rel (%p2878) target = $region60
        $region59: #{decoder_forward_train.9} parent=39 // pred_region
          %2882 = vsyncadd %s2874, 0
          %s2883 = smul.addr %s21, 2
          %s2884 = scalar_lea.hbm %s5, %s2883
          %s2886 = sshll.u32 %s2877, 4
          %s2887 = int_to_ptr.vmem [resolvable:$true] %s2886
          %s2888 = sshll.u32 %s2884, 4
          %s2889 = int_to_ptr.hbm [resolvable:$true] %s2888
          %2891 = dma.vmem_to_hbm [thread:$0]  %s2887, 32, %s2889, %s2874
        $region60: #{decoder_forward_train.9} parent=39 // pred_fallthru
          _
      $region40: #{decoder_forward_train.9} parent=5 // pred_fallthru
        _
      %p2892 = scmp.le.s32.totalorder 2, %s16
      // Predicated region
      $region61: #{decoder_forward_train.9} parent=5 // pred_check
        %p2893 = pneg %p2892
      $region62: #{decoder_forward_train.9} parent=5 // pred_check_branch
        %2895 = sbr.rel (%p2893) target = $region64
      $region63: #{decoder_forward_train.9} parent=5 // pred_region
        %s2896 = ssub.s32 %s16, 2
        // Predicated region
        $region65: #{decoder_forward_train.9} parent=63 // pred_check
          %p2897 = pneg %p155
        $region66: #{decoder_forward_train.9} parent=63 // pred_check_branch
          %2899 = sbr.rel (%p2897) target = $region68
        $region67: #{decoder_forward_train.9} parent=63 // pred_region
          %s2900 = sand.u32 %s140, 1
          %s2901 = scalar_lea.sflag [#allocation6], %s2900
          %s2902 = sand.u32 %s140, 1
          %s2903 = smul.addr %s2902, 2
          %s2904 = scalar_lea.vmem [#allocation10], %s2903
          %2906 = dma.done %s2901, 32
        $region68: #{decoder_forward_train.9} parent=63 // pred_fallthru
          _
      $region64: #{decoder_forward_train.9} parent=5 // pred_fallthru
        _
    $region6: #{decoder_forward_train.9} parent=1 // loop_footer
      %s20 = sadd.s32 1, %s16
    $region7: #{decoder_forward_train.9} parent=1 // loop_footer_branch
      %15 = sbr.rel target = $region3
    $region8: #{decoder_forward_train.9} parent=1 // loop_exit
      _
    %2907 = vsyncpa [#allocation5], 1
    %s2908 = scalar_lea.sflag [#allocation5], 1
    %2909 = vsyncpa %s2908, 1
    %2910 = vsyncpa [#allocation8], 1
    %2911 = vsyncpa [#allocation6], 1
    %s2912 = scalar_lea.sflag [#allocation6], 1
    %2913 = vsyncpa %s2912, 1

</llo_original>
